<compile_context>
chip_gen: v5e
topology: v5e:2x2
jax: 0.10.0
libtpu: 0.0.40
codegen_flags: <defaults>
</compile_context>

<pallas_src>
import functools
from functools import reduce

import jax
import jax.numpy as jnp
from jax.experimental import pallas as pl
from jax.experimental.pallas import tpu as pltpu

BN_EPS = 1e-5
LANES = 128


def _round_up(x, m):
    return (x + m - 1) // m * m


# ----------------------------- Pallas kernels ------------------------------

def _conv_bn_relu_pool_kernel(x_ref, w_ref, scale_ref, bias_ref, o_ref, *,
                              H, Wp, Wh, cpo):
    """One image: Conv3x3(pad=1) + folded BN + ReLU + MaxPool2d(2,2), fully fused.

    x_ref:     ((H+3)*Wp, 2*cpi) bf16  zero-padded, column-pair packed, row-flattened image
    w_ref:     (9, 2*cpi, 2*cpo) bf16  per-(dy, pair-offset) tap weights in pair layout
    scale_ref: (1, 2*cpo) f32,  bias_ref: (1, 2*cpo) f32   (conv bias + BN folded)
    o_ref:     ((H//2)*Wh, cpo)  bf16  pooled output, row-major (row, col), lane-dense
    """
    L = H * Wp
    acc = jnp.zeros((L, 2 * cpo), jnp.float32)
    # In-kernel im2col: 9 accumulated MXU matmuls over contiguous row slices of the
    # flattened padded image (input is read from HBM exactly once).
    for dy in range(3):
        for dp in range(3):
            patch = x_ref[pl.ds(dy * Wp + dp, L), :]
            acc = acc + jnp.dot(patch, w_ref[dy * 3 + dp],
                                preferred_element_type=jnp.float32)
    # BN + ReLU epilogue in f32 (single pass, single narrowing store later).
    y = jnp.maximum(acc * scale_ref[...] + bias_ref[...], 0.0)
    # 2x2 max-pool fused into the epilogue:
    #   width  direction: even/odd output columns live in the two 128-lane halves.
    #   height direction: max of row pairs via static slices of the flat row axis.
    zw = jnp.maximum(y[:, :cpo], y[:, cpo:])
    for r in range(H // 2):
        top = zw[2 * r * Wp: 2 * r * Wp + Wh, :]
        bot = zw[(2 * r + 1) * Wp: (2 * r + 1) * Wp + Wh, :]
        o_ref[r * Wh:(r + 1) * Wh, :] = jnp.maximum(top, bot).astype(o_ref.dtype)


def _mlp_fused_kernel(*refs, num_layers):
    """All MLP layers (Linear + BN1d + ReLU) fused into one kernel."""
    x_ref, o_ref = refs[0], refs[-1]
    h = x_ref[...]
    for l in range(num_layers):
        w_ref = refs[1 + 2 * l]
        sb_ref = refs[2 + 2 * l]                       # (2, Fp): row0 = scale, row1 = bias
        z = jnp.dot(h, w_ref[...], preferred_element_type=jnp.float32)
        z = jnp.maximum(z * sb_ref[0:1, :] + sb_ref[1:2, :], 0.0)
        h = z if l == num_layers - 1 else z.astype(jnp.bfloat16)
    o_ref[...] = h.astype(o_ref.dtype)


# ----------------------------- kernel wrappers ------------------------------

def _to_pair_layout(x_nhwc):
    """(N, H, W, cp) channel-padded NHWC -> (N, (H+3)*Wp, 2*cp) flattened pair layout."""
    N, H, W, cp = x_nhwc.shape
    assert H % 2 == 0 and W % 2 == 0, "MaxPool2d(2,2) path assumes even H, W"
    xp = jnp.pad(x_nhwc, ((0, 0), (1, 2), (2, 2), (0, 0)))   # rows: 1 top + 2 bottom, cols: 2 + 2
    Wp = (W + 4) // 2
    return xp.reshape(N, (H + 3) * Wp, 2 * cp), Wp


def conv_block(x_nhwc, layer):
    """_conv2d_block (Conv3x3 pad=1 + BN2d + ReLU + Dropout2d[eval]) + MaxPool2d(2,2)."""
    wp, scale2, bias2 = layer
    N, H, W, cp_in = x_nhwc.shape
    cpi = wp.shape[1] // 2
    cpo = wp.shape[2] // 2
    assert cp_in == cpi
    Wh = W // 2
    x_flat, Wp = _to_pair_layout(x_nhwc)
    x_flat = x_flat.astype(jnp.bfloat16)
    P = (H + 3) * Wp
    kernel = functools.partial(_conv_bn_relu_pool_kernel, H=H, Wp=Wp, Wh=Wh, cpo=cpo)
    # TODO(synk): Dropout2d is identity here (eval-mode); train-mode channel dropout would
    # need an RNG mask which is not part of the deterministic forward.
    y = pl.pallas_call(
        kernel,
        grid=(N,),                                     # pipelined over images
        in_specs=[
            pl.BlockSpec((None, P, 2 * cpi), lambda n: (n, 0, 0)),
            pl.BlockSpec((9, 2 * cpi, 2 * cpo), lambda n: (0, 0, 0)),   # weights stay resident
            pl.BlockSpec((1, 2 * cpo), lambda n: (0, 0)),
            pl.BlockSpec((1, 2 * cpo), lambda n: (0, 0)),
        ],
        out_specs=pl.BlockSpec((None, (H // 2) * Wh, cpo), lambda n: (n, 0, 0)),
        out_shape=jax.ShapeDtypeStruct((N, (H // 2) * Wh, cpo), jnp.bfloat16),
        compiler_params=pltpu.CompilerParams(dimension_semantics=("parallel",)),
    )(x_flat, wp, scale2, bias2)
    return y.reshape(N, H // 2, W // 2, cpo)           # free reshape (contiguous)


def mlp_fused(feats, mlp_params):
    """Single pallas_call running every Linear+BN1d+ReLU layer, tiled over the batch."""
    Np, K1 = feats.shape
    num_layers = len(mlp_params)
    TM = min(Np, 512)
    assert Np % TM == 0
    fout_p = mlp_params[-1][0].shape[1]
    in_specs = [pl.BlockSpec((TM, K1), lambda i: (i, 0))]
    args = [feats]
    for w, sb in mlp_params:
        in_specs.append(pl.BlockSpec(w.shape, lambda i: (0, 0)))
        in_specs.append(pl.BlockSpec(sb.shape, lambda i: (0, 0)))
        args.extend([w, sb])
    kernel = functools.partial(_mlp_fused_kernel, num_layers=num_layers)
    return pl.pallas_call(
        kernel,
        grid=(Np // TM,),
        in_specs=in_specs,
        out_specs=pl.BlockSpec((TM, fout_p), lambda i: (i, 0)),
        out_shape=jax.ShapeDtypeStruct((Np, fout_p), jnp.float32),
        compiler_params=pltpu.CompilerParams(dimension_semantics=("parallel",)),
    )(*args)


def convolutional_encoder_forward(x_nchw, params, *, out_features):
    N = x_nchw.shape[0]
    x = jnp.transpose(x_nchw, (0, 2, 3, 1))                      # NCHW -> NHWC (tiny, once)
    cin = x.shape[-1]
    cpi0 = params["conv"][0][0].shape[1] // 2
    x = jnp.pad(x, ((0, 0), (0, 0), (0, 0), (0, cpi0 - cin)))    # lane-dense channel pad
    for layer in params["conv"]:
        x = conv_block(x, layer)
    # Flatten: the NCHW permutation + channel un-padding is folded into the first MLP
    # weight at init time, so the (N,H,W,Cp) feature map is flattened directly (free).
    _, Hf, Wf, cp = x.shape
    feats = x.reshape(N, Hf * Wf * cp)
    assert feats.shape[1] == params["mlp"][0][0].shape[0]
    Np = _round_up(N, 8)
    feats = jnp.pad(feats, ((0, Np - N), (0, 0))).astype(jnp.bfloat16)
    out = mlp_fused(feats, params["mlp"])
    return out[:N, :out_features]


# ----------------------------- parameter folding ------------------------------

def _fold_conv_layer(w, b, gamma, beta, rmean, rvar, cpi, cpo):
    """torch Conv2d(3x3) weights + BN2d(eval) -> pair-layout tap weights + scale/bias."""
    cout, cin = int(w.shape[0]), int(w.shape[1])
    scale_c = gamma / jnp.sqrt(rvar + BN_EPS)
    bias_c = (b - rmean) * scale_c + beta
    wt = jnp.transpose(w, (2, 3, 1, 0))                # (kh, kw, Cin, Cout) = [dy, dx, i, o]
    wp = jnp.zeros((9, 2 * cpi, 2 * cpo), jnp.float32)
    for dy in range(3):
        # input pair j   (dp=0): odd column -> even output, conv dx=0
        wp = wp.at[dy * 3 + 0, cpi:cpi + cin, 0:cout].set(wt[dy, 0])
        # input pair j+1 (dp=1)
        wp = wp.at[dy * 3 + 1, 0:cin,        0:cout].set(wt[dy, 1])            # even col -> even out, dx=1
        wp = wp.at[dy * 3 + 1, cpi:cpi + cin, 0:cout].set(wt[dy, 2])           # odd  col -> even out, dx=2
        wp = wp.at[dy * 3 + 1, 0:cin,        cpo:cpo + cout].set(wt[dy, 0])    # even col -> odd  out, dx=0
        wp = wp.at[dy * 3 + 1, cpi:cpi + cin, cpo:cpo + cout].set(wt[dy, 1])   # odd  col -> odd  out, dx=1
        # input pair j+2 (dp=2): even column -> odd output, conv dx=2
        wp = wp.at[dy * 3 + 2, 0:cin, cpo:cpo + cout].set(wt[dy, 2])
    scale_p = jnp.zeros((cpo,), jnp.float32).at[:cout].set(scale_c)
    bias_p = jnp.zeros((cpo,), jnp.float32).at[:cout].set(bias_c)
    scale2 = jnp.concatenate([scale_p, scale_p])[None, :]
    bias2 = jnp.concatenate([bias_p, bias_p])[None, :]
    return wp.astype(jnp.bfloat16), scale2, bias2


def _fold_first_linear(w, b, gamma, beta, rmean, rvar, c_real, Hf, Wf, cp, fp):
    """First Linear + BN1d, with the NCHW-flatten permutation folded into the weight."""
    f1 = int(w.shape[0])
    w4 = w.reshape(f1, c_real, Hf, Wf)
    w4 = jnp.transpose(w4, (2, 3, 1, 0))               # (Hf, Wf, C, F1) == NHWC feature order
    w4 = jnp.pad(w4, ((0, 0), (0, 0), (0, cp - c_real), (0, fp - f1)))
    w_p = w4.reshape(Hf * Wf * cp, fp)
    scale = gamma / jnp.sqrt(rvar + BN_EPS)
    bias_eff = (b - rmean) * scale + beta
    sb = jnp.zeros((2, fp), jnp.float32).at[0, :f1].set(scale).at[1, :f1].set(bias_eff)
    return w_p.astype(jnp.bfloat16), sb


def _fold_linear(w, b, gamma, beta, rmean, rvar, kp, fp):
    fout, fin = int(w.shape[0]), int(w.shape[1])
    scale = gamma / jnp.sqrt(rvar + BN_EPS)
    bias_eff = (b - rmean) * scale + beta
    w_p = jnp.zeros((kp, fp), jnp.float32).at[:fin, :fout].set(jnp.transpose(w))
    sb = jnp.zeros((2, fp), jnp.float32).at[0, :fout].set(scale).at[1, :fout].set(bias_eff)
    return w_p.astype(jnp.bfloat16), sb


def init_params(key, conv_features_sizes, linear_layer_sizes, connector_shape):
    params = {"conv": [], "mlp": []}

    c_ins = [1] + list(conv_features_sizes[:-1])
    for cin, cout in zip(c_ins, conv_features_sizes):
        key, kw, kb = jax.random.split(key, 3)
        w = jax.random.normal(kw, (cout, cin, 3, 3), jnp.float32) * 0.1   # torch (O, I, kh, kw)
        b = jax.random.normal(kb, (cout,), jnp.float32) * 0.1
        gamma = jnp.ones((cout,), jnp.float32)
        beta = jnp.zeros((cout,), jnp.float32)
        rmean = jnp.zeros((cout,), jnp.float32)
        rvar = jnp.ones((cout,), jnp.float32)
        params["conv"].append(
            _fold_conv_layer(w, b, gamma, beta, rmean, rvar,
                             _round_up(cin, LANES), _round_up(cout, LANES)))

    c_real, Hf, Wf = (int(v) for v in connector_shape)
    mlp_input = int(reduce(lambda a, bb: a * bb, connector_shape))
    assert mlp_input == c_real * Hf * Wf
    cp_last = _round_up(conv_features_sizes[-1], LANES)
    f_ins = [mlp_input] + list(linear_layer_sizes[:-1])
    for li, (fin, fout) in enumerate(zip(f_ins, linear_layer_sizes)):
        key, kw, kb = jax.random.split(key, 3)
        w = jax.random.normal(kw, (fout, fin), jnp.float32) / jnp.sqrt(float(fin))
        b = jax.random.normal(kb, (fout,), jnp.float32) * 0.1
        gamma = jnp.ones((fout,), jnp.float32)
        beta = jnp.zeros((fout,), jnp.float32)
        rmean = jnp.zeros((fout,), jnp.float32)
        rvar = jnp.ones((fout,), jnp.float32)
        fp = _round_up(fout, LANES)
        if li == 0:
            layer = _fold_first_linear(w, b, gamma, beta, rmean, rvar,
                                       c_real, Hf, Wf, cp_last, fp)
        else:
            layer = _fold_linear(w, b, gamma, beta, rmean, rvar,
                                 _round_up(fin, LANES), fp)
        params["mlp"].append(layer)
    return params


# ----------------------------------- main -----------------------------------

if __name__ == "__main__":
    conv_features_sizes = [4, 8]
    linear_layer_sizes = [32, 16]
    N, H, W = 2, 16, 16
    # two conv blocks, each MaxPool(2,2): 16 -> 8 -> 4
    connector_shape = (conv_features_sizes[-1], H // 4, W // 4)   # (8, 4, 4) -> 128

    key = jax.random.PRNGKey(0)
    key, kx = jax.random.split(key)
    x = jax.random.normal(kx, (N, 1, H, W), jnp.float32)          # NCHW like PyTorch

    params = init_params(key, conv_features_sizes, linear_layer_sizes, connector_shape)

    fwd = jax.jit(functools.partial(convolutional_encoder_forward,
                                    out_features=linear_layer_sizes[-1]))
    out = jax.block_until_ready(fwd(x, params))

    assert out.shape == (N, linear_layer_sizes[-1]), out.shape
    assert out.dtype == jnp.float32
    assert bool(jnp.all(jnp.isfinite(out)))
    print("KERNEL_OK")
</pallas_src>

<mosaic_0001>
module attributes {stable_mosaic.version = 11 : i64} {
  func.func @_conv_bn_relu_pool_kernel(%arg0: i32, %arg1: memref<1x190x256xbf16, #tpu.memory_space<vmem>>, %arg2: memref<9x256x256xbf16, #tpu.memory_space<vmem>>, %arg3: memref<1x256xf32, #tpu.memory_space<vmem>>, %arg4: memref<1x256xf32, #tpu.memory_space<vmem>>, %arg5: memref<1x64x128xbf16, #tpu.memory_space<vmem>>) attributes {dimension_semantics = [#tpu.dimension_semantics<parallel>], iteration_bounds = array<i64: 2>, scalar_prefetch = 0 : i64, scratch_operands = 0 : i64, tpu.core_type = #tpu.core_type<tc>, window_params = [{transform_indices = @transform_0, window_bounds = array<i64: 1, 190, 256>}, {pipeline_mode = #tpu.pipeline_mode<synchronous>, transform_indices = @transform_1, window_bounds = array<i64: 9, 256, 256>}, {pipeline_mode = #tpu.pipeline_mode<synchronous>, transform_indices = @transform_2, window_bounds = array<i64: 1, 256>}, {pipeline_mode = #tpu.pipeline_mode<synchronous>, transform_indices = @transform_3, window_bounds = array<i64: 1, 256>}, {transform_indices = @transform_4, window_bounds = array<i64: 1, 64, 128>}]} {
    %cst = arith.constant 0.000000e+00 : f32
    %0 = vector.broadcast %cst : f32 to vector<160x256xf32>
    %c0 = arith.constant 0 : index
    %c0_0 = arith.constant 0 : index
    %c0_1 = arith.constant 0 : index
    %1 = vector.load %arg1[%c0, %c0_0, %c0_1] : memref<1x190x256xbf16, #tpu.memory_space<vmem>>, vector<1x160x256xbf16>
    %2 = vector.shape_cast %1 : vector<1x160x256xbf16> to vector<160x256xbf16>
    %c0_2 = arith.constant 0 : index
    %c0_3 = arith.constant 0 : index
    %c0_4 = arith.constant 0 : index
    %3 = vector.load %arg2[%c0_2, %c0_3, %c0_4] : memref<9x256x256xbf16, #tpu.memory_space<vmem>>, vector<1x256x256xbf16>
    %4 = vector.shape_cast %3 : vector<1x256x256xbf16> to vector<256x256xbf16>
    %cst_5 = arith.constant dense<0.000000e+00> : vector<160x256xf32>
    %5 = tpu.matmul %2, %4, %cst_5 {dimension_numbers = #tpu.dot_dimension_numbers<[1], [0], [0], [1], [0, 0, 1, 1], [], []>} : vector<160x256xbf16>, vector<256x256xbf16>, vector<160x256xf32> -> vector<160x256xf32>
    %6 = arith.addf %0, %5 : vector<160x256xf32>
    %c0_6 = arith.constant 0 : index
    %c1 = arith.constant 1 : index
    %c0_7 = arith.constant 0 : index
    %7 = vector.load %arg1[%c0_6, %c1, %c0_7] : memref<1x190x256xbf16, #tpu.memory_space<vmem>>, vector<1x160x256xbf16>
    %8 = vector.shape_cast %7 : vector<1x160x256xbf16> to vector<160x256xbf16>
    %c1_8 = arith.constant 1 : index
    %c0_9 = arith.constant 0 : index
    %c0_10 = arith.constant 0 : index
    %9 = vector.load %arg2[%c1_8, %c0_9, %c0_10] : memref<9x256x256xbf16, #tpu.memory_space<vmem>>, vector<1x256x256xbf16>
    %10 = vector.shape_cast %9 : vector<1x256x256xbf16> to vector<256x256xbf16>
    %cst_11 = arith.constant dense<0.000000e+00> : vector<160x256xf32>
    %11 = tpu.matmul %8, %10, %cst_11 {dimension_numbers = #tpu.dot_dimension_numbers<[1], [0], [0], [1], [0, 0, 1, 1], [], []>} : vector<160x256xbf16>, vector<256x256xbf16>, vector<160x256xf32> -> vector<160x256xf32>
    %12 = arith.addf %6, %11 : vector<160x256xf32>
    %c0_12 = arith.constant 0 : index
    %c2 = arith.constant 2 : index
    %c0_13 = arith.constant 0 : index
    %13 = vector.load %arg1[%c0_12, %c2, %c0_13] : memref<1x190x256xbf16, #tpu.memory_space<vmem>>, vector<1x160x256xbf16>
    %14 = vector.shape_cast %13 : vector<1x160x256xbf16> to vector<160x256xbf16>
    %c2_14 = arith.constant 2 : index
    %c0_15 = arith.constant 0 : index
    %c0_16 = arith.constant 0 : index
    %15 = vector.load %arg2[%c2_14, %c0_15, %c0_16] : memref<9x256x256xbf16, #tpu.memory_space<vmem>>, vector<1x256x256xbf16>
    %16 = vector.shape_cast %15 : vector<1x256x256xbf16> to vector<256x256xbf16>
    %cst_17 = arith.constant dense<0.000000e+00> : vector<160x256xf32>
    %17 = tpu.matmul %14, %16, %cst_17 {dimension_numbers = #tpu.dot_dimension_numbers<[1], [0], [0], [1], [0, 0, 1, 1], [], []>} : vector<160x256xbf16>, vector<256x256xbf16>, vector<160x256xf32> -> vector<160x256xf32>
    %18 = arith.addf %12, %17 : vector<160x256xf32>
    %c0_18 = arith.constant 0 : index
    %c10 = arith.constant 10 : index
    %c0_19 = arith.constant 0 : index
    %19 = vector.load %arg1[%c0_18, %c10, %c0_19] : memref<1x190x256xbf16, #tpu.memory_space<vmem>>, vector<1x160x256xbf16>
    %20 = vector.shape_cast %19 : vector<1x160x256xbf16> to vector<160x256xbf16>
    %c3 = arith.constant 3 : index
    %c0_20 = arith.constant 0 : index
    %c0_21 = arith.constant 0 : index
    %21 = vector.load %arg2[%c3, %c0_20, %c0_21] : memref<9x256x256xbf16, #tpu.memory_space<vmem>>, vector<1x256x256xbf16>
    %22 = vector.shape_cast %21 : vector<1x256x256xbf16> to vector<256x256xbf16>
    %cst_22 = arith.constant dense<0.000000e+00> : vector<160x256xf32>
    %23 = tpu.matmul %20, %22, %cst_22 {dimension_numbers = #tpu.dot_dimension_numbers<[1], [0], [0], [1], [0, 0, 1, 1], [], []>} : vector<160x256xbf16>, vector<256x256xbf16>, vector<160x256xf32> -> vector<160x256xf32>
    %24 = arith.addf %18, %23 : vector<160x256xf32>
    %c0_23 = arith.constant 0 : index
    %c11 = arith.constant 11 : index
    %c0_24 = arith.constant 0 : index
    %25 = vector.load %arg1[%c0_23, %c11, %c0_24] : memref<1x190x256xbf16, #tpu.memory_space<vmem>>, vector<1x160x256xbf16>
    %26 = vector.shape_cast %25 : vector<1x160x256xbf16> to vector<160x256xbf16>
    %c4 = arith.constant 4 : index
    %c0_25 = arith.constant 0 : index
    %c0_26 = arith.constant 0 : index
    %27 = vector.load %arg2[%c4, %c0_25, %c0_26] : memref<9x256x256xbf16, #tpu.memory_space<vmem>>, vector<1x256x256xbf16>
    %28 = vector.shape_cast %27 : vector<1x256x256xbf16> to vector<256x256xbf16>
    %cst_27 = arith.constant dense<0.000000e+00> : vector<160x256xf32>
    %29 = tpu.matmul %26, %28, %cst_27 {dimension_numbers = #tpu.dot_dimension_numbers<[1], [0], [0], [1], [0, 0, 1, 1], [], []>} : vector<160x256xbf16>, vector<256x256xbf16>, vector<160x256xf32> -> vector<160x256xf32>
    %30 = arith.addf %24, %29 : vector<160x256xf32>
    %c0_28 = arith.constant 0 : index
    %c12 = arith.constant 12 : index
    %c0_29 = arith.constant 0 : index
    %31 = vector.load %arg1[%c0_28, %c12, %c0_29] : memref<1x190x256xbf16, #tpu.memory_space<vmem>>, vector<1x160x256xbf16>
    %32 = vector.shape_cast %31 : vector<1x160x256xbf16> to vector<160x256xbf16>
    %c5 = arith.constant 5 : index
    %c0_30 = arith.constant 0 : index
    %c0_31 = arith.constant 0 : index
    %33 = vector.load %arg2[%c5, %c0_30, %c0_31] : memref<9x256x256xbf16, #tpu.memory_space<vmem>>, vector<1x256x256xbf16>
    %34 = vector.shape_cast %33 : vector<1x256x256xbf16> to vector<256x256xbf16>
    %cst_32 = arith.constant dense<0.000000e+00> : vector<160x256xf32>
    %35 = tpu.matmul %32, %34, %cst_32 {dimension_numbers = #tpu.dot_dimension_numbers<[1], [0], [0], [1], [0, 0, 1, 1], [], []>} : vector<160x256xbf16>, vector<256x256xbf16>, vector<160x256xf32> -> vector<160x256xf32>
    %36 = arith.addf %30, %35 : vector<160x256xf32>
    %c0_33 = arith.constant 0 : index
    %c20 = arith.constant 20 : index
    %c0_34 = arith.constant 0 : index
    %37 = vector.load %arg1[%c0_33, %c20, %c0_34] : memref<1x190x256xbf16, #tpu.memory_space<vmem>>, vector<1x160x256xbf16>
    %38 = vector.shape_cast %37 : vector<1x160x256xbf16> to vector<160x256xbf16>
    %c6 = arith.constant 6 : index
    %c0_35 = arith.constant 0 : index
    %c0_36 = arith.constant 0 : index
    %39 = vector.load %arg2[%c6, %c0_35, %c0_36] : memref<9x256x256xbf16, #tpu.memory_space<vmem>>, vector<1x256x256xbf16>
    %40 = vector.shape_cast %39 : vector<1x256x256xbf16> to vector<256x256xbf16>
    %cst_37 = arith.constant dense<0.000000e+00> : vector<160x256xf32>
    %41 = tpu.matmul %38, %40, %cst_37 {dimension_numbers = #tpu.dot_dimension_numbers<[1], [0], [0], [1], [0, 0, 1, 1], [], []>} : vector<160x256xbf16>, vector<256x256xbf16>, vector<160x256xf32> -> vector<160x256xf32>
    %42 = arith.addf %36, %41 : vector<160x256xf32>
    %c0_38 = arith.constant 0 : index
    %c21 = arith.constant 21 : index
    %c0_39 = arith.constant 0 : index
    %43 = vector.load %arg1[%c0_38, %c21, %c0_39] : memref<1x190x256xbf16, #tpu.memory_space<vmem>>, vector<1x160x256xbf16>
    %44 = vector.shape_cast %43 : vector<1x160x256xbf16> to vector<160x256xbf16>
    %c7 = arith.constant 7 : index
    %c0_40 = arith.constant 0 : index
    %c0_41 = arith.constant 0 : index
    %45 = vector.load %arg2[%c7, %c0_40, %c0_41] : memref<9x256x256xbf16, #tpu.memory_space<vmem>>, vector<1x256x256xbf16>
    %46 = vector.shape_cast %45 : vector<1x256x256xbf16> to vector<256x256xbf16>
    %cst_42 = arith.constant dense<0.000000e+00> : vector<160x256xf32>
    %47 = tpu.matmul %44, %46, %cst_42 {dimension_numbers = #tpu.dot_dimension_numbers<[1], [0], [0], [1], [0, 0, 1, 1], [], []>} : vector<160x256xbf16>, vector<256x256xbf16>, vector<160x256xf32> -> vector<160x256xf32>
    %48 = arith.addf %42, %47 : vector<160x256xf32>
    %c0_43 = arith.constant 0 : index
    %c22 = arith.constant 22 : index
    %c0_44 = arith.constant 0 : index
    %49 = vector.load %arg1[%c0_43, %c22, %c0_44] : memref<1x190x256xbf16, #tpu.memory_space<vmem>>, vector<1x160x256xbf16>
    %50 = vector.shape_cast %49 : vector<1x160x256xbf16> to vector<160x256xbf16>
    %c8 = arith.constant 8 : index
    %c0_45 = arith.constant 0 : index
    %c0_46 = arith.constant 0 : index
    %51 = vector.load %arg2[%c8, %c0_45, %c0_46] : memref<9x256x256xbf16, #tpu.memory_space<vmem>>, vector<1x256x256xbf16>
    %52 = vector.shape_cast %51 : vector<1x256x256xbf16> to vector<256x256xbf16>
    %cst_47 = arith.constant dense<0.000000e+00> : vector<160x256xf32>
    %53 = tpu.matmul %50, %52, %cst_47 {dimension_numbers = #tpu.dot_dimension_numbers<[1], [0], [0], [1], [0, 0, 1, 1], [], []>} : vector<160x256xbf16>, vector<256x256xbf16>, vector<160x256xf32> -> vector<160x256xf32>
    %54 = arith.addf %48, %53 : vector<160x256xf32>
    %c0_48 = arith.constant 0 : index
    %c0_49 = arith.constant 0 : index
    %55 = vector.load %arg3[%c0_48, %c0_49] : memref<1x256xf32, #tpu.memory_space<vmem>>, vector<1x256xf32>
    %56 = vector.broadcast %55 : vector<1x256xf32> to vector<160x256xf32>
    %57 = arith.mulf %54, %56 : vector<160x256xf32>
    %c0_50 = arith.constant 0 : index
    %c0_51 = arith.constant 0 : index
    %58 = vector.load %arg4[%c0_50, %c0_51] : memref<1x256xf32, #tpu.memory_space<vmem>>, vector<1x256xf32>
    %59 = vector.broadcast %58 : vector<1x256xf32> to vector<160x256xf32>
    %60 = arith.addf %57, %59 : vector<160x256xf32>
    %cst_52 = arith.constant 0.000000e+00 : f32
    %61 = vector.broadcast %cst_52 : f32 to vector<160x256xf32>
    %62 = arith.maximumf %60, %61 : vector<160x256xf32>
    %63 = vector.extract_strided_slice %62 {offsets = [0, 0], sizes = [160, 128], strides = [1, 1]} : vector<160x256xf32> to vector<160x128xf32>
    %64 = vector.extract_strided_slice %62 {offsets = [0, 128], sizes = [160, 128], strides = [1, 1]} : vector<160x256xf32> to vector<160x128xf32>
    %65 = arith.maximumf %63, %64 : vector<160x128xf32>
    %66 = vector.extract_strided_slice %65 {offsets = [0, 0], sizes = [8, 128], strides = [1, 1]} : vector<160x128xf32> to vector<8x128xf32>
    %67 = vector.extract_strided_slice %65 {offsets = [10, 0], sizes = [8, 128], strides = [1, 1]} : vector<160x128xf32> to vector<8x128xf32>
    %68 = arith.maximumf %66, %67 : vector<8x128xf32>
    %69 = arith.truncf %68 : vector<8x128xf32> to vector<8x128xbf16>
    %c0_53 = arith.constant 0 : index
    %c0_54 = arith.constant 0 : index
    %c0_55 = arith.constant 0 : index
    %70 = vector.load %arg5[%c0_53, %c0_54, %c0_55] : memref<1x64x128xbf16, #tpu.memory_space<vmem>>, vector<1x8x128xbf16>
    %71 = vector.shape_cast %70 : vector<1x8x128xbf16> to vector<8x128xbf16>
    %72 = vector.shape_cast %69 : vector<8x128xbf16> to vector<1x8x128xbf16>
    tpu.vector_store %arg5[%c0_53, %c0_54, %c0_55], %72 {strides = array<i32>} : memref<1x64x128xbf16, #tpu.memory_space<vmem>>, vector<1x8x128xbf16>,
    %73 = vector.extract_strided_slice %65 {offsets = [20, 0], sizes = [8, 128], strides = [1, 1]} : vector<160x128xf32> to vector<8x128xf32>
    %74 = vector.extract_strided_slice %65 {offsets = [30, 0], sizes = [8, 128], strides = [1, 1]} : vector<160x128xf32> to vector<8x128xf32>
    %75 = arith.maximumf %73, %74 : vector<8x128xf32>
    %76 = arith.truncf %75 : vector<8x128xf32> to vector<8x128xbf16>
    %c0_56 = arith.constant 0 : index
    %c8_57 = arith.constant 8 : index
    %c0_58 = arith.constant 0 : index
    %77 = vector.load %arg5[%c0_56, %c8_57, %c0_58] : memref<1x64x128xbf16, #tpu.memory_space<vmem>>, vector<1x8x128xbf16>
    %78 = vector.shape_cast %77 : vector<1x8x128xbf16> to vector<8x128xbf16>
    %79 = vector.shape_cast %76 : vector<8x128xbf16> to vector<1x8x128xbf16>
    tpu.vector_store %arg5[%c0_56, %c8_57, %c0_58], %79 {strides = array<i32>} : memref<1x64x128xbf16, #tpu.memory_space<vmem>>, vector<1x8x128xbf16>,
    %80 = vector.extract_strided_slice %65 {offsets = [40, 0], sizes = [8, 128], strides = [1, 1]} : vector<160x128xf32> to vector<8x128xf32>
    %81 = vector.extract_strided_slice %65 {offsets = [50, 0], sizes = [8, 128], strides = [1, 1]} : vector<160x128xf32> to vector<8x128xf32>
    %82 = arith.maximumf %80, %81 : vector<8x128xf32>
    %83 = arith.truncf %82 : vector<8x128xf32> to vector<8x128xbf16>
    %c0_59 = arith.constant 0 : index
    %c16 = arith.constant 16 : index
    %c0_60 = arith.constant 0 : index
    %84 = vector.load %arg5[%c0_59, %c16, %c0_60] : memref<1x64x128xbf16, #tpu.memory_space<vmem>>, vector<1x8x128xbf16>
    %85 = vector.shape_cast %84 : vector<1x8x128xbf16> to vector<8x128xbf16>
    %86 = vector.shape_cast %83 : vector<8x128xbf16> to vector<1x8x128xbf16>
    tpu.vector_store %arg5[%c0_59, %c16, %c0_60], %86 {strides = array<i32>} : memref<1x64x128xbf16, #tpu.memory_space<vmem>>, vector<1x8x128xbf16>,
    %87 = vector.extract_strided_slice %65 {offsets = [60, 0], sizes = [8, 128], strides = [1, 1]} : vector<160x128xf32> to vector<8x128xf32>
    %88 = vector.extract_strided_slice %65 {offsets = [70, 0], sizes = [8, 128], strides = [1, 1]} : vector<160x128xf32> to vector<8x128xf32>
    %89 = arith.maximumf %87, %88 : vector<8x128xf32>
    %90 = arith.truncf %89 : vector<8x128xf32> to vector<8x128xbf16>
    %c0_61 = arith.constant 0 : index
    %c24 = arith.constant 24 : index
    %c0_62 = arith.constant 0 : index
    %91 = vector.load %arg5[%c0_61, %c24, %c0_62] : memref<1x64x128xbf16, #tpu.memory_space<vmem>>, vector<1x8x128xbf16>
    %92 = vector.shape_cast %91 : vector<1x8x128xbf16> to vector<8x128xbf16>
    %93 = vector.shape_cast %90 : vector<8x128xbf16> to vector<1x8x128xbf16>
    tpu.vector_store %arg5[%c0_61, %c24, %c0_62], %93 {strides = array<i32>} : memref<1x64x128xbf16, #tpu.memory_space<vmem>>, vector<1x8x128xbf16>,
    %94 = vector.extract_strided_slice %65 {offsets = [80, 0], sizes = [8, 128], strides = [1, 1]} : vector<160x128xf32> to vector<8x128xf32>
    %95 = vector.extract_strided_slice %65 {offsets = [90, 0], sizes = [8, 128], strides = [1, 1]} : vector<160x128xf32> to vector<8x128xf32>
    %96 = arith.maximumf %94, %95 : vector<8x128xf32>
    %97 = arith.truncf %96 : vector<8x128xf32> to vector<8x128xbf16>
    %c0_63 = arith.constant 0 : index
    %c32 = arith.constant 32 : index
    %c0_64 = arith.constant 0 : index
    %98 = vector.load %arg5[%c0_63, %c32, %c0_64] : memref<1x64x128xbf16, #tpu.memory_space<vmem>>, vector<1x8x128xbf16>
    %99 = vector.shape_cast %98 : vector<1x8x128xbf16> to vector<8x128xbf16>
    %100 = vector.shape_cast %97 : vector<8x128xbf16> to vector<1x8x128xbf16>
    tpu.vector_store %arg5[%c0_63, %c32, %c0_64], %100 {strides = array<i32>} : memref<1x64x128xbf16, #tpu.memory_space<vmem>>, vector<1x8x128xbf16>,
    %101 = vector.extract_strided_slice %65 {offsets = [100, 0], sizes = [8, 128], strides = [1, 1]} : vector<160x128xf32> to vector<8x128xf32>
    %102 = vector.extract_strided_slice %65 {offsets = [110, 0], sizes = [8, 128], strides = [1, 1]} : vector<160x128xf32> to vector<8x128xf32>
    %103 = arith.maximumf %101, %102 : vector<8x128xf32>
    %104 = arith.truncf %103 : vector<8x128xf32> to vector<8x128xbf16>
    %c0_65 = arith.constant 0 : index
    %c40 = arith.constant 40 : index
    %c0_66 = arith.constant 0 : index
    %105 = vector.load %arg5[%c0_65, %c40, %c0_66] : memref<1x64x128xbf16, #tpu.memory_space<vmem>>, vector<1x8x128xbf16>
    %106 = vector.shape_cast %105 : vector<1x8x128xbf16> to vector<8x128xbf16>
    %107 = vector.shape_cast %104 : vector<8x128xbf16> to vector<1x8x128xbf16>
    tpu.vector_store %arg5[%c0_65, %c40, %c0_66], %107 {strides = array<i32>} : memref<1x64x128xbf16, #tpu.memory_space<vmem>>, vector<1x8x128xbf16>,
    %108 = vector.extract_strided_slice %65 {offsets = [120, 0], sizes = [8, 128], strides = [1, 1]} : vector<160x128xf32> to vector<8x128xf32>
    %109 = vector.extract_strided_slice %65 {offsets = [130, 0], sizes = [8, 128], strides = [1, 1]} : vector<160x128xf32> to vector<8x128xf32>
    %110 = arith.maximumf %108, %109 : vector<8x128xf32>
    %111 = arith.truncf %110 : vector<8x128xf32> to vector<8x128xbf16>
    %c0_67 = arith.constant 0 : index
    %c48 = arith.constant 48 : index
    %c0_68 = arith.constant 0 : index
    %112 = vector.load %arg5[%c0_67, %c48, %c0_68] : memref<1x64x128xbf16, #tpu.memory_space<vmem>>, vector<1x8x128xbf16>
    %113 = vector.shape_cast %112 : vector<1x8x128xbf16> to vector<8x128xbf16>
    %114 = vector.shape_cast %111 : vector<8x128xbf16> to vector<1x8x128xbf16>
    tpu.vector_store %arg5[%c0_67, %c48, %c0_68], %114 {strides = array<i32>} : memref<1x64x128xbf16, #tpu.memory_space<vmem>>, vector<1x8x128xbf16>,
    %115 = vector.extract_strided_slice %65 {offsets = [140, 0], sizes = [8, 128], strides = [1, 1]} : vector<160x128xf32> to vector<8x128xf32>
    %116 = vector.extract_strided_slice %65 {offsets = [150, 0], sizes = [8, 128], strides = [1, 1]} : vector<160x128xf32> to vector<8x128xf32>
    %117 = arith.maximumf %115, %116 : vector<8x128xf32>
    %118 = arith.truncf %117 : vector<8x128xf32> to vector<8x128xbf16>
    %c0_69 = arith.constant 0 : index
    %c56 = arith.constant 56 : index
    %c0_70 = arith.constant 0 : index
    %119 = vector.load %arg5[%c0_69, %c56, %c0_70] : memref<1x64x128xbf16, #tpu.memory_space<vmem>>, vector<1x8x128xbf16>
    %120 = vector.shape_cast %119 : vector<1x8x128xbf16> to vector<8x128xbf16>
    %121 = vector.shape_cast %118 : vector<8x128xbf16> to vector<1x8x128xbf16>
    tpu.vector_store %arg5[%c0_69, %c56, %c0_70], %121 {strides = array<i32>} : memref<1x64x128xbf16, #tpu.memory_space<vmem>>, vector<1x8x128xbf16>,
    return
  }
  func.func @transform_0(%arg0: i32) -> (i32, i32, i32) {
    %c0_i32 = arith.constant 0 : i32
    %c0_i32_0 = arith.constant 0 : i32
    %c0_i32_1 = arith.constant 0 : i32
    return %arg0, %c0_i32, %c0_i32_0 : i32, i32, i32
  }
  func.func @transform_1(%arg0: i32) -> (i32, i32, i32) {
    %c0_i32 = arith.constant 0 : i32
    %c0_i32_0 = arith.constant 0 : i32
    %c0_i32_1 = arith.constant 0 : i32
    %c0_i32_2 = arith.constant 0 : i32
    return %c0_i32, %c0_i32_0, %c0_i32_1 : i32, i32, i32
  }
  func.func @transform_2(%arg0: i32) -> (i32, i32) {
    %c0_i32 = arith.constant 0 : i32
    %c0_i32_0 = arith.constant 0 : i32
    %c0_i32_1 = arith.constant 0 : i32
    return %c0_i32, %c0_i32_0 : i32, i32
  }
  func.func @transform_3(%arg0: i32) -> (i32, i32) {
    %c0_i32 = arith.constant 0 : i32
    %c0_i32_0 = arith.constant 0 : i32
    %c0_i32_1 = arith.constant 0 : i32
    return %c0_i32, %c0_i32_0 : i32, i32
  }
  func.func @transform_4(%arg0: i32) -> (i32, i32, i32) {
    %c0_i32 = arith.constant 0 : i32
    %c0_i32_0 = arith.constant 0 : i32
    %c0_i32_1 = arith.constant 0 : i32
    return %arg0, %c0_i32, %c0_i32_0 : i32, i32, i32
  }
}

module attributes {stable_mosaic.version = 11 : i64} {
  func.func @_conv_bn_relu_pool_kernel(%arg0: i32, %arg1: memref<1x66x256xbf16, #tpu.memory_space<vmem>>, %arg2: memref<9x256x256xbf16, #tpu.memory_space<vmem>>, %arg3: memref<1x256xf32, #tpu.memory_space<vmem>>, %arg4: memref<1x256xf32, #tpu.memory_space<vmem>>, %arg5: memref<1x16x128xbf16, #tpu.memory_space<vmem>>) attributes {dimension_semantics = [#tpu.dimension_semantics<parallel>], iteration_bounds = array<i64: 2>, scalar_prefetch = 0 : i64, scratch_operands = 0 : i64, tpu.core_type = #tpu.core_type<tc>, window_params = [{transform_indices = @transform_0, window_bounds = array<i64: 1, 66, 256>}, {pipeline_mode = #tpu.pipeline_mode<synchronous>, transform_indices = @transform_1, window_bounds = array<i64: 9, 256, 256>}, {pipeline_mode = #tpu.pipeline_mode<synchronous>, transform_indices = @transform_2, window_bounds = array<i64: 1, 256>}, {pipeline_mode = #tpu.pipeline_mode<synchronous>, transform_indices = @transform_3, window_bounds = array<i64: 1, 256>}, {transform_indices = @transform_4, window_bounds = array<i64: 1, 16, 128>}]} {
    %cst = arith.constant 0.000000e+00 : f32
    %0 = vector.broadcast %cst : f32 to vector<48x256xf32>
    %c0 = arith.constant 0 : index
    %c0_0 = arith.constant 0 : index
    %c0_1 = arith.constant 0 : index
    %1 = vector.load %arg1[%c0, %c0_0, %c0_1] : memref<1x66x256xbf16, #tpu.memory_space<vmem>>, vector<1x48x256xbf16>
    %2 = vector.shape_cast %1 : vector<1x48x256xbf16> to vector<48x256xbf16>
    %c0_2 = arith.constant 0 : index
    %c0_3 = arith.constant 0 : index
    %c0_4 = arith.constant 0 : index
    %3 = vector.load %arg2[%c0_2, %c0_3, %c0_4] : memref<9x256x256xbf16, #tpu.memory_space<vmem>>, vector<1x256x256xbf16>
    %4 = vector.shape_cast %3 : vector<1x256x256xbf16> to vector<256x256xbf16>
    %cst_5 = arith.constant dense<0.000000e+00> : vector<48x256xf32>
    %5 = tpu.matmul %2, %4, %cst_5 {dimension_numbers = #tpu.dot_dimension_numbers<[1], [0], [0], [1], [0, 0, 1, 1], [], []>} : vector<48x256xbf16>, vector<256x256xbf16>, vector<48x256xf32> -> vector<48x256xf32>
    %6 = arith.addf %0, %5 : vector<48x256xf32>
    %c0_6 = arith.constant 0 : index
    %c1 = arith.constant 1 : index
    %c0_7 = arith.constant 0 : index
    %7 = vector.load %arg1[%c0_6, %c1, %c0_7] : memref<1x66x256xbf16, #tpu.memory_space<vmem>>, vector<1x48x256xbf16>
    %8 = vector.shape_cast %7 : vector<1x48x256xbf16> to vector<48x256xbf16>
    %c1_8 = arith.constant 1 : index
    %c0_9 = arith.constant 0 : index
    %c0_10 = arith.constant 0 : index
    %9 = vector.load %arg2[%c1_8, %c0_9, %c0_10] : memref<9x256x256xbf16, #tpu.memory_space<vmem>>, vector<1x256x256xbf16>
    %10 = vector.shape_cast %9 : vector<1x256x256xbf16> to vector<256x256xbf16>
    %cst_11 = arith.constant dense<0.000000e+00> : vector<48x256xf32>
    %11 = tpu.matmul %8, %10, %cst_11 {dimension_numbers = #tpu.dot_dimension_numbers<[1], [0], [0], [1], [0, 0, 1, 1], [], []>} : vector<48x256xbf16>, vector<256x256xbf16>, vector<48x256xf32> -> vector<48x256xf32>
    %12 = arith.addf %6, %11 : vector<48x256xf32>
    %c0_12 = arith.constant 0 : index
    %c2 = arith.constant 2 : index
    %c0_13 = arith.constant 0 : index
    %13 = vector.load %arg1[%c0_12, %c2, %c0_13] : memref<1x66x256xbf16, #tpu.memory_space<vmem>>, vector<1x48x256xbf16>
    %14 = vector.shape_cast %13 : vector<1x48x256xbf16> to vector<48x256xbf16>
    %c2_14 = arith.constant 2 : index
    %c0_15 = arith.constant 0 : index
    %c0_16 = arith.constant 0 : index
    %15 = vector.load %arg2[%c2_14, %c0_15, %c0_16] : memref<9x256x256xbf16, #tpu.memory_space<vmem>>, vector<1x256x256xbf16>
    %16 = vector.shape_cast %15 : vector<1x256x256xbf16> to vector<256x256xbf16>
    %cst_17 = arith.constant dense<0.000000e+00> : vector<48x256xf32>
    %17 = tpu.matmul %14, %16, %cst_17 {dimension_numbers = #tpu.dot_dimension_numbers<[1], [0], [0], [1], [0, 0, 1, 1], [], []>} : vector<48x256xbf16>, vector<256x256xbf16>, vector<48x256xf32> -> vector<48x256xf32>
    %18 = arith.addf %12, %17 : vector<48x256xf32>
    %c0_18 = arith.constant 0 : index
    %c6 = arith.constant 6 : index
    %c0_19 = arith.constant 0 : index
    %19 = vector.load %arg1[%c0_18, %c6, %c0_19] : memref<1x66x256xbf16, #tpu.memory_space<vmem>>, vector<1x48x256xbf16>
    %20 = vector.shape_cast %19 : vector<1x48x256xbf16> to vector<48x256xbf16>
    %c3 = arith.constant 3 : index
    %c0_20 = arith.constant 0 : index
    %c0_21 = arith.constant 0 : index
    %21 = vector.load %arg2[%c3, %c0_20, %c0_21] : memref<9x256x256xbf16, #tpu.memory_space<vmem>>, vector<1x256x256xbf16>
    %22 = vector.shape_cast %21 : vector<1x256x256xbf16> to vector<256x256xbf16>
    %cst_22 = arith.constant dense<0.000000e+00> : vector<48x256xf32>
    %23 = tpu.matmul %20, %22, %cst_22 {dimension_numbers = #tpu.dot_dimension_numbers<[1], [0], [0], [1], [0, 0, 1, 1], [], []>} : vector<48x256xbf16>, vector<256x256xbf16>, vector<48x256xf32> -> vector<48x256xf32>
    %24 = arith.addf %18, %23 : vector<48x256xf32>
    %c0_23 = arith.constant 0 : index
    %c7 = arith.constant 7 : index
    %c0_24 = arith.constant 0 : index
    %25 = vector.load %arg1[%c0_23, %c7, %c0_24] : memref<1x66x256xbf16, #tpu.memory_space<vmem>>, vector<1x48x256xbf16>
    %26 = vector.shape_cast %25 : vector<1x48x256xbf16> to vector<48x256xbf16>
    %c4 = arith.constant 4 : index
    %c0_25 = arith.constant 0 : index
    %c0_26 = arith.constant 0 : index
    %27 = vector.load %arg2[%c4, %c0_25, %c0_26] : memref<9x256x256xbf16, #tpu.memory_space<vmem>>, vector<1x256x256xbf16>
    %28 = vector.shape_cast %27 : vector<1x256x256xbf16> to vector<256x256xbf16>
    %cst_27 = arith.constant dense<0.000000e+00> : vector<48x256xf32>
    %29 = tpu.matmul %26, %28, %cst_27 {dimension_numbers = #tpu.dot_dimension_numbers<[1], [0], [0], [1], [0, 0, 1, 1], [], []>} : vector<48x256xbf16>, vector<256x256xbf16>, vector<48x256xf32> -> vector<48x256xf32>
    %30 = arith.addf %24, %29 : vector<48x256xf32>
    %c0_28 = arith.constant 0 : index
    %c8 = arith.constant 8 : index
    %c0_29 = arith.constant 0 : index
    %31 = vector.load %arg1[%c0_28, %c8, %c0_29] : memref<1x66x256xbf16, #tpu.memory_space<vmem>>, vector<1x48x256xbf16>
    %32 = vector.shape_cast %31 : vector<1x48x256xbf16> to vector<48x256xbf16>
    %c5 = arith.constant 5 : index
    %c0_30 = arith.constant 0 : index
    %c0_31 = arith.constant 0 : index
    %33 = vector.load %arg2[%c5, %c0_30, %c0_31] : memref<9x256x256xbf16, #tpu.memory_space<vmem>>, vector<1x256x256xbf16>
    %34 = vector.shape_cast %33 : vector<1x256x256xbf16> to vector<256x256xbf16>
    %cst_32 = arith.constant dense<0.000000e+00> : vector<48x256xf32>
    %35 = tpu.matmul %32, %34, %cst_32 {dimension_numbers = #tpu.dot_dimension_numbers<[1], [0], [0], [1], [0, 0, 1, 1], [], []>} : vector<48x256xbf16>, vector<256x256xbf16>, vector<48x256xf32> -> vector<48x256xf32>
    %36 = arith.addf %30, %35 : vector<48x256xf32>
    %c0_33 = arith.constant 0 : index
    %c12 = arith.constant 12 : index
    %c0_34 = arith.constant 0 : index
    %37 = vector.load %arg1[%c0_33, %c12, %c0_34] : memref<1x66x256xbf16, #tpu.memory_space<vmem>>, vector<1x48x256xbf16>
    %38 = vector.shape_cast %37 : vector<1x48x256xbf16> to vector<48x256xbf16>
    %c6_35 = arith.constant 6 : index
    %c0_36 = arith.constant 0 : index
    %c0_37 = arith.constant 0 : index
    %39 = vector.load %arg2[%c6_35, %c0_36, %c0_37] : memref<9x256x256xbf16, #tpu.memory_space<vmem>>, vector<1x256x256xbf16>
    %40 = vector.shape_cast %39 : vector<1x256x256xbf16> to vector<256x256xbf16>
    %cst_38 = arith.constant dense<0.000000e+00> : vector<48x256xf32>
    %41 = tpu.matmul %38, %40, %cst_38 {dimension_numbers = #tpu.dot_dimension_numbers<[1], [0], [0], [1], [0, 0, 1, 1], [], []>} : vector<48x256xbf16>, vector<256x256xbf16>, vector<48x256xf32> -> vector<48x256xf32>
    %42 = arith.addf %36, %41 : vector<48x256xf32>
    %c0_39 = arith.constant 0 : index
    %c13 = arith.constant 13 : index
    %c0_40 = arith.constant 0 : index
    %43 = vector.load %arg1[%c0_39, %c13, %c0_40] : memref<1x66x256xbf16, #tpu.memory_space<vmem>>, vector<1x48x256xbf16>
    %44 = vector.shape_cast %43 : vector<1x48x256xbf16> to vector<48x256xbf16>
    %c7_41 = arith.constant 7 : index
    %c0_42 = arith.constant 0 : index
    %c0_43 = arith.constant 0 : index
    %45 = vector.load %arg2[%c7_41, %c0_42, %c0_43] : memref<9x256x256xbf16, #tpu.memory_space<vmem>>, vector<1x256x256xbf16>
    %46 = vector.shape_cast %45 : vector<1x256x256xbf16> to vector<256x256xbf16>
    %cst_44 = arith.constant dense<0.000000e+00> : vector<48x256xf32>
    %47 = tpu.matmul %44, %46, %cst_44 {dimension_numbers = #tpu.dot_dimension_numbers<[1], [0], [0], [1], [0, 0, 1, 1], [], []>} : vector<48x256xbf16>, vector<256x256xbf16>, vector<48x256xf32> -> vector<48x256xf32>
    %48 = arith.addf %42, %47 : vector<48x256xf32>
    %c0_45 = arith.constant 0 : index
    %c14 = arith.constant 14 : index
    %c0_46 = arith.constant 0 : index
    %49 = vector.load %arg1[%c0_45, %c14, %c0_46] : memref<1x66x256xbf16, #tpu.memory_space<vmem>>, vector<1x48x256xbf16>
    %50 = vector.shape_cast %49 : vector<1x48x256xbf16> to vector<48x256xbf16>
    %c8_47 = arith.constant 8 : index
    %c0_48 = arith.constant 0 : index
    %c0_49 = arith.constant 0 : index
    %51 = vector.load %arg2[%c8_47, %c0_48, %c0_49] : memref<9x256x256xbf16, #tpu.memory_space<vmem>>, vector<1x256x256xbf16>
    %52 = vector.shape_cast %51 : vector<1x256x256xbf16> to vector<256x256xbf16>
    %cst_50 = arith.constant dense<0.000000e+00> : vector<48x256xf32>
    %53 = tpu.matmul %50, %52, %cst_50 {dimension_numbers = #tpu.dot_dimension_numbers<[1], [0], [0], [1], [0, 0, 1, 1], [], []>} : vector<48x256xbf16>, vector<256x256xbf16>, vector<48x256xf32> -> vector<48x256xf32>
    %54 = arith.addf %48, %53 : vector<48x256xf32>
    %c0_51 = arith.constant 0 : index
    %c0_52 = arith.constant 0 : index
    %55 = vector.load %arg3[%c0_51, %c0_52] : memref<1x256xf32, #tpu.memory_space<vmem>>, vector<1x256xf32>
    %56 = vector.broadcast %55 : vector<1x256xf32> to vector<48x256xf32>
    %57 = arith.mulf %54, %56 : vector<48x256xf32>
    %c0_53 = arith.constant 0 : index
    %c0_54 = arith.constant 0 : index
    %58 = vector.load %arg4[%c0_53, %c0_54] : memref<1x256xf32, #tpu.memory_space<vmem>>, vector<1x256xf32>
    %59 = vector.broadcast %58 : vector<1x256xf32> to vector<48x256xf32>
    %60 = arith.addf %57, %59 : vector<48x256xf32>
    %cst_55 = arith.constant 0.000000e+00 : f32
    %61 = vector.broadcast %cst_55 : f32 to vector<48x256xf32>
    %62 = arith.maximumf %60, %61 : vector<48x256xf32>
    %63 = vector.extract_strided_slice %62 {offsets = [0, 0], sizes = [48, 128], strides = [1, 1]} : vector<48x256xf32> to vector<48x128xf32>
    %64 = vector.extract_strided_slice %62 {offsets = [0, 128], sizes = [48, 128], strides = [1, 1]} : vector<48x256xf32> to vector<48x128xf32>
    %65 = arith.maximumf %63, %64 : vector<48x128xf32>
    %66 = vector.extract_strided_slice %65 {offsets = [0, 0], sizes = [4, 128], strides = [1, 1]} : vector<48x128xf32> to vector<4x128xf32>
    %67 = vector.extract_strided_slice %65 {offsets = [6, 0], sizes = [4, 128], strides = [1, 1]} : vector<48x128xf32> to vector<4x128xf32>
    %68 = arith.maximumf %66, %67 : vector<4x128xf32>
    %69 = arith.truncf %68 : vector<4x128xf32> to vector<4x128xbf16>
    %c0_56 = arith.constant 0 : index
    %c0_57 = arith.constant 0 : index
    %c0_58 = arith.constant 0 : index
    %70 = vector.load %arg5[%c0_56, %c0_57, %c0_58] : memref<1x16x128xbf16, #tpu.memory_space<vmem>>, vector<1x4x128xbf16>
    %71 = vector.shape_cast %70 : vector<1x4x128xbf16> to vector<4x128xbf16>
    %72 = vector.shape_cast %69 : vector<4x128xbf16> to vector<1x4x128xbf16>
    tpu.vector_store %arg5[%c0_56, %c0_57, %c0_58], %72 {strides = array<i32>} : memref<1x16x128xbf16, #tpu.memory_space<vmem>>, vector<1x4x128xbf16>,
    %73 = vector.extract_strided_slice %65 {offsets = [12, 0], sizes = [4, 128], strides = [1, 1]} : vector<48x128xf32> to vector<4x128xf32>
    %74 = vector.extract_strided_slice %65 {offsets = [18, 0], sizes = [4, 128], strides = [1, 1]} : vector<48x128xf32> to vector<4x128xf32>
    %75 = arith.maximumf %73, %74 : vector<4x128xf32>
    %76 = arith.truncf %75 : vector<4x128xf32> to vector<4x128xbf16>
    %c0_59 = arith.constant 0 : index
    %c4_60 = arith.constant 4 : index
    %c0_61 = arith.constant 0 : index
    %77 = vector.load %arg5[%c0_59, %c4_60, %c0_61] : memref<1x16x128xbf16, #tpu.memory_space<vmem>>, vector<1x4x128xbf16>
    %78 = vector.shape_cast %77 : vector<1x4x128xbf16> to vector<4x128xbf16>
    %79 = vector.shape_cast %76 : vector<4x128xbf16> to vector<1x4x128xbf16>
    tpu.vector_store %arg5[%c0_59, %c4_60, %c0_61], %79 {strides = array<i32>} : memref<1x16x128xbf16, #tpu.memory_space<vmem>>, vector<1x4x128xbf16>,
    %80 = vector.extract_strided_slice %65 {offsets = [24, 0], sizes = [4, 128], strides = [1, 1]} : vector<48x128xf32> to vector<4x128xf32>
    %81 = vector.extract_strided_slice %65 {offsets = [30, 0], sizes = [4, 128], strides = [1, 1]} : vector<48x128xf32> to vector<4x128xf32>
    %82 = arith.maximumf %80, %81 : vector<4x128xf32>
    %83 = arith.truncf %82 : vector<4x128xf32> to vector<4x128xbf16>
    %c0_62 = arith.constant 0 : index
    %c8_63 = arith.constant 8 : index
    %c0_64 = arith.constant 0 : index
    %84 = vector.load %arg5[%c0_62, %c8_63, %c0_64] : memref<1x16x128xbf16, #tpu.memory_space<vmem>>, vector<1x4x128xbf16>
    %85 = vector.shape_cast %84 : vector<1x4x128xbf16> to vector<4x128xbf16>
    %86 = vector.shape_cast %83 : vector<4x128xbf16> to vector<1x4x128xbf16>
    tpu.vector_store %arg5[%c0_62, %c8_63, %c0_64], %86 {strides = array<i32>} : memref<1x16x128xbf16, #tpu.memory_space<vmem>>, vector<1x4x128xbf16>,
    %87 = vector.extract_strided_slice %65 {offsets = [36, 0], sizes = [4, 128], strides = [1, 1]} : vector<48x128xf32> to vector<4x128xf32>
    %88 = vector.extract_strided_slice %65 {offsets = [42, 0], sizes = [4, 128], strides = [1, 1]} : vector<48x128xf32> to vector<4x128xf32>
    %89 = arith.maximumf %87, %88 : vector<4x128xf32>
    %90 = arith.truncf %89 : vector<4x128xf32> to vector<4x128xbf16>
    %c0_65 = arith.constant 0 : index
    %c12_66 = arith.constant 12 : index
    %c0_67 = arith.constant 0 : index
    %91 = vector.load %arg5[%c0_65, %c12_66, %c0_67] : memref<1x16x128xbf16, #tpu.memory_space<vmem>>, vector<1x4x128xbf16>
    %92 = vector.shape_cast %91 : vector<1x4x128xbf16> to vector<4x128xbf16>
    %93 = vector.shape_cast %90 : vector<4x128xbf16> to vector<1x4x128xbf16>
    tpu.vector_store %arg5[%c0_65, %c12_66, %c0_67], %93 {strides = array<i32>} : memref<1x16x128xbf16, #tpu.memory_space<vmem>>, vector<1x4x128xbf16>,
    return
  }
  func.func @transform_0(%arg0: i32) -> (i32, i32, i32) {
    %c0_i32 = arith.constant 0 : i32
    %c0_i32_0 = arith.constant 0 : i32
    %c0_i32_1 = arith.constant 0 : i32
    return %arg0, %c0_i32, %c0_i32_0 : i32, i32, i32
  }
  func.func @transform_1(%arg0: i32) -> (i32, i32, i32) {
    %c0_i32 = arith.constant 0 : i32
    %c0_i32_0 = arith.constant 0 : i32
    %c0_i32_1 = arith.constant 0 : i32
    %c0_i32_2 = arith.constant 0 : i32
    return %c0_i32, %c0_i32_0, %c0_i32_1 : i32, i32, i32
  }
  func.func @transform_2(%arg0: i32) -> (i32, i32) {
    %c0_i32 = arith.constant 0 : i32
    %c0_i32_0 = arith.constant 0 : i32
    %c0_i32_1 = arith.constant 0 : i32
    return %c0_i32, %c0_i32_0 : i32, i32
  }
  func.func @transform_3(%arg0: i32) -> (i32, i32) {
    %c0_i32 = arith.constant 0 : i32
    %c0_i32_0 = arith.constant 0 : i32
    %c0_i32_1 = arith.constant 0 : i32
    return %c0_i32, %c0_i32_0 : i32, i32
  }
  func.func @transform_4(%arg0: i32) -> (i32, i32, i32) {
    %c0_i32 = arith.constant 0 : i32
    %c0_i32_0 = arith.constant 0 : i32
    %c0_i32_1 = arith.constant 0 : i32
    return %arg0, %c0_i32, %c0_i32_0 : i32, i32, i32
  }
}

module attributes {stable_mosaic.version = 11 : i64} {
  func.func @_mlp_fused_kernel(%arg0: i32, %arg1: memref<8x2048xbf16, #tpu.memory_space<vmem>>, %arg2: memref<2048x128xbf16, #tpu.memory_space<vmem>>, %arg3: memref<2x128xf32, #tpu.memory_space<vmem>>, %arg4: memref<128x128xbf16, #tpu.memory_space<vmem>>, %arg5: memref<2x128xf32, #tpu.memory_space<vmem>>, %arg6: memref<8x128xf32, #tpu.memory_space<vmem>>) attributes {dimension_semantics = [#tpu.dimension_semantics<parallel>], iteration_bounds = array<i64: 1>, scalar_prefetch = 0 : i64, scratch_operands = 0 : i64, tpu.core_type = #tpu.core_type<tc>, window_params = [{transform_indices = @transform_0, window_bounds = array<i64: 8, 2048>}, {pipeline_mode = #tpu.pipeline_mode<synchronous>, transform_indices = @transform_1, window_bounds = array<i64: 2048, 128>}, {pipeline_mode = #tpu.pipeline_mode<synchronous>, transform_indices = @transform_2, window_bounds = array<i64: 2, 128>}, {pipeline_mode = #tpu.pipeline_mode<synchronous>, transform_indices = @transform_3, window_bounds = array<i64: 128, 128>}, {pipeline_mode = #tpu.pipeline_mode<synchronous>, transform_indices = @transform_4, window_bounds = array<i64: 2, 128>}, {transform_indices = @transform_5, window_bounds = array<i64: 8, 128>}]} {
    %c0 = arith.constant 0 : index
    %c0_0 = arith.constant 0 : index
    %0 = vector.load %arg1[%c0, %c0_0] : memref<8x2048xbf16, #tpu.memory_space<vmem>>, vector<8x2048xbf16>
    %c0_1 = arith.constant 0 : index
    %c0_2 = arith.constant 0 : index
    %1 = vector.load %arg2[%c0_1, %c0_2] : memref<2048x128xbf16, #tpu.memory_space<vmem>>, vector<2048x128xbf16>
    %cst = arith.constant dense<0.000000e+00> : vector<8x128xf32>
    %2 = tpu.matmul %0, %1, %cst {dimension_numbers = #tpu.dot_dimension_numbers<[1], [0], [0], [1], [0, 0, 1, 1], [], []>} : vector<8x2048xbf16>, vector<2048x128xbf16>, vector<8x128xf32> -> vector<8x128xf32>
    %c0_3 = arith.constant 0 : index
    %c0_4 = arith.constant 0 : index
    %3 = vector.load %arg3[%c0_3, %c0_4] : memref<2x128xf32, #tpu.memory_space<vmem>>, vector<1x128xf32>
    %4 = vector.broadcast %3 : vector<1x128xf32> to vector<8x128xf32>
    %5 = arith.mulf %2, %4 : vector<8x128xf32>
    %c1 = arith.constant 1 : index
    %c0_5 = arith.constant 0 : index
    %6 = vector.load %arg3[%c1, %c0_5] : memref<2x128xf32, #tpu.memory_space<vmem>>, vector<1x128xf32>
    %7 = vector.broadcast %6 : vector<1x128xf32> to vector<8x128xf32>
    %8 = arith.addf %5, %7 : vector<8x128xf32>
    %cst_6 = arith.constant 0.000000e+00 : f32
    %9 = vector.broadcast %cst_6 : f32 to vector<8x128xf32>
    %10 = arith.maximumf %8, %9 : vector<8x128xf32>
    %11 = arith.truncf %10 : vector<8x128xf32> to vector<8x128xbf16>
    %c0_7 = arith.constant 0 : index
    %c0_8 = arith.constant 0 : index
    %12 = vector.load %arg4[%c0_7, %c0_8] : memref<128x128xbf16, #tpu.memory_space<vmem>>, vector<128x128xbf16>
    %cst_9 = arith.constant dense<0.000000e+00> : vector<8x128xf32>
    %13 = tpu.matmul %11, %12, %cst_9 {dimension_numbers = #tpu.dot_dimension_numbers<[1], [0], [0], [1], [0, 0, 1, 1], [], []>} : vector<8x128xbf16>, vector<128x128xbf16>, vector<8x128xf32> -> vector<8x128xf32>
    %c0_10 = arith.constant 0 : index
    %c0_11 = arith.constant 0 : index
    %14 = vector.load %arg5[%c0_10, %c0_11] : memref<2x128xf32, #tpu.memory_space<vmem>>, vector<1x128xf32>
    %15 = vector.broadcast %14 : vector<1x128xf32> to vector<8x128xf32>
    %16 = arith.mulf %13, %15 : vector<8x128xf32>
    %c1_12 = arith.constant 1 : index
    %c0_13 = arith.constant 0 : index
    %17 = vector.load %arg5[%c1_12, %c0_13] : memref<2x128xf32, #tpu.memory_space<vmem>>, vector<1x128xf32>
    %18 = vector.broadcast %17 : vector<1x128xf32> to vector<8x128xf32>
    %19 = arith.addf %16, %18 : vector<8x128xf32>
    %cst_14 = arith.constant 0.000000e+00 : f32
    %20 = vector.broadcast %cst_14 : f32 to vector<8x128xf32>
    %21 = arith.maximumf %19, %20 : vector<8x128xf32>
    %c0_15 = arith.constant 0 : index
    %c0_16 = arith.constant 0 : index
    %22 = vector.load %arg6[%c0_15, %c0_16] : memref<8x128xf32, #tpu.memory_space<vmem>>, vector<8x128xf32>
    tpu.vector_store %arg6[%c0_15, %c0_16], %21 {strides = array<i32>} : memref<8x128xf32, #tpu.memory_space<vmem>>, vector<8x128xf32>,
    return
  }
  func.func @transform_0(%arg0: i32) -> (i32, i32) {
    %c0_i32 = arith.constant 0 : i32
    %c0_i32_0 = arith.constant 0 : i32
    return %arg0, %c0_i32 : i32, i32
  }
  func.func @transform_1(%arg0: i32) -> (i32, i32) {
    %c0_i32 = arith.constant 0 : i32
    %c0_i32_0 = arith.constant 0 : i32
    %c0_i32_1 = arith.constant 0 : i32
    return %c0_i32, %c0_i32_0 : i32, i32
  }
  func.func @transform_2(%arg0: i32) -> (i32, i32) {
    %c0_i32 = arith.constant 0 : i32
    %c0_i32_0 = arith.constant 0 : i32
    %c0_i32_1 = arith.constant 0 : i32
    return %c0_i32, %c0_i32_0 : i32, i32
  }
  func.func @transform_3(%arg0: i32) -> (i32, i32) {
    %c0_i32 = arith.constant 0 : i32
    %c0_i32_0 = arith.constant 0 : i32
    %c0_i32_1 = arith.constant 0 : i32
    return %c0_i32, %c0_i32_0 : i32, i32
  }
  func.func @transform_4(%arg0: i32) -> (i32, i32) {
    %c0_i32 = arith.constant 0 : i32
    %c0_i32_0 = arith.constant 0 : i32
    %c0_i32_1 = arith.constant 0 : i32
    return %c0_i32, %c0_i32_0 : i32, i32
  }
  func.func @transform_5(%arg0: i32) -> (i32, i32) {
    %c0_i32 = arith.constant 0 : i32
    %c0_i32_0 = arith.constant 0 : i32
    return %arg0, %c0_i32 : i32, i32
  }
}

</mosaic_0001>

<llo_original>
// kernel: convolutional_encoder_forward.5
$region0: #{convolutional_encoder_forward.5}
  #allocation0 [shape = 'u32[]', space=smem, size = 0x4, offset = 0x4, fixed_abs, tag = 'smem constant byte address 0x4 - core index']
  #allocation1 [shape = 'u32[72,128]{1,0:T(1,128)}', space=vmem, size = 0x9000, scoped, tag = 'internal scratch']
  %s0 = inlined_call_operand.vmem [shape: bf16[8,2048], index: 0, kind: input, shape index: {}]
  %s1 = inlined_call_operand.hbm [shape: bf16[2048,128], index: 1, kind: input, shape index: {}]
  %s2 = inlined_call_operand.vmem [shape: f32[2,128], index: 2, kind: input, shape index: {}]
  %s3 = inlined_call_operand.vmem [shape: bf16[128,128], index: 3, kind: input, shape index: {}]
  %s4 = inlined_call_operand.vmem [shape: f32[2,128], index: 4, kind: input, shape index: {}]
  %s5 = inlined_call_operand.vmem [shape: f32[8,128], index: 5, kind: output, shape index: {}]
  %s6 = sld [smem:[#allocation0]]
  $region34: #{convolutional_encoder_forward.5} parent=0
    _
  %s8 = ssub.s32 1, %s6
  %s9 = scalar_select 0, %s8, %s6
  $region1: #{convolutional_encoder_forward.5} parent=0
    #allocation2 [shape = 'u8[524288]{0}', space=vmem, size = 0x80000, scoped, tag = 'input window, operand 1, single buffered']
    #allocation3 [shape = 's32[1]{0}', space=sflag, size = 0x4, scoped, tag = 'scoped memory for convolutional_encoder_forward.5']
    %10 = vsyncpa [#allocation3], 0
    // Predicated region
    $region2: #{convolutional_encoder_forward.5} parent=1 // pred_check
      _
    $region3: #{convolutional_encoder_forward.5} parent=1 // pred_check_branch
      %12 = sbr.rel (0) target = $region5
    $region4: #{convolutional_encoder_forward.5} parent=1 // pred_region
      _
    $region5: #{convolutional_encoder_forward.5} parent=1 // pred_fallthru
      _
    // Predicated region
    $region6: #{convolutional_encoder_forward.5} parent=1 // pred_check
      _
    $region7: #{convolutional_encoder_forward.5} parent=1 // pred_check_branch
      %14 = sbr.rel (0) target = $region9
    $region8: #{convolutional_encoder_forward.5} parent=1 // pred_region
      %16 = vsyncadd [#allocation3], 0
      %s17 = sshll.u32 %s1, 4
      %s18 = int_to_ptr.hbm [resolvable:$true] %s17
      %s19 = sshll.u32 [#allocation2], 4
      %s20 = int_to_ptr.vmem [resolvable:$true] %s19
      %25 = dma.hbm_to_vmem [thread:$0]  %s18, 16384, %s20, [#allocation3], 64, 64, 4
    $region9: #{convolutional_encoder_forward.5} parent=1 // pred_fallthru
      _
    // Predicated region
    $region10: #{convolutional_encoder_forward.5} parent=1 // pred_check
      _
    $region11: #{convolutional_encoder_forward.5} parent=1 // pred_check_branch
      %27 = sbr.rel (0) target = $region13
    $region12: #{convolutional_encoder_forward.5} parent=1 // pred_region
      _
    $region13: #{convolutional_encoder_forward.5} parent=1 // pred_fallthru
      _
    // Predicated region
    $region14: #{convolutional_encoder_forward.5} parent=1 // pred_check
      _
    $region15: #{convolutional_encoder_forward.5} parent=1 // pred_check_branch
      %29 = sbr.rel (0) target = $region17
    $region16: #{convolutional_encoder_forward.5} parent=1 // pred_region
      _
    $region17: #{convolutional_encoder_forward.5} parent=1 // pred_fallthru
      _
    // Predicated region
    $region18: #{convolutional_encoder_forward.5} parent=1 // pred_check
      _
    $region19: #{convolutional_encoder_forward.5} parent=1 // pred_check_branch
      %31 = sbr.rel (0) target = $region21
    $region20: #{convolutional_encoder_forward.5} parent=1 // pred_region
      _
    $region21: #{convolutional_encoder_forward.5} parent=1 // pred_fallthru
      _
    // Predicated region
    $region22: #{convolutional_encoder_forward.5} parent=1 // pred_check
      _
    $region23: #{convolutional_encoder_forward.5} parent=1 // pred_check_branch
      %33 = sbr.rel (0) target = $region25
    $region24: #{convolutional_encoder_forward.5} parent=1 // pred_region
      %35 = dma.done [#allocation3], 16384
    $region25: #{convolutional_encoder_forward.5} parent=1 // pred_fallthru
      _
    %v36 = vld [vmem:[%s0] sm:$0xff]
    %v37 = vld [vmem:[%s0 + $0x8] sm:$0xff]
    %v38 = vld [vmem:[%s0 + $0x10] sm:$0xff]
    %v39 = vld [vmem:[%s0 + $0x18] sm:$0xff]
    %v40 = vld [vmem:[%s0 + $0x20] sm:$0xff]
    %v41 = vld [vmem:[%s0 + $0x28] sm:$0xff]
    %v42 = vld [vmem:[%s0 + $0x30] sm:$0xff]
    %v43 = vld [vmem:[%s0 + $0x38] sm:$0xff]
    %v44 = vld [vmem:[#allocation2] sm:$0xf]
    %v45 = vld [vmem:[#allocation2 + $0x4] sm:$0xf]
    %v46 = vld [vmem:[#allocation2 + $0x8] sm:$0xf]
    %v47 = vld [vmem:[#allocation2 + $0xc] sm:$0xf]
    %v48 = vld [vmem:[#allocation2 + $0x10] sm:$0xf]
    %v49 = vld [vmem:[#allocation2 + $0x14] sm:$0xf]
    %v50 = vld [vmem:[#allocation2 + $0x18] sm:$0xf]
    %v51 = vld [vmem:[#allocation2 + $0x1c] sm:$0xf]
    %v52 = vld [vmem:[#allocation2 + $0x20] sm:$0xf]
    %v53 = vld [vmem:[#allocation2 + $0x24] sm:$0xf]
    %v54 = vld [vmem:[#allocation2 + $0x28] sm:$0xf]
    %v55 = vld [vmem:[#allocation2 + $0x2c] sm:$0xf]
    %v56 = vld [vmem:[#allocation2 + $0x30] sm:$0xf]
    %v57 = vld [vmem:[#allocation2 + $0x34] sm:$0xf]
    %v58 = vld [vmem:[#allocation2 + $0x38] sm:$0xf]
    %v59 = vld [vmem:[#allocation2 + $0x3c] sm:$0xf]
    %v60 = vld [vmem:[#allocation2 + $0x40] sm:$0xf]
    %v61 = vld [vmem:[#allocation2 + $0x44] sm:$0xf]
    %v62 = vld [vmem:[#allocation2 + $0x48] sm:$0xf]
    %v63 = vld [vmem:[#allocation2 + $0x4c] sm:$0xf]
    %v64 = vld [vmem:[#allocation2 + $0x50] sm:$0xf]
    %v65 = vld [vmem:[#allocation2 + $0x54] sm:$0xf]
    %v66 = vld [vmem:[#allocation2 + $0x58] sm:$0xf]
    %v67 = vld [vmem:[#allocation2 + $0x5c] sm:$0xf]
    %v68 = vld [vmem:[#allocation2 + $0x60] sm:$0xf]
    %v69 = vld [vmem:[#allocation2 + $0x64] sm:$0xf]
    %v70 = vld [vmem:[#allocation2 + $0x68] sm:$0xf]
    %v71 = vld [vmem:[#allocation2 + $0x6c] sm:$0xf]
    %v72 = vld [vmem:[#allocation2 + $0x70] sm:$0xf]
    %v73 = vld [vmem:[#allocation2 + $0x74] sm:$0xf]
    %v74 = vld [vmem:[#allocation2 + $0x78] sm:$0xf]
    %v75 = vld [vmem:[#allocation2 + $0x7c] sm:$0xf]
    %v76 = vld [vmem:[#allocation2 + $0x80] sm:$0xf]
    %v77 = vld [vmem:[#allocation2 + $0x84] sm:$0xf]
    %v78 = vld [vmem:[#allocation2 + $0x88] sm:$0xf]
    %v79 = vld [vmem:[#allocation2 + $0x8c] sm:$0xf]
    %v80 = vld [vmem:[#allocation2 + $0x90] sm:$0xf]
    %v81 = vld [vmem:[#allocation2 + $0x94] sm:$0xf]
    %v82 = vld [vmem:[#allocation2 + $0x98] sm:$0xf]
    %v83 = vld [vmem:[#allocation2 + $0x9c] sm:$0xf]
    %v84 = vld [vmem:[#allocation2 + $0xa0] sm:$0xf]
    %v85 = vld [vmem:[#allocation2 + $0xa4] sm:$0xf]
    %v86 = vld [vmem:[#allocation2 + $0xa8] sm:$0xf]
    %v87 = vld [vmem:[#allocation2 + $0xac] sm:$0xf]
    %v88 = vld [vmem:[#allocation2 + $0xb0] sm:$0xf]
    %v89 = vld [vmem:[#allocation2 + $0xb4] sm:$0xf]
    %v90 = vld [vmem:[#allocation2 + $0xb8] sm:$0xf]
    %v91 = vld [vmem:[#allocation2 + $0xbc] sm:$0xf]
    %v92 = vld [vmem:[#allocation2 + $0xc0] sm:$0xf]
    %v93 = vld [vmem:[#allocation2 + $0xc4] sm:$0xf]
    %v94 = vld [vmem:[#allocation2 + $0xc8] sm:$0xf]
    %v95 = vld [vmem:[#allocation2 + $0xcc] sm:$0xf]
    %v96 = vld [vmem:[#allocation2 + $0xd0] sm:$0xf]
    %v97 = vld [vmem:[#allocation2 + $0xd4] sm:$0xf]
    %v98 = vld [vmem:[#allocation2 + $0xd8] sm:$0xf]
    %v99 = vld [vmem:[#allocation2 + $0xdc] sm:$0xf]
    %v100 = vld [vmem:[#allocation2 + $0xe0] sm:$0xf]
    %v101 = vld [vmem:[#allocation2 + $0xe4] sm:$0xf]
    %v102 = vld [vmem:[#allocation2 + $0xe8] sm:$0xf]
    %v103 = vld [vmem:[#allocation2 + $0xec] sm:$0xf]
    %v104 = vld [vmem:[#allocation2 + $0xf0] sm:$0xf]
    %v105 = vld [vmem:[#allocation2 + $0xf4] sm:$0xf]
    %v106 = vld [vmem:[#allocation2 + $0xf8] sm:$0xf]
    %v107 = vld [vmem:[#allocation2 + $0xfc] sm:$0xf]
    %v108 = vld [vmem:[#allocation2 + $0x100] sm:$0xf]
    %v109 = vld [vmem:[#allocation2 + $0x104] sm:$0xf]
    %v110 = vld [vmem:[#allocation2 + $0x108] sm:$0xf]
    %v111 = vld [vmem:[#allocation2 + $0x10c] sm:$0xf]
    %v112 = vld [vmem:[#allocation2 + $0x110] sm:$0xf]
    %v113 = vld [vmem:[#allocation2 + $0x114] sm:$0xf]
    %v114 = vld [vmem:[#allocation2 + $0x118] sm:$0xf]
    %v115 = vld [vmem:[#allocation2 + $0x11c] sm:$0xf]
    %v116 = vld [vmem:[#allocation2 + $0x120] sm:$0xf]
    %v117 = vld [vmem:[#allocation2 + $0x124] sm:$0xf]
    %v118 = vld [vmem:[#allocation2 + $0x128] sm:$0xf]
    %v119 = vld [vmem:[#allocation2 + $0x12c] sm:$0xf]
    %v120 = vld [vmem:[#allocation2 + $0x130] sm:$0xf]
    %v121 = vld [vmem:[#allocation2 + $0x134] sm:$0xf]
    %v122 = vld [vmem:[#allocation2 + $0x138] sm:$0xf]
    %v123 = vld [vmem:[#allocation2 + $0x13c] sm:$0xf]
    %v124 = vld [vmem:[#allocation2 + $0x140] sm:$0xf]
    %v125 = vld [vmem:[#allocation2 + $0x144] sm:$0xf]
    %v126 = vld [vmem:[#allocation2 + $0x148] sm:$0xf]
    %v127 = vld [vmem:[#allocation2 + $0x14c] sm:$0xf]
    %v128 = vld [vmem:[#allocation2 + $0x150] sm:$0xf]
    %v129 = vld [vmem:[#allocation2 + $0x154] sm:$0xf]
    %v130 = vld [vmem:[#allocation2 + $0x158] sm:$0xf]
    %v131 = vld [vmem:[#allocation2 + $0x15c] sm:$0xf]
    %v132 = vld [vmem:[#allocation2 + $0x160] sm:$0xf]
    %v133 = vld [vmem:[#allocation2 + $0x164] sm:$0xf]
    %v134 = vld [vmem:[#allocation2 + $0x168] sm:$0xf]
    %v135 = vld [vmem:[#allocation2 + $0x16c] sm:$0xf]
    %v136 = vld [vmem:[#allocation2 + $0x170] sm:$0xf]
    %v137 = vld [vmem:[#allocation2 + $0x174] sm:$0xf]
    %v138 = vld [vmem:[#allocation2 + $0x178] sm:$0xf]
    %v139 = vld [vmem:[#allocation2 + $0x17c] sm:$0xf]
    %v140 = vld [vmem:[#allocation2 + $0x180] sm:$0xf]
    %v141 = vld [vmem:[#allocation2 + $0x184] sm:$0xf]
    %v142 = vld [vmem:[#allocation2 + $0x188] sm:$0xf]
    %v143 = vld [vmem:[#allocation2 + $0x18c] sm:$0xf]
    %v144 = vld [vmem:[#allocation2 + $0x190] sm:$0xf]
    %v145 = vld [vmem:[#allocation2 + $0x194] sm:$0xf]
    %v146 = vld [vmem:[#allocation2 + $0x198] sm:$0xf]
    %v147 = vld [vmem:[#allocation2 + $0x19c] sm:$0xf]
    %v148 = vld [vmem:[#allocation2 + $0x1a0] sm:$0xf]
    %v149 = vld [vmem:[#allocation2 + $0x1a4] sm:$0xf]
    %v150 = vld [vmem:[#allocation2 + $0x1a8] sm:$0xf]
    %v151 = vld [vmem:[#allocation2 + $0x1ac] sm:$0xf]
    %v152 = vld [vmem:[#allocation2 + $0x1b0] sm:$0xf]
    %v153 = vld [vmem:[#allocation2 + $0x1b4] sm:$0xf]
    %v154 = vld [vmem:[#allocation2 + $0x1b8] sm:$0xf]
    %v155 = vld [vmem:[#allocation2 + $0x1bc] sm:$0xf]
    %v156 = vld [vmem:[#allocation2 + $0x1c0] sm:$0xf]
    %v157 = vld [vmem:[#allocation2 + $0x1c4] sm:$0xf]
    %v158 = vld [vmem:[#allocation2 + $0x1c8] sm:$0xf]
    %v159 = vld [vmem:[#allocation2 + $0x1cc] sm:$0xf]
    %v160 = vld [vmem:[#allocation2 + $0x1d0] sm:$0xf]
    %v161 = vld [vmem:[#allocation2 + $0x1d4] sm:$0xf]
    %v162 = vld [vmem:[#allocation2 + $0x1d8] sm:$0xf]
    %v163 = vld [vmem:[#allocation2 + $0x1dc] sm:$0xf]
    %v164 = vld [vmem:[#allocation2 + $0x1e0] sm:$0xf]
    %v165 = vld [vmem:[#allocation2 + $0x1e4] sm:$0xf]
    %v166 = vld [vmem:[#allocation2 + $0x1e8] sm:$0xf]
    %v167 = vld [vmem:[#allocation2 + $0x1ec] sm:$0xf]
    %v168 = vld [vmem:[#allocation2 + $0x1f0] sm:$0xf]
    %v169 = vld [vmem:[#allocation2 + $0x1f4] sm:$0xf]
    %v170 = vld [vmem:[#allocation2 + $0x1f8] sm:$0xf]
    %v171 = vld [vmem:[#allocation2 + $0x1fc] sm:$0xf]
    %v172 = vld [vmem:[#allocation2 + $0x200] sm:$0xf]
    %v173 = vld [vmem:[#allocation2 + $0x204] sm:$0xf]
    %v174 = vld [vmem:[#allocation2 + $0x208] sm:$0xf]
    %v175 = vld [vmem:[#allocation2 + $0x20c] sm:$0xf]
    %v176 = vld [vmem:[#allocation2 + $0x210] sm:$0xf]
    %v177 = vld [vmem:[#allocation2 + $0x214] sm:$0xf]
    %v178 = vld [vmem:[#allocation2 + $0x218] sm:$0xf]
    %v179 = vld [vmem:[#allocation2 + $0x21c] sm:$0xf]
    %v180 = vld [vmem:[#allocation2 + $0x220] sm:$0xf]
    %v181 = vld [vmem:[#allocation2 + $0x224] sm:$0xf]
    %v182 = vld [vmem:[#allocation2 + $0x228] sm:$0xf]
    %v183 = vld [vmem:[#allocation2 + $0x22c] sm:$0xf]
    %v184 = vld [vmem:[#allocation2 + $0x230] sm:$0xf]
    %v185 = vld [vmem:[#allocation2 + $0x234] sm:$0xf]
    %v186 = vld [vmem:[#allocation2 + $0x238] sm:$0xf]
    %v187 = vld [vmem:[#allocation2 + $0x23c] sm:$0xf]
    %v188 = vld [vmem:[#allocation2 + $0x240] sm:$0xf]
    %v189 = vld [vmem:[#allocation2 + $0x244] sm:$0xf]
    %v190 = vld [vmem:[#allocation2 + $0x248] sm:$0xf]
    %v191 = vld [vmem:[#allocation2 + $0x24c] sm:$0xf]
    %v192 = vld [vmem:[#allocation2 + $0x250] sm:$0xf]
    %v193 = vld [vmem:[#allocation2 + $0x254] sm:$0xf]
    %v194 = vld [vmem:[#allocation2 + $0x258] sm:$0xf]
    %v195 = vld [vmem:[#allocation2 + $0x25c] sm:$0xf]
    %v196 = vld [vmem:[#allocation2 + $0x260] sm:$0xf]
    %v197 = vld [vmem:[#allocation2 + $0x264] sm:$0xf]
    %v198 = vld [vmem:[#allocation2 + $0x268] sm:$0xf]
    %v199 = vld [vmem:[#allocation2 + $0x26c] sm:$0xf]
    %v200 = vld [vmem:[#allocation2 + $0x270] sm:$0xf]
    %v201 = vld [vmem:[#allocation2 + $0x274] sm:$0xf]
    %v202 = vld [vmem:[#allocation2 + $0x278] sm:$0xf]
    %v203 = vld [vmem:[#allocation2 + $0x27c] sm:$0xf]
    %v204 = vld [vmem:[#allocation2 + $0x280] sm:$0xf]
    %v205 = vld [vmem:[#allocation2 + $0x284] sm:$0xf]
    %v206 = vld [vmem:[#allocation2 + $0x288] sm:$0xf]
    %v207 = vld [vmem:[#allocation2 + $0x28c] sm:$0xf]
    %v208 = vld [vmem:[#allocation2 + $0x290] sm:$0xf]
    %v209 = vld [vmem:[#allocation2 + $0x294] sm:$0xf]
    %v210 = vld [vmem:[#allocation2 + $0x298] sm:$0xf]
    %v211 = vld [vmem:[#allocation2 + $0x29c] sm:$0xf]
    %v212 = vld [vmem:[#allocation2 + $0x2a0] sm:$0xf]
    %v213 = vld [vmem:[#allocation2 + $0x2a4] sm:$0xf]
    %v214 = vld [vmem:[#allocation2 + $0x2a8] sm:$0xf]
    %v215 = vld [vmem:[#allocation2 + $0x2ac] sm:$0xf]
    %v216 = vld [vmem:[#allocation2 + $0x2b0] sm:$0xf]
    %v217 = vld [vmem:[#allocation2 + $0x2b4] sm:$0xf]
    %v218 = vld [vmem:[#allocation2 + $0x2b8] sm:$0xf]
    %v219 = vld [vmem:[#allocation2 + $0x2bc] sm:$0xf]
    %v220 = vld [vmem:[#allocation2 + $0x2c0] sm:$0xf]
    %v221 = vld [vmem:[#allocation2 + $0x2c4] sm:$0xf]
    %v222 = vld [vmem:[#allocation2 + $0x2c8] sm:$0xf]
    %v223 = vld [vmem:[#allocation2 + $0x2cc] sm:$0xf]
    %v224 = vld [vmem:[#allocation2 + $0x2d0] sm:$0xf]
    %v225 = vld [vmem:[#allocation2 + $0x2d4] sm:$0xf]
    %v226 = vld [vmem:[#allocation2 + $0x2d8] sm:$0xf]
    %v227 = vld [vmem:[#allocation2 + $0x2dc] sm:$0xf]
    %v228 = vld [vmem:[#allocation2 + $0x2e0] sm:$0xf]
    %v229 = vld [vmem:[#allocation2 + $0x2e4] sm:$0xf]
    %v230 = vld [vmem:[#allocation2 + $0x2e8] sm:$0xf]
    %v231 = vld [vmem:[#allocation2 + $0x2ec] sm:$0xf]
    %v232 = vld [vmem:[#allocation2 + $0x2f0] sm:$0xf]
    %v233 = vld [vmem:[#allocation2 + $0x2f4] sm:$0xf]
    %v234 = vld [vmem:[#allocation2 + $0x2f8] sm:$0xf]
    %v235 = vld [vmem:[#allocation2 + $0x2fc] sm:$0xf]
    %v236 = vld [vmem:[#allocation2 + $0x300] sm:$0xf]
    %v237 = vld [vmem:[#allocation2 + $0x304] sm:$0xf]
    %v238 = vld [vmem:[#allocation2 + $0x308] sm:$0xf]
    %v239 = vld [vmem:[#allocation2 + $0x30c] sm:$0xf]
    %v240 = vld [vmem:[#allocation2 + $0x310] sm:$0xf]
    %v241 = vld [vmem:[#allocation2 + $0x314] sm:$0xf]
    %v242 = vld [vmem:[#allocation2 + $0x318] sm:$0xf]
    %v243 = vld [vmem:[#allocation2 + $0x31c] sm:$0xf]
    %v244 = vld [vmem:[#allocation2 + $0x320] sm:$0xf]
    %v245 = vld [vmem:[#allocation2 + $0x324] sm:$0xf]
    %v246 = vld [vmem:[#allocation2 + $0x328] sm:$0xf]
    %v247 = vld [vmem:[#allocation2 + $0x32c] sm:$0xf]
    %v248 = vld [vmem:[#allocation2 + $0x330] sm:$0xf]
    %v249 = vld [vmem:[#allocation2 + $0x334] sm:$0xf]
    %v250 = vld [vmem:[#allocation2 + $0x338] sm:$0xf]
    %v251 = vld [vmem:[#allocation2 + $0x33c] sm:$0xf]
    %v252 = vld [vmem:[#allocation2 + $0x340] sm:$0xf]
    %v253 = vld [vmem:[#allocation2 + $0x344] sm:$0xf]
    %v254 = vld [vmem:[#allocation2 + $0x348] sm:$0xf]
    %v255 = vld [vmem:[#allocation2 + $0x34c] sm:$0xf]
    %v256 = vld [vmem:[#allocation2 + $0x350] sm:$0xf]
    %v257 = vld [vmem:[#allocation2 + $0x354] sm:$0xf]
    %v258 = vld [vmem:[#allocation2 + $0x358] sm:$0xf]
    %v259 = vld [vmem:[#allocation2 + $0x35c] sm:$0xf]
    %v260 = vld [vmem:[#allocation2 + $0x360] sm:$0xf]
    %v261 = vld [vmem:[#allocation2 + $0x364] sm:$0xf]
    %v262 = vld [vmem:[#allocation2 + $0x368] sm:$0xf]
    %v263 = vld [vmem:[#allocation2 + $0x36c] sm:$0xf]
    %v264 = vld [vmem:[#allocation2 + $0x370] sm:$0xf]
    %v265 = vld [vmem:[#allocation2 + $0x374] sm:$0xf]
    %v266 = vld [vmem:[#allocation2 + $0x378] sm:$0xf]
    %v267 = vld [vmem:[#allocation2 + $0x37c] sm:$0xf]
    %v268 = vld [vmem:[#allocation2 + $0x380] sm:$0xf]
    %v269 = vld [vmem:[#allocation2 + $0x384] sm:$0xf]
    %v270 = vld [vmem:[#allocation2 + $0x388] sm:$0xf]
    %v271 = vld [vmem:[#allocation2 + $0x38c] sm:$0xf]
    %v272 = vld [vmem:[#allocation2 + $0x390] sm:$0xf]
    %v273 = vld [vmem:[#allocation2 + $0x394] sm:$0xf]
    %v274 = vld [vmem:[#allocation2 + $0x398] sm:$0xf]
    %v275 = vld [vmem:[#allocation2 + $0x39c] sm:$0xf]
    %v276 = vld [vmem:[#allocation2 + $0x3a0] sm:$0xf]
    %v277 = vld [vmem:[#allocation2 + $0x3a4] sm:$0xf]
    %v278 = vld [vmem:[#allocation2 + $0x3a8] sm:$0xf]
    %v279 = vld [vmem:[#allocation2 + $0x3ac] sm:$0xf]
    %v280 = vld [vmem:[#allocation2 + $0x3b0] sm:$0xf]
    %v281 = vld [vmem:[#allocation2 + $0x3b4] sm:$0xf]
    %v282 = vld [vmem:[#allocation2 + $0x3b8] sm:$0xf]
    %v283 = vld [vmem:[#allocation2 + $0x3bc] sm:$0xf]
    %v284 = vld [vmem:[#allocation2 + $0x3c0] sm:$0xf]
    %v285 = vld [vmem:[#allocation2 + $0x3c4] sm:$0xf]
    %v286 = vld [vmem:[#allocation2 + $0x3c8] sm:$0xf]
    %v287 = vld [vmem:[#allocation2 + $0x3cc] sm:$0xf]
    %v288 = vld [vmem:[#allocation2 + $0x3d0] sm:$0xf]
    %v289 = vld [vmem:[#allocation2 + $0x3d4] sm:$0xf]
    %v290 = vld [vmem:[#allocation2 + $0x3d8] sm:$0xf]
    %v291 = vld [vmem:[#allocation2 + $0x3dc] sm:$0xf]
    %v292 = vld [vmem:[#allocation2 + $0x3e0] sm:$0xf]
    %v293 = vld [vmem:[#allocation2 + $0x3e4] sm:$0xf]
    %v294 = vld [vmem:[#allocation2 + $0x3e8] sm:$0xf]
    %v295 = vld [vmem:[#allocation2 + $0x3ec] sm:$0xf]
    %v296 = vld [vmem:[#allocation2 + $0x3f0] sm:$0xf]
    %v297 = vld [vmem:[#allocation2 + $0x3f4] sm:$0xf]
    %v298 = vld [vmem:[#allocation2 + $0x3f8] sm:$0xf]
    %v299 = vld [vmem:[#allocation2 + $0x3fc] sm:$0xf]
    %v308 = vunpack.c.l.b16 %v36
    %v309 = vunpack.c.h.b16 %v36
    %v310 = vunpack.c.l.b16 %v37
    %v311 = vunpack.c.h.b16 %v37
    %v312 = vunpack.c.l.b16 %v38
    %v313 = vunpack.c.h.b16 %v38
    %v314 = vunpack.c.l.b16 %v39
    %v315 = vunpack.c.h.b16 %v39
    %v316 = vunpack.c.l.b16 %v40
    %v317 = vunpack.c.h.b16 %v40
    %v318 = vunpack.c.l.b16 %v41
    %v319 = vunpack.c.h.b16 %v41
    %v320 = vunpack.c.l.b16 %v42
    %v321 = vunpack.c.h.b16 %v42
    %v322 = vunpack.c.l.b16 %v43
    %v323 = vunpack.c.h.b16 %v43
    %v324 = vpack.c.b16 %v308, %v308
    %v325 = vpack.c.b16 %v309, %v309
    %v326 = vpack.c.b16 %v310, %v310
    %v327 = vpack.c.b16 %v311, %v311
    %v328 = vpack.c.b16 %v312, %v312
    %v329 = vpack.c.b16 %v313, %v313
    %v330 = vpack.c.b16 %v314, %v314
    %v331 = vpack.c.b16 %v315, %v315
    %v332 = vpack.c.b16 %v316, %v316
    %v333 = vpack.c.b16 %v317, %v317
    %v334 = vpack.c.b16 %v318, %v318
    %v335 = vpack.c.b16 %v319, %v319
    %v336 = vpack.c.b16 %v320, %v320
    %v337 = vpack.c.b16 %v321, %v321
    %v338 = vpack.c.b16 %v322, %v322
    %v339 = vpack.c.b16 %v323, %v323
    %v612 = vunpack.c.l.b16 %v44
    %v613 = vunpack.c.l.b16 %v45
    %v614 = vunpack.c.l.b16 %v46
    %v615 = vunpack.c.l.b16 %v47
    %v616 = vunpack.c.l.b16 %v48
    %v617 = vunpack.c.l.b16 %v49
    %v618 = vunpack.c.l.b16 %v50
    %v619 = vunpack.c.l.b16 %v51
    %v620 = vunpack.c.l.b16 %v52
    %v621 = vunpack.c.l.b16 %v53
    %v622 = vunpack.c.l.b16 %v54
    %v623 = vunpack.c.l.b16 %v55
    %v624 = vunpack.c.l.b16 %v56
    %v625 = vunpack.c.l.b16 %v57
    %v626 = vunpack.c.l.b16 %v58
    %v627 = vunpack.c.l.b16 %v59
    %v628 = vunpack.c.l.b16 %v60
    %v629 = vunpack.c.l.b16 %v61
    %v630 = vunpack.c.l.b16 %v62
    %v631 = vunpack.c.l.b16 %v63
    %v632 = vunpack.c.l.b16 %v64
    %v633 = vunpack.c.l.b16 %v65
    %v634 = vunpack.c.l.b16 %v66
    %v635 = vunpack.c.l.b16 %v67
    %v636 = vunpack.c.l.b16 %v68
    %v637 = vunpack.c.l.b16 %v69
    %v638 = vunpack.c.l.b16 %v70
    %v639 = vunpack.c.l.b16 %v71
    %v640 = vunpack.c.l.b16 %v72
    %v641 = vunpack.c.l.b16 %v73
    %v642 = vunpack.c.l.b16 %v74
    %v643 = vunpack.c.l.b16 %v75
    %v644 = vunpack.c.l.b16 %v76
    %v645 = vunpack.c.l.b16 %v77
    %v646 = vunpack.c.l.b16 %v78
    %v647 = vunpack.c.l.b16 %v79
    %v648 = vunpack.c.l.b16 %v80
    %v649 = vunpack.c.l.b16 %v81
    %v650 = vunpack.c.l.b16 %v82
    %v651 = vunpack.c.l.b16 %v83
    %v652 = vunpack.c.l.b16 %v84
    %v653 = vunpack.c.l.b16 %v85
    %v654 = vunpack.c.l.b16 %v86
    %v655 = vunpack.c.l.b16 %v87
    %v656 = vunpack.c.l.b16 %v88
    %v657 = vunpack.c.l.b16 %v89
    %v658 = vunpack.c.l.b16 %v90
    %v659 = vunpack.c.l.b16 %v91
    %v660 = vunpack.c.l.b16 %v92
    %v661 = vunpack.c.l.b16 %v93
    %v662 = vunpack.c.l.b16 %v94
    %v663 = vunpack.c.l.b16 %v95
    %v664 = vunpack.c.l.b16 %v96
    %v665 = vunpack.c.l.b16 %v97
    %v666 = vunpack.c.l.b16 %v98
    %v667 = vunpack.c.l.b16 %v99
    %v668 = vunpack.c.l.b16 %v100
    %v669 = vunpack.c.l.b16 %v101
    %v670 = vunpack.c.l.b16 %v102
    %v671 = vunpack.c.l.b16 %v103
    %v672 = vunpack.c.l.b16 %v104
    %v673 = vunpack.c.l.b16 %v105
    %v674 = vunpack.c.l.b16 %v106
    %v675 = vunpack.c.l.b16 %v107
    %v676 = vunpack.c.l.b16 %v108
    %v677 = vunpack.c.l.b16 %v109
    %v678 = vunpack.c.l.b16 %v110
    %v679 = vunpack.c.l.b16 %v111
    %v680 = vunpack.c.l.b16 %v112
    %v681 = vunpack.c.l.b16 %v113
    %v682 = vunpack.c.l.b16 %v114
    %v683 = vunpack.c.l.b16 %v115
    %v684 = vunpack.c.l.b16 %v116
    %v685 = vunpack.c.l.b16 %v117
    %v686 = vunpack.c.l.b16 %v118
    %v687 = vunpack.c.l.b16 %v119
    %v688 = vunpack.c.l.b16 %v120
    %v689 = vunpack.c.l.b16 %v121
    %v690 = vunpack.c.l.b16 %v122
    %v691 = vunpack.c.l.b16 %v123
    %v692 = vunpack.c.l.b16 %v124
    %v693 = vunpack.c.l.b16 %v125
    %v694 = vunpack.c.l.b16 %v126
    %v695 = vunpack.c.l.b16 %v127
    %v696 = vunpack.c.l.b16 %v128
    %v697 = vunpack.c.l.b16 %v129
    %v698 = vunpack.c.l.b16 %v130
    %v699 = vunpack.c.l.b16 %v131
    %v700 = vunpack.c.l.b16 %v132
    %v701 = vunpack.c.l.b16 %v133
    %v702 = vunpack.c.l.b16 %v134
    %v703 = vunpack.c.l.b16 %v135
    %v704 = vunpack.c.l.b16 %v136
    %v705 = vunpack.c.l.b16 %v137
    %v706 = vunpack.c.l.b16 %v138
    %v707 = vunpack.c.l.b16 %v139
    %v708 = vunpack.c.l.b16 %v140
    %v709 = vunpack.c.l.b16 %v141
    %v710 = vunpack.c.l.b16 %v142
    %v711 = vunpack.c.l.b16 %v143
    %v712 = vunpack.c.l.b16 %v144
    %v713 = vunpack.c.l.b16 %v145
    %v714 = vunpack.c.l.b16 %v146
    %v715 = vunpack.c.l.b16 %v147
    %v716 = vunpack.c.l.b16 %v148
    %v717 = vunpack.c.l.b16 %v149
    %v718 = vunpack.c.l.b16 %v150
    %v719 = vunpack.c.l.b16 %v151
    %v720 = vunpack.c.l.b16 %v152
    %v721 = vunpack.c.l.b16 %v153
    %v722 = vunpack.c.l.b16 %v154
    %v723 = vunpack.c.l.b16 %v155
    %v724 = vunpack.c.l.b16 %v156
    %v725 = vunpack.c.l.b16 %v157
    %v726 = vunpack.c.l.b16 %v158
    %v727 = vunpack.c.l.b16 %v159
    %v728 = vunpack.c.l.b16 %v160
    %v729 = vunpack.c.l.b16 %v161
    %v730 = vunpack.c.l.b16 %v162
    %v731 = vunpack.c.l.b16 %v163
    %v732 = vunpack.c.l.b16 %v164
    %v733 = vunpack.c.l.b16 %v165
    %v734 = vunpack.c.l.b16 %v166
    %v735 = vunpack.c.l.b16 %v167
    %v736 = vunpack.c.l.b16 %v168
    %v737 = vunpack.c.l.b16 %v169
    %v738 = vunpack.c.l.b16 %v170
    %v739 = vunpack.c.l.b16 %v171
    %v740 = vunpack.c.l.b16 %v172
    %v741 = vunpack.c.l.b16 %v173
    %v742 = vunpack.c.l.b16 %v174
    %v743 = vunpack.c.l.b16 %v175
    %v744 = vunpack.c.l.b16 %v176
    %v745 = vunpack.c.l.b16 %v177
    %v746 = vunpack.c.l.b16 %v178
    %v747 = vunpack.c.l.b16 %v179
    %v748 = vunpack.c.l.b16 %v180
    %v749 = vunpack.c.l.b16 %v181
    %v750 = vunpack.c.l.b16 %v182
    %v751 = vunpack.c.l.b16 %v183
    %v752 = vunpack.c.l.b16 %v184
    %v753 = vunpack.c.l.b16 %v185
    %v754 = vunpack.c.l.b16 %v186
    %v755 = vunpack.c.l.b16 %v187
    %v756 = vunpack.c.l.b16 %v188
    %v757 = vunpack.c.l.b16 %v189
    %v758 = vunpack.c.l.b16 %v190
    %v759 = vunpack.c.l.b16 %v191
    %v760 = vunpack.c.l.b16 %v192
    %v761 = vunpack.c.l.b16 %v193
    %v762 = vunpack.c.l.b16 %v194
    %v763 = vunpack.c.l.b16 %v195
    %v764 = vunpack.c.l.b16 %v196
    %v765 = vunpack.c.l.b16 %v197
    %v766 = vunpack.c.l.b16 %v198
    %v767 = vunpack.c.l.b16 %v199
    %v768 = vunpack.c.l.b16 %v200
    %v769 = vunpack.c.l.b16 %v201
    %v770 = vunpack.c.l.b16 %v202
    %v771 = vunpack.c.l.b16 %v203
    %v772 = vunpack.c.l.b16 %v204
    %v773 = vunpack.c.l.b16 %v205
    %v774 = vunpack.c.l.b16 %v206
    %v775 = vunpack.c.l.b16 %v207
    %v776 = vunpack.c.l.b16 %v208
    %v777 = vunpack.c.l.b16 %v209
    %v778 = vunpack.c.l.b16 %v210
    %v779 = vunpack.c.l.b16 %v211
    %v780 = vunpack.c.l.b16 %v212
    %v781 = vunpack.c.l.b16 %v213
    %v782 = vunpack.c.l.b16 %v214
    %v783 = vunpack.c.l.b16 %v215
    %v784 = vunpack.c.l.b16 %v216
    %v785 = vunpack.c.l.b16 %v217
    %v786 = vunpack.c.l.b16 %v218
    %v787 = vunpack.c.l.b16 %v219
    %v788 = vunpack.c.l.b16 %v220
    %v789 = vunpack.c.l.b16 %v221
    %v790 = vunpack.c.l.b16 %v222
    %v791 = vunpack.c.l.b16 %v223
    %v792 = vunpack.c.l.b16 %v224
    %v793 = vunpack.c.l.b16 %v225
    %v794 = vunpack.c.l.b16 %v226
    %v795 = vunpack.c.l.b16 %v227
    %v796 = vunpack.c.l.b16 %v228
    %v797 = vunpack.c.l.b16 %v229
    %v798 = vunpack.c.l.b16 %v230
    %v799 = vunpack.c.l.b16 %v231
    %v800 = vunpack.c.l.b16 %v232
    %v801 = vunpack.c.l.b16 %v233
    %v802 = vunpack.c.l.b16 %v234
    %v803 = vunpack.c.l.b16 %v235
    %v804 = vunpack.c.l.b16 %v236
    %v805 = vunpack.c.l.b16 %v237
    %v806 = vunpack.c.l.b16 %v238
    %v807 = vunpack.c.l.b16 %v239
    %v808 = vunpack.c.l.b16 %v240
    %v809 = vunpack.c.l.b16 %v241
    %v810 = vunpack.c.l.b16 %v242
    %v811 = vunpack.c.l.b16 %v243
    %v812 = vunpack.c.l.b16 %v244
    %v813 = vunpack.c.l.b16 %v245
    %v814 = vunpack.c.l.b16 %v246
    %v815 = vunpack.c.l.b16 %v247
    %v816 = vunpack.c.l.b16 %v248
    %v817 = vunpack.c.l.b16 %v249
    %v818 = vunpack.c.l.b16 %v250
    %v819 = vunpack.c.l.b16 %v251
    %v820 = vunpack.c.l.b16 %v252
    %v821 = vunpack.c.l.b16 %v253
    %v822 = vunpack.c.l.b16 %v254
    %v823 = vunpack.c.l.b16 %v255
    %v824 = vunpack.c.l.b16 %v256
    %v825 = vunpack.c.l.b16 %v257
    %v826 = vunpack.c.l.b16 %v258
    %v827 = vunpack.c.l.b16 %v259
    %v828 = vunpack.c.l.b16 %v260
    %v829 = vunpack.c.l.b16 %v261
    %v830 = vunpack.c.l.b16 %v262
    %v831 = vunpack.c.l.b16 %v263
    %v832 = vunpack.c.l.b16 %v264
    %v833 = vunpack.c.l.b16 %v265
    %v834 = vunpack.c.l.b16 %v266
    %v835 = vunpack.c.l.b16 %v267
    %v836 = vunpack.c.l.b16 %v268
    %v837 = vunpack.c.l.b16 %v269
    %v838 = vunpack.c.l.b16 %v270
    %v839 = vunpack.c.l.b16 %v271
    %v840 = vunpack.c.l.b16 %v272
    %v841 = vunpack.c.l.b16 %v273
    %v842 = vunpack.c.l.b16 %v274
    %v843 = vunpack.c.l.b16 %v275
    %v844 = vunpack.c.l.b16 %v276
    %v845 = vunpack.c.l.b16 %v277
    %v846 = vunpack.c.l.b16 %v278
    %v847 = vunpack.c.l.b16 %v279
    %v848 = vunpack.c.l.b16 %v280
    %v849 = vunpack.c.l.b16 %v281
    %v850 = vunpack.c.l.b16 %v282
    %v851 = vunpack.c.l.b16 %v283
    %v852 = vunpack.c.l.b16 %v284
    %v853 = vunpack.c.l.b16 %v285
    %v854 = vunpack.c.l.b16 %v286
    %v855 = vunpack.c.l.b16 %v287
    %v856 = vunpack.c.l.b16 %v288
    %v857 = vunpack.c.l.b16 %v289
    %v858 = vunpack.c.l.b16 %v290
    %v859 = vunpack.c.l.b16 %v291
    %v860 = vunpack.c.l.b16 %v292
    %v861 = vunpack.c.l.b16 %v293
    %v862 = vunpack.c.l.b16 %v294
    %v863 = vunpack.c.l.b16 %v295
    %v864 = vunpack.c.l.b16 %v296
    %v865 = vunpack.c.l.b16 %v297
    %v866 = vunpack.c.l.b16 %v298
    %v867 = vunpack.c.l.b16 %v299
    %v868 = vpack.c.b16 %v613, %v612
    %v869 = vpack.c.b16 %v615, %v614
    %v870 = vpack.c.b16 %v617, %v616
    %v871 = vpack.c.b16 %v619, %v618
    %v872 = vpack.c.b16 %v621, %v620
    %v873 = vpack.c.b16 %v623, %v622
    %v874 = vpack.c.b16 %v625, %v624
    %v875 = vpack.c.b16 %v627, %v626
    %v876 = vpack.c.b16 %v629, %v628
    %v877 = vpack.c.b16 %v631, %v630
    %v878 = vpack.c.b16 %v633, %v632
    %v879 = vpack.c.b16 %v635, %v634
    %v880 = vpack.c.b16 %v637, %v636
    %v881 = vpack.c.b16 %v639, %v638
    %v882 = vpack.c.b16 %v641, %v640
    %v883 = vpack.c.b16 %v643, %v642
    %v884 = vpack.c.b16 %v645, %v644
    %v885 = vpack.c.b16 %v647, %v646
    %v886 = vpack.c.b16 %v649, %v648
    %v887 = vpack.c.b16 %v651, %v650
    %v888 = vpack.c.b16 %v653, %v652
    %v889 = vpack.c.b16 %v655, %v654
    %v890 = vpack.c.b16 %v657, %v656
    %v891 = vpack.c.b16 %v659, %v658
    %v892 = vpack.c.b16 %v661, %v660
    %v893 = vpack.c.b16 %v663, %v662
    %v894 = vpack.c.b16 %v665, %v664
    %v895 = vpack.c.b16 %v667, %v666
    %v896 = vpack.c.b16 %v669, %v668
    %v897 = vpack.c.b16 %v671, %v670
    %v898 = vpack.c.b16 %v673, %v672
    %v899 = vpack.c.b16 %v675, %v674
    %v900 = vpack.c.b16 %v677, %v676
    %v901 = vpack.c.b16 %v679, %v678
    %v902 = vpack.c.b16 %v681, %v680
    %v903 = vpack.c.b16 %v683, %v682
    %v904 = vpack.c.b16 %v685, %v684
    %v905 = vpack.c.b16 %v687, %v686
    %v906 = vpack.c.b16 %v689, %v688
    %v907 = vpack.c.b16 %v691, %v690
    %v908 = vpack.c.b16 %v693, %v692
    %v909 = vpack.c.b16 %v695, %v694
    %v910 = vpack.c.b16 %v697, %v696
    %v911 = vpack.c.b16 %v699, %v698
    %v912 = vpack.c.b16 %v701, %v700
    %v913 = vpack.c.b16 %v703, %v702
    %v914 = vpack.c.b16 %v705, %v704
    %v915 = vpack.c.b16 %v707, %v706
    %v916 = vpack.c.b16 %v709, %v708
    %v917 = vpack.c.b16 %v711, %v710
    %v918 = vpack.c.b16 %v713, %v712
    %v919 = vpack.c.b16 %v715, %v714
    %v920 = vpack.c.b16 %v717, %v716
    %v921 = vpack.c.b16 %v719, %v718
    %v922 = vpack.c.b16 %v721, %v720
    %v923 = vpack.c.b16 %v723, %v722
    %v924 = vpack.c.b16 %v725, %v724
    %v925 = vpack.c.b16 %v727, %v726
    %v926 = vpack.c.b16 %v729, %v728
    %v927 = vpack.c.b16 %v731, %v730
    %v928 = vpack.c.b16 %v733, %v732
    %v929 = vpack.c.b16 %v735, %v734
    %v930 = vpack.c.b16 %v737, %v736
    %v931 = vpack.c.b16 %v739, %v738
    %v932 = vpack.c.b16 %v741, %v740
    %v933 = vpack.c.b16 %v743, %v742
    %v934 = vpack.c.b16 %v745, %v744
    %v935 = vpack.c.b16 %v747, %v746
    %v936 = vpack.c.b16 %v749, %v748
    %v937 = vpack.c.b16 %v751, %v750
    %v938 = vpack.c.b16 %v753, %v752
    %v939 = vpack.c.b16 %v755, %v754
    %v940 = vpack.c.b16 %v757, %v756
    %v941 = vpack.c.b16 %v759, %v758
    %v942 = vpack.c.b16 %v761, %v760
    %v943 = vpack.c.b16 %v763, %v762
    %v944 = vpack.c.b16 %v765, %v764
    %v945 = vpack.c.b16 %v767, %v766
    %v946 = vpack.c.b16 %v769, %v768
    %v947 = vpack.c.b16 %v771, %v770
    %v948 = vpack.c.b16 %v773, %v772
    %v949 = vpack.c.b16 %v775, %v774
    %v950 = vpack.c.b16 %v777, %v776
    %v951 = vpack.c.b16 %v779, %v778
    %v952 = vpack.c.b16 %v781, %v780
    %v953 = vpack.c.b16 %v783, %v782
    %v954 = vpack.c.b16 %v785, %v784
    %v955 = vpack.c.b16 %v787, %v786
    %v956 = vpack.c.b16 %v789, %v788
    %v957 = vpack.c.b16 %v791, %v790
    %v958 = vpack.c.b16 %v793, %v792
    %v959 = vpack.c.b16 %v795, %v794
    %v960 = vpack.c.b16 %v797, %v796
    %v961 = vpack.c.b16 %v799, %v798
    %v962 = vpack.c.b16 %v801, %v800
    %v963 = vpack.c.b16 %v803, %v802
    %v964 = vpack.c.b16 %v805, %v804
    %v965 = vpack.c.b16 %v807, %v806
    %v966 = vpack.c.b16 %v809, %v808
    %v967 = vpack.c.b16 %v811, %v810
    %v968 = vpack.c.b16 %v813, %v812
    %v969 = vpack.c.b16 %v815, %v814
    %v970 = vpack.c.b16 %v817, %v816
    %v971 = vpack.c.b16 %v819, %v818
    %v972 = vpack.c.b16 %v821, %v820
    %v973 = vpack.c.b16 %v823, %v822
    %v974 = vpack.c.b16 %v825, %v824
    %v975 = vpack.c.b16 %v827, %v826
    %v976 = vpack.c.b16 %v829, %v828
    %v977 = vpack.c.b16 %v831, %v830
    %v978 = vpack.c.b16 %v833, %v832
    %v979 = vpack.c.b16 %v835, %v834
    %v980 = vpack.c.b16 %v837, %v836
    %v981 = vpack.c.b16 %v839, %v838
    %v982 = vpack.c.b16 %v841, %v840
    %v983 = vpack.c.b16 %v843, %v842
    %v984 = vpack.c.b16 %v845, %v844
    %v985 = vpack.c.b16 %v847, %v846
    %v986 = vpack.c.b16 %v849, %v848
    %v987 = vpack.c.b16 %v851, %v850
    %v988 = vpack.c.b16 %v853, %v852
    %v989 = vpack.c.b16 %v855, %v854
    %v990 = vpack.c.b16 %v857, %v856
    %v991 = vpack.c.b16 %v859, %v858
    %v992 = vpack.c.b16 %v861, %v860
    %v993 = vpack.c.b16 %v863, %v862
    %v994 = vpack.c.b16 %v865, %v864
    %v995 = vpack.c.b16 %v867, %v866
    %1124 = vmatpush.bf16.msra.mxu0 %v875
    %1125 = vmatpush.bf16.msra.mxu0 %v874
    %1126 = vmatpush.bf16.msra.mxu0 %v873
    %1127 = vmatpush.bf16.msra.mxu0 %v872
    %1128 = vmatpush.bf16.msra.mxu0 %v871
    %1129 = vmatpush.bf16.msra.mxu0 %v870
    %1130 = vmatpush.bf16.msra.mxu0 %v869
    %1131 = vmatpush.bf16.msra.mxu0 %v868
    %1132 = vmatmul.bf16.gmra.mxu0 %v324
    %v1133 = vpop.f32.mrf.mxu0
    %v1134 = vadd.f32 0.0, %v1133
    %v1135 = vpop.f32.mrf.mxu0
    %1136 = vdwg.mxu0
    %1137 = vmatpush.bf16.msra.mxu0 %v883
    %1138 = vmatpush.bf16.msra.mxu0 %v882
    %1139 = vmatpush.bf16.msra.mxu0 %v881
    %1140 = vmatpush.bf16.msra.mxu0 %v880
    %1141 = vmatpush.bf16.msra.mxu0 %v879
    %1142 = vmatpush.bf16.msra.mxu0 %v878
    %1143 = vmatpush.bf16.msra.mxu0 %v877
    %1144 = vmatpush.bf16.msra.mxu0 %v876
    %1145 = vmatmul.bf16.gmra.mxu0 %v325
    %v1146 = vpop.f32.mrf.mxu0
    %v1147 = vadd.f32 %v1134, %v1146
    %v1148 = vpop.f32.mrf.mxu0
    %1149 = vdwg.mxu0
    %1150 = vmatpush.bf16.msra.mxu0 %v891
    %1151 = vmatpush.bf16.msra.mxu0 %v890
    %1152 = vmatpush.bf16.msra.mxu0 %v889
    %1153 = vmatpush.bf16.msra.mxu0 %v888
    %1154 = vmatpush.bf16.msra.mxu0 %v887
    %1155 = vmatpush.bf16.msra.mxu0 %v886
    %1156 = vmatpush.bf16.msra.mxu0 %v885
    %1157 = vmatpush.bf16.msra.mxu0 %v884
    %1158 = vmatmul.bf16.gmra.mxu0 %v326
    %v1159 = vpop.f32.mrf.mxu0
    %v1160 = vadd.f32 %v1147, %v1159
    %v1161 = vpop.f32.mrf.mxu0
    %1162 = vdwg.mxu0
    %1163 = vmatpush.bf16.msra.mxu0 %v899
    %1164 = vmatpush.bf16.msra.mxu0 %v898
    %1165 = vmatpush.bf16.msra.mxu0 %v897
    %1166 = vmatpush.bf16.msra.mxu0 %v896
    %1167 = vmatpush.bf16.msra.mxu0 %v895
    %1168 = vmatpush.bf16.msra.mxu0 %v894
    %1169 = vmatpush.bf16.msra.mxu0 %v893
    %1170 = vmatpush.bf16.msra.mxu0 %v892
    %1171 = vmatmul.bf16.gmra.mxu0 %v327
    %v1172 = vpop.f32.mrf.mxu0
    %v1173 = vadd.f32 %v1160, %v1172
    %v1174 = vpop.f32.mrf.mxu0
    %1175 = vdwg.mxu0
    %1176 = vmatpush.bf16.msra.mxu0 %v907
    %1177 = vmatpush.bf16.msra.mxu0 %v906
    %1178 = vmatpush.bf16.msra.mxu0 %v905
    %1179 = vmatpush.bf16.msra.mxu0 %v904
    %1180 = vmatpush.bf16.msra.mxu0 %v903
    %1181 = vmatpush.bf16.msra.mxu0 %v902
    %1182 = vmatpush.bf16.msra.mxu0 %v901
    %1183 = vmatpush.bf16.msra.mxu0 %v900
    %1184 = vmatmul.bf16.gmra.mxu0 %v328
    %v1185 = vpop.f32.mrf.mxu0
    %v1186 = vadd.f32 %v1173, %v1185
    %v1187 = vpop.f32.mrf.mxu0
    %1188 = vdwg.mxu0
    %1189 = vmatpush.bf16.msra.mxu0 %v915
    %1190 = vmatpush.bf16.msra.mxu0 %v914
    %1191 = vmatpush.bf16.msra.mxu0 %v913
    %1192 = vmatpush.bf16.msra.mxu0 %v912
    %1193 = vmatpush.bf16.msra.mxu0 %v911
    %1194 = vmatpush.bf16.msra.mxu0 %v910
    %1195 = vmatpush.bf16.msra.mxu0 %v909
    %1196 = vmatpush.bf16.msra.mxu0 %v908
    %1197 = vmatmul.bf16.gmra.mxu0 %v329
    %v1198 = vpop.f32.mrf.mxu0
    %v1199 = vadd.f32 %v1186, %v1198
    %v1200 = vpop.f32.mrf.mxu0
    %1201 = vdwg.mxu0
    %1202 = vmatpush.bf16.msra.mxu0 %v923
    %1203 = vmatpush.bf16.msra.mxu0 %v922
    %1204 = vmatpush.bf16.msra.mxu0 %v921
    %1205 = vmatpush.bf16.msra.mxu0 %v920
    %1206 = vmatpush.bf16.msra.mxu0 %v919
    %1207 = vmatpush.bf16.msra.mxu0 %v918
    %1208 = vmatpush.bf16.msra.mxu0 %v917
    %1209 = vmatpush.bf16.msra.mxu0 %v916
    %1210 = vmatmul.bf16.gmra.mxu0 %v330
    %v1211 = vpop.f32.mrf.mxu0
    %v1212 = vadd.f32 %v1199, %v1211
    %v1213 = vpop.f32.mrf.mxu0
    %1214 = vdwg.mxu0
    %1215 = vmatpush.bf16.msra.mxu0 %v931
    %1216 = vmatpush.bf16.msra.mxu0 %v930
    %1217 = vmatpush.bf16.msra.mxu0 %v929
    %1218 = vmatpush.bf16.msra.mxu0 %v928
    %1219 = vmatpush.bf16.msra.mxu0 %v927
    %1220 = vmatpush.bf16.msra.mxu0 %v926
    %1221 = vmatpush.bf16.msra.mxu0 %v925
    %1222 = vmatpush.bf16.msra.mxu0 %v924
    %1223 = vmatmul.bf16.gmra.mxu0 %v331
    %v1224 = vpop.f32.mrf.mxu0
    %v1225 = vadd.f32 %v1212, %v1224
    %v1226 = vpop.f32.mrf.mxu0
    %1227 = vdwg.mxu0
    %1228 = vmatpush.bf16.msra.mxu0 %v939
    %1229 = vmatpush.bf16.msra.mxu0 %v938
    %1230 = vmatpush.bf16.msra.mxu0 %v937
    %1231 = vmatpush.bf16.msra.mxu0 %v936
    %1232 = vmatpush.bf16.msra.mxu0 %v935
    %1233 = vmatpush.bf16.msra.mxu0 %v934
    %1234 = vmatpush.bf16.msra.mxu0 %v933
    %1235 = vmatpush.bf16.msra.mxu0 %v932
    %1236 = vmatmul.bf16.gmra.mxu0 %v332
    %v1237 = vpop.f32.mrf.mxu0
    %v1238 = vadd.f32 %v1225, %v1237
    %v1239 = vpop.f32.mrf.mxu0
    %1240 = vdwg.mxu0
    %1241 = vmatpush.bf16.msra.mxu0 %v947
    %1242 = vmatpush.bf16.msra.mxu0 %v946
    %1243 = vmatpush.bf16.msra.mxu0 %v945
    %1244 = vmatpush.bf16.msra.mxu0 %v944
    %1245 = vmatpush.bf16.msra.mxu0 %v943
    %1246 = vmatpush.bf16.msra.mxu0 %v942
    %1247 = vmatpush.bf16.msra.mxu0 %v941
    %1248 = vmatpush.bf16.msra.mxu0 %v940
    %1249 = vmatmul.bf16.gmra.mxu0 %v333
    %v1250 = vpop.f32.mrf.mxu0
    %v1251 = vadd.f32 %v1238, %v1250
    %v1252 = vpop.f32.mrf.mxu0
    %1253 = vdwg.mxu0
    %1254 = vmatpush.bf16.msra.mxu0 %v955
    %1255 = vmatpush.bf16.msra.mxu0 %v954
    %1256 = vmatpush.bf16.msra.mxu0 %v953
    %1257 = vmatpush.bf16.msra.mxu0 %v952
    %1258 = vmatpush.bf16.msra.mxu0 %v951
    %1259 = vmatpush.bf16.msra.mxu0 %v950
    %1260 = vmatpush.bf16.msra.mxu0 %v949
    %1261 = vmatpush.bf16.msra.mxu0 %v948
    %1262 = vmatmul.bf16.gmra.mxu0 %v334
    %v1263 = vpop.f32.mrf.mxu0
    %v1264 = vadd.f32 %v1251, %v1263
    %v1265 = vpop.f32.mrf.mxu0
    %1266 = vdwg.mxu0
    %1267 = vmatpush.bf16.msra.mxu0 %v963
    %1268 = vmatpush.bf16.msra.mxu0 %v962
    %1269 = vmatpush.bf16.msra.mxu0 %v961
    %1270 = vmatpush.bf16.msra.mxu0 %v960
    %1271 = vmatpush.bf16.msra.mxu0 %v959
    %1272 = vmatpush.bf16.msra.mxu0 %v958
    %1273 = vmatpush.bf16.msra.mxu0 %v957
    %1274 = vmatpush.bf16.msra.mxu0 %v956
    %1275 = vmatmul.bf16.gmra.mxu0 %v335
    %v1276 = vpop.f32.mrf.mxu0
    %v1277 = vadd.f32 %v1264, %v1276
    %v1278 = vpop.f32.mrf.mxu0
    %1279 = vdwg.mxu0
    %1280 = vmatpush.bf16.msra.mxu0 %v971
    %1281 = vmatpush.bf16.msra.mxu0 %v970
    %1282 = vmatpush.bf16.msra.mxu0 %v969
    %1283 = vmatpush.bf16.msra.mxu0 %v968
    %1284 = vmatpush.bf16.msra.mxu0 %v967
    %1285 = vmatpush.bf16.msra.mxu0 %v966
    %1286 = vmatpush.bf16.msra.mxu0 %v965
    %1287 = vmatpush.bf16.msra.mxu0 %v964
    %1288 = vmatmul.bf16.gmra.mxu0 %v336
    %v1289 = vpop.f32.mrf.mxu0
    %v1290 = vadd.f32 %v1277, %v1289
    %v1291 = vpop.f32.mrf.mxu0
    %1292 = vdwg.mxu0
    %1293 = vmatpush.bf16.msra.mxu0 %v979
    %1294 = vmatpush.bf16.msra.mxu0 %v978
    %1295 = vmatpush.bf16.msra.mxu0 %v977
    %1296 = vmatpush.bf16.msra.mxu0 %v976
    %1297 = vmatpush.bf16.msra.mxu0 %v975
    %1298 = vmatpush.bf16.msra.mxu0 %v974
    %1299 = vmatpush.bf16.msra.mxu0 %v973
    %1300 = vmatpush.bf16.msra.mxu0 %v972
    %1301 = vmatmul.bf16.gmra.mxu0 %v337
    %v1302 = vpop.f32.mrf.mxu0
    %v1303 = vadd.f32 %v1290, %v1302
    %v1304 = vpop.f32.mrf.mxu0
    %1305 = vdwg.mxu0
    %1306 = vmatpush.bf16.msra.mxu0 %v987
    %1307 = vmatpush.bf16.msra.mxu0 %v986
    %1308 = vmatpush.bf16.msra.mxu0 %v985
    %1309 = vmatpush.bf16.msra.mxu0 %v984
    %1310 = vmatpush.bf16.msra.mxu0 %v983
    %1311 = vmatpush.bf16.msra.mxu0 %v982
    %1312 = vmatpush.bf16.msra.mxu0 %v981
    %1313 = vmatpush.bf16.msra.mxu0 %v980
    %1314 = vmatmul.bf16.gmra.mxu0 %v338
    %v1315 = vpop.f32.mrf.mxu0
    %v1316 = vadd.f32 %v1303, %v1315
    %v1317 = vpop.f32.mrf.mxu0
    %1318 = vdwg.mxu0
    %1319 = vmatpush.bf16.msra.mxu0 %v995
    %1320 = vmatpush.bf16.msra.mxu0 %v994
    %1321 = vmatpush.bf16.msra.mxu0 %v993
    %1322 = vmatpush.bf16.msra.mxu0 %v992
    %1323 = vmatpush.bf16.msra.mxu0 %v991
    %1324 = vmatpush.bf16.msra.mxu0 %v990
    %1325 = vmatpush.bf16.msra.mxu0 %v989
    %1326 = vmatpush.bf16.msra.mxu0 %v988
    %1327 = vmatmul.bf16.gmra.mxu0 %v339
    %v1328 = vpop.f32.mrf.mxu0
    %v1329 = vadd.f32 %v1316, %v1328
    %v1330 = vpop.f32.mrf.mxu0
    %1331 = vdwg.mxu0
    %v1332 = vld [vmem:[%s2] sm:$0x1]
    %v1333 = vperm.slane %v1332, 0
    %v1334 = vmul.f32 %v1329, %v1333
    %v1335 = vld [vmem:[%s2 + $0x1] sm:$0x1]
    %v1336 = vperm.slane %v1335, 0
    %v1337 = vadd.f32 %v1334, %v1336
    %v1338 = vmax.f32 %v1337, 0.0
    %v1339 = vpack.c.bf16 %v1338, %v1338
    %v1340 = vld [vmem:[%s3] sm:$0xf]
    %v1341 = vld [vmem:[%s3 + $0x4] sm:$0xf]
    %v1342 = vld [vmem:[%s3 + $0x8] sm:$0xf]
    %v1343 = vld [vmem:[%s3 + $0xc] sm:$0xf]
    %v1344 = vld [vmem:[%s3 + $0x10] sm:$0xf]
    %v1345 = vld [vmem:[%s3 + $0x14] sm:$0xf]
    %v1346 = vld [vmem:[%s3 + $0x18] sm:$0xf]
    %v1347 = vld [vmem:[%s3 + $0x1c] sm:$0xf]
    %v1348 = vld [vmem:[%s3 + $0x20] sm:$0xf]
    %v1349 = vld [vmem:[%s3 + $0x24] sm:$0xf]
    %v1350 = vld [vmem:[%s3 + $0x28] sm:$0xf]
    %v1351 = vld [vmem:[%s3 + $0x2c] sm:$0xf]
    %v1352 = vld [vmem:[%s3 + $0x30] sm:$0xf]
    %v1353 = vld [vmem:[%s3 + $0x34] sm:$0xf]
    %v1354 = vld [vmem:[%s3 + $0x38] sm:$0xf]
    %v1355 = vld [vmem:[%s3 + $0x3c] sm:$0xf]
    %v1372 = vunpack.c.l.b16 %v1340
    %v1373 = vunpack.c.l.b16 %v1341
    %v1374 = vunpack.c.l.b16 %v1342
    %v1375 = vunpack.c.l.b16 %v1343
    %v1376 = vunpack.c.l.b16 %v1344
    %v1377 = vunpack.c.l.b16 %v1345
    %v1378 = vunpack.c.l.b16 %v1346
    %v1379 = vunpack.c.l.b16 %v1347
    %v1380 = vunpack.c.l.b16 %v1348
    %v1381 = vunpack.c.l.b16 %v1349
    %v1382 = vunpack.c.l.b16 %v1350
    %v1383 = vunpack.c.l.b16 %v1351
    %v1384 = vunpack.c.l.b16 %v1352
    %v1385 = vunpack.c.l.b16 %v1353
    %v1386 = vunpack.c.l.b16 %v1354
    %v1387 = vunpack.c.l.b16 %v1355
    %v1388 = vpack.c.b16 %v1373, %v1372
    %v1389 = vpack.c.b16 %v1375, %v1374
    %v1390 = vpack.c.b16 %v1377, %v1376
    %v1391 = vpack.c.b16 %v1379, %v1378
    %v1392 = vpack.c.b16 %v1381, %v1380
    %v1393 = vpack.c.b16 %v1383, %v1382
    %v1394 = vpack.c.b16 %v1385, %v1384
    %v1395 = vpack.c.b16 %v1387, %v1386
    %1404 = vmatpush.bf16.msra.mxu0 %v1395
    %1405 = vmatpush.bf16.msra.mxu0 %v1394
    %1406 = vmatpush.bf16.msra.mxu0 %v1393
    %1407 = vmatpush.bf16.msra.mxu0 %v1392
    %1408 = vmatpush.bf16.msra.mxu0 %v1391
    %1409 = vmatpush.bf16.msra.mxu0 %v1390
    %1410 = vmatpush.bf16.msra.mxu0 %v1389
    %1411 = vmatpush.bf16.msra.mxu0 %v1388
    %1412 = vmatmul.bf16.gmra.mxu0 %v1339
    %v1413 = vpop.f32.mrf.mxu0
    %v1414 = vadd.f32 0.0, %v1413
    %v1415 = vpop.f32.mrf.mxu0
    %1416 = vdwg.mxu0
    %v1417 = vld [vmem:[%s4] sm:$0x1]
    %v1418 = vperm.slane %v1417, 0
    %v1419 = vmul.f32 %v1414, %v1418
    %v1420 = vld [vmem:[%s4 + $0x1] sm:$0x1]
    %v1421 = vperm.slane %v1420, 0
    %v1422 = vadd.f32 %v1419, %v1421
    %v1423 = vmax.f32 %v1422, 0.0
    %1424 = vst [vmem:[%s5] sm:$0xff] %v1423
    // Predicated region
    $region26: #{convolutional_encoder_forward.5} parent=1 // pred_check
      _
    $region27: #{convolutional_encoder_forward.5} parent=1 // pred_check_branch
      %1426 = sbr.rel (0) target = $region29
    $region28: #{convolutional_encoder_forward.5} parent=1 // pred_region
      _
    $region29: #{convolutional_encoder_forward.5} parent=1 // pred_fallthru
      _
    // Predicated region
    $region30: #{convolutional_encoder_forward.5} parent=1 // pred_check
      _
    $region31: #{convolutional_encoder_forward.5} parent=1 // pred_check_branch
      %1428 = sbr.rel (0) target = $region33
    $region32: #{convolutional_encoder_forward.5} parent=1 // pred_region
      _
    $region33: #{convolutional_encoder_forward.5} parent=1 // pred_fallthru
      _
    %1429 = vsyncpa [#allocation3], 1

// kernel: convolutional_encoder_forward.4
$region0: #{convolutional_encoder_forward.4}
  #allocation0 [shape = 'u32[]', space=smem, size = 0x4, offset = 0x4, fixed_abs, tag = 'smem constant byte address 0x4 - core index']
  #allocation1 [shape = 'u32[72,128]{1,0:T(1,128)}', space=vmem, size = 0x9000, scoped, tag = 'internal scratch']
  %s0 = inlined_call_operand.vmem [shape: bf16[2,66,256], index: 0, kind: input, shape index: {}]
  %s1 = inlined_call_operand.vmem [shape: bf16[9,256,256], index: 1, kind: input, shape index: {}]
  %s2 = inlined_call_operand.vmem [shape: f32[1,256], index: 2, kind: input, shape index: {}]
  %s3 = inlined_call_operand.vmem [shape: f32[1,256], index: 3, kind: input, shape index: {}]
  %s4 = inlined_call_operand.vmem [shape: bf16[2,16,128], index: 4, kind: output, shape index: {}]
  %s5 = sld [smem:[#allocation0]]
  $region49: #{convolutional_encoder_forward.4} parent=0
    _
  %s7 = ssub.s32 1, %s5
  %s8 = scalar_select 0, %s7, %s5
  loop: start=0, step=1, limit=4
  $region2: #{convolutional_encoder_forward.4} parent=0 // loop_pre_header
    _
  $region3: #{convolutional_encoder_forward.4} parent=0 // loop_header
    %s10 = sphi 0, %s14
    %p11 = scmp.ge.s32.totalorder %s10, 4
    %s20 = sphi 0, %s22
    %s23 = sphi 0, %s20
    %s24 = sphi 0, %s23
    %s40 = sphi 0, %s24
    %s44 = sphi 0, %s44
    %s46 = sphi 0, %s44
    %s47 = sphi 0, %s46
    %s61 = sphi 0, %s47
    %s65 = sphi 0, %s65
    %s67 = sphi 0, %s65
    %s68 = sphi 0, %s67
    %s82 = sphi 0, %s68
    %s86 = sphi 0, %s86
    %s88 = sphi 0, %s86
    %s89 = sphi 0, %s88
    %s103 = sphi 0, %s89
    %s109 = sphi 0, %s111
    %s112 = sphi 0, %s109
    %s113 = sphi 0, %s112
    %s129 = sphi 0, %s113
  $region4: #{convolutional_encoder_forward.4} parent=0 // loop_header_branch
    %13 = sbr.rel (%p11) target = $region8
  $region5: #{convolutional_encoder_forward.4} parent=0 // loop_body
    %s15 = ssub.s32 %s10, 1
    %s16 = ssub.s32 %s10, 2
    %s17 = sadd.s32 %s10, 1
    %s18 = ssub.s32 %s10, %s17
    %p19 = scmp.eq.s32.totalorder %s18, 0
    %s21 = sadd.s32 %s20, 1
    %s22 = scalar_select %p19, %s20, %s21
    %p25 = pneg %p19
    %p26 = scmp.eq.s32.totalorder %s10, 1
    %p27 = por %p25, %p26
    %p28 = scmp.ne.s32.totalorder %s20, %s23
    %p29 = scmp.eq.s32.totalorder %s10, 0
    %p30 = por %p28, %p29
    %p31 = scmp.ne.s32.totalorder %s20, %s23
    %p32 = scmp.eq.s32.totalorder %s15, 1
    %p33 = por %p31, %p32
    %p34 = scmp.ne.s32.totalorder %s23, %s24
    %p35 = scmp.eq.s32.totalorder %s15, 0
    %p36 = por %p34, %p35
    %p37 = scmp.ne.s32.totalorder %s23, %s24
    %p38 = scmp.eq.s32.totalorder %s16, 1
    %p39 = por %p37, %p38
    %p41 = scmp.ne.s32.totalorder %s24, %s40
    %p42 = scmp.eq.s32.totalorder %s16, 0
    %p43 = por %p41, %p42
    %s45 = sadd.s32 %s44, 1
    %p48 = scmp.eq.s32.totalorder %s10, 1
    %p49 = scmp.ne.s32.totalorder %s44, %s46
    %p50 = scmp.eq.s32.totalorder %s10, 0
    %p51 = por %p49, %p50
    %p52 = scmp.ne.s32.totalorder %s44, %s46
    %p53 = scmp.eq.s32.totalorder %s15, 1
    %p54 = por %p52, %p53
    %p55 = scmp.ne.s32.totalorder %s46, %s47
    %p56 = scmp.eq.s32.totalorder %s15, 0
    %p57 = por %p55, %p56
    %p58 = scmp.ne.s32.totalorder %s46, %s47
    %p59 = scmp.eq.s32.totalorder %s16, 1
    %p60 = por %p58, %p59
    %p62 = scmp.ne.s32.totalorder %s47, %s61
    %p63 = scmp.eq.s32.totalorder %s16, 0
    %p64 = por %p62, %p63
    %s66 = sadd.s32 %s65, 1
    %p69 = scmp.eq.s32.totalorder %s10, 1
    %p70 = scmp.ne.s32.totalorder %s65, %s67
    %p71 = scmp.eq.s32.totalorder %s10, 0
    %p72 = por %p70, %p71
    %p73 = scmp.ne.s32.totalorder %s65, %s67
    %p74 = scmp.eq.s32.totalorder %s15, 1
    %p75 = por %p73, %p74
    %p76 = scmp.ne.s32.totalorder %s67, %s68
    %p77 = scmp.eq.s32.totalorder %s15, 0
    %p78 = por %p76, %p77
    %p79 = scmp.ne.s32.totalorder %s67, %s68
    %p80 = scmp.eq.s32.totalorder %s16, 1
    %p81 = por %p79, %p80
    %p83 = scmp.ne.s32.totalorder %s68, %s82
    %p84 = scmp.eq.s32.totalorder %s16, 0
    %p85 = por %p83, %p84
    %s87 = sadd.s32 %s86, 1
    %p90 = scmp.eq.s32.totalorder %s10, 1
    %p91 = scmp.ne.s32.totalorder %s86, %s88
    %p92 = scmp.eq.s32.totalorder %s10, 0
    %p93 = por %p91, %p92
    %p94 = scmp.ne.s32.totalorder %s86, %s88
    %p95 = scmp.eq.s32.totalorder %s15, 1
    %p96 = por %p94, %p95
    %p97 = scmp.ne.s32.totalorder %s88, %s89
    %p98 = scmp.eq.s32.totalorder %s15, 0
    %p99 = por %p97, %p98
    %p100 = scmp.ne.s32.totalorder %s88, %s89
    %p101 = scmp.eq.s32.totalorder %s16, 1
    %p102 = por %p100, %p101
    %p104 = scmp.ne.s32.totalorder %s89, %s103
    %p105 = scmp.eq.s32.totalorder %s16, 0
    %p106 = por %p104, %p105
    %s107 = ssub.s32 %s10, %s17
    %p108 = scmp.eq.s32.totalorder %s107, 0
    %s110 = sadd.s32 %s109, 1
    %s111 = scalar_select %p108, %s109, %s110
    %p114 = pneg %p108
    %p115 = scmp.eq.s32.totalorder %s10, 1
    %p116 = por %p114, %p115
    %p117 = scmp.ne.s32.totalorder %s109, %s112
    %p118 = scmp.eq.s32.totalorder %s10, 0
    %p119 = por %p117, %p118
    %p120 = scmp.ne.s32.totalorder %s109, %s112
    %p121 = scmp.eq.s32.totalorder %s15, 1
    %p122 = por %p120, %p121
    %p123 = scmp.ne.s32.totalorder %s112, %s113
    %p124 = scmp.eq.s32.totalorder %s15, 0
    %p125 = por %p123, %p124
    %p126 = scmp.ne.s32.totalorder %s112, %s113
    %p127 = scmp.eq.s32.totalorder %s16, 1
    %p128 = por %p126, %p127
    %p130 = scmp.ne.s32.totalorder %s113, %s129
    %p131 = scmp.eq.s32.totalorder %s16, 0
    %p132 = por %p130, %p131
    %p133 = scmp.le.s32.totalorder 1, %s10
    %p134 = scmp.lt.s32.totalorder %s10, 3
    %p135 = pnand %p133, %p134
    %p136 = pneg %p135
    // Predicated region
    $region9: #{convolutional_encoder_forward.4} parent=5 // pred_check
      _
    $region10: #{convolutional_encoder_forward.4} parent=5 // pred_check_branch
      %138 = sbr.rel (%p135) target = $region12
    $region11: #{convolutional_encoder_forward.4} parent=5 // pred_region
      %s139 = ssub.s32 %s10, 1
      // Predicated region
      $region13: #{convolutional_encoder_forward.4} parent=11 // pred_check
        %p140 = pneg %p57
      $region14: #{convolutional_encoder_forward.4} parent=11 // pred_check_branch
        %142 = sbr.rel (%p140) target = $region16
      $region15: #{convolutional_encoder_forward.4} parent=11 // pred_region
        _
      $region16: #{convolutional_encoder_forward.4} parent=11 // pred_fallthru
        _
      // Predicated region
      $region17: #{convolutional_encoder_forward.4} parent=11 // pred_check
        %p143 = pneg %p78
      $region18: #{convolutional_encoder_forward.4} parent=11 // pred_check_branch
        %145 = sbr.rel (%p143) target = $region20
      $region19: #{convolutional_encoder_forward.4} parent=11 // pred_region
        _
      $region20: #{convolutional_encoder_forward.4} parent=11 // pred_fallthru
        _
      // Predicated region
      $region21: #{convolutional_encoder_forward.4} parent=11 // pred_check
        %p146 = pneg %p99
      $region22: #{convolutional_encoder_forward.4} parent=11 // pred_check_branch
        %148 = sbr.rel (%p146) target = $region24
      $region23: #{convolutional_encoder_forward.4} parent=11 // pred_region
        _
      $region24: #{convolutional_encoder_forward.4} parent=11 // pred_fallthru
        _
    $region12: #{convolutional_encoder_forward.4} parent=5 // pred_fallthru
      _
    %p149 = scmp.lt.s32.totalorder %s10, 2
    // Predicated region
    $region25: #{convolutional_encoder_forward.4} parent=5 // pred_check
      %p150 = pneg %p149
    $region26: #{convolutional_encoder_forward.4} parent=5 // pred_check_branch
      %152 = sbr.rel (%p150) target = $region28
    $region27: #{convolutional_encoder_forward.4} parent=5 // pred_region
      // Predicated region
      $region29: #{convolutional_encoder_forward.4} parent=27 // pred_check
        %p153 = pneg %p30
      $region30: #{convolutional_encoder_forward.4} parent=27 // pred_check_branch
        %155 = sbr.rel (%p153) target = $region32
      $region31: #{convolutional_encoder_forward.4} parent=27 // pred_region
        %p156 = scmp.lt.s32.totalorder %s10, 1
        %s157 = scalar_select %p156, %s10, 1
        %s158 = smul.addr %s157, 18
        %s159 = smul.addr %s158, 4
        %s160 = scalar_lea.vmem %s0, %s159
      $region32: #{convolutional_encoder_forward.4} parent=27 // pred_fallthru
        _
    $region28: #{convolutional_encoder_forward.4} parent=5 // pred_fallthru
      _
    %p161 = scmp.le.s32.totalorder 1, %s10
    %p162 = scmp.lt.s32.totalorder %s10, 3
    %p163 = pnand %p161, %p162
    %p164 = pneg %p163
    // Predicated region
    $region33: #{convolutional_encoder_forward.4} parent=5 // pred_check
      _
    $region34: #{convolutional_encoder_forward.4} parent=5 // pred_check_branch
      %166 = sbr.rel (%p163) target = $region36
    $region35: #{convolutional_encoder_forward.4} parent=5 // pred_region
      %s167 = ssub.s32 %s10, 1
      %p168 = scmp.lt.s32.totalorder %s15, 1
      %s169 = scalar_select %p168, %s15, 1
      %s170 = smul.addr %s169, 18
      %s171 = smul.addr %s170, 4
      %s172 = scalar_lea.vmem %s0, %s171
      %p173 = pneg %p36
      %p174 = pneg %p33
      %p175 = pneg %p57
      %p176 = pneg %p54
      %p177 = pneg %p78
      %p178 = pneg %p75
      %p179 = pneg %p99
      %p180 = pneg %p96
      %p181 = pneg %p125
      %p182 = pneg %p122
      %p183 = scmp.lt.s32.totalorder %s15, 1
      %s184 = scalar_select %p183, %s15, 1
      %s185 = smul.addr %s184, 2
      %s186 = smul.addr %s185, 4
      %s187 = scalar_lea.vmem %s4, %s186
      %p188 = scmp.lt.s32.totalorder %s15, 1
      %s189 = scalar_select %p188, %s15, 1
      %s190 = smul.addr %s189, 18
      %s191 = smul.addr %s190, 4
      %s192 = scalar_lea.vmem %s0, %s191
      %p193 = scmp.lt.s32.totalorder %s15, 1
      %s194 = scalar_select %p193, %s15, 1
      %s195 = smul.addr %s194, 2
      %s196 = smul.addr %s195, 4
      %s197 = scalar_lea.vmem %s4, %s196
      %v198 = vld [vmem:[%s192] sm:$0xff]
      %v199 = vld [vmem:[%s192 + $0x8] sm:$0xff]
      %v200 = vld [vmem:[%s192 + $0x10] sm:$0xff]
      %v201 = vld [vmem:[%s192 + $0x18] sm:$0xff]
      %v202 = vld [vmem:[%s192 + $0x20] sm:$0xff]
      %v203 = vld [vmem:[%s192 + $0x28] sm:$0xff]
      %v204 = vld [vmem:[%s1] sm:$0xff]
      %v205 = vld [vmem:[%s1 + $0x8] sm:$0xff]
      %v206 = vld [vmem:[%s1 + $0x10] sm:$0xff]
      %v207 = vld [vmem:[%s1 + $0x18] sm:$0xff]
      %v208 = vld [vmem:[%s1 + $0x20] sm:$0xff]
      %v209 = vld [vmem:[%s1 + $0x28] sm:$0xff]
      %v210 = vld [vmem:[%s1 + $0x30] sm:$0xff]
      %v211 = vld [vmem:[%s1 + $0x38] sm:$0xff]
      %v212 = vld [vmem:[%s1 + $0x40] sm:$0xff]
      %v213 = vld [vmem:[%s1 + $0x48] sm:$0xff]
      %v214 = vld [vmem:[%s1 + $0x50] sm:$0xff]
      %v215 = vld [vmem:[%s1 + $0x58] sm:$0xff]
      %v216 = vld [vmem:[%s1 + $0x60] sm:$0xff]
      %v217 = vld [vmem:[%s1 + $0x68] sm:$0xff]
      %v218 = vld [vmem:[%s1 + $0x70] sm:$0xff]
      %v219 = vld [vmem:[%s1 + $0x78] sm:$0xff]
      %v220 = vld [vmem:[%s1 + $0x80] sm:$0xff]
      %v221 = vld [vmem:[%s1 + $0x88] sm:$0xff]
      %v222 = vld [vmem:[%s1 + $0x90] sm:$0xff]
      %v223 = vld [vmem:[%s1 + $0x98] sm:$0xff]
      %v224 = vld [vmem:[%s1 + $0xa0] sm:$0xff]
      %v225 = vld [vmem:[%s1 + $0xa8] sm:$0xff]
      %v226 = vld [vmem:[%s1 + $0xb0] sm:$0xff]
      %v227 = vld [vmem:[%s1 + $0xb8] sm:$0xff]
      %v228 = vld [vmem:[%s1 + $0xc0] sm:$0xff]
      %v229 = vld [vmem:[%s1 + $0xc8] sm:$0xff]
      %v230 = vld [vmem:[%s1 + $0xd0] sm:$0xff]
      %v231 = vld [vmem:[%s1 + $0xd8] sm:$0xff]
      %v232 = vld [vmem:[%s1 + $0xe0] sm:$0xff]
      %v233 = vld [vmem:[%s1 + $0xe8] sm:$0xff]
      %v234 = vld [vmem:[%s1 + $0xf0] sm:$0xff]
      %v235 = vld [vmem:[%s1 + $0xf8] sm:$0xff]
      %v236 = vld [vmem:[%s192 + $0x30] sm:$0x11]
      %s237 = scalar_lea.vmem %s1, 256
      %v238 = vld [vmem:[%s237] sm:$0xff]
      %v239 = vld [vmem:[%s237 + $0x8] sm:$0xff]
      %v240 = vld [vmem:[%s237 + $0x10] sm:$0xff]
      %v241 = vld [vmem:[%s237 + $0x18] sm:$0xff]
      %v242 = vld [vmem:[%s237 + $0x20] sm:$0xff]
      %v243 = vld [vmem:[%s237 + $0x28] sm:$0xff]
      %v244 = vld [vmem:[%s237 + $0x30] sm:$0xff]
      %v245 = vld [vmem:[%s237 + $0x38] sm:$0xff]
      %v246 = vld [vmem:[%s237 + $0x40] sm:$0xff]
      %v247 = vld [vmem:[%s237 + $0x48] sm:$0xff]
      %v248 = vld [vmem:[%s237 + $0x50] sm:$0xff]
      %v249 = vld [vmem:[%s237 + $0x58] sm:$0xff]
      %v250 = vld [vmem:[%s237 + $0x60] sm:$0xff]
      %v251 = vld [vmem:[%s237 + $0x68] sm:$0xff]
      %v252 = vld [vmem:[%s237 + $0x70] sm:$0xff]
      %v253 = vld [vmem:[%s237 + $0x78] sm:$0xff]
      %v254 = vld [vmem:[%s237 + $0x80] sm:$0xff]
      %v255 = vld [vmem:[%s237 + $0x88] sm:$0xff]
      %v256 = vld [vmem:[%s237 + $0x90] sm:$0xff]
      %v257 = vld [vmem:[%s237 + $0x98] sm:$0xff]
      %v258 = vld [vmem:[%s237 + $0xa0] sm:$0xff]
      %v259 = vld [vmem:[%s237 + $0xa8] sm:$0xff]
      %v260 = vld [vmem:[%s237 + $0xb0] sm:$0xff]
      %v261 = vld [vmem:[%s237 + $0xb8] sm:$0xff]
      %v262 = vld [vmem:[%s237 + $0xc0] sm:$0xff]
      %v263 = vld [vmem:[%s237 + $0xc8] sm:$0xff]
      %v264 = vld [vmem:[%s237 + $0xd0] sm:$0xff]
      %v265 = vld [vmem:[%s237 + $0xd8] sm:$0xff]
      %v266 = vld [vmem:[%s237 + $0xe0] sm:$0xff]
      %v267 = vld [vmem:[%s237 + $0xe8] sm:$0xff]
      %v268 = vld [vmem:[%s237 + $0xf0] sm:$0xff]
      %v269 = vld [vmem:[%s237 + $0xf8] sm:$0xff]
      %v277 = vunpack.c.l.b16 %v198
      %v278 = vunpack.c.h.b16 %v198
      %v279 = vunpack.c.l.b16 %v199
      %v280 = vunpack.c.h.b16 %v199
      %v281 = vunpack.c.l.b16 %v200
      %v282 = vunpack.c.h.b16 %v200
      %v283 = vunpack.c.l.b16 %v201
      %v284 = vunpack.c.h.b16 %v201
      %v285 = vunpack.c.l.b16 %v202
      %v286 = vunpack.c.h.b16 %v202
      %v287 = vunpack.c.l.b16 %v203
      %v288 = vunpack.c.h.b16 %v203
      %v289 = vunpack.c.l.b16 %v236
      %v290 = vunpack.c.h.b16 %v236
      %v291 = vpack.c.b16 %v279, %v277
      %v292 = vpack.c.b16 %v280, %v278
      %v293 = vpack.c.b16 %v283, %v281
      %v294 = vpack.c.b16 %v284, %v282
      %v295 = vpack.c.b16 %v287, %v285
      %v296 = vpack.c.b16 %v288, %v286
      %v297 = vpack.c.b16 %v289, %v289
      %v298 = vpack.c.b16 %v290, %v290
      %vm299 = vsmask.f32 7424
      %v301 = vshrl.u32 %v291, 16
      %v303 = vshll.u32 %v291, 16
      %v305 = vrot.slane %v303, 1
      %v306 = vor.u32 %v301, %v305
      %v308 = vshll.u32 %v293, 16
      %v310 = vrot.slane %v308, 1
      %v311 = vsel %vm299, %v306, %v310
      %v313 = vshrl.u32 %v292, 16
      %v315 = vshll.u32 %v292, 16
      %v317 = vrot.slane %v315, 1
      %v318 = vor.u32 %v313, %v317
      %v320 = vshll.u32 %v294, 16
      %v322 = vrot.slane %v320, 1
      %v323 = vsel %vm299, %v318, %v322
      %v324 = vshrl.u32 %v293, 16
      %v326 = vor.u32 %v324, %v310
      %v328 = vshll.u32 %v295, 16
      %v330 = vrot.slane %v328, 1
      %v331 = vsel %vm299, %v326, %v330
      %v332 = vshrl.u32 %v294, 16
      %v334 = vor.u32 %v332, %v322
      %v336 = vshll.u32 %v296, 16
      %v338 = vrot.slane %v336, 1
      %v339 = vsel %vm299, %v334, %v338
      %v340 = vshrl.u32 %v295, 16
      %v342 = vor.u32 %v340, %v330
      %v344 = vshll.u32 %v297, 16
      %v346 = vrot.slane %v344, 1
      %v347 = vsel %vm299, %v342, %v346
      %v348 = vshrl.u32 %v296, 16
      %v350 = vor.u32 %v348, %v338
      %v352 = vshll.u32 %v298, 16
      %v354 = vrot.slane %v352, 1
      %v355 = vsel %vm299, %v350, %v354
      %v394 = vunpack.c.l.b16 %v238
      %v395 = vunpack.c.h.b16 %v238
      %v396 = vunpack.c.l.b16 %v239
      %v397 = vunpack.c.h.b16 %v239
      %v398 = vunpack.c.l.b16 %v240
      %v399 = vunpack.c.h.b16 %v240
      %v400 = vunpack.c.l.b16 %v241
      %v401 = vunpack.c.h.b16 %v241
      %v402 = vunpack.c.l.b16 %v242
      %v403 = vunpack.c.h.b16 %v242
      %v404 = vunpack.c.l.b16 %v243
      %v405 = vunpack.c.h.b16 %v243
      %v406 = vunpack.c.l.b16 %v244
      %v407 = vunpack.c.h.b16 %v244
      %v408 = vunpack.c.l.b16 %v245
      %v409 = vunpack.c.h.b16 %v245
      %v410 = vunpack.c.l.b16 %v246
      %v411 = vunpack.c.h.b16 %v246
      %v412 = vunpack.c.l.b16 %v247
      %v413 = vunpack.c.h.b16 %v247
      %v414 = vunpack.c.l.b16 %v248
      %v415 = vunpack.c.h.b16 %v248
      %v416 = vunpack.c.l.b16 %v249
      %v417 = vunpack.c.h.b16 %v249
      %v418 = vunpack.c.l.b16 %v250
      %v419 = vunpack.c.h.b16 %v250
      %v420 = vunpack.c.l.b16 %v251
      %v421 = vunpack.c.h.b16 %v251
      %v422 = vunpack.c.l.b16 %v252
      %v423 = vunpack.c.h.b16 %v252
      %v424 = vunpack.c.l.b16 %v253
      %v425 = vunpack.c.h.b16 %v253
      %v426 = vunpack.c.l.b16 %v254
      %v427 = vunpack.c.h.b16 %v254
      %v428 = vunpack.c.l.b16 %v255
      %v429 = vunpack.c.h.b16 %v255
      %v430 = vunpack.c.l.b16 %v256
      %v431 = vunpack.c.h.b16 %v256
      %v432 = vunpack.c.l.b16 %v257
      %v433 = vunpack.c.h.b16 %v257
      %v434 = vunpack.c.l.b16 %v258
      %v435 = vunpack.c.h.b16 %v258
      %v436 = vunpack.c.l.b16 %v259
      %v437 = vunpack.c.h.b16 %v259
      %v438 = vunpack.c.l.b16 %v260
      %v439 = vunpack.c.h.b16 %v260
      %v440 = vunpack.c.l.b16 %v261
      %v441 = vunpack.c.h.b16 %v261
      %v442 = vunpack.c.l.b16 %v262
      %v443 = vunpack.c.h.b16 %v262
      %v444 = vunpack.c.l.b16 %v263
      %v445 = vunpack.c.h.b16 %v263
      %v446 = vunpack.c.l.b16 %v264
      %v447 = vunpack.c.h.b16 %v264
      %v448 = vunpack.c.l.b16 %v265
      %v449 = vunpack.c.h.b16 %v265
      %v450 = vunpack.c.l.b16 %v266
      %v451 = vunpack.c.h.b16 %v266
      %v452 = vunpack.c.l.b16 %v267
      %v453 = vunpack.c.h.b16 %v267
      %v454 = vunpack.c.l.b16 %v268
      %v455 = vunpack.c.h.b16 %v268
      %v456 = vunpack.c.l.b16 %v269
      %v457 = vunpack.c.h.b16 %v269
      %v458 = vpack.c.b16 %v396, %v394
      %v459 = vpack.c.b16 %v397, %v395
      %v460 = vpack.c.b16 %v400, %v398
      %v461 = vpack.c.b16 %v401, %v399
      %v462 = vpack.c.b16 %v404, %v402
      %v463 = vpack.c.b16 %v405, %v403
      %v464 = vpack.c.b16 %v408, %v406
      %v465 = vpack.c.b16 %v409, %v407
      %v466 = vpack.c.b16 %v412, %v410
      %v467 = vpack.c.b16 %v413, %v411
      %v468 = vpack.c.b16 %v416, %v414
      %v469 = vpack.c.b16 %v417, %v415
      %v470 = vpack.c.b16 %v420, %v418
      %v471 = vpack.c.b16 %v421, %v419
      %v472 = vpack.c.b16 %v424, %v422
      %v473 = vpack.c.b16 %v425, %v423
      %v474 = vpack.c.b16 %v428, %v426
      %v475 = vpack.c.b16 %v429, %v427
      %v476 = vpack.c.b16 %v432, %v430
      %v477 = vpack.c.b16 %v433, %v431
      %v478 = vpack.c.b16 %v436, %v434
      %v479 = vpack.c.b16 %v437, %v435
      %v480 = vpack.c.b16 %v440, %v438
      %v481 = vpack.c.b16 %v441, %v439
      %v482 = vpack.c.b16 %v444, %v442
      %v483 = vpack.c.b16 %v445, %v443
      %v484 = vpack.c.b16 %v448, %v446
      %v485 = vpack.c.b16 %v449, %v447
      %v486 = vpack.c.b16 %v452, %v450
      %v487 = vpack.c.b16 %v453, %v451
      %v488 = vpack.c.b16 %v456, %v454
      %v489 = vpack.c.b16 %v457, %v455
      %522 = vmatpush.bf16.msra.mxu0 %v472
      %523 = vmatpush.bf16.msra.mxu0 %v470
      %524 = vmatpush.bf16.msra.mxu0 %v468
      %525 = vmatpush.bf16.msra.mxu0 %v466
      %526 = vmatpush.bf16.msra.mxu0 %v464
      %527 = vmatpush.bf16.msra.mxu0 %v462
      %528 = vmatpush.bf16.msra.mxu0 %v460
      %529 = vmatpush.bf16.msra.mxu0 %v458
      %530 = vmatmul.bf16.gmra.mxu0 %v311
      %v531 = vpop.f32.mrf.mxu0
      %v532 = vadd.f32 0.0, %v531
      %v533 = vpop.f32.mrf.mxu0
      %v534 = vadd.f32 0.0, %v533
      %535 = vmatmul.bf16.gmra.mxu0 %v331
      %v536 = vpop.f32.mrf.mxu0
      %v537 = vadd.f32 0.0, %v536
      %v538 = vpop.f32.mrf.mxu0
      %v539 = vadd.f32 0.0, %v538
      %540 = vmatmul.bf16.gmra.mxu0 %v347
      %v541 = vpop.f32.mrf.mxu0
      %v542 = vadd.f32 0.0, %v541
      %v543 = vpop.f32.mrf.mxu0
      %v544 = vadd.f32 0.0, %v543
      %545 = vdwg.mxu0
      %546 = vmatpush.bf16.msra.mxu0 %v488
      %547 = vmatpush.bf16.msra.mxu0 %v486
      %548 = vmatpush.bf16.msra.mxu0 %v484
      %549 = vmatpush.bf16.msra.mxu0 %v482
      %550 = vmatpush.bf16.msra.mxu0 %v480
      %551 = vmatpush.bf16.msra.mxu0 %v478
      %552 = vmatpush.bf16.msra.mxu0 %v476
      %553 = vmatpush.bf16.msra.mxu0 %v474
      %554 = vmatmul.bf16.gmra.mxu0 %v323
      %v555 = vpop.f32.mrf.mxu0
      %v556 = vadd.f32 %v532, %v555
      %v557 = vpop.f32.mrf.mxu0
      %v558 = vadd.f32 %v534, %v557
      %559 = vmatmul.bf16.gmra.mxu0 %v339
      %v560 = vpop.f32.mrf.mxu0
      %v561 = vadd.f32 %v537, %v560
      %v562 = vpop.f32.mrf.mxu0
      %v563 = vadd.f32 %v539, %v562
      %564 = vmatmul.bf16.gmra.mxu0 %v355
      %v565 = vpop.f32.mrf.mxu0
      %v566 = vadd.f32 %v542, %v565
      %v567 = vpop.f32.mrf.mxu0
      %v568 = vadd.f32 %v544, %v567
      %569 = vdwg.mxu0
      %570 = vmatpush.bf16.msra.mxu0 %v473
      %571 = vmatpush.bf16.msra.mxu0 %v471
      %572 = vmatpush.bf16.msra.mxu0 %v469
      %573 = vmatpush.bf16.msra.mxu0 %v467
      %574 = vmatpush.bf16.msra.mxu0 %v465
      %575 = vmatpush.bf16.msra.mxu0 %v463
      %576 = vmatpush.bf16.msra.mxu0 %v461
      %577 = vmatpush.bf16.msra.mxu0 %v459
      %578 = vmatmul.bf16.gmra.mxu0 %v311
      %v579 = vpop.f32.mrf.mxu0
      %v580 = vadd.f32 0.0, %v579
      %v581 = vpop.f32.mrf.mxu0
      %v582 = vadd.f32 0.0, %v581
      %583 = vmatmul.bf16.gmra.mxu0 %v331
      %v584 = vpop.f32.mrf.mxu0
      %v585 = vadd.f32 0.0, %v584
      %v586 = vpop.f32.mrf.mxu0
      %v587 = vadd.f32 0.0, %v586
      %588 = vmatmul.bf16.gmra.mxu0 %v347
      %v589 = vpop.f32.mrf.mxu0
      %v590 = vadd.f32 0.0, %v589
      %v591 = vpop.f32.mrf.mxu0
      %v592 = vadd.f32 0.0, %v591
      %593 = vdwg.mxu0
      %594 = vmatpush.bf16.msra.mxu0 %v489
      %595 = vmatpush.bf16.msra.mxu0 %v487
      %596 = vmatpush.bf16.msra.mxu0 %v485
      %597 = vmatpush.bf16.msra.mxu0 %v483
      %598 = vmatpush.bf16.msra.mxu0 %v481
      %599 = vmatpush.bf16.msra.mxu0 %v479
      %600 = vmatpush.bf16.msra.mxu0 %v477
      %601 = vmatpush.bf16.msra.mxu0 %v475
      %602 = vmatmul.bf16.gmra.mxu0 %v323
      %v603 = vpop.f32.mrf.mxu0
      %v604 = vadd.f32 %v580, %v603
      %v605 = vpop.f32.mrf.mxu0
      %v606 = vadd.f32 %v582, %v605
      %607 = vmatmul.bf16.gmra.mxu0 %v339
      %v608 = vpop.f32.mrf.mxu0
      %v609 = vadd.f32 %v585, %v608
      %v610 = vpop.f32.mrf.mxu0
      %v611 = vadd.f32 %v587, %v610
      %612 = vmatmul.bf16.gmra.mxu0 %v355
      %v613 = vpop.f32.mrf.mxu0
      %v614 = vadd.f32 %v590, %v613
      %v615 = vpop.f32.mrf.mxu0
      %v616 = vadd.f32 %v592, %v615
      %617 = vdwg.mxu0
      %v656 = vunpack.c.l.b16 %v204
      %v657 = vunpack.c.h.b16 %v204
      %v658 = vunpack.c.l.b16 %v205
      %v659 = vunpack.c.h.b16 %v205
      %v660 = vunpack.c.l.b16 %v206
      %v661 = vunpack.c.h.b16 %v206
      %v662 = vunpack.c.l.b16 %v207
      %v663 = vunpack.c.h.b16 %v207
      %v664 = vunpack.c.l.b16 %v208
      %v665 = vunpack.c.h.b16 %v208
      %v666 = vunpack.c.l.b16 %v209
      %v667 = vunpack.c.h.b16 %v209
      %v668 = vunpack.c.l.b16 %v210
      %v669 = vunpack.c.h.b16 %v210
      %v670 = vunpack.c.l.b16 %v211
      %v671 = vunpack.c.h.b16 %v211
      %v672 = vunpack.c.l.b16 %v212
      %v673 = vunpack.c.h.b16 %v212
      %v674 = vunpack.c.l.b16 %v213
      %v675 = vunpack.c.h.b16 %v213
      %v676 = vunpack.c.l.b16 %v214
      %v677 = vunpack.c.h.b16 %v214
      %v678 = vunpack.c.l.b16 %v215
      %v679 = vunpack.c.h.b16 %v215
      %v680 = vunpack.c.l.b16 %v216
      %v681 = vunpack.c.h.b16 %v216
      %v682 = vunpack.c.l.b16 %v217
      %v683 = vunpack.c.h.b16 %v217
      %v684 = vunpack.c.l.b16 %v218
      %v685 = vunpack.c.h.b16 %v218
      %v686 = vunpack.c.l.b16 %v219
      %v687 = vunpack.c.h.b16 %v219
      %v688 = vunpack.c.l.b16 %v220
      %v689 = vunpack.c.h.b16 %v220
      %v690 = vunpack.c.l.b16 %v221
      %v691 = vunpack.c.h.b16 %v221
      %v692 = vunpack.c.l.b16 %v222
      %v693 = vunpack.c.h.b16 %v222
      %v694 = vunpack.c.l.b16 %v223
      %v695 = vunpack.c.h.b16 %v223
      %v696 = vunpack.c.l.b16 %v224
      %v697 = vunpack.c.h.b16 %v224
      %v698 = vunpack.c.l.b16 %v225
      %v699 = vunpack.c.h.b16 %v225
      %v700 = vunpack.c.l.b16 %v226
      %v701 = vunpack.c.h.b16 %v226
      %v702 = vunpack.c.l.b16 %v227
      %v703 = vunpack.c.h.b16 %v227
      %v704 = vunpack.c.l.b16 %v228
      %v705 = vunpack.c.h.b16 %v228
      %v706 = vunpack.c.l.b16 %v229
      %v707 = vunpack.c.h.b16 %v229
      %v708 = vunpack.c.l.b16 %v230
      %v709 = vunpack.c.h.b16 %v230
      %v710 = vunpack.c.l.b16 %v231
      %v711 = vunpack.c.h.b16 %v231
      %v712 = vunpack.c.l.b16 %v232
      %v713 = vunpack.c.h.b16 %v232
      %v714 = vunpack.c.l.b16 %v233
      %v715 = vunpack.c.h.b16 %v233
      %v716 = vunpack.c.l.b16 %v234
      %v717 = vunpack.c.h.b16 %v234
      %v718 = vunpack.c.l.b16 %v235
      %v719 = vunpack.c.h.b16 %v235
      %v720 = vpack.c.b16 %v658, %v656
      %v721 = vpack.c.b16 %v659, %v657
      %v722 = vpack.c.b16 %v662, %v660
      %v723 = vpack.c.b16 %v663, %v661
      %v724 = vpack.c.b16 %v666, %v664
      %v725 = vpack.c.b16 %v667, %v665
      %v726 = vpack.c.b16 %v670, %v668
      %v727 = vpack.c.b16 %v671, %v669
      %v728 = vpack.c.b16 %v674, %v672
      %v729 = vpack.c.b16 %v675, %v673
      %v730 = vpack.c.b16 %v678, %v676
      %v731 = vpack.c.b16 %v679, %v677
      %v732 = vpack.c.b16 %v682, %v680
      %v733 = vpack.c.b16 %v683, %v681
      %v734 = vpack.c.b16 %v686, %v684
      %v735 = vpack.c.b16 %v687, %v685
      %v736 = vpack.c.b16 %v690, %v688
      %v737 = vpack.c.b16 %v691, %v689
      %v738 = vpack.c.b16 %v694, %v692
      %v739 = vpack.c.b16 %v695, %v693
      %v740 = vpack.c.b16 %v698, %v696
      %v741 = vpack.c.b16 %v699, %v697
      %v742 = vpack.c.b16 %v702, %v700
      %v743 = vpack.c.b16 %v703, %v701
      %v744 = vpack.c.b16 %v706, %v704
      %v745 = vpack.c.b16 %v707, %v705
      %v746 = vpack.c.b16 %v710, %v708
      %v747 = vpack.c.b16 %v711, %v709
      %v748 = vpack.c.b16 %v714, %v712
      %v749 = vpack.c.b16 %v715, %v713
      %v750 = vpack.c.b16 %v718, %v716
      %v751 = vpack.c.b16 %v719, %v717
      %784 = vmatpush.bf16.msra.mxu0 %v734
      %785 = vmatpush.bf16.msra.mxu0 %v732
      %786 = vmatpush.bf16.msra.mxu0 %v730
      %787 = vmatpush.bf16.msra.mxu0 %v728
      %788 = vmatpush.bf16.msra.mxu0 %v726
      %789 = vmatpush.bf16.msra.mxu0 %v724
      %790 = vmatpush.bf16.msra.mxu0 %v722
      %791 = vmatpush.bf16.msra.mxu0 %v720
      %792 = vmatmul.bf16.gmra.mxu0 %v291
      %v793 = vpop.f32.mrf.mxu0
      %v794 = vadd.f32 %v556, %v793
      %v795 = vpop.f32.mrf.mxu0
      %v796 = vadd.f32 %v558, %v795
      %797 = vmatmul.bf16.gmra.mxu0 %v293
      %v798 = vpop.f32.mrf.mxu0
      %v799 = vadd.f32 %v561, %v798
      %v800 = vpop.f32.mrf.mxu0
      %v801 = vadd.f32 %v563, %v800
      %802 = vmatmul.bf16.gmra.mxu0 %v295
      %v803 = vpop.f32.mrf.mxu0
      %v804 = vadd.f32 %v566, %v803
      %v805 = vpop.f32.mrf.mxu0
      %v806 = vadd.f32 %v568, %v805
      %807 = vdwg.mxu0
      %808 = vmatpush.bf16.msra.mxu0 %v750
      %809 = vmatpush.bf16.msra.mxu0 %v748
      %810 = vmatpush.bf16.msra.mxu0 %v746
      %811 = vmatpush.bf16.msra.mxu0 %v744
      %812 = vmatpush.bf16.msra.mxu0 %v742
      %813 = vmatpush.bf16.msra.mxu0 %v740
      %814 = vmatpush.bf16.msra.mxu0 %v738
      %815 = vmatpush.bf16.msra.mxu0 %v736
      %816 = vmatmul.bf16.gmra.mxu0 %v292
      %v817 = vpop.f32.mrf.mxu0
      %v818 = vadd.f32 %v794, %v817
      %v819 = vpop.f32.mrf.mxu0
      %v820 = vadd.f32 %v796, %v819
      %821 = vmatmul.bf16.gmra.mxu0 %v294
      %v822 = vpop.f32.mrf.mxu0
      %v823 = vadd.f32 %v799, %v822
      %v824 = vpop.f32.mrf.mxu0
      %v825 = vadd.f32 %v801, %v824
      %826 = vmatmul.bf16.gmra.mxu0 %v296
      %v827 = vpop.f32.mrf.mxu0
      %v828 = vadd.f32 %v804, %v827
      %v829 = vpop.f32.mrf.mxu0
      %v830 = vadd.f32 %v806, %v829
      %831 = vdwg.mxu0
      %832 = vmatpush.bf16.msra.mxu0 %v735
      %833 = vmatpush.bf16.msra.mxu0 %v733
      %834 = vmatpush.bf16.msra.mxu0 %v731
      %835 = vmatpush.bf16.msra.mxu0 %v729
      %836 = vmatpush.bf16.msra.mxu0 %v727
      %837 = vmatpush.bf16.msra.mxu0 %v725
      %838 = vmatpush.bf16.msra.mxu0 %v723
      %839 = vmatpush.bf16.msra.mxu0 %v721
      %840 = vmatmul.bf16.gmra.mxu0 %v291
      %v841 = vpop.f32.mrf.mxu0
      %v842 = vadd.f32 %v604, %v841
      %v843 = vpop.f32.mrf.mxu0
      %v844 = vadd.f32 %v606, %v843
      %845 = vmatmul.bf16.gmra.mxu0 %v293
      %v846 = vpop.f32.mrf.mxu0
      %v847 = vadd.f32 %v609, %v846
      %v848 = vpop.f32.mrf.mxu0
      %v849 = vadd.f32 %v611, %v848
      %850 = vmatmul.bf16.gmra.mxu0 %v295
      %v851 = vpop.f32.mrf.mxu0
      %v852 = vadd.f32 %v614, %v851
      %v853 = vpop.f32.mrf.mxu0
      %v854 = vadd.f32 %v616, %v853
      %855 = vdwg.mxu0
      %856 = vmatpush.bf16.msra.mxu0 %v751
      %857 = vmatpush.bf16.msra.mxu0 %v749
      %858 = vmatpush.bf16.msra.mxu0 %v747
      %859 = vmatpush.bf16.msra.mxu0 %v745
      %860 = vmatpush.bf16.msra.mxu0 %v743
      %861 = vmatpush.bf16.msra.mxu0 %v741
      %862 = vmatpush.bf16.msra.mxu0 %v739
      %863 = vmatpush.bf16.msra.mxu0 %v737
      %864 = vmatmul.bf16.gmra.mxu0 %v292
      %v865 = vpop.f32.mrf.mxu0
      %v866 = vadd.f32 %v842, %v865
      %v867 = vpop.f32.mrf.mxu0
      %v868 = vadd.f32 %v844, %v867
      %869 = vmatmul.bf16.gmra.mxu0 %v294
      %v870 = vpop.f32.mrf.mxu0
      %v871 = vadd.f32 %v847, %v870
      %v872 = vpop.f32.mrf.mxu0
      %v873 = vadd.f32 %v849, %v872
      %874 = vmatmul.bf16.gmra.mxu0 %v296
      %v875 = vpop.f32.mrf.mxu0
      %v876 = vadd.f32 %v852, %v875
      %v877 = vpop.f32.mrf.mxu0
      %v878 = vadd.f32 %v854, %v877
      %879 = vdwg.mxu0
      %v880 = vld [vmem:[%s192] sm:$0xee]
      %s881 = scalar_lea.vmem %s1, 512
      %v882 = vld [vmem:[%s881] sm:$0xff]
      %v883 = vld [vmem:[%s881 + $0x8] sm:$0xff]
      %v884 = vld [vmem:[%s881 + $0x10] sm:$0xff]
      %v885 = vld [vmem:[%s881 + $0x18] sm:$0xff]
      %v886 = vld [vmem:[%s881 + $0x20] sm:$0xff]
      %v887 = vld [vmem:[%s881 + $0x28] sm:$0xff]
      %v888 = vld [vmem:[%s881 + $0x30] sm:$0xff]
      %v889 = vld [vmem:[%s881 + $0x38] sm:$0xff]
      %v890 = vld [vmem:[%s881 + $0x40] sm:$0xff]
      %v891 = vld [vmem:[%s881 + $0x48] sm:$0xff]
      %v892 = vld [vmem:[%s881 + $0x50] sm:$0xff]
      %v893 = vld [vmem:[%s881 + $0x58] sm:$0xff]
      %v894 = vld [vmem:[%s881 + $0x60] sm:$0xff]
      %v895 = vld [vmem:[%s881 + $0x68] sm:$0xff]
      %v896 = vld [vmem:[%s881 + $0x70] sm:$0xff]
      %v897 = vld [vmem:[%s881 + $0x78] sm:$0xff]
      %v898 = vld [vmem:[%s881 + $0x80] sm:$0xff]
      %v899 = vld [vmem:[%s881 + $0x88] sm:$0xff]
      %v900 = vld [vmem:[%s881 + $0x90] sm:$0xff]
      %v901 = vld [vmem:[%s881 + $0x98] sm:$0xff]
      %v902 = vld [vmem:[%s881 + $0xa0] sm:$0xff]
      %v903 = vld [vmem:[%s881 + $0xa8] sm:$0xff]
      %v904 = vld [vmem:[%s881 + $0xb0] sm:$0xff]
      %v905 = vld [vmem:[%s881 + $0xb8] sm:$0xff]
      %v906 = vld [vmem:[%s881 + $0xc0] sm:$0xff]
      %v907 = vld [vmem:[%s881 + $0xc8] sm:$0xff]
      %v908 = vld [vmem:[%s881 + $0xd0] sm:$0xff]
      %v909 = vld [vmem:[%s881 + $0xd8] sm:$0xff]
      %v910 = vld [vmem:[%s881 + $0xe0] sm:$0xff]
      %v911 = vld [vmem:[%s881 + $0xe8] sm:$0xff]
      %v912 = vld [vmem:[%s881 + $0xf0] sm:$0xff]
      %v913 = vld [vmem:[%s881 + $0xf8] sm:$0xff]
      %v915 = vunpack.c.l.b16 %v880
      %v916 = vunpack.c.h.b16 %v880
      %v917 = vpack.c.b16 %v279, %v915
      %v918 = vpack.c.b16 %v280, %v916
      %vm919 = vcmask 1046528
      %v920 = vrot.slane %v917, 1
      %v921 = vrot.slane %v293, 1
      %v922 = vsel %vm919, %v920, %v921
      %v923 = vrot.slane %v918, 1
      %v924 = vrot.slane %v294, 1
      %v925 = vsel %vm919, %v923, %v924
      %v926 = vrot.slane %v295, 1
      %v927 = vsel %vm919, %v921, %v926
      %v928 = vrot.slane %v296, 1
      %v929 = vsel %vm919, %v924, %v928
      %v930 = vrot.slane %v297, 1
      %v931 = vsel %vm919, %v926, %v930
      %v932 = vrot.slane %v298, 1
      %v933 = vsel %vm919, %v928, %v932
      %v972 = vunpack.c.l.b16 %v882
      %v973 = vunpack.c.h.b16 %v882
      %v974 = vunpack.c.l.b16 %v883
      %v975 = vunpack.c.h.b16 %v883
      %v976 = vunpack.c.l.b16 %v884
      %v977 = vunpack.c.h.b16 %v884
      %v978 = vunpack.c.l.b16 %v885
      %v979 = vunpack.c.h.b16 %v885
      %v980 = vunpack.c.l.b16 %v886
      %v981 = vunpack.c.h.b16 %v886
      %v982 = vunpack.c.l.b16 %v887
      %v983 = vunpack.c.h.b16 %v887
      %v984 = vunpack.c.l.b16 %v888
      %v985 = vunpack.c.h.b16 %v888
      %v986 = vunpack.c.l.b16 %v889
      %v987 = vunpack.c.h.b16 %v889
      %v988 = vunpack.c.l.b16 %v890
      %v989 = vunpack.c.h.b16 %v890
      %v990 = vunpack.c.l.b16 %v891
      %v991 = vunpack.c.h.b16 %v891
      %v992 = vunpack.c.l.b16 %v892
      %v993 = vunpack.c.h.b16 %v892
      %v994 = vunpack.c.l.b16 %v893
      %v995 = vunpack.c.h.b16 %v893
      %v996 = vunpack.c.l.b16 %v894
      %v997 = vunpack.c.h.b16 %v894
      %v998 = vunpack.c.l.b16 %v895
      %v999 = vunpack.c.h.b16 %v895
      %v1000 = vunpack.c.l.b16 %v896
      %v1001 = vunpack.c.h.b16 %v896
      %v1002 = vunpack.c.l.b16 %v897
      %v1003 = vunpack.c.h.b16 %v897
      %v1004 = vunpack.c.l.b16 %v898
      %v1005 = vunpack.c.h.b16 %v898
      %v1006 = vunpack.c.l.b16 %v899
      %v1007 = vunpack.c.h.b16 %v899
      %v1008 = vunpack.c.l.b16 %v900
      %v1009 = vunpack.c.h.b16 %v900
      %v1010 = vunpack.c.l.b16 %v901
      %v1011 = vunpack.c.h.b16 %v901
      %v1012 = vunpack.c.l.b16 %v902
      %v1013 = vunpack.c.h.b16 %v902
      %v1014 = vunpack.c.l.b16 %v903
      %v1015 = vunpack.c.h.b16 %v903
      %v1016 = vunpack.c.l.b16 %v904
      %v1017 = vunpack.c.h.b16 %v904
      %v1018 = vunpack.c.l.b16 %v905
      %v1019 = vunpack.c.h.b16 %v905
      %v1020 = vunpack.c.l.b16 %v906
      %v1021 = vunpack.c.h.b16 %v906
      %v1022 = vunpack.c.l.b16 %v907
      %v1023 = vunpack.c.h.b16 %v907
      %v1024 = vunpack.c.l.b16 %v908
      %v1025 = vunpack.c.h.b16 %v908
      %v1026 = vunpack.c.l.b16 %v909
      %v1027 = vunpack.c.h.b16 %v909
      %v1028 = vunpack.c.l.b16 %v910
      %v1029 = vunpack.c.h.b16 %v910
      %v1030 = vunpack.c.l.b16 %v911
      %v1031 = vunpack.c.h.b16 %v911
      %v1032 = vunpack.c.l.b16 %v912
      %v1033 = vunpack.c.h.b16 %v912
      %v1034 = vunpack.c.l.b16 %v913
      %v1035 = vunpack.c.h.b16 %v913
      %v1036 = vpack.c.b16 %v974, %v972
      %v1037 = vpack.c.b16 %v975, %v973
      %v1038 = vpack.c.b16 %v978, %v976
      %v1039 = vpack.c.b16 %v979, %v977
      %v1040 = vpack.c.b16 %v982, %v980
      %v1041 = vpack.c.b16 %v983, %v981
      %v1042 = vpack.c.b16 %v986, %v984
      %v1043 = vpack.c.b16 %v987, %v985
      %v1044 = vpack.c.b16 %v990, %v988
      %v1045 = vpack.c.b16 %v991, %v989
      %v1046 = vpack.c.b16 %v994, %v992
      %v1047 = vpack.c.b16 %v995, %v993
      %v1048 = vpack.c.b16 %v998, %v996
      %v1049 = vpack.c.b16 %v999, %v997
      %v1050 = vpack.c.b16 %v1002, %v1000
      %v1051 = vpack.c.b16 %v1003, %v1001
      %v1052 = vpack.c.b16 %v1006, %v1004
      %v1053 = vpack.c.b16 %v1007, %v1005
      %v1054 = vpack.c.b16 %v1010, %v1008
      %v1055 = vpack.c.b16 %v1011, %v1009
      %v1056 = vpack.c.b16 %v1014, %v1012
      %v1057 = vpack.c.b16 %v1015, %v1013
      %v1058 = vpack.c.b16 %v1018, %v1016
      %v1059 = vpack.c.b16 %v1019, %v1017
      %v1060 = vpack.c.b16 %v1022, %v1020
      %v1061 = vpack.c.b16 %v1023, %v1021
      %v1062 = vpack.c.b16 %v1026, %v1024
      %v1063 = vpack.c.b16 %v1027, %v1025
      %v1064 = vpack.c.b16 %v1030, %v1028
      %v1065 = vpack.c.b16 %v1031, %v1029
      %v1066 = vpack.c.b16 %v1034, %v1032
      %v1067 = vpack.c.b16 %v1035, %v1033
      %1100 = vmatpush.bf16.msra.mxu0 %v1050
      %1101 = vmatpush.bf16.msra.mxu0 %v1048
      %1102 = vmatpush.bf16.msra.mxu0 %v1046
      %1103 = vmatpush.bf16.msra.mxu0 %v1044
      %1104 = vmatpush.bf16.msra.mxu0 %v1042
      %1105 = vmatpush.bf16.msra.mxu0 %v1040
      %1106 = vmatpush.bf16.msra.mxu0 %v1038
      %1107 = vmatpush.bf16.msra.mxu0 %v1036
      %1108 = vmatmul.bf16.gmra.mxu0 %v922
      %v1109 = vpop.f32.mrf.mxu0
      %v1110 = vadd.f32 0.0, %v1109
      %v1111 = vpop.f32.mrf.mxu0
      %v1112 = vadd.f32 0.0, %v1111
      %1113 = vmatmul.bf16.gmra.mxu0 %v927
      %v1114 = vpop.f32.mrf.mxu0
      %v1115 = vadd.f32 0.0, %v1114
      %v1116 = vpop.f32.mrf.mxu0
      %v1117 = vadd.f32 0.0, %v1116
      %1118 = vmatmul.bf16.gmra.mxu0 %v931
      %v1119 = vpop.f32.mrf.mxu0
      %v1120 = vadd.f32 0.0, %v1119
      %v1121 = vpop.f32.mrf.mxu0
      %v1122 = vadd.f32 0.0, %v1121
      %1123 = vdwg.mxu0
      %1124 = vmatpush.bf16.msra.mxu0 %v1066
      %1125 = vmatpush.bf16.msra.mxu0 %v1064
      %1126 = vmatpush.bf16.msra.mxu0 %v1062
      %1127 = vmatpush.bf16.msra.mxu0 %v1060
      %1128 = vmatpush.bf16.msra.mxu0 %v1058
      %1129 = vmatpush.bf16.msra.mxu0 %v1056
      %1130 = vmatpush.bf16.msra.mxu0 %v1054
      %1131 = vmatpush.bf16.msra.mxu0 %v1052
      %1132 = vmatmul.bf16.gmra.mxu0 %v925
      %v1133 = vpop.f32.mrf.mxu0
      %v1134 = vadd.f32 %v1110, %v1133
      %v1135 = vpop.f32.mrf.mxu0
      %v1136 = vadd.f32 %v1112, %v1135
      %1137 = vmatmul.bf16.gmra.mxu0 %v929
      %v1138 = vpop.f32.mrf.mxu0
      %v1139 = vadd.f32 %v1115, %v1138
      %v1140 = vpop.f32.mrf.mxu0
      %v1141 = vadd.f32 %v1117, %v1140
      %1142 = vmatmul.bf16.gmra.mxu0 %v933
      %v1143 = vpop.f32.mrf.mxu0
      %v1144 = vadd.f32 %v1120, %v1143
      %v1145 = vpop.f32.mrf.mxu0
      %v1146 = vadd.f32 %v1122, %v1145
      %1147 = vdwg.mxu0
      %1148 = vmatpush.bf16.msra.mxu0 %v1051
      %1149 = vmatpush.bf16.msra.mxu0 %v1049
      %1150 = vmatpush.bf16.msra.mxu0 %v1047
      %1151 = vmatpush.bf16.msra.mxu0 %v1045
      %1152 = vmatpush.bf16.msra.mxu0 %v1043
      %1153 = vmatpush.bf16.msra.mxu0 %v1041
      %1154 = vmatpush.bf16.msra.mxu0 %v1039
      %1155 = vmatpush.bf16.msra.mxu0 %v1037
      %1156 = vmatmul.bf16.gmra.mxu0 %v922
      %v1157 = vpop.f32.mrf.mxu0
      %v1158 = vadd.f32 0.0, %v1157
      %v1159 = vpop.f32.mrf.mxu0
      %v1160 = vadd.f32 0.0, %v1159
      %1161 = vmatmul.bf16.gmra.mxu0 %v927
      %v1162 = vpop.f32.mrf.mxu0
      %v1163 = vadd.f32 0.0, %v1162
      %v1164 = vpop.f32.mrf.mxu0
      %v1165 = vadd.f32 0.0, %v1164
      %1166 = vmatmul.bf16.gmra.mxu0 %v931
      %v1167 = vpop.f32.mrf.mxu0
      %v1168 = vadd.f32 0.0, %v1167
      %v1169 = vpop.f32.mrf.mxu0
      %v1170 = vadd.f32 0.0, %v1169
      %1171 = vdwg.mxu0
      %1172 = vmatpush.bf16.msra.mxu0 %v1067
      %1173 = vmatpush.bf16.msra.mxu0 %v1065
      %1174 = vmatpush.bf16.msra.mxu0 %v1063
      %1175 = vmatpush.bf16.msra.mxu0 %v1061
      %1176 = vmatpush.bf16.msra.mxu0 %v1059
      %1177 = vmatpush.bf16.msra.mxu0 %v1057
      %1178 = vmatpush.bf16.msra.mxu0 %v1055
      %1179 = vmatpush.bf16.msra.mxu0 %v1053
      %1180 = vmatmul.bf16.gmra.mxu0 %v925
      %v1181 = vpop.f32.mrf.mxu0
      %v1182 = vadd.f32 %v1158, %v1181
      %v1183 = vpop.f32.mrf.mxu0
      %v1184 = vadd.f32 %v1160, %v1183
      %1185 = vmatmul.bf16.gmra.mxu0 %v929
      %v1186 = vpop.f32.mrf.mxu0
      %v1187 = vadd.f32 %v1163, %v1186
      %v1188 = vpop.f32.mrf.mxu0
      %v1189 = vadd.f32 %v1165, %v1188
      %1190 = vmatmul.bf16.gmra.mxu0 %v933
      %v1191 = vpop.f32.mrf.mxu0
      %v1192 = vadd.f32 %v1168, %v1191
      %v1193 = vpop.f32.mrf.mxu0
      %v1194 = vadd.f32 %v1170, %v1193
      %1195 = vdwg.mxu0
      %v1196 = vadd.f32 %v818, %v1134
      %v1197 = vadd.f32 %v866, %v1182
      %v1198 = vadd.f32 %v820, %v1136
      %v1199 = vadd.f32 %v868, %v1184
      %v1200 = vadd.f32 %v823, %v1139
      %v1201 = vadd.f32 %v871, %v1187
      %v1202 = vadd.f32 %v825, %v1141
      %v1203 = vadd.f32 %v873, %v1189
      %v1204 = vadd.f32 %v828, %v1144
      %v1205 = vadd.f32 %v876, %v1192
      %v1206 = vadd.f32 %v830, %v1146
      %v1207 = vadd.f32 %v878, %v1194
      %v1208 = vld [vmem:[%s192] sm:$0x88]
      %v1209 = vld [vmem:[%s192 + $0x30] sm:$0x77]
      %s1210 = scalar_lea.vmem %s1, 768
      %v1211 = vld [vmem:[%s1210] sm:$0xff]
      %v1212 = vld [vmem:[%s1210 + $0x8] sm:$0xff]
      %v1213 = vld [vmem:[%s1210 + $0x10] sm:$0xff]
      %v1214 = vld [vmem:[%s1210 + $0x18] sm:$0xff]
      %v1215 = vld [vmem:[%s1210 + $0x20] sm:$0xff]
      %v1216 = vld [vmem:[%s1210 + $0x28] sm:$0xff]
      %v1217 = vld [vmem:[%s1210 + $0x30] sm:$0xff]
      %v1218 = vld [vmem:[%s1210 + $0x38] sm:$0xff]
      %v1219 = vld [vmem:[%s1210 + $0x40] sm:$0xff]
      %v1220 = vld [vmem:[%s1210 + $0x48] sm:$0xff]
      %v1221 = vld [vmem:[%s1210 + $0x50] sm:$0xff]
      %v1222 = vld [vmem:[%s1210 + $0x58] sm:$0xff]
      %v1223 = vld [vmem:[%s1210 + $0x60] sm:$0xff]
      %v1224 = vld [vmem:[%s1210 + $0x68] sm:$0xff]
      %v1225 = vld [vmem:[%s1210 + $0x70] sm:$0xff]
      %v1226 = vld [vmem:[%s1210 + $0x78] sm:$0xff]
      %v1227 = vld [vmem:[%s1210 + $0x80] sm:$0xff]
      %v1228 = vld [vmem:[%s1210 + $0x88] sm:$0xff]
      %v1229 = vld [vmem:[%s1210 + $0x90] sm:$0xff]
      %v1230 = vld [vmem:[%s1210 + $0x98] sm:$0xff]
      %v1231 = vld [vmem:[%s1210 + $0xa0] sm:$0xff]
      %v1232 = vld [vmem:[%s1210 + $0xa8] sm:$0xff]
      %v1233 = vld [vmem:[%s1210 + $0xb0] sm:$0xff]
      %v1234 = vld [vmem:[%s1210 + $0xb8] sm:$0xff]
      %v1235 = vld [vmem:[%s1210 + $0xc0] sm:$0xff]
      %v1236 = vld [vmem:[%s1210 + $0xc8] sm:$0xff]
      %v1237 = vld [vmem:[%s1210 + $0xd0] sm:$0xff]
      %v1238 = vld [vmem:[%s1210 + $0xd8] sm:$0xff]
      %v1239 = vld [vmem:[%s1210 + $0xe0] sm:$0xff]
      %v1240 = vld [vmem:[%s1210 + $0xe8] sm:$0xff]
      %v1241 = vld [vmem:[%s1210 + $0xf0] sm:$0xff]
      %v1242 = vld [vmem:[%s1210 + $0xf8] sm:$0xff]
      %v1245 = vunpack.c.l.b16 %v1208
      %v1246 = vunpack.c.h.b16 %v1208
      %v1247 = vunpack.c.l.b16 %v1209
      %v1248 = vunpack.c.h.b16 %v1209
      %v1249 = vpack.c.b16 %v279, %v1245
      %v1250 = vpack.c.b16 %v280, %v1246
      %v1251 = vpack.c.b16 %v1247, %v1247
      %v1252 = vpack.c.b16 %v1248, %v1248
      %vm1253 = vcmask 1044480
      %v1254 = vrot.slane %v1249, 3
      %v1255 = vrot.slane %v293, 3
      %v1256 = vsel %vm1253, %v1254, %v1255
      %v1257 = vrot.slane %v1250, 3
      %v1258 = vrot.slane %v294, 3
      %v1259 = vsel %vm1253, %v1257, %v1258
      %v1260 = vrot.slane %v295, 3
      %v1261 = vsel %vm1253, %v1255, %v1260
      %v1262 = vrot.slane %v296, 3
      %v1263 = vsel %vm1253, %v1258, %v1262
      %v1264 = vrot.slane %v1251, 3
      %v1265 = vsel %vm1253, %v1260, %v1264
      %v1266 = vrot.slane %v1252, 3
      %v1267 = vsel %vm1253, %v1262, %v1266
      %v1306 = vunpack.c.l.b16 %v1211
      %v1307 = vunpack.c.h.b16 %v1211
      %v1308 = vunpack.c.l.b16 %v1212
      %v1309 = vunpack.c.h.b16 %v1212
      %v1310 = vunpack.c.l.b16 %v1213
      %v1311 = vunpack.c.h.b16 %v1213
      %v1312 = vunpack.c.l.b16 %v1214
      %v1313 = vunpack.c.h.b16 %v1214
      %v1314 = vunpack.c.l.b16 %v1215
      %v1315 = vunpack.c.h.b16 %v1215
      %v1316 = vunpack.c.l.b16 %v1216
      %v1317 = vunpack.c.h.b16 %v1216
      %v1318 = vunpack.c.l.b16 %v1217
      %v1319 = vunpack.c.h.b16 %v1217
      %v1320 = vunpack.c.l.b16 %v1218
      %v1321 = vunpack.c.h.b16 %v1218
      %v1322 = vunpack.c.l.b16 %v1219
      %v1323 = vunpack.c.h.b16 %v1219
      %v1324 = vunpack.c.l.b16 %v1220
      %v1325 = vunpack.c.h.b16 %v1220
      %v1326 = vunpack.c.l.b16 %v1221
      %v1327 = vunpack.c.h.b16 %v1221
      %v1328 = vunpack.c.l.b16 %v1222
      %v1329 = vunpack.c.h.b16 %v1222
      %v1330 = vunpack.c.l.b16 %v1223
      %v1331 = vunpack.c.h.b16 %v1223
      %v1332 = vunpack.c.l.b16 %v1224
      %v1333 = vunpack.c.h.b16 %v1224
      %v1334 = vunpack.c.l.b16 %v1225
      %v1335 = vunpack.c.h.b16 %v1225
      %v1336 = vunpack.c.l.b16 %v1226
      %v1337 = vunpack.c.h.b16 %v1226
      %v1338 = vunpack.c.l.b16 %v1227
      %v1339 = vunpack.c.h.b16 %v1227
      %v1340 = vunpack.c.l.b16 %v1228
      %v1341 = vunpack.c.h.b16 %v1228
      %v1342 = vunpack.c.l.b16 %v1229
      %v1343 = vunpack.c.h.b16 %v1229
      %v1344 = vunpack.c.l.b16 %v1230
      %v1345 = vunpack.c.h.b16 %v1230
      %v1346 = vunpack.c.l.b16 %v1231
      %v1347 = vunpack.c.h.b16 %v1231
      %v1348 = vunpack.c.l.b16 %v1232
      %v1349 = vunpack.c.h.b16 %v1232
      %v1350 = vunpack.c.l.b16 %v1233
      %v1351 = vunpack.c.h.b16 %v1233
      %v1352 = vunpack.c.l.b16 %v1234
      %v1353 = vunpack.c.h.b16 %v1234
      %v1354 = vunpack.c.l.b16 %v1235
      %v1355 = vunpack.c.h.b16 %v1235
      %v1356 = vunpack.c.l.b16 %v1236
      %v1357 = vunpack.c.h.b16 %v1236
      %v1358 = vunpack.c.l.b16 %v1237
      %v1359 = vunpack.c.h.b16 %v1237
      %v1360 = vunpack.c.l.b16 %v1238
      %v1361 = vunpack.c.h.b16 %v1238
      %v1362 = vunpack.c.l.b16 %v1239
      %v1363 = vunpack.c.h.b16 %v1239
      %v1364 = vunpack.c.l.b16 %v1240
      %v1365 = vunpack.c.h.b16 %v1240
      %v1366 = vunpack.c.l.b16 %v1241
      %v1367 = vunpack.c.h.b16 %v1241
      %v1368 = vunpack.c.l.b16 %v1242
      %v1369 = vunpack.c.h.b16 %v1242
      %v1370 = vpack.c.b16 %v1308, %v1306
      %v1371 = vpack.c.b16 %v1309, %v1307
      %v1372 = vpack.c.b16 %v1312, %v1310
      %v1373 = vpack.c.b16 %v1313, %v1311
      %v1374 = vpack.c.b16 %v1316, %v1314
      %v1375 = vpack.c.b16 %v1317, %v1315
      %v1376 = vpack.c.b16 %v1320, %v1318
      %v1377 = vpack.c.b16 %v1321, %v1319
      %v1378 = vpack.c.b16 %v1324, %v1322
      %v1379 = vpack.c.b16 %v1325, %v1323
      %v1380 = vpack.c.b16 %v1328, %v1326
      %v1381 = vpack.c.b16 %v1329, %v1327
      %v1382 = vpack.c.b16 %v1332, %v1330
      %v1383 = vpack.c.b16 %v1333, %v1331
      %v1384 = vpack.c.b16 %v1336, %v1334
      %v1385 = vpack.c.b16 %v1337, %v1335
      %v1386 = vpack.c.b16 %v1340, %v1338
      %v1387 = vpack.c.b16 %v1341, %v1339
      %v1388 = vpack.c.b16 %v1344, %v1342
      %v1389 = vpack.c.b16 %v1345, %v1343
      %v1390 = vpack.c.b16 %v1348, %v1346
      %v1391 = vpack.c.b16 %v1349, %v1347
      %v1392 = vpack.c.b16 %v1352, %v1350
      %v1393 = vpack.c.b16 %v1353, %v1351
      %v1394 = vpack.c.b16 %v1356, %v1354
      %v1395 = vpack.c.b16 %v1357, %v1355
      %v1396 = vpack.c.b16 %v1360, %v1358
      %v1397 = vpack.c.b16 %v1361, %v1359
      %v1398 = vpack.c.b16 %v1364, %v1362
      %v1399 = vpack.c.b16 %v1365, %v1363
      %v1400 = vpack.c.b16 %v1368, %v1366
      %v1401 = vpack.c.b16 %v1369, %v1367
      %1434 = vmatpush.bf16.msra.mxu0 %v1384
      %1435 = vmatpush.bf16.msra.mxu0 %v1382
      %1436 = vmatpush.bf16.msra.mxu0 %v1380
      %1437 = vmatpush.bf16.msra.mxu0 %v1378
      %1438 = vmatpush.bf16.msra.mxu0 %v1376
      %1439 = vmatpush.bf16.msra.mxu0 %v1374
      %1440 = vmatpush.bf16.msra.mxu0 %v1372
      %1441 = vmatpush.bf16.msra.mxu0 %v1370
      %1442 = vmatmul.bf16.gmra.mxu0 %v1256
      %v1443 = vpop.f32.mrf.mxu0
      %v1444 = vadd.f32 0.0, %v1443
      %v1445 = vpop.f32.mrf.mxu0
      %v1446 = vadd.f32 0.0, %v1445
      %1447 = vmatmul.bf16.gmra.mxu0 %v1261
      %v1448 = vpop.f32.mrf.mxu0
      %v1449 = vadd.f32 0.0, %v1448
      %v1450 = vpop.f32.mrf.mxu0
      %v1451 = vadd.f32 0.0, %v1450
      %1452 = vmatmul.bf16.gmra.mxu0 %v1265
      %v1453 = vpop.f32.mrf.mxu0
      %v1454 = vadd.f32 0.0, %v1453
      %v1455 = vpop.f32.mrf.mxu0
      %v1456 = vadd.f32 0.0, %v1455
      %1457 = vdwg.mxu0
      %1458 = vmatpush.bf16.msra.mxu0 %v1400
      %1459 = vmatpush.bf16.msra.mxu0 %v1398
      %1460 = vmatpush.bf16.msra.mxu0 %v1396
      %1461 = vmatpush.bf16.msra.mxu0 %v1394
      %1462 = vmatpush.bf16.msra.mxu0 %v1392
      %1463 = vmatpush.bf16.msra.mxu0 %v1390
      %1464 = vmatpush.bf16.msra.mxu0 %v1388
      %1465 = vmatpush.bf16.msra.mxu0 %v1386
      %1466 = vmatmul.bf16.gmra.mxu0 %v1259
      %v1467 = vpop.f32.mrf.mxu0
      %v1468 = vadd.f32 %v1444, %v1467
      %v1469 = vpop.f32.mrf.mxu0
      %v1470 = vadd.f32 %v1446, %v1469
      %1471 = vmatmul.bf16.gmra.mxu0 %v1263
      %v1472 = vpop.f32.mrf.mxu0
      %v1473 = vadd.f32 %v1449, %v1472
      %v1474 = vpop.f32.mrf.mxu0
      %v1475 = vadd.f32 %v1451, %v1474
      %1476 = vmatmul.bf16.gmra.mxu0 %v1267
      %v1477 = vpop.f32.mrf.mxu0
      %v1478 = vadd.f32 %v1454, %v1477
      %v1479 = vpop.f32.mrf.mxu0
      %v1480 = vadd.f32 %v1456, %v1479
      %1481 = vdwg.mxu0
      %1482 = vmatpush.bf16.msra.mxu0 %v1385
      %1483 = vmatpush.bf16.msra.mxu0 %v1383
      %1484 = vmatpush.bf16.msra.mxu0 %v1381
      %1485 = vmatpush.bf16.msra.mxu0 %v1379
      %1486 = vmatpush.bf16.msra.mxu0 %v1377
      %1487 = vmatpush.bf16.msra.mxu0 %v1375
      %1488 = vmatpush.bf16.msra.mxu0 %v1373
      %1489 = vmatpush.bf16.msra.mxu0 %v1371
      %1490 = vmatmul.bf16.gmra.mxu0 %v1256
      %v1491 = vpop.f32.mrf.mxu0
      %v1492 = vadd.f32 0.0, %v1491
      %v1493 = vpop.f32.mrf.mxu0
      %v1494 = vadd.f32 0.0, %v1493
      %1495 = vmatmul.bf16.gmra.mxu0 %v1261
      %v1496 = vpop.f32.mrf.mxu0
      %v1497 = vadd.f32 0.0, %v1496
      %v1498 = vpop.f32.mrf.mxu0
      %v1499 = vadd.f32 0.0, %v1498
      %1500 = vmatmul.bf16.gmra.mxu0 %v1265
      %v1501 = vpop.f32.mrf.mxu0
      %v1502 = vadd.f32 0.0, %v1501
      %v1503 = vpop.f32.mrf.mxu0
      %v1504 = vadd.f32 0.0, %v1503
      %1505 = vdwg.mxu0
      %1506 = vmatpush.bf16.msra.mxu0 %v1401
      %1507 = vmatpush.bf16.msra.mxu0 %v1399
      %1508 = vmatpush.bf16.msra.mxu0 %v1397
      %1509 = vmatpush.bf16.msra.mxu0 %v1395
      %1510 = vmatpush.bf16.msra.mxu0 %v1393
      %1511 = vmatpush.bf16.msra.mxu0 %v1391
      %1512 = vmatpush.bf16.msra.mxu0 %v1389
      %1513 = vmatpush.bf16.msra.mxu0 %v1387
      %1514 = vmatmul.bf16.gmra.mxu0 %v1259
      %v1515 = vpop.f32.mrf.mxu0
      %v1516 = vadd.f32 %v1492, %v1515
      %v1517 = vpop.f32.mrf.mxu0
      %v1518 = vadd.f32 %v1494, %v1517
      %1519 = vmatmul.bf16.gmra.mxu0 %v1263
      %v1520 = vpop.f32.mrf.mxu0
      %v1521 = vadd.f32 %v1497, %v1520
      %v1522 = vpop.f32.mrf.mxu0
      %v1523 = vadd.f32 %v1499, %v1522
      %1524 = vmatmul.bf16.gmra.mxu0 %v1267
      %v1525 = vpop.f32.mrf.mxu0
      %v1526 = vadd.f32 %v1502, %v1525
      %v1527 = vpop.f32.mrf.mxu0
      %v1528 = vadd.f32 %v1504, %v1527
      %1529 = vdwg.mxu0
      %v1530 = vadd.f32 %v1196, %v1468
      %v1531 = vadd.f32 %v1197, %v1516
      %v1532 = vadd.f32 %v1198, %v1470
      %v1533 = vadd.f32 %v1199, %v1518
      %v1534 = vadd.f32 %v1200, %v1473
      %v1535 = vadd.f32 %v1201, %v1521
      %v1536 = vadd.f32 %v1202, %v1475
      %v1537 = vadd.f32 %v1203, %v1523
      %v1538 = vadd.f32 %v1204, %v1478
      %v1539 = vadd.f32 %v1205, %v1526
      %v1540 = vadd.f32 %v1206, %v1480
      %v1541 = vadd.f32 %v1207, %v1528
      %v1542 = vld [vmem:[%s192 + $0x30] sm:$0xff]
      %s1543 = scalar_lea.vmem %s1, 1024
      %v1544 = vld [vmem:[%s1543] sm:$0xff]
      %v1545 = vld [vmem:[%s1543 + $0x8] sm:$0xff]
      %v1546 = vld [vmem:[%s1543 + $0x10] sm:$0xff]
      %v1547 = vld [vmem:[%s1543 + $0x18] sm:$0xff]
      %v1548 = vld [vmem:[%s1543 + $0x20] sm:$0xff]
      %v1549 = vld [vmem:[%s1543 + $0x28] sm:$0xff]
      %v1550 = vld [vmem:[%s1543 + $0x30] sm:$0xff]
      %v1551 = vld [vmem:[%s1543 + $0x38] sm:$0xff]
      %v1552 = vld [vmem:[%s1543 + $0x40] sm:$0xff]
      %v1553 = vld [vmem:[%s1543 + $0x48] sm:$0xff]
      %v1554 = vld [vmem:[%s1543 + $0x50] sm:$0xff]
      %v1555 = vld [vmem:[%s1543 + $0x58] sm:$0xff]
      %v1556 = vld [vmem:[%s1543 + $0x60] sm:$0xff]
      %v1557 = vld [vmem:[%s1543 + $0x68] sm:$0xff]
      %v1558 = vld [vmem:[%s1543 + $0x70] sm:$0xff]
      %v1559 = vld [vmem:[%s1543 + $0x78] sm:$0xff]
      %v1560 = vld [vmem:[%s1543 + $0x80] sm:$0xff]
      %v1561 = vld [vmem:[%s1543 + $0x88] sm:$0xff]
      %v1562 = vld [vmem:[%s1543 + $0x90] sm:$0xff]
      %v1563 = vld [vmem:[%s1543 + $0x98] sm:$0xff]
      %v1564 = vld [vmem:[%s1543 + $0xa0] sm:$0xff]
      %v1565 = vld [vmem:[%s1543 + $0xa8] sm:$0xff]
      %v1566 = vld [vmem:[%s1543 + $0xb0] sm:$0xff]
      %v1567 = vld [vmem:[%s1543 + $0xb8] sm:$0xff]
      %v1568 = vld [vmem:[%s1543 + $0xc0] sm:$0xff]
      %v1569 = vld [vmem:[%s1543 + $0xc8] sm:$0xff]
      %v1570 = vld [vmem:[%s1543 + $0xd0] sm:$0xff]
      %v1571 = vld [vmem:[%s1543 + $0xd8] sm:$0xff]
      %v1572 = vld [vmem:[%s1543 + $0xe0] sm:$0xff]
      %v1573 = vld [vmem:[%s1543 + $0xe8] sm:$0xff]
      %v1574 = vld [vmem:[%s1543 + $0xf0] sm:$0xff]
      %v1575 = vld [vmem:[%s1543 + $0xf8] sm:$0xff]
      %v1577 = vunpack.c.l.b16 %v1542
      %v1578 = vunpack.c.h.b16 %v1542
      %v1579 = vpack.c.b16 %v1577, %v1577
      %v1580 = vpack.c.b16 %v1578, %v1578
      %vm1581 = vsmask.f32 4352
      %v1583 = vshrl.u32 %v1249, 16
      %v1585 = vrot.slane %v1583, 3
      %v1586 = vshll.u32 %v1249, 16
      %v1588 = vrot.slane %v1586, 4
      %v1589 = vor.u32 %v1585, %v1588
      %v1590 = vrot.slane %v324, 3
      %v1591 = vrot.slane %v308, 4
      %v1592 = vor.u32 %v1590, %v1591
      %v1593 = vsel %vm1581, %v1589, %v1592
      %v1595 = vshrl.u32 %v1250, 16
      %v1597 = vrot.slane %v1595, 3
      %v1598 = vshll.u32 %v1250, 16
      %v1600 = vrot.slane %v1598, 4
      %v1601 = vor.u32 %v1597, %v1600
      %v1602 = vrot.slane %v332, 3
      %v1603 = vrot.slane %v320, 4
      %v1604 = vor.u32 %v1602, %v1603
      %v1605 = vsel %vm1581, %v1601, %v1604
      %v1606 = vrot.slane %v340, 3
      %v1607 = vrot.slane %v328, 4
      %v1608 = vor.u32 %v1606, %v1607
      %v1609 = vsel %vm1581, %v1592, %v1608
      %v1610 = vrot.slane %v348, 3
      %v1611 = vrot.slane %v336, 4
      %v1612 = vor.u32 %v1610, %v1611
      %v1613 = vsel %vm1581, %v1604, %v1612
      %v1615 = vshrl.u32 %v1579, 16
      %v1617 = vrot.slane %v1615, 3
      %v1618 = vshll.u32 %v1579, 16
      %v1620 = vrot.slane %v1618, 4
      %v1621 = vor.u32 %v1617, %v1620
      %v1622 = vsel %vm1581, %v1608, %v1621
      %v1624 = vshrl.u32 %v1580, 16
      %v1626 = vrot.slane %v1624, 3
      %v1627 = vshll.u32 %v1580, 16
      %v1629 = vrot.slane %v1627, 4
      %v1630 = vor.u32 %v1626, %v1629
      %v1631 = vsel %vm1581, %v1612, %v1630
      %v1670 = vunpack.c.l.b16 %v1544
      %v1671 = vunpack.c.h.b16 %v1544
      %v1672 = vunpack.c.l.b16 %v1545
      %v1673 = vunpack.c.h.b16 %v1545
      %v1674 = vunpack.c.l.b16 %v1546
      %v1675 = vunpack.c.h.b16 %v1546
      %v1676 = vunpack.c.l.b16 %v1547
      %v1677 = vunpack.c.h.b16 %v1547
      %v1678 = vunpack.c.l.b16 %v1548
      %v1679 = vunpack.c.h.b16 %v1548
      %v1680 = vunpack.c.l.b16 %v1549
      %v1681 = vunpack.c.h.b16 %v1549
      %v1682 = vunpack.c.l.b16 %v1550
      %v1683 = vunpack.c.h.b16 %v1550
      %v1684 = vunpack.c.l.b16 %v1551
      %v1685 = vunpack.c.h.b16 %v1551
      %v1686 = vunpack.c.l.b16 %v1552
      %v1687 = vunpack.c.h.b16 %v1552
      %v1688 = vunpack.c.l.b16 %v1553
      %v1689 = vunpack.c.h.b16 %v1553
      %v1690 = vunpack.c.l.b16 %v1554
      %v1691 = vunpack.c.h.b16 %v1554
      %v1692 = vunpack.c.l.b16 %v1555
      %v1693 = vunpack.c.h.b16 %v1555
      %v1694 = vunpack.c.l.b16 %v1556
      %v1695 = vunpack.c.h.b16 %v1556
      %v1696 = vunpack.c.l.b16 %v1557
      %v1697 = vunpack.c.h.b16 %v1557
      %v1698 = vunpack.c.l.b16 %v1558
      %v1699 = vunpack.c.h.b16 %v1558
      %v1700 = vunpack.c.l.b16 %v1559
      %v1701 = vunpack.c.h.b16 %v1559
      %v1702 = vunpack.c.l.b16 %v1560
      %v1703 = vunpack.c.h.b16 %v1560
      %v1704 = vunpack.c.l.b16 %v1561
      %v1705 = vunpack.c.h.b16 %v1561
      %v1706 = vunpack.c.l.b16 %v1562
      %v1707 = vunpack.c.h.b16 %v1562
      %v1708 = vunpack.c.l.b16 %v1563
      %v1709 = vunpack.c.h.b16 %v1563
      %v1710 = vunpack.c.l.b16 %v1564
      %v1711 = vunpack.c.h.b16 %v1564
      %v1712 = vunpack.c.l.b16 %v1565
      %v1713 = vunpack.c.h.b16 %v1565
      %v1714 = vunpack.c.l.b16 %v1566
      %v1715 = vunpack.c.h.b16 %v1566
      %v1716 = vunpack.c.l.b16 %v1567
      %v1717 = vunpack.c.h.b16 %v1567
      %v1718 = vunpack.c.l.b16 %v1568
      %v1719 = vunpack.c.h.b16 %v1568
      %v1720 = vunpack.c.l.b16 %v1569
      %v1721 = vunpack.c.h.b16 %v1569
      %v1722 = vunpack.c.l.b16 %v1570
      %v1723 = vunpack.c.h.b16 %v1570
      %v1724 = vunpack.c.l.b16 %v1571
      %v1725 = vunpack.c.h.b16 %v1571
      %v1726 = vunpack.c.l.b16 %v1572
      %v1727 = vunpack.c.h.b16 %v1572
      %v1728 = vunpack.c.l.b16 %v1573
      %v1729 = vunpack.c.h.b16 %v1573
      %v1730 = vunpack.c.l.b16 %v1574
      %v1731 = vunpack.c.h.b16 %v1574
      %v1732 = vunpack.c.l.b16 %v1575
      %v1733 = vunpack.c.h.b16 %v1575
      %v1734 = vpack.c.b16 %v1672, %v1670
      %v1735 = vpack.c.b16 %v1673, %v1671
      %v1736 = vpack.c.b16 %v1676, %v1674
      %v1737 = vpack.c.b16 %v1677, %v1675
      %v1738 = vpack.c.b16 %v1680, %v1678
      %v1739 = vpack.c.b16 %v1681, %v1679
      %v1740 = vpack.c.b16 %v1684, %v1682
      %v1741 = vpack.c.b16 %v1685, %v1683
      %v1742 = vpack.c.b16 %v1688, %v1686
      %v1743 = vpack.c.b16 %v1689, %v1687
      %v1744 = vpack.c.b16 %v1692, %v1690
      %v1745 = vpack.c.b16 %v1693, %v1691
      %v1746 = vpack.c.b16 %v1696, %v1694
      %v1747 = vpack.c.b16 %v1697, %v1695
      %v1748 = vpack.c.b16 %v1700, %v1698
      %v1749 = vpack.c.b16 %v1701, %v1699
      %v1750 = vpack.c.b16 %v1704, %v1702
      %v1751 = vpack.c.b16 %v1705, %v1703
      %v1752 = vpack.c.b16 %v1708, %v1706
      %v1753 = vpack.c.b16 %v1709, %v1707
      %v1754 = vpack.c.b16 %v1712, %v1710
      %v1755 = vpack.c.b16 %v1713, %v1711
      %v1756 = vpack.c.b16 %v1716, %v1714
      %v1757 = vpack.c.b16 %v1717, %v1715
      %v1758 = vpack.c.b16 %v1720, %v1718
      %v1759 = vpack.c.b16 %v1721, %v1719
      %v1760 = vpack.c.b16 %v1724, %v1722
      %v1761 = vpack.c.b16 %v1725, %v1723
      %v1762 = vpack.c.b16 %v1728, %v1726
      %v1763 = vpack.c.b16 %v1729, %v1727
      %v1764 = vpack.c.b16 %v1732, %v1730
      %v1765 = vpack.c.b16 %v1733, %v1731
      %1798 = vmatpush.bf16.msra.mxu0 %v1748
      %1799 = vmatpush.bf16.msra.mxu0 %v1746
      %1800 = vmatpush.bf16.msra.mxu0 %v1744
      %1801 = vmatpush.bf16.msra.mxu0 %v1742
      %1802 = vmatpush.bf16.msra.mxu0 %v1740
      %1803 = vmatpush.bf16.msra.mxu0 %v1738
      %1804 = vmatpush.bf16.msra.mxu0 %v1736
      %1805 = vmatpush.bf16.msra.mxu0 %v1734
      %1806 = vmatmul.bf16.gmra.mxu0 %v1593
      %v1807 = vpop.f32.mrf.mxu0
      %v1808 = vadd.f32 0.0, %v1807
      %v1809 = vpop.f32.mrf.mxu0
      %v1810 = vadd.f32 0.0, %v1809
      %1811 = vmatmul.bf16.gmra.mxu0 %v1609
      %v1812 = vpop.f32.mrf.mxu0
      %v1813 = vadd.f32 0.0, %v1812
      %v1814 = vpop.f32.mrf.mxu0
      %v1815 = vadd.f32 0.0, %v1814
      %1816 = vmatmul.bf16.gmra.mxu0 %v1622
      %v1817 = vpop.f32.mrf.mxu0
      %v1818 = vadd.f32 0.0, %v1817
      %v1819 = vpop.f32.mrf.mxu0
      %v1820 = vadd.f32 0.0, %v1819
      %1821 = vdwg.mxu0
      %1822 = vmatpush.bf16.msra.mxu0 %v1764
      %1823 = vmatpush.bf16.msra.mxu0 %v1762
      %1824 = vmatpush.bf16.msra.mxu0 %v1760
      %1825 = vmatpush.bf16.msra.mxu0 %v1758
      %1826 = vmatpush.bf16.msra.mxu0 %v1756
      %1827 = vmatpush.bf16.msra.mxu0 %v1754
      %1828 = vmatpush.bf16.msra.mxu0 %v1752
      %1829 = vmatpush.bf16.msra.mxu0 %v1750
      %1830 = vmatmul.bf16.gmra.mxu0 %v1605
      %v1831 = vpop.f32.mrf.mxu0
      %v1832 = vadd.f32 %v1808, %v1831
      %v1833 = vpop.f32.mrf.mxu0
      %v1834 = vadd.f32 %v1810, %v1833
      %1835 = vmatmul.bf16.gmra.mxu0 %v1613
      %v1836 = vpop.f32.mrf.mxu0
      %v1837 = vadd.f32 %v1813, %v1836
      %v1838 = vpop.f32.mrf.mxu0
      %v1839 = vadd.f32 %v1815, %v1838
      %1840 = vmatmul.bf16.gmra.mxu0 %v1631
      %v1841 = vpop.f32.mrf.mxu0
      %v1842 = vadd.f32 %v1818, %v1841
      %v1843 = vpop.f32.mrf.mxu0
      %v1844 = vadd.f32 %v1820, %v1843
      %1845 = vdwg.mxu0
      %1846 = vmatpush.bf16.msra.mxu0 %v1749
      %1847 = vmatpush.bf16.msra.mxu0 %v1747
      %1848 = vmatpush.bf16.msra.mxu0 %v1745
      %1849 = vmatpush.bf16.msra.mxu0 %v1743
      %1850 = vmatpush.bf16.msra.mxu0 %v1741
      %1851 = vmatpush.bf16.msra.mxu0 %v1739
      %1852 = vmatpush.bf16.msra.mxu0 %v1737
      %1853 = vmatpush.bf16.msra.mxu0 %v1735
      %1854 = vmatmul.bf16.gmra.mxu0 %v1593
      %v1855 = vpop.f32.mrf.mxu0
      %v1856 = vadd.f32 0.0, %v1855
      %v1857 = vpop.f32.mrf.mxu0
      %v1858 = vadd.f32 0.0, %v1857
      %1859 = vmatmul.bf16.gmra.mxu0 %v1609
      %v1860 = vpop.f32.mrf.mxu0
      %v1861 = vadd.f32 0.0, %v1860
      %v1862 = vpop.f32.mrf.mxu0
      %v1863 = vadd.f32 0.0, %v1862
      %1864 = vmatmul.bf16.gmra.mxu0 %v1622
      %v1865 = vpop.f32.mrf.mxu0
      %v1866 = vadd.f32 0.0, %v1865
      %v1867 = vpop.f32.mrf.mxu0
      %v1868 = vadd.f32 0.0, %v1867
      %1869 = vdwg.mxu0
      %1870 = vmatpush.bf16.msra.mxu0 %v1765
      %1871 = vmatpush.bf16.msra.mxu0 %v1763
      %1872 = vmatpush.bf16.msra.mxu0 %v1761
      %1873 = vmatpush.bf16.msra.mxu0 %v1759
      %1874 = vmatpush.bf16.msra.mxu0 %v1757
      %1875 = vmatpush.bf16.msra.mxu0 %v1755
      %1876 = vmatpush.bf16.msra.mxu0 %v1753
      %1877 = vmatpush.bf16.msra.mxu0 %v1751
      %1878 = vmatmul.bf16.gmra.mxu0 %v1605
      %v1879 = vpop.f32.mrf.mxu0
      %v1880 = vadd.f32 %v1856, %v1879
      %v1881 = vpop.f32.mrf.mxu0
      %v1882 = vadd.f32 %v1858, %v1881
      %1883 = vmatmul.bf16.gmra.mxu0 %v1613
      %v1884 = vpop.f32.mrf.mxu0
      %v1885 = vadd.f32 %v1861, %v1884
      %v1886 = vpop.f32.mrf.mxu0
      %v1887 = vadd.f32 %v1863, %v1886
      %1888 = vmatmul.bf16.gmra.mxu0 %v1631
      %v1889 = vpop.f32.mrf.mxu0
      %v1890 = vadd.f32 %v1866, %v1889
      %v1891 = vpop.f32.mrf.mxu0
      %v1892 = vadd.f32 %v1868, %v1891
      %1893 = vdwg.mxu0
      %v1894 = vadd.f32 %v1530, %v1832
      %v1895 = vadd.f32 %v1531, %v1880
      %v1896 = vadd.f32 %v1532, %v1834
      %v1897 = vadd.f32 %v1533, %v1882
      %v1898 = vadd.f32 %v1534, %v1837
      %v1899 = vadd.f32 %v1535, %v1885
      %v1900 = vadd.f32 %v1536, %v1839
      %v1901 = vadd.f32 %v1537, %v1887
      %v1902 = vadd.f32 %v1538, %v1842
      %v1903 = vadd.f32 %v1539, %v1890
      %v1904 = vadd.f32 %v1540, %v1844
      %v1905 = vadd.f32 %v1541, %v1892
      %s1906 = scalar_lea.vmem %s1, 1280
      %v1907 = vld [vmem:[%s1906] sm:$0xff]
      %v1908 = vld [vmem:[%s1906 + $0x8] sm:$0xff]
      %v1909 = vld [vmem:[%s1906 + $0x10] sm:$0xff]
      %v1910 = vld [vmem:[%s1906 + $0x18] sm:$0xff]
      %v1911 = vld [vmem:[%s1906 + $0x20] sm:$0xff]
      %v1912 = vld [vmem:[%s1906 + $0x28] sm:$0xff]
      %v1913 = vld [vmem:[%s1906 + $0x30] sm:$0xff]
      %v1914 = vld [vmem:[%s1906 + $0x38] sm:$0xff]
      %v1915 = vld [vmem:[%s1906 + $0x40] sm:$0xff]
      %v1916 = vld [vmem:[%s1906 + $0x48] sm:$0xff]
      %v1917 = vld [vmem:[%s1906 + $0x50] sm:$0xff]
      %v1918 = vld [vmem:[%s1906 + $0x58] sm:$0xff]
      %v1919 = vld [vmem:[%s1906 + $0x60] sm:$0xff]
      %v1920 = vld [vmem:[%s1906 + $0x68] sm:$0xff]
      %v1921 = vld [vmem:[%s1906 + $0x70] sm:$0xff]
      %v1922 = vld [vmem:[%s1906 + $0x78] sm:$0xff]
      %v1923 = vld [vmem:[%s1906 + $0x80] sm:$0xff]
      %v1924 = vld [vmem:[%s1906 + $0x88] sm:$0xff]
      %v1925 = vld [vmem:[%s1906 + $0x90] sm:$0xff]
      %v1926 = vld [vmem:[%s1906 + $0x98] sm:$0xff]
      %v1927 = vld [vmem:[%s1906 + $0xa0] sm:$0xff]
      %v1928 = vld [vmem:[%s1906 + $0xa8] sm:$0xff]
      %v1929 = vld [vmem:[%s1906 + $0xb0] sm:$0xff]
      %v1930 = vld [vmem:[%s1906 + $0xb8] sm:$0xff]
      %v1931 = vld [vmem:[%s1906 + $0xc0] sm:$0xff]
      %v1932 = vld [vmem:[%s1906 + $0xc8] sm:$0xff]
      %v1933 = vld [vmem:[%s1906 + $0xd0] sm:$0xff]
      %v1934 = vld [vmem:[%s1906 + $0xd8] sm:$0xff]
      %v1935 = vld [vmem:[%s1906 + $0xe0] sm:$0xff]
      %v1936 = vld [vmem:[%s1906 + $0xe8] sm:$0xff]
      %v1937 = vld [vmem:[%s1906 + $0xf0] sm:$0xff]
      %v1938 = vld [vmem:[%s1906 + $0xf8] sm:$0xff]
      %v1939 = vpack.c.b16 %v281, %v279
      %v1940 = vpack.c.b16 %v282, %v280
      %v1941 = vpack.c.b16 %v285, %v283
      %v1942 = vpack.c.b16 %v286, %v284
      %v1943 = vpack.c.b16 %v1577, %v287
      %v1944 = vpack.c.b16 %v1578, %v288
      %v1983 = vunpack.c.l.b16 %v1907
      %v1984 = vunpack.c.h.b16 %v1907
      %v1985 = vunpack.c.l.b16 %v1908
      %v1986 = vunpack.c.h.b16 %v1908
      %v1987 = vunpack.c.l.b16 %v1909
      %v1988 = vunpack.c.h.b16 %v1909
      %v1989 = vunpack.c.l.b16 %v1910
      %v1990 = vunpack.c.h.b16 %v1910
      %v1991 = vunpack.c.l.b16 %v1911
      %v1992 = vunpack.c.h.b16 %v1911
      %v1993 = vunpack.c.l.b16 %v1912
      %v1994 = vunpack.c.h.b16 %v1912
      %v1995 = vunpack.c.l.b16 %v1913
      %v1996 = vunpack.c.h.b16 %v1913
      %v1997 = vunpack.c.l.b16 %v1914
      %v1998 = vunpack.c.h.b16 %v1914
      %v1999 = vunpack.c.l.b16 %v1915
      %v2000 = vunpack.c.h.b16 %v1915
      %v2001 = vunpack.c.l.b16 %v1916
      %v2002 = vunpack.c.h.b16 %v1916
      %v2003 = vunpack.c.l.b16 %v1917
      %v2004 = vunpack.c.h.b16 %v1917
      %v2005 = vunpack.c.l.b16 %v1918
      %v2006 = vunpack.c.h.b16 %v1918
      %v2007 = vunpack.c.l.b16 %v1919
      %v2008 = vunpack.c.h.b16 %v1919
      %v2009 = vunpack.c.l.b16 %v1920
      %v2010 = vunpack.c.h.b16 %v1920
      %v2011 = vunpack.c.l.b16 %v1921
      %v2012 = vunpack.c.h.b16 %v1921
      %v2013 = vunpack.c.l.b16 %v1922
      %v2014 = vunpack.c.h.b16 %v1922
      %v2015 = vunpack.c.l.b16 %v1923
      %v2016 = vunpack.c.h.b16 %v1923
      %v2017 = vunpack.c.l.b16 %v1924
      %v2018 = vunpack.c.h.b16 %v1924
      %v2019 = vunpack.c.l.b16 %v1925
      %v2020 = vunpack.c.h.b16 %v1925
      %v2021 = vunpack.c.l.b16 %v1926
      %v2022 = vunpack.c.h.b16 %v1926
      %v2023 = vunpack.c.l.b16 %v1927
      %v2024 = vunpack.c.h.b16 %v1927
      %v2025 = vunpack.c.l.b16 %v1928
      %v2026 = vunpack.c.h.b16 %v1928
      %v2027 = vunpack.c.l.b16 %v1929
      %v2028 = vunpack.c.h.b16 %v1929
      %v2029 = vunpack.c.l.b16 %v1930
      %v2030 = vunpack.c.h.b16 %v1930
      %v2031 = vunpack.c.l.b16 %v1931
      %v2032 = vunpack.c.h.b16 %v1931
      %v2033 = vunpack.c.l.b16 %v1932
      %v2034 = vunpack.c.h.b16 %v1932
      %v2035 = vunpack.c.l.b16 %v1933
      %v2036 = vunpack.c.h.b16 %v1933
      %v2037 = vunpack.c.l.b16 %v1934
      %v2038 = vunpack.c.h.b16 %v1934
      %v2039 = vunpack.c.l.b16 %v1935
      %v2040 = vunpack.c.h.b16 %v1935
      %v2041 = vunpack.c.l.b16 %v1936
      %v2042 = vunpack.c.h.b16 %v1936
      %v2043 = vunpack.c.l.b16 %v1937
      %v2044 = vunpack.c.h.b16 %v1937
      %v2045 = vunpack.c.l.b16 %v1938
      %v2046 = vunpack.c.h.b16 %v1938
      %v2047 = vpack.c.b16 %v1985, %v1983
      %v2048 = vpack.c.b16 %v1986, %v1984
      %v2049 = vpack.c.b16 %v1989, %v1987
      %v2050 = vpack.c.b16 %v1990, %v1988
      %v2051 = vpack.c.b16 %v1993, %v1991
      %v2052 = vpack.c.b16 %v1994, %v1992
      %v2053 = vpack.c.b16 %v1997, %v1995
      %v2054 = vpack.c.b16 %v1998, %v1996
      %v2055 = vpack.c.b16 %v2001, %v1999
      %v2056 = vpack.c.b16 %v2002, %v2000
      %v2057 = vpack.c.b16 %v2005, %v2003
      %v2058 = vpack.c.b16 %v2006, %v2004
      %v2059 = vpack.c.b16 %v2009, %v2007
      %v2060 = vpack.c.b16 %v2010, %v2008
      %v2061 = vpack.c.b16 %v2013, %v2011
      %v2062 = vpack.c.b16 %v2014, %v2012
      %v2063 = vpack.c.b16 %v2017, %v2015
      %v2064 = vpack.c.b16 %v2018, %v2016
      %v2065 = vpack.c.b16 %v2021, %v2019
      %v2066 = vpack.c.b16 %v2022, %v2020
      %v2067 = vpack.c.b16 %v2025, %v2023
      %v2068 = vpack.c.b16 %v2026, %v2024
      %v2069 = vpack.c.b16 %v2029, %v2027
      %v2070 = vpack.c.b16 %v2030, %v2028
      %v2071 = vpack.c.b16 %v2033, %v2031
      %v2072 = vpack.c.b16 %v2034, %v2032
      %v2073 = vpack.c.b16 %v2037, %v2035
      %v2074 = vpack.c.b16 %v2038, %v2036
      %v2075 = vpack.c.b16 %v2041, %v2039
      %v2076 = vpack.c.b16 %v2042, %v2040
      %v2077 = vpack.c.b16 %v2045, %v2043
      %v2078 = vpack.c.b16 %v2046, %v2044
      %2111 = vmatpush.bf16.msra.mxu0 %v2061
      %2112 = vmatpush.bf16.msra.mxu0 %v2059
      %2113 = vmatpush.bf16.msra.mxu0 %v2057
      %2114 = vmatpush.bf16.msra.mxu0 %v2055
      %2115 = vmatpush.bf16.msra.mxu0 %v2053
      %2116 = vmatpush.bf16.msra.mxu0 %v2051
      %2117 = vmatpush.bf16.msra.mxu0 %v2049
      %2118 = vmatpush.bf16.msra.mxu0 %v2047
      %2119 = vmatmul.bf16.gmra.mxu0 %v1939
      %v2120 = vpop.f32.mrf.mxu0
      %v2121 = vadd.f32 0.0, %v2120
      %v2122 = vpop.f32.mrf.mxu0
      %v2123 = vadd.f32 0.0, %v2122
      %2124 = vmatmul.bf16.gmra.mxu0 %v1941
      %v2125 = vpop.f32.mrf.mxu0
      %v2126 = vadd.f32 0.0, %v2125
      %v2127 = vpop.f32.mrf.mxu0
      %v2128 = vadd.f32 0.0, %v2127
      %2129 = vmatmul.bf16.gmra.mxu0 %v1943
      %v2130 = vpop.f32.mrf.mxu0
      %v2131 = vadd.f32 0.0, %v2130
      %v2132 = vpop.f32.mrf.mxu0
      %v2133 = vadd.f32 0.0, %v2132
      %2134 = vdwg.mxu0
      %2135 = vmatpush.bf16.msra.mxu0 %v2077
      %2136 = vmatpush.bf16.msra.mxu0 %v2075
      %2137 = vmatpush.bf16.msra.mxu0 %v2073
      %2138 = vmatpush.bf16.msra.mxu0 %v2071
      %2139 = vmatpush.bf16.msra.mxu0 %v2069
      %2140 = vmatpush.bf16.msra.mxu0 %v2067
      %2141 = vmatpush.bf16.msra.mxu0 %v2065
      %2142 = vmatpush.bf16.msra.mxu0 %v2063
      %2143 = vmatmul.bf16.gmra.mxu0 %v1940
      %v2144 = vpop.f32.mrf.mxu0
      %v2145 = vadd.f32 %v2121, %v2144
      %v2146 = vpop.f32.mrf.mxu0
      %v2147 = vadd.f32 %v2123, %v2146
      %2148 = vmatmul.bf16.gmra.mxu0 %v1942
      %v2149 = vpop.f32.mrf.mxu0
      %v2150 = vadd.f32 %v2126, %v2149
      %v2151 = vpop.f32.mrf.mxu0
      %v2152 = vadd.f32 %v2128, %v2151
      %2153 = vmatmul.bf16.gmra.mxu0 %v1944
      %v2154 = vpop.f32.mrf.mxu0
      %v2155 = vadd.f32 %v2131, %v2154
      %v2156 = vpop.f32.mrf.mxu0
      %v2157 = vadd.f32 %v2133, %v2156
      %2158 = vdwg.mxu0
      %2159 = vmatpush.bf16.msra.mxu0 %v2062
      %2160 = vmatpush.bf16.msra.mxu0 %v2060
      %2161 = vmatpush.bf16.msra.mxu0 %v2058
      %2162 = vmatpush.bf16.msra.mxu0 %v2056
      %2163 = vmatpush.bf16.msra.mxu0 %v2054
      %2164 = vmatpush.bf16.msra.mxu0 %v2052
      %2165 = vmatpush.bf16.msra.mxu0 %v2050
      %2166 = vmatpush.bf16.msra.mxu0 %v2048
      %2167 = vmatmul.bf16.gmra.mxu0 %v1939
      %v2168 = vpop.f32.mrf.mxu0
      %v2169 = vadd.f32 0.0, %v2168
      %v2170 = vpop.f32.mrf.mxu0
      %v2171 = vadd.f32 0.0, %v2170
      %2172 = vmatmul.bf16.gmra.mxu0 %v1941
      %v2173 = vpop.f32.mrf.mxu0
      %v2174 = vadd.f32 0.0, %v2173
      %v2175 = vpop.f32.mrf.mxu0
      %v2176 = vadd.f32 0.0, %v2175
      %2177 = vmatmul.bf16.gmra.mxu0 %v1943
      %v2178 = vpop.f32.mrf.mxu0
      %v2179 = vadd.f32 0.0, %v2178
      %v2180 = vpop.f32.mrf.mxu0
      %v2181 = vadd.f32 0.0, %v2180
      %2182 = vdwg.mxu0
      %2183 = vmatpush.bf16.msra.mxu0 %v2078
      %2184 = vmatpush.bf16.msra.mxu0 %v2076
      %2185 = vmatpush.bf16.msra.mxu0 %v2074
      %2186 = vmatpush.bf16.msra.mxu0 %v2072
      %2187 = vmatpush.bf16.msra.mxu0 %v2070
      %2188 = vmatpush.bf16.msra.mxu0 %v2068
      %2189 = vmatpush.bf16.msra.mxu0 %v2066
      %2190 = vmatpush.bf16.msra.mxu0 %v2064
      %2191 = vmatmul.bf16.gmra.mxu0 %v1940
      %v2192 = vpop.f32.mrf.mxu0
      %v2193 = vadd.f32 %v2169, %v2192
      %v2194 = vpop.f32.mrf.mxu0
      %v2195 = vadd.f32 %v2171, %v2194
      %2196 = vmatmul.bf16.gmra.mxu0 %v1942
      %v2197 = vpop.f32.mrf.mxu0
      %v2198 = vadd.f32 %v2174, %v2197
      %v2199 = vpop.f32.mrf.mxu0
      %v2200 = vadd.f32 %v2176, %v2199
      %2201 = vmatmul.bf16.gmra.mxu0 %v1944
      %v2202 = vpop.f32.mrf.mxu0
      %v2203 = vadd.f32 %v2179, %v2202
      %v2204 = vpop.f32.mrf.mxu0
      %v2205 = vadd.f32 %v2181, %v2204
      %2206 = vdwg.mxu0
      %v2207 = vadd.f32 %v1894, %v2145
      %v2208 = vadd.f32 %v1895, %v2193
      %v2209 = vadd.f32 %v1896, %v2147
      %v2210 = vadd.f32 %v1897, %v2195
      %v2211 = vadd.f32 %v1898, %v2150
      %v2212 = vadd.f32 %v1899, %v2198
      %v2213 = vadd.f32 %v1900, %v2152
      %v2214 = vadd.f32 %v1901, %v2200
      %v2215 = vadd.f32 %v1902, %v2155
      %v2216 = vadd.f32 %v1903, %v2203
      %v2217 = vadd.f32 %v1904, %v2157
      %v2218 = vadd.f32 %v1905, %v2205
      %v2219 = vld [vmem:[%s192 + $0x8] sm:$0xcc]
      %v2220 = vld [vmem:[%s192 + $0x10] sm:$0xff]
      %v2221 = vld [vmem:[%s192 + $0x18] sm:$0xff]
      %v2222 = vld [vmem:[%s192 + $0x20] sm:$0xff]
      %v2223 = vld [vmem:[%s192 + $0x28] sm:$0xff]
      %v2224 = vld [vmem:[%s192 + $0x30] sm:$0xff]
      %v2225 = vld [vmem:[%s192 + $0x38] sm:$0x33]
      %s2226 = scalar_lea.vmem %s1, 1536
      %v2227 = vld [vmem:[%s2226] sm:$0xff]
      %v2228 = vld [vmem:[%s2226 + $0x8] sm:$0xff]
      %v2229 = vld [vmem:[%s2226 + $0x10] sm:$0xff]
      %v2230 = vld [vmem:[%s2226 + $0x18] sm:$0xff]
      %v2231 = vld [vmem:[%s2226 + $0x20] sm:$0xff]
      %v2232 = vld [vmem:[%s2226 + $0x28] sm:$0xff]
      %v2233 = vld [vmem:[%s2226 + $0x30] sm:$0xff]
      %v2234 = vld [vmem:[%s2226 + $0x38] sm:$0xff]
      %v2235 = vld [vmem:[%s2226 + $0x40] sm:$0xff]
      %v2236 = vld [vmem:[%s2226 + $0x48] sm:$0xff]
      %v2237 = vld [vmem:[%s2226 + $0x50] sm:$0xff]
      %v2238 = vld [vmem:[%s2226 + $0x58] sm:$0xff]
      %v2239 = vld [vmem:[%s2226 + $0x60] sm:$0xff]
      %v2240 = vld [vmem:[%s2226 + $0x68] sm:$0xff]
      %v2241 = vld [vmem:[%s2226 + $0x70] sm:$0xff]
      %v2242 = vld [vmem:[%s2226 + $0x78] sm:$0xff]
      %v2243 = vld [vmem:[%s2226 + $0x80] sm:$0xff]
      %v2244 = vld [vmem:[%s2226 + $0x88] sm:$0xff]
      %v2245 = vld [vmem:[%s2226 + $0x90] sm:$0xff]
      %v2246 = vld [vmem:[%s2226 + $0x98] sm:$0xff]
      %v2247 = vld [vmem:[%s2226 + $0xa0] sm:$0xff]
      %v2248 = vld [vmem:[%s2226 + $0xa8] sm:$0xff]
      %v2249 = vld [vmem:[%s2226 + $0xb0] sm:$0xff]
      %v2250 = vld [vmem:[%s2226 + $0xb8] sm:$0xff]
      %v2251 = vld [vmem:[%s2226 + $0xc0] sm:$0xff]
      %v2252 = vld [vmem:[%s2226 + $0xc8] sm:$0xff]
      %v2253 = vld [vmem:[%s2226 + $0xd0] sm:$0xff]
      %v2254 = vld [vmem:[%s2226 + $0xd8] sm:$0xff]
      %v2255 = vld [vmem:[%s2226 + $0xe0] sm:$0xff]
      %v2256 = vld [vmem:[%s2226 + $0xe8] sm:$0xff]
      %v2257 = vld [vmem:[%s2226 + $0xf0] sm:$0xff]
      %v2258 = vld [vmem:[%s2226 + $0xf8] sm:$0xff]
      %v2266 = vunpack.c.l.b16 %v2219
      %v2267 = vunpack.c.h.b16 %v2219
      %v2268 = vunpack.c.l.b16 %v2220
      %v2269 = vunpack.c.h.b16 %v2220
      %v2270 = vunpack.c.l.b16 %v2221
      %v2271 = vunpack.c.h.b16 %v2221
      %v2272 = vunpack.c.l.b16 %v2222
      %v2273 = vunpack.c.h.b16 %v2222
      %v2274 = vunpack.c.l.b16 %v2223
      %v2275 = vunpack.c.h.b16 %v2223
      %v2276 = vunpack.c.l.b16 %v2224
      %v2277 = vunpack.c.h.b16 %v2224
      %v2278 = vunpack.c.l.b16 %v2225
      %v2279 = vunpack.c.h.b16 %v2225
      %v2280 = vpack.c.b16 %v2268, %v2266
      %v2281 = vpack.c.b16 %v2269, %v2267
      %v2282 = vpack.c.b16 %v2272, %v2270
      %v2283 = vpack.c.b16 %v2273, %v2271
      %v2284 = vpack.c.b16 %v2276, %v2274
      %v2285 = vpack.c.b16 %v2277, %v2275
      %v2286 = vpack.c.b16 %v2278, %v2278
      %v2287 = vpack.c.b16 %v2279, %v2279
      %vm2288 = vcmask 1045504
      %v2289 = vrot.slane %v2280, 2
      %v2290 = vrot.slane %v2282, 2
      %v2291 = vsel %vm2288, %v2289, %v2290
      %v2292 = vrot.slane %v2281, 2
      %v2293 = vrot.slane %v2283, 2
      %v2294 = vsel %vm2288, %v2292, %v2293
      %v2295 = vrot.slane %v2284, 2
      %v2296 = vsel %vm2288, %v2290, %v2295
      %v2297 = vrot.slane %v2285, 2
      %v2298 = vsel %vm2288, %v2293, %v2297
      %v2299 = vrot.slane %v2286, 2
      %v2300 = vsel %vm2288, %v2295, %v2299
      %v2301 = vrot.slane %v2287, 2
      %v2302 = vsel %vm2288, %v2297, %v2301
      %v2341 = vunpack.c.l.b16 %v2227
      %v2342 = vunpack.c.h.b16 %v2227
      %v2343 = vunpack.c.l.b16 %v2228
      %v2344 = vunpack.c.h.b16 %v2228
      %v2345 = vunpack.c.l.b16 %v2229
      %v2346 = vunpack.c.h.b16 %v2229
      %v2347 = vunpack.c.l.b16 %v2230
      %v2348 = vunpack.c.h.b16 %v2230
      %v2349 = vunpack.c.l.b16 %v2231
      %v2350 = vunpack.c.h.b16 %v2231
      %v2351 = vunpack.c.l.b16 %v2232
      %v2352 = vunpack.c.h.b16 %v2232
      %v2353 = vunpack.c.l.b16 %v2233
      %v2354 = vunpack.c.h.b16 %v2233
      %v2355 = vunpack.c.l.b16 %v2234
      %v2356 = vunpack.c.h.b16 %v2234
      %v2357 = vunpack.c.l.b16 %v2235
      %v2358 = vunpack.c.h.b16 %v2235
      %v2359 = vunpack.c.l.b16 %v2236
      %v2360 = vunpack.c.h.b16 %v2236
      %v2361 = vunpack.c.l.b16 %v2237
      %v2362 = vunpack.c.h.b16 %v2237
      %v2363 = vunpack.c.l.b16 %v2238
      %v2364 = vunpack.c.h.b16 %v2238
      %v2365 = vunpack.c.l.b16 %v2239
      %v2366 = vunpack.c.h.b16 %v2239
      %v2367 = vunpack.c.l.b16 %v2240
      %v2368 = vunpack.c.h.b16 %v2240
      %v2369 = vunpack.c.l.b16 %v2241
      %v2370 = vunpack.c.h.b16 %v2241
      %v2371 = vunpack.c.l.b16 %v2242
      %v2372 = vunpack.c.h.b16 %v2242
      %v2373 = vunpack.c.l.b16 %v2243
      %v2374 = vunpack.c.h.b16 %v2243
      %v2375 = vunpack.c.l.b16 %v2244
      %v2376 = vunpack.c.h.b16 %v2244
      %v2377 = vunpack.c.l.b16 %v2245
      %v2378 = vunpack.c.h.b16 %v2245
      %v2379 = vunpack.c.l.b16 %v2246
      %v2380 = vunpack.c.h.b16 %v2246
      %v2381 = vunpack.c.l.b16 %v2247
      %v2382 = vunpack.c.h.b16 %v2247
      %v2383 = vunpack.c.l.b16 %v2248
      %v2384 = vunpack.c.h.b16 %v2248
      %v2385 = vunpack.c.l.b16 %v2249
      %v2386 = vunpack.c.h.b16 %v2249
      %v2387 = vunpack.c.l.b16 %v2250
      %v2388 = vunpack.c.h.b16 %v2250
      %v2389 = vunpack.c.l.b16 %v2251
      %v2390 = vunpack.c.h.b16 %v2251
      %v2391 = vunpack.c.l.b16 %v2252
      %v2392 = vunpack.c.h.b16 %v2252
      %v2393 = vunpack.c.l.b16 %v2253
      %v2394 = vunpack.c.h.b16 %v2253
      %v2395 = vunpack.c.l.b16 %v2254
      %v2396 = vunpack.c.h.b16 %v2254
      %v2397 = vunpack.c.l.b16 %v2255
      %v2398 = vunpack.c.h.b16 %v2255
      %v2399 = vunpack.c.l.b16 %v2256
      %v2400 = vunpack.c.h.b16 %v2256
      %v2401 = vunpack.c.l.b16 %v2257
      %v2402 = vunpack.c.h.b16 %v2257
      %v2403 = vunpack.c.l.b16 %v2258
      %v2404 = vunpack.c.h.b16 %v2258
      %v2405 = vpack.c.b16 %v2343, %v2341
      %v2406 = vpack.c.b16 %v2344, %v2342
      %v2407 = vpack.c.b16 %v2347, %v2345
      %v2408 = vpack.c.b16 %v2348, %v2346
      %v2409 = vpack.c.b16 %v2351, %v2349
      %v2410 = vpack.c.b16 %v2352, %v2350
      %v2411 = vpack.c.b16 %v2355, %v2353
      %v2412 = vpack.c.b16 %v2356, %v2354
      %v2413 = vpack.c.b16 %v2359, %v2357
      %v2414 = vpack.c.b16 %v2360, %v2358
      %v2415 = vpack.c.b16 %v2363, %v2361
      %v2416 = vpack.c.b16 %v2364, %v2362
      %v2417 = vpack.c.b16 %v2367, %v2365
      %v2418 = vpack.c.b16 %v2368, %v2366
      %v2419 = vpack.c.b16 %v2371, %v2369
      %v2420 = vpack.c.b16 %v2372, %v2370
      %v2421 = vpack.c.b16 %v2375, %v2373
      %v2422 = vpack.c.b16 %v2376, %v2374
      %v2423 = vpack.c.b16 %v2379, %v2377
      %v2424 = vpack.c.b16 %v2380, %v2378
      %v2425 = vpack.c.b16 %v2383, %v2381
      %v2426 = vpack.c.b16 %v2384, %v2382
      %v2427 = vpack.c.b16 %v2387, %v2385
      %v2428 = vpack.c.b16 %v2388, %v2386
      %v2429 = vpack.c.b16 %v2391, %v2389
      %v2430 = vpack.c.b16 %v2392, %v2390
      %v2431 = vpack.c.b16 %v2395, %v2393
      %v2432 = vpack.c.b16 %v2396, %v2394
      %v2433 = vpack.c.b16 %v2399, %v2397
      %v2434 = vpack.c.b16 %v2400, %v2398
      %v2435 = vpack.c.b16 %v2403, %v2401
      %v2436 = vpack.c.b16 %v2404, %v2402
      %2469 = vmatpush.bf16.msra.mxu0 %v2419
      %2470 = vmatpush.bf16.msra.mxu0 %v2417
      %2471 = vmatpush.bf16.msra.mxu0 %v2415
      %2472 = vmatpush.bf16.msra.mxu0 %v2413
      %2473 = vmatpush.bf16.msra.mxu0 %v2411
      %2474 = vmatpush.bf16.msra.mxu0 %v2409
      %2475 = vmatpush.bf16.msra.mxu0 %v2407
      %2476 = vmatpush.bf16.msra.mxu0 %v2405
      %2477 = vmatmul.bf16.gmra.mxu0 %v2291
      %v2478 = vpop.f32.mrf.mxu0
      %v2479 = vadd.f32 0.0, %v2478
      %v2480 = vpop.f32.mrf.mxu0
      %v2481 = vadd.f32 0.0, %v2480
      %2482 = vmatmul.bf16.gmra.mxu0 %v2296
      %v2483 = vpop.f32.mrf.mxu0
      %v2484 = vadd.f32 0.0, %v2483
      %v2485 = vpop.f32.mrf.mxu0
      %v2486 = vadd.f32 0.0, %v2485
      %2487 = vmatmul.bf16.gmra.mxu0 %v2300
      %v2488 = vpop.f32.mrf.mxu0
      %v2489 = vadd.f32 0.0, %v2488
      %v2490 = vpop.f32.mrf.mxu0
      %v2491 = vadd.f32 0.0, %v2490
      %2492 = vdwg.mxu0
      %2493 = vmatpush.bf16.msra.mxu0 %v2435
      %2494 = vmatpush.bf16.msra.mxu0 %v2433
      %2495 = vmatpush.bf16.msra.mxu0 %v2431
      %2496 = vmatpush.bf16.msra.mxu0 %v2429
      %2497 = vmatpush.bf16.msra.mxu0 %v2427
      %2498 = vmatpush.bf16.msra.mxu0 %v2425
      %2499 = vmatpush.bf16.msra.mxu0 %v2423
      %2500 = vmatpush.bf16.msra.mxu0 %v2421
      %2501 = vmatmul.bf16.gmra.mxu0 %v2294
      %v2502 = vpop.f32.mrf.mxu0
      %v2503 = vadd.f32 %v2479, %v2502
      %v2504 = vpop.f32.mrf.mxu0
      %v2505 = vadd.f32 %v2481, %v2504
      %2506 = vmatmul.bf16.gmra.mxu0 %v2298
      %v2507 = vpop.f32.mrf.mxu0
      %v2508 = vadd.f32 %v2484, %v2507
      %v2509 = vpop.f32.mrf.mxu0
      %v2510 = vadd.f32 %v2486, %v2509
      %2511 = vmatmul.bf16.gmra.mxu0 %v2302
      %v2512 = vpop.f32.mrf.mxu0
      %v2513 = vadd.f32 %v2489, %v2512
      %v2514 = vpop.f32.mrf.mxu0
      %v2515 = vadd.f32 %v2491, %v2514
      %2516 = vdwg.mxu0
      %2517 = vmatpush.bf16.msra.mxu0 %v2420
      %2518 = vmatpush.bf16.msra.mxu0 %v2418
      %2519 = vmatpush.bf16.msra.mxu0 %v2416
      %2520 = vmatpush.bf16.msra.mxu0 %v2414
      %2521 = vmatpush.bf16.msra.mxu0 %v2412
      %2522 = vmatpush.bf16.msra.mxu0 %v2410
      %2523 = vmatpush.bf16.msra.mxu0 %v2408
      %2524 = vmatpush.bf16.msra.mxu0 %v2406
      %2525 = vmatmul.bf16.gmra.mxu0 %v2291
      %v2526 = vpop.f32.mrf.mxu0
      %v2527 = vadd.f32 0.0, %v2526
      %v2528 = vpop.f32.mrf.mxu0
      %v2529 = vadd.f32 0.0, %v2528
      %2530 = vmatmul.bf16.gmra.mxu0 %v2296
      %v2531 = vpop.f32.mrf.mxu0
      %v2532 = vadd.f32 0.0, %v2531
      %v2533 = vpop.f32.mrf.mxu0
      %v2534 = vadd.f32 0.0, %v2533
      %2535 = vmatmul.bf16.gmra.mxu0 %v2300
      %v2536 = vpop.f32.mrf.mxu0
      %v2537 = vadd.f32 0.0, %v2536
      %v2538 = vpop.f32.mrf.mxu0
      %v2539 = vadd.f32 0.0, %v2538
      %2540 = vdwg.mxu0
      %2541 = vmatpush.bf16.msra.mxu0 %v2436
      %2542 = vmatpush.bf16.msra.mxu0 %v2434
      %2543 = vmatpush.bf16.msra.mxu0 %v2432
      %2544 = vmatpush.bf16.msra.mxu0 %v2430
      %2545 = vmatpush.bf16.msra.mxu0 %v2428
      %2546 = vmatpush.bf16.msra.mxu0 %v2426
      %2547 = vmatpush.bf16.msra.mxu0 %v2424
      %2548 = vmatpush.bf16.msra.mxu0 %v2422
      %2549 = vmatmul.bf16.gmra.mxu0 %v2294
      %v2550 = vpop.f32.mrf.mxu0
      %v2551 = vadd.f32 %v2527, %v2550
      %v2552 = vpop.f32.mrf.mxu0
      %v2553 = vadd.f32 %v2529, %v2552
      %2554 = vmatmul.bf16.gmra.mxu0 %v2298
      %v2555 = vpop.f32.mrf.mxu0
      %v2556 = vadd.f32 %v2532, %v2555
      %v2557 = vpop.f32.mrf.mxu0
      %v2558 = vadd.f32 %v2534, %v2557
      %2559 = vmatmul.bf16.gmra.mxu0 %v2302
      %v2560 = vpop.f32.mrf.mxu0
      %v2561 = vadd.f32 %v2537, %v2560
      %v2562 = vpop.f32.mrf.mxu0
      %v2563 = vadd.f32 %v2539, %v2562
      %2564 = vdwg.mxu0
      %v2565 = vadd.f32 %v2207, %v2503
      %v2566 = vadd.f32 %v2208, %v2551
      %v2567 = vadd.f32 %v2209, %v2505
      %v2568 = vadd.f32 %v2210, %v2553
      %v2569 = vadd.f32 %v2211, %v2508
      %v2570 = vadd.f32 %v2212, %v2556
      %v2571 = vadd.f32 %v2213, %v2510
      %v2572 = vadd.f32 %v2214, %v2558
      %v2573 = vadd.f32 %v2215, %v2513
      %v2574 = vadd.f32 %v2216, %v2561
      %v2575 = vadd.f32 %v2217, %v2515
      %v2576 = vadd.f32 %v2218, %v2563
      %v2577 = vld [vmem:[%s192 + $0x38] sm:$0x77]
      %s2578 = scalar_lea.vmem %s1, 1792
      %v2579 = vld [vmem:[%s2578] sm:$0xff]
      %v2580 = vld [vmem:[%s2578 + $0x8] sm:$0xff]
      %v2581 = vld [vmem:[%s2578 + $0x10] sm:$0xff]
      %v2582 = vld [vmem:[%s2578 + $0x18] sm:$0xff]
      %v2583 = vld [vmem:[%s2578 + $0x20] sm:$0xff]
      %v2584 = vld [vmem:[%s2578 + $0x28] sm:$0xff]
      %v2585 = vld [vmem:[%s2578 + $0x30] sm:$0xff]
      %v2586 = vld [vmem:[%s2578 + $0x38] sm:$0xff]
      %v2587 = vld [vmem:[%s2578 + $0x40] sm:$0xff]
      %v2588 = vld [vmem:[%s2578 + $0x48] sm:$0xff]
      %v2589 = vld [vmem:[%s2578 + $0x50] sm:$0xff]
      %v2590 = vld [vmem:[%s2578 + $0x58] sm:$0xff]
      %v2591 = vld [vmem:[%s2578 + $0x60] sm:$0xff]
      %v2592 = vld [vmem:[%s2578 + $0x68] sm:$0xff]
      %v2593 = vld [vmem:[%s2578 + $0x70] sm:$0xff]
      %v2594 = vld [vmem:[%s2578 + $0x78] sm:$0xff]
      %v2595 = vld [vmem:[%s2578 + $0x80] sm:$0xff]
      %v2596 = vld [vmem:[%s2578 + $0x88] sm:$0xff]
      %v2597 = vld [vmem:[%s2578 + $0x90] sm:$0xff]
      %v2598 = vld [vmem:[%s2578 + $0x98] sm:$0xff]
      %v2599 = vld [vmem:[%s2578 + $0xa0] sm:$0xff]
      %v2600 = vld [vmem:[%s2578 + $0xa8] sm:$0xff]
      %v2601 = vld [vmem:[%s2578 + $0xb0] sm:$0xff]
      %v2602 = vld [vmem:[%s2578 + $0xb8] sm:$0xff]
      %v2603 = vld [vmem:[%s2578 + $0xc0] sm:$0xff]
      %v2604 = vld [vmem:[%s2578 + $0xc8] sm:$0xff]
      %v2605 = vld [vmem:[%s2578 + $0xd0] sm:$0xff]
      %v2606 = vld [vmem:[%s2578 + $0xd8] sm:$0xff]
      %v2607 = vld [vmem:[%s2578 + $0xe0] sm:$0xff]
      %v2608 = vld [vmem:[%s2578 + $0xe8] sm:$0xff]
      %v2609 = vld [vmem:[%s2578 + $0xf0] sm:$0xff]
      %v2610 = vld [vmem:[%s2578 + $0xf8] sm:$0xff]
      %v2612 = vunpack.c.l.b16 %v2577
      %v2613 = vunpack.c.h.b16 %v2577
      %v2614 = vpack.c.b16 %v2612, %v2612
      %v2615 = vpack.c.b16 %v2613, %v2613
      %vm2616 = vsmask.f32 5376
      %v2618 = vshrl.u32 %v2280, 16
      %v2620 = vrot.slane %v2618, 2
      %v2621 = vshll.u32 %v2280, 16
      %v2623 = vrot.slane %v2621, 3
      %v2624 = vor.u32 %v2620, %v2623
      %v2626 = vshrl.u32 %v2282, 16
      %v2628 = vrot.slane %v2626, 2
      %v2629 = vshll.u32 %v2282, 16
      %v2631 = vrot.slane %v2629, 3
      %v2632 = vor.u32 %v2628, %v2631
      %v2633 = vsel %vm2616, %v2624, %v2632
      %v2635 = vshrl.u32 %v2281, 16
      %v2637 = vrot.slane %v2635, 2
      %v2638 = vshll.u32 %v2281, 16
      %v2640 = vrot.slane %v2638, 3
      %v2641 = vor.u32 %v2637, %v2640
      %v2643 = vshrl.u32 %v2283, 16
      %v2645 = vrot.slane %v2643, 2
      %v2646 = vshll.u32 %v2283, 16
      %v2648 = vrot.slane %v2646, 3
      %v2649 = vor.u32 %v2645, %v2648
      %v2650 = vsel %vm2616, %v2641, %v2649
      %v2652 = vshrl.u32 %v2284, 16
      %v2654 = vrot.slane %v2652, 2
      %v2655 = vshll.u32 %v2284, 16
      %v2657 = vrot.slane %v2655, 3
      %v2658 = vor.u32 %v2654, %v2657
      %v2659 = vsel %vm2616, %v2632, %v2658
      %v2661 = vshrl.u32 %v2285, 16
      %v2663 = vrot.slane %v2661, 2
      %v2664 = vshll.u32 %v2285, 16
      %v2666 = vrot.slane %v2664, 3
      %v2667 = vor.u32 %v2663, %v2666
      %v2668 = vsel %vm2616, %v2649, %v2667
      %v2670 = vshrl.u32 %v2614, 16
      %v2672 = vrot.slane %v2670, 2
      %v2673 = vshll.u32 %v2614, 16
      %v2675 = vrot.slane %v2673, 3
      %v2676 = vor.u32 %v2672, %v2675
      %v2677 = vsel %vm2616, %v2658, %v2676
      %v2679 = vshrl.u32 %v2615, 16
      %v2681 = vrot.slane %v2679, 2
      %v2682 = vshll.u32 %v2615, 16
      %v2684 = vrot.slane %v2682, 3
      %v2685 = vor.u32 %v2681, %v2684
      %v2686 = vsel %vm2616, %v2667, %v2685
      %v2725 = vunpack.c.l.b16 %v2579
      %v2726 = vunpack.c.h.b16 %v2579
      %v2727 = vunpack.c.l.b16 %v2580
      %v2728 = vunpack.c.h.b16 %v2580
      %v2729 = vunpack.c.l.b16 %v2581
      %v2730 = vunpack.c.h.b16 %v2581
      %v2731 = vunpack.c.l.b16 %v2582
      %v2732 = vunpack.c.h.b16 %v2582
      %v2733 = vunpack.c.l.b16 %v2583
      %v2734 = vunpack.c.h.b16 %v2583
      %v2735 = vunpack.c.l.b16 %v2584
      %v2736 = vunpack.c.h.b16 %v2584
      %v2737 = vunpack.c.l.b16 %v2585
      %v2738 = vunpack.c.h.b16 %v2585
      %v2739 = vunpack.c.l.b16 %v2586
      %v2740 = vunpack.c.h.b16 %v2586
      %v2741 = vunpack.c.l.b16 %v2587
      %v2742 = vunpack.c.h.b16 %v2587
      %v2743 = vunpack.c.l.b16 %v2588
      %v2744 = vunpack.c.h.b16 %v2588
      %v2745 = vunpack.c.l.b16 %v2589
      %v2746 = vunpack.c.h.b16 %v2589
      %v2747 = vunpack.c.l.b16 %v2590
      %v2748 = vunpack.c.h.b16 %v2590
      %v2749 = vunpack.c.l.b16 %v2591
      %v2750 = vunpack.c.h.b16 %v2591
      %v2751 = vunpack.c.l.b16 %v2592
      %v2752 = vunpack.c.h.b16 %v2592
      %v2753 = vunpack.c.l.b16 %v2593
      %v2754 = vunpack.c.h.b16 %v2593
      %v2755 = vunpack.c.l.b16 %v2594
      %v2756 = vunpack.c.h.b16 %v2594
      %v2757 = vunpack.c.l.b16 %v2595
      %v2758 = vunpack.c.h.b16 %v2595
      %v2759 = vunpack.c.l.b16 %v2596
      %v2760 = vunpack.c.h.b16 %v2596
      %v2761 = vunpack.c.l.b16 %v2597
      %v2762 = vunpack.c.h.b16 %v2597
      %v2763 = vunpack.c.l.b16 %v2598
      %v2764 = vunpack.c.h.b16 %v2598
      %v2765 = vunpack.c.l.b16 %v2599
      %v2766 = vunpack.c.h.b16 %v2599
      %v2767 = vunpack.c.l.b16 %v2600
      %v2768 = vunpack.c.h.b16 %v2600
      %v2769 = vunpack.c.l.b16 %v2601
      %v2770 = vunpack.c.h.b16 %v2601
      %v2771 = vunpack.c.l.b16 %v2602
      %v2772 = vunpack.c.h.b16 %v2602
      %v2773 = vunpack.c.l.b16 %v2603
      %v2774 = vunpack.c.h.b16 %v2603
      %v2775 = vunpack.c.l.b16 %v2604
      %v2776 = vunpack.c.h.b16 %v2604
      %v2777 = vunpack.c.l.b16 %v2605
      %v2778 = vunpack.c.h.b16 %v2605
      %v2779 = vunpack.c.l.b16 %v2606
      %v2780 = vunpack.c.h.b16 %v2606
      %v2781 = vunpack.c.l.b16 %v2607
      %v2782 = vunpack.c.h.b16 %v2607
      %v2783 = vunpack.c.l.b16 %v2608
      %v2784 = vunpack.c.h.b16 %v2608
      %v2785 = vunpack.c.l.b16 %v2609
      %v2786 = vunpack.c.h.b16 %v2609
      %v2787 = vunpack.c.l.b16 %v2610
      %v2788 = vunpack.c.h.b16 %v2610
      %v2789 = vpack.c.b16 %v2727, %v2725
      %v2790 = vpack.c.b16 %v2728, %v2726
      %v2791 = vpack.c.b16 %v2731, %v2729
      %v2792 = vpack.c.b16 %v2732, %v2730
      %v2793 = vpack.c.b16 %v2735, %v2733
      %v2794 = vpack.c.b16 %v2736, %v2734
      %v2795 = vpack.c.b16 %v2739, %v2737
      %v2796 = vpack.c.b16 %v2740, %v2738
      %v2797 = vpack.c.b16 %v2743, %v2741
      %v2798 = vpack.c.b16 %v2744, %v2742
      %v2799 = vpack.c.b16 %v2747, %v2745
      %v2800 = vpack.c.b16 %v2748, %v2746
      %v2801 = vpack.c.b16 %v2751, %v2749
      %v2802 = vpack.c.b16 %v2752, %v2750
      %v2803 = vpack.c.b16 %v2755, %v2753
      %v2804 = vpack.c.b16 %v2756, %v2754
      %v2805 = vpack.c.b16 %v2759, %v2757
      %v2806 = vpack.c.b16 %v2760, %v2758
      %v2807 = vpack.c.b16 %v2763, %v2761
      %v2808 = vpack.c.b16 %v2764, %v2762
      %v2809 = vpack.c.b16 %v2767, %v2765
      %v2810 = vpack.c.b16 %v2768, %v2766
      %v2811 = vpack.c.b16 %v2771, %v2769
      %v2812 = vpack.c.b16 %v2772, %v2770
      %v2813 = vpack.c.b16 %v2775, %v2773
      %v2814 = vpack.c.b16 %v2776, %v2774
      %v2815 = vpack.c.b16 %v2779, %v2777
      %v2816 = vpack.c.b16 %v2780, %v2778
      %v2817 = vpack.c.b16 %v2783, %v2781
      %v2818 = vpack.c.b16 %v2784, %v2782
      %v2819 = vpack.c.b16 %v2787, %v2785
      %v2820 = vpack.c.b16 %v2788, %v2786
      %2853 = vmatpush.bf16.msra.mxu0 %v2803
      %2854 = vmatpush.bf16.msra.mxu0 %v2801
      %2855 = vmatpush.bf16.msra.mxu0 %v2799
      %2856 = vmatpush.bf16.msra.mxu0 %v2797
      %2857 = vmatpush.bf16.msra.mxu0 %v2795
      %2858 = vmatpush.bf16.msra.mxu0 %v2793
      %2859 = vmatpush.bf16.msra.mxu0 %v2791
      %2860 = vmatpush.bf16.msra.mxu0 %v2789
      %2861 = vmatmul.bf16.gmra.mxu0 %v2633
      %v2862 = vpop.f32.mrf.mxu0
      %v2863 = vadd.f32 0.0, %v2862
      %v2864 = vpop.f32.mrf.mxu0
      %v2865 = vadd.f32 0.0, %v2864
      %2866 = vmatmul.bf16.gmra.mxu0 %v2659
      %v2867 = vpop.f32.mrf.mxu0
      %v2868 = vadd.f32 0.0, %v2867
      %v2869 = vpop.f32.mrf.mxu0
      %v2870 = vadd.f32 0.0, %v2869
      %2871 = vmatmul.bf16.gmra.mxu0 %v2677
      %v2872 = vpop.f32.mrf.mxu0
      %v2873 = vadd.f32 0.0, %v2872
      %v2874 = vpop.f32.mrf.mxu0
      %v2875 = vadd.f32 0.0, %v2874
      %2876 = vdwg.mxu0
      %2877 = vmatpush.bf16.msra.mxu0 %v2819
      %2878 = vmatpush.bf16.msra.mxu0 %v2817
      %2879 = vmatpush.bf16.msra.mxu0 %v2815
      %2880 = vmatpush.bf16.msra.mxu0 %v2813
      %2881 = vmatpush.bf16.msra.mxu0 %v2811
      %2882 = vmatpush.bf16.msra.mxu0 %v2809
      %2883 = vmatpush.bf16.msra.mxu0 %v2807
      %2884 = vmatpush.bf16.msra.mxu0 %v2805
      %2885 = vmatmul.bf16.gmra.mxu0 %v2650
      %v2886 = vpop.f32.mrf.mxu0
      %v2887 = vadd.f32 %v2863, %v2886
      %v2888 = vpop.f32.mrf.mxu0
      %v2889 = vadd.f32 %v2865, %v2888
      %2890 = vmatmul.bf16.gmra.mxu0 %v2668
      %v2891 = vpop.f32.mrf.mxu0
      %v2892 = vadd.f32 %v2868, %v2891
      %v2893 = vpop.f32.mrf.mxu0
      %v2894 = vadd.f32 %v2870, %v2893
      %2895 = vmatmul.bf16.gmra.mxu0 %v2686
      %v2896 = vpop.f32.mrf.mxu0
      %v2897 = vadd.f32 %v2873, %v2896
      %v2898 = vpop.f32.mrf.mxu0
      %v2899 = vadd.f32 %v2875, %v2898
      %2900 = vdwg.mxu0
      %2901 = vmatpush.bf16.msra.mxu0 %v2804
      %2902 = vmatpush.bf16.msra.mxu0 %v2802
      %2903 = vmatpush.bf16.msra.mxu0 %v2800
      %2904 = vmatpush.bf16.msra.mxu0 %v2798
      %2905 = vmatpush.bf16.msra.mxu0 %v2796
      %2906 = vmatpush.bf16.msra.mxu0 %v2794
      %2907 = vmatpush.bf16.msra.mxu0 %v2792
      %2908 = vmatpush.bf16.msra.mxu0 %v2790
      %2909 = vmatmul.bf16.gmra.mxu0 %v2633
      %v2910 = vpop.f32.mrf.mxu0
      %v2911 = vadd.f32 0.0, %v2910
      %v2912 = vpop.f32.mrf.mxu0
      %v2913 = vadd.f32 0.0, %v2912
      %2914 = vmatmul.bf16.gmra.mxu0 %v2659
      %v2915 = vpop.f32.mrf.mxu0
      %v2916 = vadd.f32 0.0, %v2915
      %v2917 = vpop.f32.mrf.mxu0
      %v2918 = vadd.f32 0.0, %v2917
      %2919 = vmatmul.bf16.gmra.mxu0 %v2677
      %v2920 = vpop.f32.mrf.mxu0
      %v2921 = vadd.f32 0.0, %v2920
      %v2922 = vpop.f32.mrf.mxu0
      %v2923 = vadd.f32 0.0, %v2922
      %2924 = vdwg.mxu0
      %2925 = vmatpush.bf16.msra.mxu0 %v2820
      %2926 = vmatpush.bf16.msra.mxu0 %v2818
      %2927 = vmatpush.bf16.msra.mxu0 %v2816
      %2928 = vmatpush.bf16.msra.mxu0 %v2814
      %2929 = vmatpush.bf16.msra.mxu0 %v2812
      %2930 = vmatpush.bf16.msra.mxu0 %v2810
      %2931 = vmatpush.bf16.msra.mxu0 %v2808
      %2932 = vmatpush.bf16.msra.mxu0 %v2806
      %2933 = vmatmul.bf16.gmra.mxu0 %v2650
      %v2934 = vpop.f32.mrf.mxu0
      %v2935 = vadd.f32 %v2911, %v2934
      %v2936 = vpop.f32.mrf.mxu0
      %v2937 = vadd.f32 %v2913, %v2936
      %2938 = vmatmul.bf16.gmra.mxu0 %v2668
      %v2939 = vpop.f32.mrf.mxu0
      %v2940 = vadd.f32 %v2916, %v2939
      %v2941 = vpop.f32.mrf.mxu0
      %v2942 = vadd.f32 %v2918, %v2941
      %2943 = vmatmul.bf16.gmra.mxu0 %v2686
      %v2944 = vpop.f32.mrf.mxu0
      %v2945 = vadd.f32 %v2921, %v2944
      %v2946 = vpop.f32.mrf.mxu0
      %v2947 = vadd.f32 %v2923, %v2946
      %2948 = vdwg.mxu0
      %v2949 = vadd.f32 %v2565, %v2887
      %v2950 = vadd.f32 %v2566, %v2935
      %v2951 = vadd.f32 %v2567, %v2889
      %v2952 = vadd.f32 %v2568, %v2937
      %v2953 = vadd.f32 %v2569, %v2892
      %v2954 = vadd.f32 %v2570, %v2940
      %v2955 = vadd.f32 %v2571, %v2894
      %v2956 = vadd.f32 %v2572, %v2942
      %v2957 = vadd.f32 %v2573, %v2897
      %v2958 = vadd.f32 %v2574, %v2945
      %v2959 = vadd.f32 %v2575, %v2899
      %v2960 = vadd.f32 %v2576, %v2947
      %v2961 = vld [vmem:[%s192 + $0x8] sm:$0x88]
      %s2962 = scalar_lea.vmem %s1, 2048
      %v2963 = vld [vmem:[%s2962] sm:$0xff]
      %v2964 = vld [vmem:[%s2962 + $0x8] sm:$0xff]
      %v2965 = vld [vmem:[%s2962 + $0x10] sm:$0xff]
      %v2966 = vld [vmem:[%s2962 + $0x18] sm:$0xff]
      %v2967 = vld [vmem:[%s2962 + $0x20] sm:$0xff]
      %v2968 = vld [vmem:[%s2962 + $0x28] sm:$0xff]
      %v2969 = vld [vmem:[%s2962 + $0x30] sm:$0xff]
      %v2970 = vld [vmem:[%s2962 + $0x38] sm:$0xff]
      %v2971 = vld [vmem:[%s2962 + $0x40] sm:$0xff]
      %v2972 = vld [vmem:[%s2962 + $0x48] sm:$0xff]
      %v2973 = vld [vmem:[%s2962 + $0x50] sm:$0xff]
      %v2974 = vld [vmem:[%s2962 + $0x58] sm:$0xff]
      %v2975 = vld [vmem:[%s2962 + $0x60] sm:$0xff]
      %v2976 = vld [vmem:[%s2962 + $0x68] sm:$0xff]
      %v2977 = vld [vmem:[%s2962 + $0x70] sm:$0xff]
      %v2978 = vld [vmem:[%s2962 + $0x78] sm:$0xff]
      %v2979 = vld [vmem:[%s2962 + $0x80] sm:$0xff]
      %v2980 = vld [vmem:[%s2962 + $0x88] sm:$0xff]
      %v2981 = vld [vmem:[%s2962 + $0x90] sm:$0xff]
      %v2982 = vld [vmem:[%s2962 + $0x98] sm:$0xff]
      %v2983 = vld [vmem:[%s2962 + $0xa0] sm:$0xff]
      %v2984 = vld [vmem:[%s2962 + $0xa8] sm:$0xff]
      %v2985 = vld [vmem:[%s2962 + $0xb0] sm:$0xff]
      %v2986 = vld [vmem:[%s2962 + $0xb8] sm:$0xff]
      %v2987 = vld [vmem:[%s2962 + $0xc0] sm:$0xff]
      %v2988 = vld [vmem:[%s2962 + $0xc8] sm:$0xff]
      %v2989 = vld [vmem:[%s2962 + $0xd0] sm:$0xff]
      %v2990 = vld [vmem:[%s2962 + $0xd8] sm:$0xff]
      %v2991 = vld [vmem:[%s2962 + $0xe0] sm:$0xff]
      %v2992 = vld [vmem:[%s2962 + $0xe8] sm:$0xff]
      %v2993 = vld [vmem:[%s2962 + $0xf0] sm:$0xff]
      %v2994 = vld [vmem:[%s2962 + $0xf8] sm:$0xff]
      %v2996 = vunpack.c.l.b16 %v2961
      %v2997 = vunpack.c.h.b16 %v2961
      %v2998 = vpack.c.b16 %v2268, %v2996
      %v2999 = vpack.c.b16 %v2269, %v2997
      %v3000 = vrot.slane %v2998, 3
      %v3001 = vrot.slane %v2282, 3
      %v3002 = vsel %vm1253, %v3000, %v3001
      %v3003 = vrot.slane %v2999, 3
      %v3004 = vrot.slane %v2283, 3
      %v3005 = vsel %vm1253, %v3003, %v3004
      %v3006 = vrot.slane %v2284, 3
      %v3007 = vsel %vm1253, %v3001, %v3006
      %v3008 = vrot.slane %v2285, 3
      %v3009 = vsel %vm1253, %v3004, %v3008
      %v3010 = vrot.slane %v2614, 3
      %v3011 = vsel %vm1253, %v3006, %v3010
      %v3012 = vrot.slane %v2615, 3
      %v3013 = vsel %vm1253, %v3008, %v3012
      %v3052 = vunpack.c.l.b16 %v2963
      %v3053 = vunpack.c.h.b16 %v2963
      %v3054 = vunpack.c.l.b16 %v2964
      %v3055 = vunpack.c.h.b16 %v2964
      %v3056 = vunpack.c.l.b16 %v2965
      %v3057 = vunpack.c.h.b16 %v2965
      %v3058 = vunpack.c.l.b16 %v2966
      %v3059 = vunpack.c.h.b16 %v2966
      %v3060 = vunpack.c.l.b16 %v2967
      %v3061 = vunpack.c.h.b16 %v2967
      %v3062 = vunpack.c.l.b16 %v2968
      %v3063 = vunpack.c.h.b16 %v2968
      %v3064 = vunpack.c.l.b16 %v2969
      %v3065 = vunpack.c.h.b16 %v2969
      %v3066 = vunpack.c.l.b16 %v2970
      %v3067 = vunpack.c.h.b16 %v2970
      %v3068 = vunpack.c.l.b16 %v2971
      %v3069 = vunpack.c.h.b16 %v2971
      %v3070 = vunpack.c.l.b16 %v2972
      %v3071 = vunpack.c.h.b16 %v2972
      %v3072 = vunpack.c.l.b16 %v2973
      %v3073 = vunpack.c.h.b16 %v2973
      %v3074 = vunpack.c.l.b16 %v2974
      %v3075 = vunpack.c.h.b16 %v2974
      %v3076 = vunpack.c.l.b16 %v2975
      %v3077 = vunpack.c.h.b16 %v2975
      %v3078 = vunpack.c.l.b16 %v2976
      %v3079 = vunpack.c.h.b16 %v2976
      %v3080 = vunpack.c.l.b16 %v2977
      %v3081 = vunpack.c.h.b16 %v2977
      %v3082 = vunpack.c.l.b16 %v2978
      %v3083 = vunpack.c.h.b16 %v2978
      %v3084 = vunpack.c.l.b16 %v2979
      %v3085 = vunpack.c.h.b16 %v2979
      %v3086 = vunpack.c.l.b16 %v2980
      %v3087 = vunpack.c.h.b16 %v2980
      %v3088 = vunpack.c.l.b16 %v2981
      %v3089 = vunpack.c.h.b16 %v2981
      %v3090 = vunpack.c.l.b16 %v2982
      %v3091 = vunpack.c.h.b16 %v2982
      %v3092 = vunpack.c.l.b16 %v2983
      %v3093 = vunpack.c.h.b16 %v2983
      %v3094 = vunpack.c.l.b16 %v2984
      %v3095 = vunpack.c.h.b16 %v2984
      %v3096 = vunpack.c.l.b16 %v2985
      %v3097 = vunpack.c.h.b16 %v2985
      %v3098 = vunpack.c.l.b16 %v2986
      %v3099 = vunpack.c.h.b16 %v2986
      %v3100 = vunpack.c.l.b16 %v2987
      %v3101 = vunpack.c.h.b16 %v2987
      %v3102 = vunpack.c.l.b16 %v2988
      %v3103 = vunpack.c.h.b16 %v2988
      %v3104 = vunpack.c.l.b16 %v2989
      %v3105 = vunpack.c.h.b16 %v2989
      %v3106 = vunpack.c.l.b16 %v2990
      %v3107 = vunpack.c.h.b16 %v2990
      %v3108 = vunpack.c.l.b16 %v2991
      %v3109 = vunpack.c.h.b16 %v2991
      %v3110 = vunpack.c.l.b16 %v2992
      %v3111 = vunpack.c.h.b16 %v2992
      %v3112 = vunpack.c.l.b16 %v2993
      %v3113 = vunpack.c.h.b16 %v2993
      %v3114 = vunpack.c.l.b16 %v2994
      %v3115 = vunpack.c.h.b16 %v2994
      %v3116 = vpack.c.b16 %v3054, %v3052
      %v3117 = vpack.c.b16 %v3055, %v3053
      %v3118 = vpack.c.b16 %v3058, %v3056
      %v3119 = vpack.c.b16 %v3059, %v3057
      %v3120 = vpack.c.b16 %v3062, %v3060
      %v3121 = vpack.c.b16 %v3063, %v3061
      %v3122 = vpack.c.b16 %v3066, %v3064
      %v3123 = vpack.c.b16 %v3067, %v3065
      %v3124 = vpack.c.b16 %v3070, %v3068
      %v3125 = vpack.c.b16 %v3071, %v3069
      %v3126 = vpack.c.b16 %v3074, %v3072
      %v3127 = vpack.c.b16 %v3075, %v3073
      %v3128 = vpack.c.b16 %v3078, %v3076
      %v3129 = vpack.c.b16 %v3079, %v3077
      %v3130 = vpack.c.b16 %v3082, %v3080
      %v3131 = vpack.c.b16 %v3083, %v3081
      %v3132 = vpack.c.b16 %v3086, %v3084
      %v3133 = vpack.c.b16 %v3087, %v3085
      %v3134 = vpack.c.b16 %v3090, %v3088
      %v3135 = vpack.c.b16 %v3091, %v3089
      %v3136 = vpack.c.b16 %v3094, %v3092
      %v3137 = vpack.c.b16 %v3095, %v3093
      %v3138 = vpack.c.b16 %v3098, %v3096
      %v3139 = vpack.c.b16 %v3099, %v3097
      %v3140 = vpack.c.b16 %v3102, %v3100
      %v3141 = vpack.c.b16 %v3103, %v3101
      %v3142 = vpack.c.b16 %v3106, %v3104
      %v3143 = vpack.c.b16 %v3107, %v3105
      %v3144 = vpack.c.b16 %v3110, %v3108
      %v3145 = vpack.c.b16 %v3111, %v3109
      %v3146 = vpack.c.b16 %v3114, %v3112
      %v3147 = vpack.c.b16 %v3115, %v3113
      %3180 = vmatpush.bf16.msra.mxu0 %v3130
      %3181 = vmatpush.bf16.msra.mxu0 %v3128
      %3182 = vmatpush.bf16.msra.mxu0 %v3126
      %3183 = vmatpush.bf16.msra.mxu0 %v3124
      %3184 = vmatpush.bf16.msra.mxu0 %v3122
      %3185 = vmatpush.bf16.msra.mxu0 %v3120
      %3186 = vmatpush.bf16.msra.mxu0 %v3118
      %3187 = vmatpush.bf16.msra.mxu0 %v3116
      %3188 = vmatmul.bf16.gmra.mxu0 %v3002
      %v3189 = vpop.f32.mrf.mxu0
      %v3190 = vadd.f32 0.0, %v3189
      %v3191 = vpop.f32.mrf.mxu0
      %v3192 = vadd.f32 0.0, %v3191
      %3193 = vmatmul.bf16.gmra.mxu0 %v3007
      %v3194 = vpop.f32.mrf.mxu0
      %v3195 = vadd.f32 0.0, %v3194
      %v3196 = vpop.f32.mrf.mxu0
      %v3197 = vadd.f32 0.0, %v3196
      %3198 = vmatmul.bf16.gmra.mxu0 %v3011
      %v3199 = vpop.f32.mrf.mxu0
      %v3200 = vadd.f32 0.0, %v3199
      %v3201 = vpop.f32.mrf.mxu0
      %v3202 = vadd.f32 0.0, %v3201
      %3203 = vdwg.mxu0
      %3204 = vmatpush.bf16.msra.mxu0 %v3146
      %3205 = vmatpush.bf16.msra.mxu0 %v3144
      %3206 = vmatpush.bf16.msra.mxu0 %v3142
      %3207 = vmatpush.bf16.msra.mxu0 %v3140
      %3208 = vmatpush.bf16.msra.mxu0 %v3138
      %3209 = vmatpush.bf16.msra.mxu0 %v3136
      %3210 = vmatpush.bf16.msra.mxu0 %v3134
      %3211 = vmatpush.bf16.msra.mxu0 %v3132
      %3212 = vmatmul.bf16.gmra.mxu0 %v3005
      %v3213 = vpop.f32.mrf.mxu0
      %v3214 = vadd.f32 %v3190, %v3213
      %v3215 = vpop.f32.mrf.mxu0
      %v3216 = vadd.f32 %v3192, %v3215
      %3217 = vmatmul.bf16.gmra.mxu0 %v3009
      %v3218 = vpop.f32.mrf.mxu0
      %v3219 = vadd.f32 %v3195, %v3218
      %v3220 = vpop.f32.mrf.mxu0
      %v3221 = vadd.f32 %v3197, %v3220
      %3222 = vmatmul.bf16.gmra.mxu0 %v3013
      %v3223 = vpop.f32.mrf.mxu0
      %v3224 = vadd.f32 %v3200, %v3223
      %v3225 = vpop.f32.mrf.mxu0
      %v3226 = vadd.f32 %v3202, %v3225
      %3227 = vdwg.mxu0
      %3228 = vmatpush.bf16.msra.mxu0 %v3131
      %3229 = vmatpush.bf16.msra.mxu0 %v3129
      %3230 = vmatpush.bf16.msra.mxu0 %v3127
      %3231 = vmatpush.bf16.msra.mxu0 %v3125
      %3232 = vmatpush.bf16.msra.mxu0 %v3123
      %3233 = vmatpush.bf16.msra.mxu0 %v3121
      %3234 = vmatpush.bf16.msra.mxu0 %v3119
      %3235 = vmatpush.bf16.msra.mxu0 %v3117
      %3236 = vmatmul.bf16.gmra.mxu0 %v3002
      %v3237 = vpop.f32.mrf.mxu0
      %v3238 = vadd.f32 0.0, %v3237
      %v3239 = vpop.f32.mrf.mxu0
      %v3240 = vadd.f32 0.0, %v3239
      %3241 = vmatmul.bf16.gmra.mxu0 %v3007
      %v3242 = vpop.f32.mrf.mxu0
      %v3243 = vadd.f32 0.0, %v3242
      %v3244 = vpop.f32.mrf.mxu0
      %v3245 = vadd.f32 0.0, %v3244
      %3246 = vmatmul.bf16.gmra.mxu0 %v3011
      %v3247 = vpop.f32.mrf.mxu0
      %v3248 = vadd.f32 0.0, %v3247
      %v3249 = vpop.f32.mrf.mxu0
      %v3250 = vadd.f32 0.0, %v3249
      %3251 = vdwg.mxu0
      %3252 = vmatpush.bf16.msra.mxu0 %v3147
      %3253 = vmatpush.bf16.msra.mxu0 %v3145
      %3254 = vmatpush.bf16.msra.mxu0 %v3143
      %3255 = vmatpush.bf16.msra.mxu0 %v3141
      %3256 = vmatpush.bf16.msra.mxu0 %v3139
      %3257 = vmatpush.bf16.msra.mxu0 %v3137
      %3258 = vmatpush.bf16.msra.mxu0 %v3135
      %3259 = vmatpush.bf16.msra.mxu0 %v3133
      %3260 = vmatmul.bf16.gmra.mxu0 %v3005
      %v3261 = vpop.f32.mrf.mxu0
      %v3262 = vadd.f32 %v3238, %v3261
      %v3263 = vpop.f32.mrf.mxu0
      %v3264 = vadd.f32 %v3240, %v3263
      %3265 = vmatmul.bf16.gmra.mxu0 %v3009
      %v3266 = vpop.f32.mrf.mxu0
      %v3267 = vadd.f32 %v3243, %v3266
      %v3268 = vpop.f32.mrf.mxu0
      %v3269 = vadd.f32 %v3245, %v3268
      %3270 = vmatmul.bf16.gmra.mxu0 %v3013
      %v3271 = vpop.f32.mrf.mxu0
      %v3272 = vadd.f32 %v3248, %v3271
      %v3273 = vpop.f32.mrf.mxu0
      %v3274 = vadd.f32 %v3250, %v3273
      %3275 = vdwg.mxu0
      %v3276 = vadd.f32 %v2949, %v3214
      %v3277 = vadd.f32 %v2950, %v3262
      %v3278 = vadd.f32 %v2951, %v3216
      %v3279 = vadd.f32 %v2952, %v3264
      %v3280 = vadd.f32 %v2953, %v3219
      %v3281 = vadd.f32 %v2954, %v3267
      %v3282 = vadd.f32 %v2955, %v3221
      %v3283 = vadd.f32 %v2956, %v3269
      %v3284 = vadd.f32 %v2957, %v3224
      %v3285 = vadd.f32 %v2958, %v3272
      %v3286 = vadd.f32 %v2959, %v3226
      %v3287 = vadd.f32 %v2960, %v3274
      %v3288 = vld [vmem:[%s2] sm:$0x3]
      %v3290 = vperm.slane %v3288, 0
      %v3291 = vperm.slane %v3288, 1
      %v3294 = vmul.f32 %v3276, %v3290
      %v3295 = vmul.f32 %v3277, %v3291
      %v3296 = vmul.f32 %v3278, %v3290
      %v3297 = vmul.f32 %v3279, %v3291
      %v3298 = vmul.f32 %v3280, %v3290
      %v3299 = vmul.f32 %v3281, %v3291
      %v3300 = vmul.f32 %v3282, %v3290
      %v3301 = vmul.f32 %v3283, %v3291
      %v3302 = vmul.f32 %v3284, %v3290
      %v3303 = vmul.f32 %v3285, %v3291
      %v3304 = vmul.f32 %v3286, %v3290
      %v3305 = vmul.f32 %v3287, %v3291
      %v3306 = vld [vmem:[%s3] sm:$0x3]
      %v3308 = vperm.slane %v3306, 0
      %v3309 = vperm.slane %v3306, 1
      %v3312 = vadd.f32 %v3294, %v3308
      %v3313 = vadd.f32 %v3295, %v3309
      %v3314 = vadd.f32 %v3296, %v3308
      %v3315 = vadd.f32 %v3297, %v3309
      %v3316 = vadd.f32 %v3298, %v3308
      %v3317 = vadd.f32 %v3299, %v3309
      %v3318 = vadd.f32 %v3300, %v3308
      %v3319 = vadd.f32 %v3301, %v3309
      %v3320 = vadd.f32 %v3302, %v3308
      %v3321 = vadd.f32 %v3303, %v3309
      %v3322 = vadd.f32 %v3304, %v3308
      %v3323 = vadd.f32 %v3305, %v3309
      %v3324 = vmax.f32 %v3312, 0.0
      %v3325 = vmax.f32 %v3313, 0.0
      %v3326 = vmax.f32 %v3314, 0.0
      %v3327 = vmax.f32 %v3315, 0.0
      %v3328 = vmax.f32 %v3316, 0.0
      %v3329 = vmax.f32 %v3317, 0.0
      %v3330 = vmax.f32 %v3318, 0.0
      %v3331 = vmax.f32 %v3319, 0.0
      %v3332 = vmax.f32 %v3320, 0.0
      %v3333 = vmax.f32 %v3321, 0.0
      %v3334 = vmax.f32 %v3322, 0.0
      %v3335 = vmax.f32 %v3323, 0.0
      %v3336 = vmax.f32 %v3324, %v3325
      %v3337 = vmax.f32 %v3326, %v3327
      %v3338 = vmax.f32 %v3328, %v3329
      %v3339 = vmax.f32 %v3330, %v3331
      %v3340 = vmax.f32 %v3332, %v3333
      %v3341 = vmax.f32 %v3334, %v3335
      %vm3344 = vcmask 1041408
      %v3345 = vrot.slane %v3336, 6
      %v3346 = vrot.slane %v3337, 6
      %v3347 = vsel %vm3344, %v3345, %v3346
      %v3349 = vmax.f32 %v3336, %v3347
      %v3350 = vpack.c.bf16 %v3349, %v3349
      %3351 = vst [vmem:[%s197] sm:$0x3] %v3350
      %v3353 = vrot.slane %v3338, 6
      %v3355 = vmax.f32 %v3337, %v3353
      %v3356 = vpack.c.bf16 %v3355, %v3355
      %3357 = vst [vmem:[%s197] sm:$0xc] %v3356
      %v3360 = vrot.slane %v3339, 6
      %v3361 = vrot.slane %v3340, 6
      %v3362 = vsel %vm3344, %v3360, %v3361
      %v3364 = vmax.f32 %v3339, %v3362
      %v3365 = vpack.c.bf16 %v3364, %v3364
      %3366 = vst [vmem:[%s197 + $0x4] sm:$0x3] %v3365
      %v3368 = vrot.slane %v3341, 6
      %v3370 = vmax.f32 %v3340, %v3368
      %v3371 = vpack.c.bf16 %v3370, %v3370
      %3372 = vst [vmem:[%s197 + $0x4] sm:$0xc] %v3371
      %p3373 = scmp.lt.s32.totalorder %s15, 1
      %s3374 = scalar_select %p3373, %s15, 1
      %s3375 = smul.addr %s3374, 2
      %s3376 = smul.addr %s3375, 4
      %s3377 = scalar_lea.vmem %s4, %s3376
      // Predicated region
      $region37: #{convolutional_encoder_forward.4} parent=35 // pred_check
        %p3378 = pneg %p122
      $region38: #{convolutional_encoder_forward.4} parent=35 // pred_check_branch
        %3380 = sbr.rel (%p3378) target = $region40
      $region39: #{convolutional_encoder_forward.4} parent=35 // pred_region
        _
      $region40: #{convolutional_encoder_forward.4} parent=35 // pred_fallthru
        _
    $region36: #{convolutional_encoder_forward.4} parent=5 // pred_fallthru
      _
    %p3381 = scmp.le.s32.totalorder 2, %s10
    // Predicated region
    $region41: #{convolutional_encoder_forward.4} parent=5 // pred_check
      %p3382 = pneg %p3381
    $region42: #{convolutional_encoder_forward.4} parent=5 // pred_check_branch
      %3384 = sbr.rel (%p3382) target = $region44
    $region43: #{convolutional_encoder_forward.4} parent=5 // pred_region
      %s3385 = ssub.s32 %s10, 2
      // Predicated region
      $region45: #{convolutional_encoder_forward.4} parent=43 // pred_check
        %p3386 = pneg %p128
      $region46: #{convolutional_encoder_forward.4} parent=43 // pred_check_branch
        %3388 = sbr.rel (%p3386) target = $region48
      $region47: #{convolutional_encoder_forward.4} parent=43 // pred_region
        %p3389 = scmp.lt.s32.totalorder %s16, 1
        %s3390 = scalar_select %p3389, %s16, 1
        %s3391 = smul.addr %s3390, 2
        %s3392 = smul.addr %s3391, 4
        %s3393 = scalar_lea.vmem %s4, %s3392
      $region48: #{convolutional_encoder_forward.4} parent=43 // pred_fallthru
        _
    $region44: #{convolutional_encoder_forward.4} parent=5 // pred_fallthru
      _
  $region6: #{convolutional_encoder_forward.4} parent=0 // loop_footer
    %s14 = sadd.s32 1, %s10
  $region7: #{convolutional_encoder_forward.4} parent=0 // loop_footer_branch
    %9 = sbr.rel target = $region3
  $region8: #{convolutional_encoder_forward.4} parent=0 // loop_exit
    _

// kernel: convolutional_encoder_forward.3
$region0: #{convolutional_encoder_forward.3}
  #allocation0 [shape = 'u32[]', space=smem, size = 0x4, offset = 0x4, fixed_abs, tag = 'smem constant byte address 0x4 - core index']
  #allocation1 [shape = 'u32[72,128]{1,0:T(1,128)}', space=vmem, size = 0x9000, scoped, tag = 'internal scratch']
  %s0 = inlined_call_operand.vmem [shape: bf16[2,190,256], index: 0, kind: input, shape index: {}]
  %s1 = inlined_call_operand.hbm [shape: bf16[9,256,256], index: 1, kind: input, shape index: {}]
  %s2 = inlined_call_operand.hbm [shape: f32[1,256], index: 2, kind: input, shape index: {}]
  %s3 = inlined_call_operand.hbm [shape: f32[1,256], index: 3, kind: input, shape index: {}]
  %s4 = inlined_call_operand.vmem [shape: bf16[2,64,128], index: 4, kind: output, shape index: {}]
  %s5 = sld [smem:[#allocation0]]
  $region61: #{convolutional_encoder_forward.3} parent=0
    _
  %s7 = ssub.s32 1, %s5
  %s8 = scalar_select 0, %s7, %s5
  $region1: #{convolutional_encoder_forward.3} parent=0
    #allocation2 [shape = 'u8[1179648]{0}', space=vmem, size = 0x120000, scoped, tag = 'input window, operand 1, single buffered']
    #allocation3 [shape = 's32[2]{0}', space=sflag, size = 0x8, scoped, tag = 'scoped memory for convolutional_encoder_forward.3']
    #allocation4 [shape = 'u8[1024]{0}', space=vmem, size = 0x400, scoped, tag = 'input window, operand 2, single buffered']
    #allocation5 [shape = 's32[1]{0}', space=sflag, size = 0x4, scoped, tag = 'scoped memory for convolutional_encoder_forward.3']
    #allocation6 [shape = 'u8[1024]{0}', space=vmem, size = 0x400, scoped, tag = 'input window, operand 3, single buffered']
    %9 = vsyncpa [#allocation3], 0
    %10 = vsyncpa [#allocation5], 0
    loop: start=0, step=1, limit=4
    $region2: #{convolutional_encoder_forward.3} parent=1 // loop_pre_header
      _
    $region3: #{convolutional_encoder_forward.3} parent=1 // loop_header
      %s12 = sphi 0, %s16
      %p13 = scmp.ge.s32.totalorder %s12, 4
      %s22 = sphi 0, %s24
      %s25 = sphi 0, %s22
      %s26 = sphi 0, %s25
      %s42 = sphi 0, %s26
      %s46 = sphi 0, %s46
      %s48 = sphi 0, %s46
      %s49 = sphi 0, %s48
      %s63 = sphi 0, %s49
      %s67 = sphi 0, %s67
      %s69 = sphi 0, %s67
      %s70 = sphi 0, %s69
      %s84 = sphi 0, %s70
      %s88 = sphi 0, %s88
      %s90 = sphi 0, %s88
      %s91 = sphi 0, %s90
      %s105 = sphi 0, %s91
      %s111 = sphi 0, %s113
      %s114 = sphi 0, %s111
      %s115 = sphi 0, %s114
      %s131 = sphi 0, %s115
    $region4: #{convolutional_encoder_forward.3} parent=1 // loop_header_branch
      %15 = sbr.rel (%p13) target = $region8
    $region5: #{convolutional_encoder_forward.3} parent=1 // loop_body
      %s17 = ssub.s32 %s12, 1
      %s18 = ssub.s32 %s12, 2
      %s19 = sadd.s32 %s12, 1
      %s20 = ssub.s32 %s12, %s19
      %p21 = scmp.eq.s32.totalorder %s20, 0
      %s23 = sadd.s32 %s22, 1
      %s24 = scalar_select %p21, %s22, %s23
      %p27 = pneg %p21
      %p28 = scmp.eq.s32.totalorder %s12, 1
      %p29 = por %p27, %p28
      %p30 = scmp.ne.s32.totalorder %s22, %s25
      %p31 = scmp.eq.s32.totalorder %s12, 0
      %p32 = por %p30, %p31
      %p33 = scmp.ne.s32.totalorder %s22, %s25
      %p34 = scmp.eq.s32.totalorder %s17, 1
      %p35 = por %p33, %p34
      %p36 = scmp.ne.s32.totalorder %s25, %s26
      %p37 = scmp.eq.s32.totalorder %s17, 0
      %p38 = por %p36, %p37
      %p39 = scmp.ne.s32.totalorder %s25, %s26
      %p40 = scmp.eq.s32.totalorder %s18, 1
      %p41 = por %p39, %p40
      %p43 = scmp.ne.s32.totalorder %s26, %s42
      %p44 = scmp.eq.s32.totalorder %s18, 0
      %p45 = por %p43, %p44
      %s47 = sadd.s32 %s46, 1
      %p50 = scmp.eq.s32.totalorder %s12, 1
      %p51 = scmp.ne.s32.totalorder %s46, %s48
      %p52 = scmp.eq.s32.totalorder %s12, 0
      %p53 = por %p51, %p52
      %p54 = scmp.ne.s32.totalorder %s46, %s48
      %p55 = scmp.eq.s32.totalorder %s17, 1
      %p56 = por %p54, %p55
      %p57 = scmp.ne.s32.totalorder %s48, %s49
      %p58 = scmp.eq.s32.totalorder %s17, 0
      %p59 = por %p57, %p58
      %p60 = scmp.ne.s32.totalorder %s48, %s49
      %p61 = scmp.eq.s32.totalorder %s18, 1
      %p62 = por %p60, %p61
      %p64 = scmp.ne.s32.totalorder %s49, %s63
      %p65 = scmp.eq.s32.totalorder %s18, 0
      %p66 = por %p64, %p65
      %s68 = sadd.s32 %s67, 1
      %p71 = scmp.eq.s32.totalorder %s12, 1
      %p72 = scmp.ne.s32.totalorder %s67, %s69
      %p73 = scmp.eq.s32.totalorder %s12, 0
      %p74 = por %p72, %p73
      %p75 = scmp.ne.s32.totalorder %s67, %s69
      %p76 = scmp.eq.s32.totalorder %s17, 1
      %p77 = por %p75, %p76
      %p78 = scmp.ne.s32.totalorder %s69, %s70
      %p79 = scmp.eq.s32.totalorder %s17, 0
      %p80 = por %p78, %p79
      %p81 = scmp.ne.s32.totalorder %s69, %s70
      %p82 = scmp.eq.s32.totalorder %s18, 1
      %p83 = por %p81, %p82
      %p85 = scmp.ne.s32.totalorder %s70, %s84
      %p86 = scmp.eq.s32.totalorder %s18, 0
      %p87 = por %p85, %p86
      %s89 = sadd.s32 %s88, 1
      %p92 = scmp.eq.s32.totalorder %s12, 1
      %p93 = scmp.ne.s32.totalorder %s88, %s90
      %p94 = scmp.eq.s32.totalorder %s12, 0
      %p95 = por %p93, %p94
      %p96 = scmp.ne.s32.totalorder %s88, %s90
      %p97 = scmp.eq.s32.totalorder %s17, 1
      %p98 = por %p96, %p97
      %p99 = scmp.ne.s32.totalorder %s90, %s91
      %p100 = scmp.eq.s32.totalorder %s17, 0
      %p101 = por %p99, %p100
      %p102 = scmp.ne.s32.totalorder %s90, %s91
      %p103 = scmp.eq.s32.totalorder %s18, 1
      %p104 = por %p102, %p103
      %p106 = scmp.ne.s32.totalorder %s91, %s105
      %p107 = scmp.eq.s32.totalorder %s18, 0
      %p108 = por %p106, %p107
      %s109 = ssub.s32 %s12, %s19
      %p110 = scmp.eq.s32.totalorder %s109, 0
      %s112 = sadd.s32 %s111, 1
      %s113 = scalar_select %p110, %s111, %s112
      %p116 = pneg %p110
      %p117 = scmp.eq.s32.totalorder %s12, 1
      %p118 = por %p116, %p117
      %p119 = scmp.ne.s32.totalorder %s111, %s114
      %p120 = scmp.eq.s32.totalorder %s12, 0
      %p121 = por %p119, %p120
      %p122 = scmp.ne.s32.totalorder %s111, %s114
      %p123 = scmp.eq.s32.totalorder %s17, 1
      %p124 = por %p122, %p123
      %p125 = scmp.ne.s32.totalorder %s114, %s115
      %p126 = scmp.eq.s32.totalorder %s17, 0
      %p127 = por %p125, %p126
      %p128 = scmp.ne.s32.totalorder %s114, %s115
      %p129 = scmp.eq.s32.totalorder %s18, 1
      %p130 = por %p128, %p129
      %p132 = scmp.ne.s32.totalorder %s115, %s131
      %p133 = scmp.eq.s32.totalorder %s18, 0
      %p134 = por %p132, %p133
      %p135 = scmp.le.s32.totalorder 1, %s12
      %p136 = scmp.lt.s32.totalorder %s12, 3
      %p137 = pnand %p135, %p136
      %p138 = pneg %p137
      // Predicated region
      $region9: #{convolutional_encoder_forward.3} parent=5 // pred_check
        _
      $region10: #{convolutional_encoder_forward.3} parent=5 // pred_check_branch
        %140 = sbr.rel (%p137) target = $region12
      $region11: #{convolutional_encoder_forward.3} parent=5 // pred_region
        %s141 = ssub.s32 %s12, 1
        // Predicated region
        $region13: #{convolutional_encoder_forward.3} parent=11 // pred_check
          %p142 = pneg %p59
        $region14: #{convolutional_encoder_forward.3} parent=11 // pred_check_branch
          %144 = sbr.rel (%p142) target = $region16
        $region15: #{convolutional_encoder_forward.3} parent=11 // pred_region
          %146 = vsyncadd [#allocation3], 0
          %s147 = sshll.u32 %s1, 4
          %s148 = int_to_ptr.hbm [resolvable:$true] %s147
          %s149 = sshll.u32 [#allocation2], 4
          %s150 = int_to_ptr.vmem [resolvable:$true] %s149
          %155 = dma.hbm_to_vmem [thread:$0]  %s148, 36864, %s150, [#allocation3], 128, 128, 8
        $region16: #{convolutional_encoder_forward.3} parent=11 // pred_fallthru
          _
        // Predicated region
        $region17: #{convolutional_encoder_forward.3} parent=11 // pred_check
          %p156 = pneg %p80
        $region18: #{convolutional_encoder_forward.3} parent=11 // pred_check_branch
          %158 = sbr.rel (%p156) target = $region20
        $region19: #{convolutional_encoder_forward.3} parent=11 // pred_region
          %160 = vsyncadd [#allocation5], 0
          %s162 = sshll.u32 %s2, 4
          %s163 = int_to_ptr.hbm [resolvable:$true] %s162
          %s164 = sshll.u32 [#allocation4], 4
          %s165 = int_to_ptr.vmem [resolvable:$true] %s164
          %167 = dma.hbm_to_vmem [thread:$0]  %s163, 32, %s165, [#allocation5]
        $region20: #{convolutional_encoder_forward.3} parent=11 // pred_fallthru
          _
        // Predicated region
        $region21: #{convolutional_encoder_forward.3} parent=11 // pred_check
          %p168 = pneg %p101
        $region22: #{convolutional_encoder_forward.3} parent=11 // pred_check_branch
          %170 = sbr.rel (%p168) target = $region24
        $region23: #{convolutional_encoder_forward.3} parent=11 // pred_region
          %172 = vsyncadd [#allocation5], 0
          %s174 = sshll.u32 %s3, 4
          %s175 = int_to_ptr.hbm [resolvable:$true] %s174
          %s176 = sshll.u32 [#allocation6], 4
          %s177 = int_to_ptr.vmem [resolvable:$true] %s176
          %179 = dma.hbm_to_vmem [thread:$0]  %s175, 32, %s177, [#allocation5]
        $region24: #{convolutional_encoder_forward.3} parent=11 // pred_fallthru
          _
      $region12: #{convolutional_encoder_forward.3} parent=5 // pred_fallthru
        _
      %p180 = scmp.lt.s32.totalorder %s12, 2
      // Predicated region
      $region25: #{convolutional_encoder_forward.3} parent=5 // pred_check
        %p181 = pneg %p180
      $region26: #{convolutional_encoder_forward.3} parent=5 // pred_check_branch
        %183 = sbr.rel (%p181) target = $region28
      $region27: #{convolutional_encoder_forward.3} parent=5 // pred_region
        // Predicated region
        $region29: #{convolutional_encoder_forward.3} parent=27 // pred_check
          %p184 = pneg %p32
        $region30: #{convolutional_encoder_forward.3} parent=27 // pred_check_branch
          %186 = sbr.rel (%p184) target = $region32
        $region31: #{convolutional_encoder_forward.3} parent=27 // pred_region
          %p187 = scmp.lt.s32.totalorder %s12, 1
          %s188 = scalar_select %p187, %s12, 1
          %s189 = smul.addr %s188, 48
          %s190 = smul.addr %s189, 4
          %s191 = scalar_lea.vmem %s0, %s190
        $region32: #{convolutional_encoder_forward.3} parent=27 // pred_fallthru
          _
      $region28: #{convolutional_encoder_forward.3} parent=5 // pred_fallthru
        _
      %p192 = scmp.le.s32.totalorder 1, %s12
      %p193 = scmp.lt.s32.totalorder %s12, 3
      %p194 = pnand %p192, %p193
      %p195 = pneg %p194
      // Predicated region
      $region33: #{convolutional_encoder_forward.3} parent=5 // pred_check
        _
      $region34: #{convolutional_encoder_forward.3} parent=5 // pred_check_branch
        %197 = sbr.rel (%p194) target = $region36
      $region35: #{convolutional_encoder_forward.3} parent=5 // pred_region
        %s198 = ssub.s32 %s12, 1
        // Predicated region
        $region37: #{convolutional_encoder_forward.3} parent=35 // pred_check
          %p199 = pneg %p59
        $region38: #{convolutional_encoder_forward.3} parent=35 // pred_check_branch
          %201 = sbr.rel (%p199) target = $region40
        $region39: #{convolutional_encoder_forward.3} parent=35 // pred_region
          %203 = dma.done [#allocation3], 36864
        $region40: #{convolutional_encoder_forward.3} parent=35 // pred_fallthru
          _
        // Predicated region
        $region41: #{convolutional_encoder_forward.3} parent=35 // pred_check
          %p204 = pneg %p80
        $region42: #{convolutional_encoder_forward.3} parent=35 // pred_check_branch
          %206 = sbr.rel (%p204) target = $region44
        $region43: #{convolutional_encoder_forward.3} parent=35 // pred_region
          %208 = dma.done [#allocation5], 32
        $region44: #{convolutional_encoder_forward.3} parent=35 // pred_fallthru
          _
        // Predicated region
        $region45: #{convolutional_encoder_forward.3} parent=35 // pred_check
          %p209 = pneg %p101
        $region46: #{convolutional_encoder_forward.3} parent=35 // pred_check_branch
          %211 = sbr.rel (%p209) target = $region48
        $region47: #{convolutional_encoder_forward.3} parent=35 // pred_region
          %213 = dma.done [#allocation5], 32
        $region48: #{convolutional_encoder_forward.3} parent=35 // pred_fallthru
          _
        %p214 = scmp.lt.s32.totalorder %s17, 1
        %s215 = scalar_select %p214, %s17, 1
        %s216 = smul.addr %s215, 48
        %s217 = smul.addr %s216, 4
        %s218 = scalar_lea.vmem %s0, %s217
        %p219 = pneg %p38
        %p220 = pneg %p35
        %p221 = pneg %p59
        %p222 = pneg %p56
        %p223 = pneg %p80
        %p224 = pneg %p77
        %p225 = pneg %p101
        %p226 = pneg %p98
        %p227 = pneg %p127
        %p228 = pneg %p124
        %p229 = scmp.lt.s32.totalorder %s17, 1
        %s230 = scalar_select %p229, %s17, 1
        %s231 = smul.addr %s230, 8
        %s232 = smul.addr %s231, 4
        %s233 = scalar_lea.vmem %s4, %s232
        %p234 = scmp.lt.s32.totalorder %s17, 1
        %s235 = scalar_select %p234, %s17, 1
        %s236 = smul.addr %s235, 48
        %s237 = smul.addr %s236, 4
        %s238 = scalar_lea.vmem %s0, %s237
        %p239 = scmp.lt.s32.totalorder %s17, 1
        %s240 = scalar_select %p239, %s17, 1
        %s241 = smul.addr %s240, 8
        %s242 = smul.addr %s241, 4
        %s243 = scalar_lea.vmem %s4, %s242
        %v244 = vld [vmem:[%s238] sm:$0xff]
        %v245 = vld [vmem:[%s238 + $0x8] sm:$0xff]
        %v246 = vld [vmem:[%s238 + $0x10] sm:$0xff]
        %v247 = vld [vmem:[%s238 + $0x18] sm:$0xff]
        %v248 = vld [vmem:[%s238 + $0x20] sm:$0xff]
        %v249 = vld [vmem:[%s238 + $0x28] sm:$0xff]
        %v250 = vld [vmem:[%s238 + $0x30] sm:$0xff]
        %v251 = vld [vmem:[%s238 + $0x38] sm:$0xff]
        %v252 = vld [vmem:[%s238 + $0x40] sm:$0xff]
        %v253 = vld [vmem:[%s238 + $0x48] sm:$0xff]
        %v254 = vld [vmem:[%s238 + $0x50] sm:$0xff]
        %v255 = vld [vmem:[%s238 + $0x58] sm:$0xff]
        %v256 = vld [vmem:[%s238 + $0x60] sm:$0xff]
        %v257 = vld [vmem:[%s238 + $0x68] sm:$0xff]
        %v258 = vld [vmem:[%s238 + $0x70] sm:$0xff]
        %v259 = vld [vmem:[%s238 + $0x78] sm:$0xff]
        %v260 = vld [vmem:[%s238 + $0x80] sm:$0xff]
        %v261 = vld [vmem:[%s238 + $0x88] sm:$0xff]
        %v262 = vld [vmem:[%s238 + $0x90] sm:$0xff]
        %v263 = vld [vmem:[%s238 + $0x98] sm:$0xff]
        %v264 = vld [vmem:[#allocation2] sm:$0xff]
        %v265 = vld [vmem:[#allocation2 + $0x8] sm:$0xff]
        %v266 = vld [vmem:[#allocation2 + $0x10] sm:$0xff]
        %v267 = vld [vmem:[#allocation2 + $0x18] sm:$0xff]
        %v268 = vld [vmem:[#allocation2 + $0x20] sm:$0xff]
        %v269 = vld [vmem:[#allocation2 + $0x28] sm:$0xff]
        %v270 = vld [vmem:[#allocation2 + $0x30] sm:$0xff]
        %v271 = vld [vmem:[#allocation2 + $0x38] sm:$0xff]
        %v272 = vld [vmem:[#allocation2 + $0x40] sm:$0xff]
        %v273 = vld [vmem:[#allocation2 + $0x48] sm:$0xff]
        %v274 = vld [vmem:[#allocation2 + $0x50] sm:$0xff]
        %v275 = vld [vmem:[#allocation2 + $0x58] sm:$0xff]
        %v276 = vld [vmem:[#allocation2 + $0x60] sm:$0xff]
        %v277 = vld [vmem:[#allocation2 + $0x68] sm:$0xff]
        %v278 = vld [vmem:[#allocation2 + $0x70] sm:$0xff]
        %v279 = vld [vmem:[#allocation2 + $0x78] sm:$0xff]
        %v280 = vld [vmem:[#allocation2 + $0x80] sm:$0xff]
        %v281 = vld [vmem:[#allocation2 + $0x88] sm:$0xff]
        %v282 = vld [vmem:[#allocation2 + $0x90] sm:$0xff]
        %v283 = vld [vmem:[#allocation2 + $0x98] sm:$0xff]
        %v284 = vld [vmem:[#allocation2 + $0xa0] sm:$0xff]
        %v285 = vld [vmem:[#allocation2 + $0xa8] sm:$0xff]
        %v286 = vld [vmem:[#allocation2 + $0xb0] sm:$0xff]
        %v287 = vld [vmem:[#allocation2 + $0xb8] sm:$0xff]
        %v288 = vld [vmem:[#allocation2 + $0xc0] sm:$0xff]
        %v289 = vld [vmem:[#allocation2 + $0xc8] sm:$0xff]
        %v290 = vld [vmem:[#allocation2 + $0xd0] sm:$0xff]
        %v291 = vld [vmem:[#allocation2 + $0xd8] sm:$0xff]
        %v292 = vld [vmem:[#allocation2 + $0xe0] sm:$0xff]
        %v293 = vld [vmem:[#allocation2 + $0xe8] sm:$0xff]
        %v294 = vld [vmem:[#allocation2 + $0xf0] sm:$0xff]
        %v295 = vld [vmem:[#allocation2 + $0xf8] sm:$0xff]
        %v296 = vld [vmem:[%s238 + $0xa0] sm:$0x11]
        %s297 = scalar_lea.vmem [#allocation2], 256
        %v298 = vld [vmem:[%s297] sm:$0xff]
        %v299 = vld [vmem:[%s297 + $0x8] sm:$0xff]
        %v300 = vld [vmem:[%s297 + $0x10] sm:$0xff]
        %v301 = vld [vmem:[%s297 + $0x18] sm:$0xff]
        %v302 = vld [vmem:[%s297 + $0x20] sm:$0xff]
        %v303 = vld [vmem:[%s297 + $0x28] sm:$0xff]
        %v304 = vld [vmem:[%s297 + $0x30] sm:$0xff]
        %v305 = vld [vmem:[%s297 + $0x38] sm:$0xff]
        %v306 = vld [vmem:[%s297 + $0x40] sm:$0xff]
        %v307 = vld [vmem:[%s297 + $0x48] sm:$0xff]
        %v308 = vld [vmem:[%s297 + $0x50] sm:$0xff]
        %v309 = vld [vmem:[%s297 + $0x58] sm:$0xff]
        %v310 = vld [vmem:[%s297 + $0x60] sm:$0xff]
        %v311 = vld [vmem:[%s297 + $0x68] sm:$0xff]
        %v312 = vld [vmem:[%s297 + $0x70] sm:$0xff]
        %v313 = vld [vmem:[%s297 + $0x78] sm:$0xff]
        %v314 = vld [vmem:[%s297 + $0x80] sm:$0xff]
        %v315 = vld [vmem:[%s297 + $0x88] sm:$0xff]
        %v316 = vld [vmem:[%s297 + $0x90] sm:$0xff]
        %v317 = vld [vmem:[%s297 + $0x98] sm:$0xff]
        %v318 = vld [vmem:[%s297 + $0xa0] sm:$0xff]
        %v319 = vld [vmem:[%s297 + $0xa8] sm:$0xff]
        %v320 = vld [vmem:[%s297 + $0xb0] sm:$0xff]
        %v321 = vld [vmem:[%s297 + $0xb8] sm:$0xff]
        %v322 = vld [vmem:[%s297 + $0xc0] sm:$0xff]
        %v323 = vld [vmem:[%s297 + $0xc8] sm:$0xff]
        %v324 = vld [vmem:[%s297 + $0xd0] sm:$0xff]
        %v325 = vld [vmem:[%s297 + $0xd8] sm:$0xff]
        %v326 = vld [vmem:[%s297 + $0xe0] sm:$0xff]
        %v327 = vld [vmem:[%s297 + $0xe8] sm:$0xff]
        %v328 = vld [vmem:[%s297 + $0xf0] sm:$0xff]
        %v329 = vld [vmem:[%s297 + $0xf8] sm:$0xff]
        %v351 = vunpack.c.l.b16 %v244
        %v352 = vunpack.c.h.b16 %v244
        %v353 = vunpack.c.l.b16 %v245
        %v354 = vunpack.c.h.b16 %v245
        %v355 = vunpack.c.l.b16 %v246
        %v356 = vunpack.c.h.b16 %v246
        %v357 = vunpack.c.l.b16 %v247
        %v358 = vunpack.c.h.b16 %v247
        %v359 = vunpack.c.l.b16 %v248
        %v360 = vunpack.c.h.b16 %v248
        %v361 = vunpack.c.l.b16 %v249
        %v362 = vunpack.c.h.b16 %v249
        %v363 = vunpack.c.l.b16 %v250
        %v364 = vunpack.c.h.b16 %v250
        %v365 = vunpack.c.l.b16 %v251
        %v366 = vunpack.c.h.b16 %v251
        %v367 = vunpack.c.l.b16 %v252
        %v368 = vunpack.c.h.b16 %v252
        %v369 = vunpack.c.l.b16 %v253
        %v370 = vunpack.c.h.b16 %v253
        %v371 = vunpack.c.l.b16 %v254
        %v372 = vunpack.c.h.b16 %v254
        %v373 = vunpack.c.l.b16 %v255
        %v374 = vunpack.c.h.b16 %v255
        %v375 = vunpack.c.l.b16 %v256
        %v376 = vunpack.c.h.b16 %v256
        %v377 = vunpack.c.l.b16 %v257
        %v378 = vunpack.c.h.b16 %v257
        %v379 = vunpack.c.l.b16 %v258
        %v380 = vunpack.c.h.b16 %v258
        %v381 = vunpack.c.l.b16 %v259
        %v382 = vunpack.c.h.b16 %v259
        %v383 = vunpack.c.l.b16 %v260
        %v384 = vunpack.c.h.b16 %v260
        %v385 = vunpack.c.l.b16 %v261
        %v386 = vunpack.c.h.b16 %v261
        %v387 = vunpack.c.l.b16 %v262
        %v388 = vunpack.c.h.b16 %v262
        %v389 = vunpack.c.l.b16 %v263
        %v390 = vunpack.c.h.b16 %v263
        %v391 = vunpack.c.l.b16 %v296
        %v392 = vunpack.c.h.b16 %v296
        %v393 = vpack.c.b16 %v353, %v351
        %v394 = vpack.c.b16 %v354, %v352
        %v395 = vpack.c.b16 %v357, %v355
        %v396 = vpack.c.b16 %v358, %v356
        %v397 = vpack.c.b16 %v361, %v359
        %v398 = vpack.c.b16 %v362, %v360
        %v399 = vpack.c.b16 %v365, %v363
        %v400 = vpack.c.b16 %v366, %v364
        %v401 = vpack.c.b16 %v369, %v367
        %v402 = vpack.c.b16 %v370, %v368
        %v403 = vpack.c.b16 %v373, %v371
        %v404 = vpack.c.b16 %v374, %v372
        %v405 = vpack.c.b16 %v377, %v375
        %v406 = vpack.c.b16 %v378, %v376
        %v407 = vpack.c.b16 %v381, %v379
        %v408 = vpack.c.b16 %v382, %v380
        %v409 = vpack.c.b16 %v385, %v383
        %v410 = vpack.c.b16 %v386, %v384
        %v411 = vpack.c.b16 %v389, %v387
        %v412 = vpack.c.b16 %v390, %v388
        %v413 = vpack.c.b16 %v391, %v391
        %v414 = vpack.c.b16 %v392, %v392
        %vm415 = vsmask.f32 7424
        %v417 = vshrl.u32 %v393, 16
        %v419 = vshll.u32 %v393, 16
        %v421 = vrot.slane %v419, 1
        %v422 = vor.u32 %v417, %v421
        %v424 = vshll.u32 %v395, 16
        %v426 = vrot.slane %v424, 1
        %v427 = vsel %vm415, %v422, %v426
        %v429 = vshrl.u32 %v394, 16
        %v431 = vshll.u32 %v394, 16
        %v433 = vrot.slane %v431, 1
        %v434 = vor.u32 %v429, %v433
        %v436 = vshll.u32 %v396, 16
        %v438 = vrot.slane %v436, 1
        %v439 = vsel %vm415, %v434, %v438
        %v440 = vshrl.u32 %v395, 16
        %v442 = vor.u32 %v440, %v426
        %v444 = vshll.u32 %v397, 16
        %v446 = vrot.slane %v444, 1
        %v447 = vsel %vm415, %v442, %v446
        %v448 = vshrl.u32 %v396, 16
        %v450 = vor.u32 %v448, %v438
        %v452 = vshll.u32 %v398, 16
        %v454 = vrot.slane %v452, 1
        %v455 = vsel %vm415, %v450, %v454
        %v456 = vshrl.u32 %v397, 16
        %v458 = vor.u32 %v456, %v446
        %v460 = vshll.u32 %v399, 16
        %v462 = vrot.slane %v460, 1
        %v463 = vsel %vm415, %v458, %v462
        %v464 = vshrl.u32 %v398, 16
        %v466 = vor.u32 %v464, %v454
        %v468 = vshll.u32 %v400, 16
        %v470 = vrot.slane %v468, 1
        %v471 = vsel %vm415, %v466, %v470
        %v472 = vshrl.u32 %v399, 16
        %v474 = vor.u32 %v472, %v462
        %v476 = vshll.u32 %v401, 16
        %v478 = vrot.slane %v476, 1
        %v479 = vsel %vm415, %v474, %v478
        %v480 = vshrl.u32 %v400, 16
        %v482 = vor.u32 %v480, %v470
        %v484 = vshll.u32 %v402, 16
        %v486 = vrot.slane %v484, 1
        %v487 = vsel %vm415, %v482, %v486
        %v488 = vshrl.u32 %v401, 16
        %v490 = vor.u32 %v488, %v478
        %v492 = vshll.u32 %v403, 16
        %v494 = vrot.slane %v492, 1
        %v495 = vsel %vm415, %v490, %v494
        %v496 = vshrl.u32 %v402, 16
        %v498 = vor.u32 %v496, %v486
        %v500 = vshll.u32 %v404, 16
        %v502 = vrot.slane %v500, 1
        %v503 = vsel %vm415, %v498, %v502
        %v504 = vshrl.u32 %v403, 16
        %v506 = vor.u32 %v504, %v494
        %v508 = vshll.u32 %v405, 16
        %v510 = vrot.slane %v508, 1
        %v511 = vsel %vm415, %v506, %v510
        %v512 = vshrl.u32 %v404, 16
        %v514 = vor.u32 %v512, %v502
        %v516 = vshll.u32 %v406, 16
        %v518 = vrot.slane %v516, 1
        %v519 = vsel %vm415, %v514, %v518
        %v520 = vshrl.u32 %v405, 16
        %v522 = vor.u32 %v520, %v510
        %v524 = vshll.u32 %v407, 16
        %v526 = vrot.slane %v524, 1
        %v527 = vsel %vm415, %v522, %v526
        %v528 = vshrl.u32 %v406, 16
        %v530 = vor.u32 %v528, %v518
        %v532 = vshll.u32 %v408, 16
        %v534 = vrot.slane %v532, 1
        %v535 = vsel %vm415, %v530, %v534
        %v536 = vshrl.u32 %v407, 16
        %v538 = vor.u32 %v536, %v526
        %v540 = vshll.u32 %v409, 16
        %v542 = vrot.slane %v540, 1
        %v543 = vsel %vm415, %v538, %v542
        %v544 = vshrl.u32 %v408, 16
        %v546 = vor.u32 %v544, %v534
        %v548 = vshll.u32 %v410, 16
        %v550 = vrot.slane %v548, 1
        %v551 = vsel %vm415, %v546, %v550
        %v552 = vshrl.u32 %v409, 16
        %v554 = vor.u32 %v552, %v542
        %v556 = vshll.u32 %v411, 16
        %v558 = vrot.slane %v556, 1
        %v559 = vsel %vm415, %v554, %v558
        %v560 = vshrl.u32 %v410, 16
        %v562 = vor.u32 %v560, %v550
        %v564 = vshll.u32 %v412, 16
        %v566 = vrot.slane %v564, 1
        %v567 = vsel %vm415, %v562, %v566
        %v568 = vshrl.u32 %v411, 16
        %v570 = vor.u32 %v568, %v558
        %v572 = vshll.u32 %v413, 16
        %v574 = vrot.slane %v572, 1
        %v575 = vsel %vm415, %v570, %v574
        %v576 = vshrl.u32 %v412, 16
        %v578 = vor.u32 %v576, %v566
        %v580 = vshll.u32 %v414, 16
        %v582 = vrot.slane %v580, 1
        %v583 = vsel %vm415, %v578, %v582
        %v636 = vunpack.c.l.b16 %v298
        %v637 = vunpack.c.h.b16 %v298
        %v638 = vunpack.c.l.b16 %v299
        %v639 = vunpack.c.h.b16 %v299
        %v640 = vunpack.c.l.b16 %v300
        %v641 = vunpack.c.h.b16 %v300
        %v642 = vunpack.c.l.b16 %v301
        %v643 = vunpack.c.h.b16 %v301
        %v644 = vunpack.c.l.b16 %v302
        %v645 = vunpack.c.h.b16 %v302
        %v646 = vunpack.c.l.b16 %v303
        %v647 = vunpack.c.h.b16 %v303
        %v648 = vunpack.c.l.b16 %v304
        %v649 = vunpack.c.h.b16 %v304
        %v650 = vunpack.c.l.b16 %v305
        %v651 = vunpack.c.h.b16 %v305
        %v652 = vunpack.c.l.b16 %v306
        %v653 = vunpack.c.h.b16 %v306
        %v654 = vunpack.c.l.b16 %v307
        %v655 = vunpack.c.h.b16 %v307
        %v656 = vunpack.c.l.b16 %v308
        %v657 = vunpack.c.h.b16 %v308
        %v658 = vunpack.c.l.b16 %v309
        %v659 = vunpack.c.h.b16 %v309
        %v660 = vunpack.c.l.b16 %v310
        %v661 = vunpack.c.h.b16 %v310
        %v662 = vunpack.c.l.b16 %v311
        %v663 = vunpack.c.h.b16 %v311
        %v664 = vunpack.c.l.b16 %v312
        %v665 = vunpack.c.h.b16 %v312
        %v666 = vunpack.c.l.b16 %v313
        %v667 = vunpack.c.h.b16 %v313
        %v668 = vunpack.c.l.b16 %v314
        %v669 = vunpack.c.h.b16 %v314
        %v670 = vunpack.c.l.b16 %v315
        %v671 = vunpack.c.h.b16 %v315
        %v672 = vunpack.c.l.b16 %v316
        %v673 = vunpack.c.h.b16 %v316
        %v674 = vunpack.c.l.b16 %v317
        %v675 = vunpack.c.h.b16 %v317
        %v676 = vunpack.c.l.b16 %v318
        %v677 = vunpack.c.h.b16 %v318
        %v678 = vunpack.c.l.b16 %v319
        %v679 = vunpack.c.h.b16 %v319
        %v680 = vunpack.c.l.b16 %v320
        %v681 = vunpack.c.h.b16 %v320
        %v682 = vunpack.c.l.b16 %v321
        %v683 = vunpack.c.h.b16 %v321
        %v684 = vunpack.c.l.b16 %v322
        %v685 = vunpack.c.h.b16 %v322
        %v686 = vunpack.c.l.b16 %v323
        %v687 = vunpack.c.h.b16 %v323
        %v688 = vunpack.c.l.b16 %v324
        %v689 = vunpack.c.h.b16 %v324
        %v690 = vunpack.c.l.b16 %v325
        %v691 = vunpack.c.h.b16 %v325
        %v692 = vunpack.c.l.b16 %v326
        %v693 = vunpack.c.h.b16 %v326
        %v694 = vunpack.c.l.b16 %v327
        %v695 = vunpack.c.h.b16 %v327
        %v696 = vunpack.c.l.b16 %v328
        %v697 = vunpack.c.h.b16 %v328
        %v698 = vunpack.c.l.b16 %v329
        %v699 = vunpack.c.h.b16 %v329
        %v700 = vpack.c.b16 %v638, %v636
        %v701 = vpack.c.b16 %v639, %v637
        %v702 = vpack.c.b16 %v642, %v640
        %v703 = vpack.c.b16 %v643, %v641
        %v704 = vpack.c.b16 %v646, %v644
        %v705 = vpack.c.b16 %v647, %v645
        %v706 = vpack.c.b16 %v650, %v648
        %v707 = vpack.c.b16 %v651, %v649
        %v708 = vpack.c.b16 %v654, %v652
        %v709 = vpack.c.b16 %v655, %v653
        %v710 = vpack.c.b16 %v658, %v656
        %v711 = vpack.c.b16 %v659, %v657
        %v712 = vpack.c.b16 %v662, %v660
        %v713 = vpack.c.b16 %v663, %v661
        %v714 = vpack.c.b16 %v666, %v664
        %v715 = vpack.c.b16 %v667, %v665
        %v716 = vpack.c.b16 %v670, %v668
        %v717 = vpack.c.b16 %v671, %v669
        %v718 = vpack.c.b16 %v674, %v672
        %v719 = vpack.c.b16 %v675, %v673
        %v720 = vpack.c.b16 %v678, %v676
        %v721 = vpack.c.b16 %v679, %v677
        %v722 = vpack.c.b16 %v682, %v680
        %v723 = vpack.c.b16 %v683, %v681
        %v724 = vpack.c.b16 %v686, %v684
        %v725 = vpack.c.b16 %v687, %v685
        %v726 = vpack.c.b16 %v690, %v688
        %v727 = vpack.c.b16 %v691, %v689
        %v728 = vpack.c.b16 %v694, %v692
        %v729 = vpack.c.b16 %v695, %v693
        %v730 = vpack.c.b16 %v698, %v696
        %v731 = vpack.c.b16 %v699, %v697
        %764 = vmatpush.bf16.msra.mxu0 %v714
        %765 = vmatpush.bf16.msra.mxu0 %v712
        %766 = vmatpush.bf16.msra.mxu0 %v710
        %767 = vmatpush.bf16.msra.mxu0 %v708
        %768 = vmatpush.bf16.msra.mxu0 %v706
        %769 = vmatpush.bf16.msra.mxu0 %v704
        %770 = vmatpush.bf16.msra.mxu0 %v702
        %771 = vmatpush.bf16.msra.mxu0 %v700
        %772 = vmatmul.bf16.gmra.mxu0 %v427
        %v773 = vpop.f32.mrf.mxu0
        %v774 = vadd.f32 0.0, %v773
        %v775 = vpop.f32.mrf.mxu0
        %v776 = vadd.f32 0.0, %v775
        %777 = vmatmul.bf16.gmra.mxu0 %v447
        %v778 = vpop.f32.mrf.mxu0
        %v779 = vadd.f32 0.0, %v778
        %v780 = vpop.f32.mrf.mxu0
        %v781 = vadd.f32 0.0, %v780
        %782 = vmatmul.bf16.gmra.mxu0 %v463
        %v783 = vpop.f32.mrf.mxu0
        %v784 = vadd.f32 0.0, %v783
        %v785 = vpop.f32.mrf.mxu0
        %v786 = vadd.f32 0.0, %v785
        %787 = vmatmul.bf16.gmra.mxu0 %v479
        %v788 = vpop.f32.mrf.mxu0
        %v789 = vadd.f32 0.0, %v788
        %v790 = vpop.f32.mrf.mxu0
        %v791 = vadd.f32 0.0, %v790
        %792 = vmatmul.bf16.gmra.mxu0 %v495
        %v793 = vpop.f32.mrf.mxu0
        %v794 = vadd.f32 0.0, %v793
        %v795 = vpop.f32.mrf.mxu0
        %v796 = vadd.f32 0.0, %v795
        %797 = vmatmul.bf16.gmra.mxu0 %v511
        %v798 = vpop.f32.mrf.mxu0
        %v799 = vadd.f32 0.0, %v798
        %v800 = vpop.f32.mrf.mxu0
        %v801 = vadd.f32 0.0, %v800
        %802 = vmatmul.bf16.gmra.mxu0 %v527
        %v803 = vpop.f32.mrf.mxu0
        %v804 = vadd.f32 0.0, %v803
        %v805 = vpop.f32.mrf.mxu0
        %v806 = vadd.f32 0.0, %v805
        %807 = vmatmul.bf16.gmra.mxu0 %v543
        %v808 = vpop.f32.mrf.mxu0
        %v809 = vadd.f32 0.0, %v808
        %v810 = vpop.f32.mrf.mxu0
        %v811 = vadd.f32 0.0, %v810
        %812 = vmatmul.bf16.gmra.mxu0 %v559
        %v813 = vpop.f32.mrf.mxu0
        %v814 = vadd.f32 0.0, %v813
        %v815 = vpop.f32.mrf.mxu0
        %v816 = vadd.f32 0.0, %v815
        %817 = vmatmul.bf16.gmra.mxu0 %v575
        %v818 = vpop.f32.mrf.mxu0
        %v819 = vadd.f32 0.0, %v818
        %v820 = vpop.f32.mrf.mxu0
        %v821 = vadd.f32 0.0, %v820
        %822 = vdwg.mxu0
        %823 = vmatpush.bf16.msra.mxu0 %v730
        %824 = vmatpush.bf16.msra.mxu0 %v728
        %825 = vmatpush.bf16.msra.mxu0 %v726
        %826 = vmatpush.bf16.msra.mxu0 %v724
        %827 = vmatpush.bf16.msra.mxu0 %v722
        %828 = vmatpush.bf16.msra.mxu0 %v720
        %829 = vmatpush.bf16.msra.mxu0 %v718
        %830 = vmatpush.bf16.msra.mxu0 %v716
        %831 = vmatmul.bf16.gmra.mxu0 %v439
        %v832 = vpop.f32.mrf.mxu0
        %v833 = vadd.f32 %v774, %v832
        %v834 = vpop.f32.mrf.mxu0
        %v835 = vadd.f32 %v776, %v834
        %836 = vmatmul.bf16.gmra.mxu0 %v455
        %v837 = vpop.f32.mrf.mxu0
        %v838 = vadd.f32 %v779, %v837
        %v839 = vpop.f32.mrf.mxu0
        %v840 = vadd.f32 %v781, %v839
        %841 = vmatmul.bf16.gmra.mxu0 %v471
        %v842 = vpop.f32.mrf.mxu0
        %v843 = vadd.f32 %v784, %v842
        %v844 = vpop.f32.mrf.mxu0
        %v845 = vadd.f32 %v786, %v844
        %846 = vmatmul.bf16.gmra.mxu0 %v487
        %v847 = vpop.f32.mrf.mxu0
        %v848 = vadd.f32 %v789, %v847
        %v849 = vpop.f32.mrf.mxu0
        %v850 = vadd.f32 %v791, %v849
        %851 = vmatmul.bf16.gmra.mxu0 %v503
        %v852 = vpop.f32.mrf.mxu0
        %v853 = vadd.f32 %v794, %v852
        %v854 = vpop.f32.mrf.mxu0
        %v855 = vadd.f32 %v796, %v854
        %856 = vmatmul.bf16.gmra.mxu0 %v519
        %v857 = vpop.f32.mrf.mxu0
        %v858 = vadd.f32 %v799, %v857
        %v859 = vpop.f32.mrf.mxu0
        %v860 = vadd.f32 %v801, %v859
        %861 = vmatmul.bf16.gmra.mxu0 %v535
        %v862 = vpop.f32.mrf.mxu0
        %v863 = vadd.f32 %v804, %v862
        %v864 = vpop.f32.mrf.mxu0
        %v865 = vadd.f32 %v806, %v864
        %866 = vmatmul.bf16.gmra.mxu0 %v551
        %v867 = vpop.f32.mrf.mxu0
        %v868 = vadd.f32 %v809, %v867
        %v869 = vpop.f32.mrf.mxu0
        %v870 = vadd.f32 %v811, %v869
        %871 = vmatmul.bf16.gmra.mxu0 %v567
        %v872 = vpop.f32.mrf.mxu0
        %v873 = vadd.f32 %v814, %v872
        %v874 = vpop.f32.mrf.mxu0
        %v875 = vadd.f32 %v816, %v874
        %876 = vmatmul.bf16.gmra.mxu0 %v583
        %v877 = vpop.f32.mrf.mxu0
        %v878 = vadd.f32 %v819, %v877
        %v879 = vpop.f32.mrf.mxu0
        %v880 = vadd.f32 %v821, %v879
        %881 = vdwg.mxu0
        %882 = vmatpush.bf16.msra.mxu0 %v715
        %883 = vmatpush.bf16.msra.mxu0 %v713
        %884 = vmatpush.bf16.msra.mxu0 %v711
        %885 = vmatpush.bf16.msra.mxu0 %v709
        %886 = vmatpush.bf16.msra.mxu0 %v707
        %887 = vmatpush.bf16.msra.mxu0 %v705
        %888 = vmatpush.bf16.msra.mxu0 %v703
        %889 = vmatpush.bf16.msra.mxu0 %v701
        %890 = vmatmul.bf16.gmra.mxu0 %v427
        %v891 = vpop.f32.mrf.mxu0
        %v892 = vadd.f32 0.0, %v891
        %v893 = vpop.f32.mrf.mxu0
        %v894 = vadd.f32 0.0, %v893
        %895 = vmatmul.bf16.gmra.mxu0 %v447
        %v896 = vpop.f32.mrf.mxu0
        %v897 = vadd.f32 0.0, %v896
        %v898 = vpop.f32.mrf.mxu0
        %v899 = vadd.f32 0.0, %v898
        %900 = vmatmul.bf16.gmra.mxu0 %v463
        %v901 = vpop.f32.mrf.mxu0
        %v902 = vadd.f32 0.0, %v901
        %v903 = vpop.f32.mrf.mxu0
        %v904 = vadd.f32 0.0, %v903
        %905 = vmatmul.bf16.gmra.mxu0 %v479
        %v906 = vpop.f32.mrf.mxu0
        %v907 = vadd.f32 0.0, %v906
        %v908 = vpop.f32.mrf.mxu0
        %v909 = vadd.f32 0.0, %v908
        %910 = vmatmul.bf16.gmra.mxu0 %v495
        %v911 = vpop.f32.mrf.mxu0
        %v912 = vadd.f32 0.0, %v911
        %v913 = vpop.f32.mrf.mxu0
        %v914 = vadd.f32 0.0, %v913
        %915 = vmatmul.bf16.gmra.mxu0 %v511
        %v916 = vpop.f32.mrf.mxu0
        %v917 = vadd.f32 0.0, %v916
        %v918 = vpop.f32.mrf.mxu0
        %v919 = vadd.f32 0.0, %v918
        %920 = vmatmul.bf16.gmra.mxu0 %v527
        %v921 = vpop.f32.mrf.mxu0
        %v922 = vadd.f32 0.0, %v921
        %v923 = vpop.f32.mrf.mxu0
        %v924 = vadd.f32 0.0, %v923
        %925 = vmatmul.bf16.gmra.mxu0 %v543
        %v926 = vpop.f32.mrf.mxu0
        %v927 = vadd.f32 0.0, %v926
        %v928 = vpop.f32.mrf.mxu0
        %v929 = vadd.f32 0.0, %v928
        %930 = vmatmul.bf16.gmra.mxu0 %v559
        %v931 = vpop.f32.mrf.mxu0
        %v932 = vadd.f32 0.0, %v931
        %v933 = vpop.f32.mrf.mxu0
        %v934 = vadd.f32 0.0, %v933
        %935 = vmatmul.bf16.gmra.mxu0 %v575
        %v936 = vpop.f32.mrf.mxu0
        %v937 = vadd.f32 0.0, %v936
        %v938 = vpop.f32.mrf.mxu0
        %v939 = vadd.f32 0.0, %v938
        %940 = vdwg.mxu0
        %941 = vmatpush.bf16.msra.mxu0 %v731
        %942 = vmatpush.bf16.msra.mxu0 %v729
        %943 = vmatpush.bf16.msra.mxu0 %v727
        %944 = vmatpush.bf16.msra.mxu0 %v725
        %945 = vmatpush.bf16.msra.mxu0 %v723
        %946 = vmatpush.bf16.msra.mxu0 %v721
        %947 = vmatpush.bf16.msra.mxu0 %v719
        %948 = vmatpush.bf16.msra.mxu0 %v717
        %949 = vmatmul.bf16.gmra.mxu0 %v439
        %v950 = vpop.f32.mrf.mxu0
        %v951 = vadd.f32 %v892, %v950
        %v952 = vpop.f32.mrf.mxu0
        %v953 = vadd.f32 %v894, %v952
        %954 = vmatmul.bf16.gmra.mxu0 %v455
        %v955 = vpop.f32.mrf.mxu0
        %v956 = vadd.f32 %v897, %v955
        %v957 = vpop.f32.mrf.mxu0
        %v958 = vadd.f32 %v899, %v957
        %959 = vmatmul.bf16.gmra.mxu0 %v471
        %v960 = vpop.f32.mrf.mxu0
        %v961 = vadd.f32 %v902, %v960
        %v962 = vpop.f32.mrf.mxu0
        %v963 = vadd.f32 %v904, %v962
        %964 = vmatmul.bf16.gmra.mxu0 %v487
        %v965 = vpop.f32.mrf.mxu0
        %v966 = vadd.f32 %v907, %v965
        %v967 = vpop.f32.mrf.mxu0
        %v968 = vadd.f32 %v909, %v967
        %969 = vmatmul.bf16.gmra.mxu0 %v503
        %v970 = vpop.f32.mrf.mxu0
        %v971 = vadd.f32 %v912, %v970
        %v972 = vpop.f32.mrf.mxu0
        %v973 = vadd.f32 %v914, %v972
        %974 = vmatmul.bf16.gmra.mxu0 %v519
        %v975 = vpop.f32.mrf.mxu0
        %v976 = vadd.f32 %v917, %v975
        %v977 = vpop.f32.mrf.mxu0
        %v978 = vadd.f32 %v919, %v977
        %979 = vmatmul.bf16.gmra.mxu0 %v535
        %v980 = vpop.f32.mrf.mxu0
        %v981 = vadd.f32 %v922, %v980
        %v982 = vpop.f32.mrf.mxu0
        %v983 = vadd.f32 %v924, %v982
        %984 = vmatmul.bf16.gmra.mxu0 %v551
        %v985 = vpop.f32.mrf.mxu0
        %v986 = vadd.f32 %v927, %v985
        %v987 = vpop.f32.mrf.mxu0
        %v988 = vadd.f32 %v929, %v987
        %989 = vmatmul.bf16.gmra.mxu0 %v567
        %v990 = vpop.f32.mrf.mxu0
        %v991 = vadd.f32 %v932, %v990
        %v992 = vpop.f32.mrf.mxu0
        %v993 = vadd.f32 %v934, %v992
        %994 = vmatmul.bf16.gmra.mxu0 %v583
        %v995 = vpop.f32.mrf.mxu0
        %v996 = vadd.f32 %v937, %v995
        %v997 = vpop.f32.mrf.mxu0
        %v998 = vadd.f32 %v939, %v997
        %999 = vdwg.mxu0
        %v1052 = vunpack.c.l.b16 %v264
        %v1053 = vunpack.c.h.b16 %v264
        %v1054 = vunpack.c.l.b16 %v265
        %v1055 = vunpack.c.h.b16 %v265
        %v1056 = vunpack.c.l.b16 %v266
        %v1057 = vunpack.c.h.b16 %v266
        %v1058 = vunpack.c.l.b16 %v267
        %v1059 = vunpack.c.h.b16 %v267
        %v1060 = vunpack.c.l.b16 %v268
        %v1061 = vunpack.c.h.b16 %v268
        %v1062 = vunpack.c.l.b16 %v269
        %v1063 = vunpack.c.h.b16 %v269
        %v1064 = vunpack.c.l.b16 %v270
        %v1065 = vunpack.c.h.b16 %v270
        %v1066 = vunpack.c.l.b16 %v271
        %v1067 = vunpack.c.h.b16 %v271
        %v1068 = vunpack.c.l.b16 %v272
        %v1069 = vunpack.c.h.b16 %v272
        %v1070 = vunpack.c.l.b16 %v273
        %v1071 = vunpack.c.h.b16 %v273
        %v1072 = vunpack.c.l.b16 %v274
        %v1073 = vunpack.c.h.b16 %v274
        %v1074 = vunpack.c.l.b16 %v275
        %v1075 = vunpack.c.h.b16 %v275
        %v1076 = vunpack.c.l.b16 %v276
        %v1077 = vunpack.c.h.b16 %v276
        %v1078 = vunpack.c.l.b16 %v277
        %v1079 = vunpack.c.h.b16 %v277
        %v1080 = vunpack.c.l.b16 %v278
        %v1081 = vunpack.c.h.b16 %v278
        %v1082 = vunpack.c.l.b16 %v279
        %v1083 = vunpack.c.h.b16 %v279
        %v1084 = vunpack.c.l.b16 %v280
        %v1085 = vunpack.c.h.b16 %v280
        %v1086 = vunpack.c.l.b16 %v281
        %v1087 = vunpack.c.h.b16 %v281
        %v1088 = vunpack.c.l.b16 %v282
        %v1089 = vunpack.c.h.b16 %v282
        %v1090 = vunpack.c.l.b16 %v283
        %v1091 = vunpack.c.h.b16 %v283
        %v1092 = vunpack.c.l.b16 %v284
        %v1093 = vunpack.c.h.b16 %v284
        %v1094 = vunpack.c.l.b16 %v285
        %v1095 = vunpack.c.h.b16 %v285
        %v1096 = vunpack.c.l.b16 %v286
        %v1097 = vunpack.c.h.b16 %v286
        %v1098 = vunpack.c.l.b16 %v287
        %v1099 = vunpack.c.h.b16 %v287
        %v1100 = vunpack.c.l.b16 %v288
        %v1101 = vunpack.c.h.b16 %v288
        %v1102 = vunpack.c.l.b16 %v289
        %v1103 = vunpack.c.h.b16 %v289
        %v1104 = vunpack.c.l.b16 %v290
        %v1105 = vunpack.c.h.b16 %v290
        %v1106 = vunpack.c.l.b16 %v291
        %v1107 = vunpack.c.h.b16 %v291
        %v1108 = vunpack.c.l.b16 %v292
        %v1109 = vunpack.c.h.b16 %v292
        %v1110 = vunpack.c.l.b16 %v293
        %v1111 = vunpack.c.h.b16 %v293
        %v1112 = vunpack.c.l.b16 %v294
        %v1113 = vunpack.c.h.b16 %v294
        %v1114 = vunpack.c.l.b16 %v295
        %v1115 = vunpack.c.h.b16 %v295
        %v1116 = vpack.c.b16 %v1054, %v1052
        %v1117 = vpack.c.b16 %v1055, %v1053
        %v1118 = vpack.c.b16 %v1058, %v1056
        %v1119 = vpack.c.b16 %v1059, %v1057
        %v1120 = vpack.c.b16 %v1062, %v1060
        %v1121 = vpack.c.b16 %v1063, %v1061
        %v1122 = vpack.c.b16 %v1066, %v1064
        %v1123 = vpack.c.b16 %v1067, %v1065
        %v1124 = vpack.c.b16 %v1070, %v1068
        %v1125 = vpack.c.b16 %v1071, %v1069
        %v1126 = vpack.c.b16 %v1074, %v1072
        %v1127 = vpack.c.b16 %v1075, %v1073
        %v1128 = vpack.c.b16 %v1078, %v1076
        %v1129 = vpack.c.b16 %v1079, %v1077
        %v1130 = vpack.c.b16 %v1082, %v1080
        %v1131 = vpack.c.b16 %v1083, %v1081
        %v1132 = vpack.c.b16 %v1086, %v1084
        %v1133 = vpack.c.b16 %v1087, %v1085
        %v1134 = vpack.c.b16 %v1090, %v1088
        %v1135 = vpack.c.b16 %v1091, %v1089
        %v1136 = vpack.c.b16 %v1094, %v1092
        %v1137 = vpack.c.b16 %v1095, %v1093
        %v1138 = vpack.c.b16 %v1098, %v1096
        %v1139 = vpack.c.b16 %v1099, %v1097
        %v1140 = vpack.c.b16 %v1102, %v1100
        %v1141 = vpack.c.b16 %v1103, %v1101
        %v1142 = vpack.c.b16 %v1106, %v1104
        %v1143 = vpack.c.b16 %v1107, %v1105
        %v1144 = vpack.c.b16 %v1110, %v1108
        %v1145 = vpack.c.b16 %v1111, %v1109
        %v1146 = vpack.c.b16 %v1114, %v1112
        %v1147 = vpack.c.b16 %v1115, %v1113
        %1180 = vmatpush.bf16.msra.mxu0 %v1130
        %1181 = vmatpush.bf16.msra.mxu0 %v1128
        %1182 = vmatpush.bf16.msra.mxu0 %v1126
        %1183 = vmatpush.bf16.msra.mxu0 %v1124
        %1184 = vmatpush.bf16.msra.mxu0 %v1122
        %1185 = vmatpush.bf16.msra.mxu0 %v1120
        %1186 = vmatpush.bf16.msra.mxu0 %v1118
        %1187 = vmatpush.bf16.msra.mxu0 %v1116
        %1188 = vmatmul.bf16.gmra.mxu0 %v393
        %v1189 = vpop.f32.mrf.mxu0
        %v1190 = vadd.f32 %v833, %v1189
        %v1191 = vpop.f32.mrf.mxu0
        %v1192 = vadd.f32 %v835, %v1191
        %1193 = vmatmul.bf16.gmra.mxu0 %v395
        %v1194 = vpop.f32.mrf.mxu0
        %v1195 = vadd.f32 %v838, %v1194
        %v1196 = vpop.f32.mrf.mxu0
        %v1197 = vadd.f32 %v840, %v1196
        %1198 = vmatmul.bf16.gmra.mxu0 %v397
        %v1199 = vpop.f32.mrf.mxu0
        %v1200 = vadd.f32 %v843, %v1199
        %v1201 = vpop.f32.mrf.mxu0
        %v1202 = vadd.f32 %v845, %v1201
        %1203 = vmatmul.bf16.gmra.mxu0 %v399
        %v1204 = vpop.f32.mrf.mxu0
        %v1205 = vadd.f32 %v848, %v1204
        %v1206 = vpop.f32.mrf.mxu0
        %v1207 = vadd.f32 %v850, %v1206
        %1208 = vmatmul.bf16.gmra.mxu0 %v401
        %v1209 = vpop.f32.mrf.mxu0
        %v1210 = vadd.f32 %v853, %v1209
        %v1211 = vpop.f32.mrf.mxu0
        %v1212 = vadd.f32 %v855, %v1211
        %1213 = vmatmul.bf16.gmra.mxu0 %v403
        %v1214 = vpop.f32.mrf.mxu0
        %v1215 = vadd.f32 %v858, %v1214
        %v1216 = vpop.f32.mrf.mxu0
        %v1217 = vadd.f32 %v860, %v1216
        %1218 = vmatmul.bf16.gmra.mxu0 %v405
        %v1219 = vpop.f32.mrf.mxu0
        %v1220 = vadd.f32 %v863, %v1219
        %v1221 = vpop.f32.mrf.mxu0
        %v1222 = vadd.f32 %v865, %v1221
        %1223 = vmatmul.bf16.gmra.mxu0 %v407
        %v1224 = vpop.f32.mrf.mxu0
        %v1225 = vadd.f32 %v868, %v1224
        %v1226 = vpop.f32.mrf.mxu0
        %v1227 = vadd.f32 %v870, %v1226
        %1228 = vmatmul.bf16.gmra.mxu0 %v409
        %v1229 = vpop.f32.mrf.mxu0
        %v1230 = vadd.f32 %v873, %v1229
        %v1231 = vpop.f32.mrf.mxu0
        %v1232 = vadd.f32 %v875, %v1231
        %1233 = vmatmul.bf16.gmra.mxu0 %v411
        %v1234 = vpop.f32.mrf.mxu0
        %v1235 = vadd.f32 %v878, %v1234
        %v1236 = vpop.f32.mrf.mxu0
        %v1237 = vadd.f32 %v880, %v1236
        %1238 = vdwg.mxu0
        %1239 = vmatpush.bf16.msra.mxu0 %v1146
        %1240 = vmatpush.bf16.msra.mxu0 %v1144
        %1241 = vmatpush.bf16.msra.mxu0 %v1142
        %1242 = vmatpush.bf16.msra.mxu0 %v1140
        %1243 = vmatpush.bf16.msra.mxu0 %v1138
        %1244 = vmatpush.bf16.msra.mxu0 %v1136
        %1245 = vmatpush.bf16.msra.mxu0 %v1134
        %1246 = vmatpush.bf16.msra.mxu0 %v1132
        %1247 = vmatmul.bf16.gmra.mxu0 %v394
        %v1248 = vpop.f32.mrf.mxu0
        %v1249 = vadd.f32 %v1190, %v1248
        %v1250 = vpop.f32.mrf.mxu0
        %v1251 = vadd.f32 %v1192, %v1250
        %1252 = vmatmul.bf16.gmra.mxu0 %v396
        %v1253 = vpop.f32.mrf.mxu0
        %v1254 = vadd.f32 %v1195, %v1253
        %v1255 = vpop.f32.mrf.mxu0
        %v1256 = vadd.f32 %v1197, %v1255
        %1257 = vmatmul.bf16.gmra.mxu0 %v398
        %v1258 = vpop.f32.mrf.mxu0
        %v1259 = vadd.f32 %v1200, %v1258
        %v1260 = vpop.f32.mrf.mxu0
        %v1261 = vadd.f32 %v1202, %v1260
        %1262 = vmatmul.bf16.gmra.mxu0 %v400
        %v1263 = vpop.f32.mrf.mxu0
        %v1264 = vadd.f32 %v1205, %v1263
        %v1265 = vpop.f32.mrf.mxu0
        %v1266 = vadd.f32 %v1207, %v1265
        %1267 = vmatmul.bf16.gmra.mxu0 %v402
        %v1268 = vpop.f32.mrf.mxu0
        %v1269 = vadd.f32 %v1210, %v1268
        %v1270 = vpop.f32.mrf.mxu0
        %v1271 = vadd.f32 %v1212, %v1270
        %1272 = vmatmul.bf16.gmra.mxu0 %v404
        %v1273 = vpop.f32.mrf.mxu0
        %v1274 = vadd.f32 %v1215, %v1273
        %v1275 = vpop.f32.mrf.mxu0
        %v1276 = vadd.f32 %v1217, %v1275
        %1277 = vmatmul.bf16.gmra.mxu0 %v406
        %v1278 = vpop.f32.mrf.mxu0
        %v1279 = vadd.f32 %v1220, %v1278
        %v1280 = vpop.f32.mrf.mxu0
        %v1281 = vadd.f32 %v1222, %v1280
        %1282 = vmatmul.bf16.gmra.mxu0 %v408
        %v1283 = vpop.f32.mrf.mxu0
        %v1284 = vadd.f32 %v1225, %v1283
        %v1285 = vpop.f32.mrf.mxu0
        %v1286 = vadd.f32 %v1227, %v1285
        %1287 = vmatmul.bf16.gmra.mxu0 %v410
        %v1288 = vpop.f32.mrf.mxu0
        %v1289 = vadd.f32 %v1230, %v1288
        %v1290 = vpop.f32.mrf.mxu0
        %v1291 = vadd.f32 %v1232, %v1290
        %1292 = vmatmul.bf16.gmra.mxu0 %v412
        %v1293 = vpop.f32.mrf.mxu0
        %v1294 = vadd.f32 %v1235, %v1293
        %v1295 = vpop.f32.mrf.mxu0
        %v1296 = vadd.f32 %v1237, %v1295
        %1297 = vdwg.mxu0
        %1298 = vmatpush.bf16.msra.mxu0 %v1131
        %1299 = vmatpush.bf16.msra.mxu0 %v1129
        %1300 = vmatpush.bf16.msra.mxu0 %v1127
        %1301 = vmatpush.bf16.msra.mxu0 %v1125
        %1302 = vmatpush.bf16.msra.mxu0 %v1123
        %1303 = vmatpush.bf16.msra.mxu0 %v1121
        %1304 = vmatpush.bf16.msra.mxu0 %v1119
        %1305 = vmatpush.bf16.msra.mxu0 %v1117
        %1306 = vmatmul.bf16.gmra.mxu0 %v393
        %v1307 = vpop.f32.mrf.mxu0
        %v1308 = vadd.f32 %v951, %v1307
        %v1309 = vpop.f32.mrf.mxu0
        %v1310 = vadd.f32 %v953, %v1309
        %1311 = vmatmul.bf16.gmra.mxu0 %v395
        %v1312 = vpop.f32.mrf.mxu0
        %v1313 = vadd.f32 %v956, %v1312
        %v1314 = vpop.f32.mrf.mxu0
        %v1315 = vadd.f32 %v958, %v1314
        %1316 = vmatmul.bf16.gmra.mxu0 %v397
        %v1317 = vpop.f32.mrf.mxu0
        %v1318 = vadd.f32 %v961, %v1317
        %v1319 = vpop.f32.mrf.mxu0
        %v1320 = vadd.f32 %v963, %v1319
        %1321 = vmatmul.bf16.gmra.mxu0 %v399
        %v1322 = vpop.f32.mrf.mxu0
        %v1323 = vadd.f32 %v966, %v1322
        %v1324 = vpop.f32.mrf.mxu0
        %v1325 = vadd.f32 %v968, %v1324
        %1326 = vmatmul.bf16.gmra.mxu0 %v401
        %v1327 = vpop.f32.mrf.mxu0
        %v1328 = vadd.f32 %v971, %v1327
        %v1329 = vpop.f32.mrf.mxu0
        %v1330 = vadd.f32 %v973, %v1329
        %1331 = vmatmul.bf16.gmra.mxu0 %v403
        %v1332 = vpop.f32.mrf.mxu0
        %v1333 = vadd.f32 %v976, %v1332
        %v1334 = vpop.f32.mrf.mxu0
        %v1335 = vadd.f32 %v978, %v1334
        %1336 = vmatmul.bf16.gmra.mxu0 %v405
        %v1337 = vpop.f32.mrf.mxu0
        %v1338 = vadd.f32 %v981, %v1337
        %v1339 = vpop.f32.mrf.mxu0
        %v1340 = vadd.f32 %v983, %v1339
        %1341 = vmatmul.bf16.gmra.mxu0 %v407
        %v1342 = vpop.f32.mrf.mxu0
        %v1343 = vadd.f32 %v986, %v1342
        %v1344 = vpop.f32.mrf.mxu0
        %v1345 = vadd.f32 %v988, %v1344
        %1346 = vmatmul.bf16.gmra.mxu0 %v409
        %v1347 = vpop.f32.mrf.mxu0
        %v1348 = vadd.f32 %v991, %v1347
        %v1349 = vpop.f32.mrf.mxu0
        %v1350 = vadd.f32 %v993, %v1349
        %1351 = vmatmul.bf16.gmra.mxu0 %v411
        %v1352 = vpop.f32.mrf.mxu0
        %v1353 = vadd.f32 %v996, %v1352
        %v1354 = vpop.f32.mrf.mxu0
        %v1355 = vadd.f32 %v998, %v1354
        %1356 = vdwg.mxu0
        %1357 = vmatpush.bf16.msra.mxu0 %v1147
        %1358 = vmatpush.bf16.msra.mxu0 %v1145
        %1359 = vmatpush.bf16.msra.mxu0 %v1143
        %1360 = vmatpush.bf16.msra.mxu0 %v1141
        %1361 = vmatpush.bf16.msra.mxu0 %v1139
        %1362 = vmatpush.bf16.msra.mxu0 %v1137
        %1363 = vmatpush.bf16.msra.mxu0 %v1135
        %1364 = vmatpush.bf16.msra.mxu0 %v1133
        %1365 = vmatmul.bf16.gmra.mxu0 %v394
        %v1366 = vpop.f32.mrf.mxu0
        %v1367 = vadd.f32 %v1308, %v1366
        %v1368 = vpop.f32.mrf.mxu0
        %v1369 = vadd.f32 %v1310, %v1368
        %1370 = vmatmul.bf16.gmra.mxu0 %v396
        %v1371 = vpop.f32.mrf.mxu0
        %v1372 = vadd.f32 %v1313, %v1371
        %v1373 = vpop.f32.mrf.mxu0
        %v1374 = vadd.f32 %v1315, %v1373
        %1375 = vmatmul.bf16.gmra.mxu0 %v398
        %v1376 = vpop.f32.mrf.mxu0
        %v1377 = vadd.f32 %v1318, %v1376
        %v1378 = vpop.f32.mrf.mxu0
        %v1379 = vadd.f32 %v1320, %v1378
        %1380 = vmatmul.bf16.gmra.mxu0 %v400
        %v1381 = vpop.f32.mrf.mxu0
        %v1382 = vadd.f32 %v1323, %v1381
        %v1383 = vpop.f32.mrf.mxu0
        %v1384 = vadd.f32 %v1325, %v1383
        %1385 = vmatmul.bf16.gmra.mxu0 %v402
        %v1386 = vpop.f32.mrf.mxu0
        %v1387 = vadd.f32 %v1328, %v1386
        %v1388 = vpop.f32.mrf.mxu0
        %v1389 = vadd.f32 %v1330, %v1388
        %1390 = vmatmul.bf16.gmra.mxu0 %v404
        %v1391 = vpop.f32.mrf.mxu0
        %v1392 = vadd.f32 %v1333, %v1391
        %v1393 = vpop.f32.mrf.mxu0
        %v1394 = vadd.f32 %v1335, %v1393
        %1395 = vmatmul.bf16.gmra.mxu0 %v406
        %v1396 = vpop.f32.mrf.mxu0
        %v1397 = vadd.f32 %v1338, %v1396
        %v1398 = vpop.f32.mrf.mxu0
        %v1399 = vadd.f32 %v1340, %v1398
        %1400 = vmatmul.bf16.gmra.mxu0 %v408
        %v1401 = vpop.f32.mrf.mxu0
        %v1402 = vadd.f32 %v1343, %v1401
        %v1403 = vpop.f32.mrf.mxu0
        %v1404 = vadd.f32 %v1345, %v1403
        %1405 = vmatmul.bf16.gmra.mxu0 %v410
        %v1406 = vpop.f32.mrf.mxu0
        %v1407 = vadd.f32 %v1348, %v1406
        %v1408 = vpop.f32.mrf.mxu0
        %v1409 = vadd.f32 %v1350, %v1408
        %1410 = vmatmul.bf16.gmra.mxu0 %v412
        %v1411 = vpop.f32.mrf.mxu0
        %v1412 = vadd.f32 %v1353, %v1411
        %v1413 = vpop.f32.mrf.mxu0
        %v1414 = vadd.f32 %v1355, %v1413
        %1415 = vdwg.mxu0
        %v1416 = vld [vmem:[%s238] sm:$0xee]
        %s1417 = scalar_lea.vmem [#allocation2], 512
        %v1418 = vld [vmem:[%s1417] sm:$0xff]
        %v1419 = vld [vmem:[%s1417 + $0x8] sm:$0xff]
        %v1420 = vld [vmem:[%s1417 + $0x10] sm:$0xff]
        %v1421 = vld [vmem:[%s1417 + $0x18] sm:$0xff]
        %v1422 = vld [vmem:[%s1417 + $0x20] sm:$0xff]
        %v1423 = vld [vmem:[%s1417 + $0x28] sm:$0xff]
        %v1424 = vld [vmem:[%s1417 + $0x30] sm:$0xff]
        %v1425 = vld [vmem:[%s1417 + $0x38] sm:$0xff]
        %v1426 = vld [vmem:[%s1417 + $0x40] sm:$0xff]
        %v1427 = vld [vmem:[%s1417 + $0x48] sm:$0xff]
        %v1428 = vld [vmem:[%s1417 + $0x50] sm:$0xff]
        %v1429 = vld [vmem:[%s1417 + $0x58] sm:$0xff]
        %v1430 = vld [vmem:[%s1417 + $0x60] sm:$0xff]
        %v1431 = vld [vmem:[%s1417 + $0x68] sm:$0xff]
        %v1432 = vld [vmem:[%s1417 + $0x70] sm:$0xff]
        %v1433 = vld [vmem:[%s1417 + $0x78] sm:$0xff]
        %v1434 = vld [vmem:[%s1417 + $0x80] sm:$0xff]
        %v1435 = vld [vmem:[%s1417 + $0x88] sm:$0xff]
        %v1436 = vld [vmem:[%s1417 + $0x90] sm:$0xff]
        %v1437 = vld [vmem:[%s1417 + $0x98] sm:$0xff]
        %v1438 = vld [vmem:[%s1417 + $0xa0] sm:$0xff]
        %v1439 = vld [vmem:[%s1417 + $0xa8] sm:$0xff]
        %v1440 = vld [vmem:[%s1417 + $0xb0] sm:$0xff]
        %v1441 = vld [vmem:[%s1417 + $0xb8] sm:$0xff]
        %v1442 = vld [vmem:[%s1417 + $0xc0] sm:$0xff]
        %v1443 = vld [vmem:[%s1417 + $0xc8] sm:$0xff]
        %v1444 = vld [vmem:[%s1417 + $0xd0] sm:$0xff]
        %v1445 = vld [vmem:[%s1417 + $0xd8] sm:$0xff]
        %v1446 = vld [vmem:[%s1417 + $0xe0] sm:$0xff]
        %v1447 = vld [vmem:[%s1417 + $0xe8] sm:$0xff]
        %v1448 = vld [vmem:[%s1417 + $0xf0] sm:$0xff]
        %v1449 = vld [vmem:[%s1417 + $0xf8] sm:$0xff]
        %v1451 = vunpack.c.l.b16 %v1416
        %v1452 = vunpack.c.h.b16 %v1416
        %v1453 = vpack.c.b16 %v353, %v1451
        %v1454 = vpack.c.b16 %v354, %v1452
        %vm1455 = vcmask 1046528
        %v1456 = vrot.slane %v1453, 1
        %v1457 = vrot.slane %v395, 1
        %v1458 = vsel %vm1455, %v1456, %v1457
        %v1459 = vrot.slane %v1454, 1
        %v1460 = vrot.slane %v396, 1
        %v1461 = vsel %vm1455, %v1459, %v1460
        %v1462 = vrot.slane %v397, 1
        %v1463 = vsel %vm1455, %v1457, %v1462
        %v1464 = vrot.slane %v398, 1
        %v1465 = vsel %vm1455, %v1460, %v1464
        %v1466 = vrot.slane %v399, 1
        %v1467 = vsel %vm1455, %v1462, %v1466
        %v1468 = vrot.slane %v400, 1
        %v1469 = vsel %vm1455, %v1464, %v1468
        %v1470 = vrot.slane %v401, 1
        %v1471 = vsel %vm1455, %v1466, %v1470
        %v1472 = vrot.slane %v402, 1
        %v1473 = vsel %vm1455, %v1468, %v1472
        %v1474 = vrot.slane %v403, 1
        %v1475 = vsel %vm1455, %v1470, %v1474
        %v1476 = vrot.slane %v404, 1
        %v1477 = vsel %vm1455, %v1472, %v1476
        %v1478 = vrot.slane %v405, 1
        %v1479 = vsel %vm1455, %v1474, %v1478
        %v1480 = vrot.slane %v406, 1
        %v1481 = vsel %vm1455, %v1476, %v1480
        %v1482 = vrot.slane %v407, 1
        %v1483 = vsel %vm1455, %v1478, %v1482
        %v1484 = vrot.slane %v408, 1
        %v1485 = vsel %vm1455, %v1480, %v1484
        %v1486 = vrot.slane %v409, 1
        %v1487 = vsel %vm1455, %v1482, %v1486
        %v1488 = vrot.slane %v410, 1
        %v1489 = vsel %vm1455, %v1484, %v1488
        %v1490 = vrot.slane %v411, 1
        %v1491 = vsel %vm1455, %v1486, %v1490
        %v1492 = vrot.slane %v412, 1
        %v1493 = vsel %vm1455, %v1488, %v1492
        %v1494 = vrot.slane %v413, 1
        %v1495 = vsel %vm1455, %v1490, %v1494
        %v1496 = vrot.slane %v414, 1
        %v1497 = vsel %vm1455, %v1492, %v1496
        %v1550 = vunpack.c.l.b16 %v1418
        %v1551 = vunpack.c.h.b16 %v1418
        %v1552 = vunpack.c.l.b16 %v1419
        %v1553 = vunpack.c.h.b16 %v1419
        %v1554 = vunpack.c.l.b16 %v1420
        %v1555 = vunpack.c.h.b16 %v1420
        %v1556 = vunpack.c.l.b16 %v1421
        %v1557 = vunpack.c.h.b16 %v1421
        %v1558 = vunpack.c.l.b16 %v1422
        %v1559 = vunpack.c.h.b16 %v1422
        %v1560 = vunpack.c.l.b16 %v1423
        %v1561 = vunpack.c.h.b16 %v1423
        %v1562 = vunpack.c.l.b16 %v1424
        %v1563 = vunpack.c.h.b16 %v1424
        %v1564 = vunpack.c.l.b16 %v1425
        %v1565 = vunpack.c.h.b16 %v1425
        %v1566 = vunpack.c.l.b16 %v1426
        %v1567 = vunpack.c.h.b16 %v1426
        %v1568 = vunpack.c.l.b16 %v1427
        %v1569 = vunpack.c.h.b16 %v1427
        %v1570 = vunpack.c.l.b16 %v1428
        %v1571 = vunpack.c.h.b16 %v1428
        %v1572 = vunpack.c.l.b16 %v1429
        %v1573 = vunpack.c.h.b16 %v1429
        %v1574 = vunpack.c.l.b16 %v1430
        %v1575 = vunpack.c.h.b16 %v1430
        %v1576 = vunpack.c.l.b16 %v1431
        %v1577 = vunpack.c.h.b16 %v1431
        %v1578 = vunpack.c.l.b16 %v1432
        %v1579 = vunpack.c.h.b16 %v1432
        %v1580 = vunpack.c.l.b16 %v1433
        %v1581 = vunpack.c.h.b16 %v1433
        %v1582 = vunpack.c.l.b16 %v1434
        %v1583 = vunpack.c.h.b16 %v1434
        %v1584 = vunpack.c.l.b16 %v1435
        %v1585 = vunpack.c.h.b16 %v1435
        %v1586 = vunpack.c.l.b16 %v1436
        %v1587 = vunpack.c.h.b16 %v1436
        %v1588 = vunpack.c.l.b16 %v1437
        %v1589 = vunpack.c.h.b16 %v1437
        %v1590 = vunpack.c.l.b16 %v1438
        %v1591 = vunpack.c.h.b16 %v1438
        %v1592 = vunpack.c.l.b16 %v1439
        %v1593 = vunpack.c.h.b16 %v1439
        %v1594 = vunpack.c.l.b16 %v1440
        %v1595 = vunpack.c.h.b16 %v1440
        %v1596 = vunpack.c.l.b16 %v1441
        %v1597 = vunpack.c.h.b16 %v1441
        %v1598 = vunpack.c.l.b16 %v1442
        %v1599 = vunpack.c.h.b16 %v1442
        %v1600 = vunpack.c.l.b16 %v1443
        %v1601 = vunpack.c.h.b16 %v1443
        %v1602 = vunpack.c.l.b16 %v1444
        %v1603 = vunpack.c.h.b16 %v1444
        %v1604 = vunpack.c.l.b16 %v1445
        %v1605 = vunpack.c.h.b16 %v1445
        %v1606 = vunpack.c.l.b16 %v1446
        %v1607 = vunpack.c.h.b16 %v1446
        %v1608 = vunpack.c.l.b16 %v1447
        %v1609 = vunpack.c.h.b16 %v1447
        %v1610 = vunpack.c.l.b16 %v1448
        %v1611 = vunpack.c.h.b16 %v1448
        %v1612 = vunpack.c.l.b16 %v1449
        %v1613 = vunpack.c.h.b16 %v1449
        %v1614 = vpack.c.b16 %v1552, %v1550
        %v1615 = vpack.c.b16 %v1553, %v1551
        %v1616 = vpack.c.b16 %v1556, %v1554
        %v1617 = vpack.c.b16 %v1557, %v1555
        %v1618 = vpack.c.b16 %v1560, %v1558
        %v1619 = vpack.c.b16 %v1561, %v1559
        %v1620 = vpack.c.b16 %v1564, %v1562
        %v1621 = vpack.c.b16 %v1565, %v1563
        %v1622 = vpack.c.b16 %v1568, %v1566
        %v1623 = vpack.c.b16 %v1569, %v1567
        %v1624 = vpack.c.b16 %v1572, %v1570
        %v1625 = vpack.c.b16 %v1573, %v1571
        %v1626 = vpack.c.b16 %v1576, %v1574
        %v1627 = vpack.c.b16 %v1577, %v1575
        %v1628 = vpack.c.b16 %v1580, %v1578
        %v1629 = vpack.c.b16 %v1581, %v1579
        %v1630 = vpack.c.b16 %v1584, %v1582
        %v1631 = vpack.c.b16 %v1585, %v1583
        %v1632 = vpack.c.b16 %v1588, %v1586
        %v1633 = vpack.c.b16 %v1589, %v1587
        %v1634 = vpack.c.b16 %v1592, %v1590
        %v1635 = vpack.c.b16 %v1593, %v1591
        %v1636 = vpack.c.b16 %v1596, %v1594
        %v1637 = vpack.c.b16 %v1597, %v1595
        %v1638 = vpack.c.b16 %v1600, %v1598
        %v1639 = vpack.c.b16 %v1601, %v1599
        %v1640 = vpack.c.b16 %v1604, %v1602
        %v1641 = vpack.c.b16 %v1605, %v1603
        %v1642 = vpack.c.b16 %v1608, %v1606
        %v1643 = vpack.c.b16 %v1609, %v1607
        %v1644 = vpack.c.b16 %v1612, %v1610
        %v1645 = vpack.c.b16 %v1613, %v1611
        %1678 = vmatpush.bf16.msra.mxu0 %v1628
        %1679 = vmatpush.bf16.msra.mxu0 %v1626
        %1680 = vmatpush.bf16.msra.mxu0 %v1624
        %1681 = vmatpush.bf16.msra.mxu0 %v1622
        %1682 = vmatpush.bf16.msra.mxu0 %v1620
        %1683 = vmatpush.bf16.msra.mxu0 %v1618
        %1684 = vmatpush.bf16.msra.mxu0 %v1616
        %1685 = vmatpush.bf16.msra.mxu0 %v1614
        %1686 = vmatmul.bf16.gmra.mxu0 %v1458
        %v1687 = vpop.f32.mrf.mxu0
        %v1688 = vadd.f32 0.0, %v1687
        %v1689 = vpop.f32.mrf.mxu0
        %v1690 = vadd.f32 0.0, %v1689
        %1691 = vmatmul.bf16.gmra.mxu0 %v1463
        %v1692 = vpop.f32.mrf.mxu0
        %v1693 = vadd.f32 0.0, %v1692
        %v1694 = vpop.f32.mrf.mxu0
        %v1695 = vadd.f32 0.0, %v1694
        %1696 = vmatmul.bf16.gmra.mxu0 %v1467
        %v1697 = vpop.f32.mrf.mxu0
        %v1698 = vadd.f32 0.0, %v1697
        %v1699 = vpop.f32.mrf.mxu0
        %v1700 = vadd.f32 0.0, %v1699
        %1701 = vmatmul.bf16.gmra.mxu0 %v1471
        %v1702 = vpop.f32.mrf.mxu0
        %v1703 = vadd.f32 0.0, %v1702
        %v1704 = vpop.f32.mrf.mxu0
        %v1705 = vadd.f32 0.0, %v1704
        %1706 = vmatmul.bf16.gmra.mxu0 %v1475
        %v1707 = vpop.f32.mrf.mxu0
        %v1708 = vadd.f32 0.0, %v1707
        %v1709 = vpop.f32.mrf.mxu0
        %v1710 = vadd.f32 0.0, %v1709
        %1711 = vmatmul.bf16.gmra.mxu0 %v1479
        %v1712 = vpop.f32.mrf.mxu0
        %v1713 = vadd.f32 0.0, %v1712
        %v1714 = vpop.f32.mrf.mxu0
        %v1715 = vadd.f32 0.0, %v1714
        %1716 = vmatmul.bf16.gmra.mxu0 %v1483
        %v1717 = vpop.f32.mrf.mxu0
        %v1718 = vadd.f32 0.0, %v1717
        %v1719 = vpop.f32.mrf.mxu0
        %v1720 = vadd.f32 0.0, %v1719
        %1721 = vmatmul.bf16.gmra.mxu0 %v1487
        %v1722 = vpop.f32.mrf.mxu0
        %v1723 = vadd.f32 0.0, %v1722
        %v1724 = vpop.f32.mrf.mxu0
        %v1725 = vadd.f32 0.0, %v1724
        %1726 = vmatmul.bf16.gmra.mxu0 %v1491
        %v1727 = vpop.f32.mrf.mxu0
        %v1728 = vadd.f32 0.0, %v1727
        %v1729 = vpop.f32.mrf.mxu0
        %v1730 = vadd.f32 0.0, %v1729
        %1731 = vmatmul.bf16.gmra.mxu0 %v1495
        %v1732 = vpop.f32.mrf.mxu0
        %v1733 = vadd.f32 0.0, %v1732
        %v1734 = vpop.f32.mrf.mxu0
        %v1735 = vadd.f32 0.0, %v1734
        %1736 = vdwg.mxu0
        %1737 = vmatpush.bf16.msra.mxu0 %v1644
        %1738 = vmatpush.bf16.msra.mxu0 %v1642
        %1739 = vmatpush.bf16.msra.mxu0 %v1640
        %1740 = vmatpush.bf16.msra.mxu0 %v1638
        %1741 = vmatpush.bf16.msra.mxu0 %v1636
        %1742 = vmatpush.bf16.msra.mxu0 %v1634
        %1743 = vmatpush.bf16.msra.mxu0 %v1632
        %1744 = vmatpush.bf16.msra.mxu0 %v1630
        %1745 = vmatmul.bf16.gmra.mxu0 %v1461
        %v1746 = vpop.f32.mrf.mxu0
        %v1747 = vadd.f32 %v1688, %v1746
        %v1748 = vpop.f32.mrf.mxu0
        %v1749 = vadd.f32 %v1690, %v1748
        %1750 = vmatmul.bf16.gmra.mxu0 %v1465
        %v1751 = vpop.f32.mrf.mxu0
        %v1752 = vadd.f32 %v1693, %v1751
        %v1753 = vpop.f32.mrf.mxu0
        %v1754 = vadd.f32 %v1695, %v1753
        %1755 = vmatmul.bf16.gmra.mxu0 %v1469
        %v1756 = vpop.f32.mrf.mxu0
        %v1757 = vadd.f32 %v1698, %v1756
        %v1758 = vpop.f32.mrf.mxu0
        %v1759 = vadd.f32 %v1700, %v1758
        %1760 = vmatmul.bf16.gmra.mxu0 %v1473
        %v1761 = vpop.f32.mrf.mxu0
        %v1762 = vadd.f32 %v1703, %v1761
        %v1763 = vpop.f32.mrf.mxu0
        %v1764 = vadd.f32 %v1705, %v1763
        %1765 = vmatmul.bf16.gmra.mxu0 %v1477
        %v1766 = vpop.f32.mrf.mxu0
        %v1767 = vadd.f32 %v1708, %v1766
        %v1768 = vpop.f32.mrf.mxu0
        %v1769 = vadd.f32 %v1710, %v1768
        %1770 = vmatmul.bf16.gmra.mxu0 %v1481
        %v1771 = vpop.f32.mrf.mxu0
        %v1772 = vadd.f32 %v1713, %v1771
        %v1773 = vpop.f32.mrf.mxu0
        %v1774 = vadd.f32 %v1715, %v1773
        %1775 = vmatmul.bf16.gmra.mxu0 %v1485
        %v1776 = vpop.f32.mrf.mxu0
        %v1777 = vadd.f32 %v1718, %v1776
        %v1778 = vpop.f32.mrf.mxu0
        %v1779 = vadd.f32 %v1720, %v1778
        %1780 = vmatmul.bf16.gmra.mxu0 %v1489
        %v1781 = vpop.f32.mrf.mxu0
        %v1782 = vadd.f32 %v1723, %v1781
        %v1783 = vpop.f32.mrf.mxu0
        %v1784 = vadd.f32 %v1725, %v1783
        %1785 = vmatmul.bf16.gmra.mxu0 %v1493
        %v1786 = vpop.f32.mrf.mxu0
        %v1787 = vadd.f32 %v1728, %v1786
        %v1788 = vpop.f32.mrf.mxu0
        %v1789 = vadd.f32 %v1730, %v1788
        %1790 = vmatmul.bf16.gmra.mxu0 %v1497
        %v1791 = vpop.f32.mrf.mxu0
        %v1792 = vadd.f32 %v1733, %v1791
        %v1793 = vpop.f32.mrf.mxu0
        %v1794 = vadd.f32 %v1735, %v1793
        %1795 = vdwg.mxu0
        %1796 = vmatpush.bf16.msra.mxu0 %v1629
        %1797 = vmatpush.bf16.msra.mxu0 %v1627
        %1798 = vmatpush.bf16.msra.mxu0 %v1625
        %1799 = vmatpush.bf16.msra.mxu0 %v1623
        %1800 = vmatpush.bf16.msra.mxu0 %v1621
        %1801 = vmatpush.bf16.msra.mxu0 %v1619
        %1802 = vmatpush.bf16.msra.mxu0 %v1617
        %1803 = vmatpush.bf16.msra.mxu0 %v1615
        %1804 = vmatmul.bf16.gmra.mxu0 %v1458
        %v1805 = vpop.f32.mrf.mxu0
        %v1806 = vadd.f32 0.0, %v1805
        %v1807 = vpop.f32.mrf.mxu0
        %v1808 = vadd.f32 0.0, %v1807
        %1809 = vmatmul.bf16.gmra.mxu0 %v1463
        %v1810 = vpop.f32.mrf.mxu0
        %v1811 = vadd.f32 0.0, %v1810
        %v1812 = vpop.f32.mrf.mxu0
        %v1813 = vadd.f32 0.0, %v1812
        %1814 = vmatmul.bf16.gmra.mxu0 %v1467
        %v1815 = vpop.f32.mrf.mxu0
        %v1816 = vadd.f32 0.0, %v1815
        %v1817 = vpop.f32.mrf.mxu0
        %v1818 = vadd.f32 0.0, %v1817
        %1819 = vmatmul.bf16.gmra.mxu0 %v1471
        %v1820 = vpop.f32.mrf.mxu0
        %v1821 = vadd.f32 0.0, %v1820
        %v1822 = vpop.f32.mrf.mxu0
        %v1823 = vadd.f32 0.0, %v1822
        %1824 = vmatmul.bf16.gmra.mxu0 %v1475
        %v1825 = vpop.f32.mrf.mxu0
        %v1826 = vadd.f32 0.0, %v1825
        %v1827 = vpop.f32.mrf.mxu0
        %v1828 = vadd.f32 0.0, %v1827
        %1829 = vmatmul.bf16.gmra.mxu0 %v1479
        %v1830 = vpop.f32.mrf.mxu0
        %v1831 = vadd.f32 0.0, %v1830
        %v1832 = vpop.f32.mrf.mxu0
        %v1833 = vadd.f32 0.0, %v1832
        %1834 = vmatmul.bf16.gmra.mxu0 %v1483
        %v1835 = vpop.f32.mrf.mxu0
        %v1836 = vadd.f32 0.0, %v1835
        %v1837 = vpop.f32.mrf.mxu0
        %v1838 = vadd.f32 0.0, %v1837
        %1839 = vmatmul.bf16.gmra.mxu0 %v1487
        %v1840 = vpop.f32.mrf.mxu0
        %v1841 = vadd.f32 0.0, %v1840
        %v1842 = vpop.f32.mrf.mxu0
        %v1843 = vadd.f32 0.0, %v1842
        %1844 = vmatmul.bf16.gmra.mxu0 %v1491
        %v1845 = vpop.f32.mrf.mxu0
        %v1846 = vadd.f32 0.0, %v1845
        %v1847 = vpop.f32.mrf.mxu0
        %v1848 = vadd.f32 0.0, %v1847
        %1849 = vmatmul.bf16.gmra.mxu0 %v1495
        %v1850 = vpop.f32.mrf.mxu0
        %v1851 = vadd.f32 0.0, %v1850
        %v1852 = vpop.f32.mrf.mxu0
        %v1853 = vadd.f32 0.0, %v1852
        %1854 = vdwg.mxu0
        %1855 = vmatpush.bf16.msra.mxu0 %v1645
        %1856 = vmatpush.bf16.msra.mxu0 %v1643
        %1857 = vmatpush.bf16.msra.mxu0 %v1641
        %1858 = vmatpush.bf16.msra.mxu0 %v1639
        %1859 = vmatpush.bf16.msra.mxu0 %v1637
        %1860 = vmatpush.bf16.msra.mxu0 %v1635
        %1861 = vmatpush.bf16.msra.mxu0 %v1633
        %1862 = vmatpush.bf16.msra.mxu0 %v1631
        %1863 = vmatmul.bf16.gmra.mxu0 %v1461
        %v1864 = vpop.f32.mrf.mxu0
        %v1865 = vadd.f32 %v1806, %v1864
        %v1866 = vpop.f32.mrf.mxu0
        %v1867 = vadd.f32 %v1808, %v1866
        %1868 = vmatmul.bf16.gmra.mxu0 %v1465
        %v1869 = vpop.f32.mrf.mxu0
        %v1870 = vadd.f32 %v1811, %v1869
        %v1871 = vpop.f32.mrf.mxu0
        %v1872 = vadd.f32 %v1813, %v1871
        %1873 = vmatmul.bf16.gmra.mxu0 %v1469
        %v1874 = vpop.f32.mrf.mxu0
        %v1875 = vadd.f32 %v1816, %v1874
        %v1876 = vpop.f32.mrf.mxu0
        %v1877 = vadd.f32 %v1818, %v1876
        %1878 = vmatmul.bf16.gmra.mxu0 %v1473
        %v1879 = vpop.f32.mrf.mxu0
        %v1880 = vadd.f32 %v1821, %v1879
        %v1881 = vpop.f32.mrf.mxu0
        %v1882 = vadd.f32 %v1823, %v1881
        %1883 = vmatmul.bf16.gmra.mxu0 %v1477
        %v1884 = vpop.f32.mrf.mxu0
        %v1885 = vadd.f32 %v1826, %v1884
        %v1886 = vpop.f32.mrf.mxu0
        %v1887 = vadd.f32 %v1828, %v1886
        %1888 = vmatmul.bf16.gmra.mxu0 %v1481
        %v1889 = vpop.f32.mrf.mxu0
        %v1890 = vadd.f32 %v1831, %v1889
        %v1891 = vpop.f32.mrf.mxu0
        %v1892 = vadd.f32 %v1833, %v1891
        %1893 = vmatmul.bf16.gmra.mxu0 %v1485
        %v1894 = vpop.f32.mrf.mxu0
        %v1895 = vadd.f32 %v1836, %v1894
        %v1896 = vpop.f32.mrf.mxu0
        %v1897 = vadd.f32 %v1838, %v1896
        %1898 = vmatmul.bf16.gmra.mxu0 %v1489
        %v1899 = vpop.f32.mrf.mxu0
        %v1900 = vadd.f32 %v1841, %v1899
        %v1901 = vpop.f32.mrf.mxu0
        %v1902 = vadd.f32 %v1843, %v1901
        %1903 = vmatmul.bf16.gmra.mxu0 %v1493
        %v1904 = vpop.f32.mrf.mxu0
        %v1905 = vadd.f32 %v1846, %v1904
        %v1906 = vpop.f32.mrf.mxu0
        %v1907 = vadd.f32 %v1848, %v1906
        %1908 = vmatmul.bf16.gmra.mxu0 %v1497
        %v1909 = vpop.f32.mrf.mxu0
        %v1910 = vadd.f32 %v1851, %v1909
        %v1911 = vpop.f32.mrf.mxu0
        %v1912 = vadd.f32 %v1853, %v1911
        %1913 = vdwg.mxu0
        %v1914 = vadd.f32 %v1249, %v1747
        %v1915 = vadd.f32 %v1367, %v1865
        %v1916 = vadd.f32 %v1251, %v1749
        %v1917 = vadd.f32 %v1369, %v1867
        %v1918 = vadd.f32 %v1254, %v1752
        %v1919 = vadd.f32 %v1372, %v1870
        %v1920 = vadd.f32 %v1256, %v1754
        %v1921 = vadd.f32 %v1374, %v1872
        %v1922 = vadd.f32 %v1259, %v1757
        %v1923 = vadd.f32 %v1377, %v1875
        %v1924 = vadd.f32 %v1261, %v1759
        %v1925 = vadd.f32 %v1379, %v1877
        %v1926 = vadd.f32 %v1264, %v1762
        %v1927 = vadd.f32 %v1382, %v1880
        %v1928 = vadd.f32 %v1266, %v1764
        %v1929 = vadd.f32 %v1384, %v1882
        %v1930 = vadd.f32 %v1269, %v1767
        %v1931 = vadd.f32 %v1387, %v1885
        %v1932 = vadd.f32 %v1271, %v1769
        %v1933 = vadd.f32 %v1389, %v1887
        %v1934 = vadd.f32 %v1274, %v1772
        %v1935 = vadd.f32 %v1392, %v1890
        %v1936 = vadd.f32 %v1276, %v1774
        %v1937 = vadd.f32 %v1394, %v1892
        %v1938 = vadd.f32 %v1279, %v1777
        %v1939 = vadd.f32 %v1397, %v1895
        %v1940 = vadd.f32 %v1281, %v1779
        %v1941 = vadd.f32 %v1399, %v1897
        %v1942 = vadd.f32 %v1284, %v1782
        %v1943 = vadd.f32 %v1402, %v1900
        %v1944 = vadd.f32 %v1286, %v1784
        %v1945 = vadd.f32 %v1404, %v1902
        %v1946 = vadd.f32 %v1289, %v1787
        %v1947 = vadd.f32 %v1407, %v1905
        %v1948 = vadd.f32 %v1291, %v1789
        %v1949 = vadd.f32 %v1409, %v1907
        %v1950 = vadd.f32 %v1294, %v1792
        %v1951 = vadd.f32 %v1412, %v1910
        %v1952 = vadd.f32 %v1296, %v1794
        %v1953 = vadd.f32 %v1414, %v1912
        %v1954 = vld [vmem:[%s238 + $0x8] sm:$0xee]
        %v1955 = vld [vmem:[%s238 + $0x10] sm:$0xff]
        %v1956 = vld [vmem:[%s238 + $0x18] sm:$0xff]
        %v1957 = vld [vmem:[%s238 + $0x20] sm:$0xff]
        %v1958 = vld [vmem:[%s238 + $0x28] sm:$0xff]
        %v1959 = vld [vmem:[%s238 + $0x30] sm:$0xff]
        %v1960 = vld [vmem:[%s238 + $0x38] sm:$0xff]
        %v1961 = vld [vmem:[%s238 + $0x40] sm:$0xff]
        %v1962 = vld [vmem:[%s238 + $0x48] sm:$0xff]
        %v1963 = vld [vmem:[%s238 + $0x50] sm:$0xff]
        %v1964 = vld [vmem:[%s238 + $0x58] sm:$0xff]
        %v1965 = vld [vmem:[%s238 + $0x60] sm:$0xff]
        %v1966 = vld [vmem:[%s238 + $0x68] sm:$0xff]
        %v1967 = vld [vmem:[%s238 + $0x70] sm:$0xff]
        %v1968 = vld [vmem:[%s238 + $0x78] sm:$0xff]
        %v1969 = vld [vmem:[%s238 + $0x80] sm:$0xff]
        %v1970 = vld [vmem:[%s238 + $0x88] sm:$0xff]
        %v1971 = vld [vmem:[%s238 + $0x90] sm:$0xff]
        %v1972 = vld [vmem:[%s238 + $0x98] sm:$0xff]
        %v1973 = vld [vmem:[%s238 + $0xa0] sm:$0xff]
        %v1974 = vld [vmem:[%s238 + $0xa8] sm:$0x11]
        %s1975 = scalar_lea.vmem [#allocation2], 768
        %v1976 = vld [vmem:[%s1975] sm:$0xff]
        %v1977 = vld [vmem:[%s1975 + $0x8] sm:$0xff]
        %v1978 = vld [vmem:[%s1975 + $0x10] sm:$0xff]
        %v1979 = vld [vmem:[%s1975 + $0x18] sm:$0xff]
        %v1980 = vld [vmem:[%s1975 + $0x20] sm:$0xff]
        %v1981 = vld [vmem:[%s1975 + $0x28] sm:$0xff]
        %v1982 = vld [vmem:[%s1975 + $0x30] sm:$0xff]
        %v1983 = vld [vmem:[%s1975 + $0x38] sm:$0xff]
        %v1984 = vld [vmem:[%s1975 + $0x40] sm:$0xff]
        %v1985 = vld [vmem:[%s1975 + $0x48] sm:$0xff]
        %v1986 = vld [vmem:[%s1975 + $0x50] sm:$0xff]
        %v1987 = vld [vmem:[%s1975 + $0x58] sm:$0xff]
        %v1988 = vld [vmem:[%s1975 + $0x60] sm:$0xff]
        %v1989 = vld [vmem:[%s1975 + $0x68] sm:$0xff]
        %v1990 = vld [vmem:[%s1975 + $0x70] sm:$0xff]
        %v1991 = vld [vmem:[%s1975 + $0x78] sm:$0xff]
        %v1992 = vld [vmem:[%s1975 + $0x80] sm:$0xff]
        %v1993 = vld [vmem:[%s1975 + $0x88] sm:$0xff]
        %v1994 = vld [vmem:[%s1975 + $0x90] sm:$0xff]
        %v1995 = vld [vmem:[%s1975 + $0x98] sm:$0xff]
        %v1996 = vld [vmem:[%s1975 + $0xa0] sm:$0xff]
        %v1997 = vld [vmem:[%s1975 + $0xa8] sm:$0xff]
        %v1998 = vld [vmem:[%s1975 + $0xb0] sm:$0xff]
        %v1999 = vld [vmem:[%s1975 + $0xb8] sm:$0xff]
        %v2000 = vld [vmem:[%s1975 + $0xc0] sm:$0xff]
        %v2001 = vld [vmem:[%s1975 + $0xc8] sm:$0xff]
        %v2002 = vld [vmem:[%s1975 + $0xd0] sm:$0xff]
        %v2003 = vld [vmem:[%s1975 + $0xd8] sm:$0xff]
        %v2004 = vld [vmem:[%s1975 + $0xe0] sm:$0xff]
        %v2005 = vld [vmem:[%s1975 + $0xe8] sm:$0xff]
        %v2006 = vld [vmem:[%s1975 + $0xf0] sm:$0xff]
        %v2007 = vld [vmem:[%s1975 + $0xf8] sm:$0xff]
        %v2029 = vunpack.c.l.b16 %v1954
        %v2030 = vunpack.c.h.b16 %v1954
        %v2031 = vunpack.c.l.b16 %v1955
        %v2032 = vunpack.c.h.b16 %v1955
        %v2033 = vunpack.c.l.b16 %v1956
        %v2034 = vunpack.c.h.b16 %v1956
        %v2035 = vunpack.c.l.b16 %v1957
        %v2036 = vunpack.c.h.b16 %v1957
        %v2037 = vunpack.c.l.b16 %v1958
        %v2038 = vunpack.c.h.b16 %v1958
        %v2039 = vunpack.c.l.b16 %v1959
        %v2040 = vunpack.c.h.b16 %v1959
        %v2041 = vunpack.c.l.b16 %v1960
        %v2042 = vunpack.c.h.b16 %v1960
        %v2043 = vunpack.c.l.b16 %v1961
        %v2044 = vunpack.c.h.b16 %v1961
        %v2045 = vunpack.c.l.b16 %v1962
        %v2046 = vunpack.c.h.b16 %v1962
        %v2047 = vunpack.c.l.b16 %v1963
        %v2048 = vunpack.c.h.b16 %v1963
        %v2049 = vunpack.c.l.b16 %v1964
        %v2050 = vunpack.c.h.b16 %v1964
        %v2051 = vunpack.c.l.b16 %v1965
        %v2052 = vunpack.c.h.b16 %v1965
        %v2053 = vunpack.c.l.b16 %v1966
        %v2054 = vunpack.c.h.b16 %v1966
        %v2055 = vunpack.c.l.b16 %v1967
        %v2056 = vunpack.c.h.b16 %v1967
        %v2057 = vunpack.c.l.b16 %v1968
        %v2058 = vunpack.c.h.b16 %v1968
        %v2059 = vunpack.c.l.b16 %v1969
        %v2060 = vunpack.c.h.b16 %v1969
        %v2061 = vunpack.c.l.b16 %v1970
        %v2062 = vunpack.c.h.b16 %v1970
        %v2063 = vunpack.c.l.b16 %v1971
        %v2064 = vunpack.c.h.b16 %v1971
        %v2065 = vunpack.c.l.b16 %v1972
        %v2066 = vunpack.c.h.b16 %v1972
        %v2067 = vunpack.c.l.b16 %v1973
        %v2068 = vunpack.c.h.b16 %v1973
        %v2069 = vunpack.c.l.b16 %v1974
        %v2070 = vunpack.c.h.b16 %v1974
        %v2071 = vpack.c.b16 %v2031, %v2029
        %v2072 = vpack.c.b16 %v2032, %v2030
        %v2073 = vpack.c.b16 %v2035, %v2033
        %v2074 = vpack.c.b16 %v2036, %v2034
        %v2075 = vpack.c.b16 %v2039, %v2037
        %v2076 = vpack.c.b16 %v2040, %v2038
        %v2077 = vpack.c.b16 %v2043, %v2041
        %v2078 = vpack.c.b16 %v2044, %v2042
        %v2079 = vpack.c.b16 %v2047, %v2045
        %v2080 = vpack.c.b16 %v2048, %v2046
        %v2081 = vpack.c.b16 %v2051, %v2049
        %v2082 = vpack.c.b16 %v2052, %v2050
        %v2083 = vpack.c.b16 %v2055, %v2053
        %v2084 = vpack.c.b16 %v2056, %v2054
        %v2085 = vpack.c.b16 %v2059, %v2057
        %v2086 = vpack.c.b16 %v2060, %v2058
        %v2087 = vpack.c.b16 %v2063, %v2061
        %v2088 = vpack.c.b16 %v2064, %v2062
        %v2089 = vpack.c.b16 %v2067, %v2065
        %v2090 = vpack.c.b16 %v2068, %v2066
        %v2091 = vpack.c.b16 %v2069, %v2069
        %v2092 = vpack.c.b16 %v2070, %v2070
        %v2093 = vrot.slane %v2071, 1
        %v2094 = vrot.slane %v2073, 1
        %v2095 = vsel %vm1455, %v2093, %v2094
        %v2096 = vrot.slane %v2072, 1
        %v2097 = vrot.slane %v2074, 1
        %v2098 = vsel %vm1455, %v2096, %v2097
        %v2099 = vrot.slane %v2075, 1
        %v2100 = vsel %vm1455, %v2094, %v2099
        %v2101 = vrot.slane %v2076, 1
        %v2102 = vsel %vm1455, %v2097, %v2101
        %v2103 = vrot.slane %v2077, 1
        %v2104 = vsel %vm1455, %v2099, %v2103
        %v2105 = vrot.slane %v2078, 1
        %v2106 = vsel %vm1455, %v2101, %v2105
        %v2107 = vrot.slane %v2079, 1
        %v2108 = vsel %vm1455, %v2103, %v2107
        %v2109 = vrot.slane %v2080, 1
        %v2110 = vsel %vm1455, %v2105, %v2109
        %v2111 = vrot.slane %v2081, 1
        %v2112 = vsel %vm1455, %v2107, %v2111
        %v2113 = vrot.slane %v2082, 1
        %v2114 = vsel %vm1455, %v2109, %v2113
        %v2115 = vrot.slane %v2083, 1
        %v2116 = vsel %vm1455, %v2111, %v2115
        %v2117 = vrot.slane %v2084, 1
        %v2118 = vsel %vm1455, %v2113, %v2117
        %v2119 = vrot.slane %v2085, 1
        %v2120 = vsel %vm1455, %v2115, %v2119
        %v2121 = vrot.slane %v2086, 1
        %v2122 = vsel %vm1455, %v2117, %v2121
        %v2123 = vrot.slane %v2087, 1
        %v2124 = vsel %vm1455, %v2119, %v2123
        %v2125 = vrot.slane %v2088, 1
        %v2126 = vsel %vm1455, %v2121, %v2125
        %v2127 = vrot.slane %v2089, 1
        %v2128 = vsel %vm1455, %v2123, %v2127
        %v2129 = vrot.slane %v2090, 1
        %v2130 = vsel %vm1455, %v2125, %v2129
        %v2131 = vrot.slane %v2091, 1
        %v2132 = vsel %vm1455, %v2127, %v2131
        %v2133 = vrot.slane %v2092, 1
        %v2134 = vsel %vm1455, %v2129, %v2133
        %v2187 = vunpack.c.l.b16 %v1976
        %v2188 = vunpack.c.h.b16 %v1976
        %v2189 = vunpack.c.l.b16 %v1977
        %v2190 = vunpack.c.h.b16 %v1977
        %v2191 = vunpack.c.l.b16 %v1978
        %v2192 = vunpack.c.h.b16 %v1978
        %v2193 = vunpack.c.l.b16 %v1979
        %v2194 = vunpack.c.h.b16 %v1979
        %v2195 = vunpack.c.l.b16 %v1980
        %v2196 = vunpack.c.h.b16 %v1980
        %v2197 = vunpack.c.l.b16 %v1981
        %v2198 = vunpack.c.h.b16 %v1981
        %v2199 = vunpack.c.l.b16 %v1982
        %v2200 = vunpack.c.h.b16 %v1982
        %v2201 = vunpack.c.l.b16 %v1983
        %v2202 = vunpack.c.h.b16 %v1983
        %v2203 = vunpack.c.l.b16 %v1984
        %v2204 = vunpack.c.h.b16 %v1984
        %v2205 = vunpack.c.l.b16 %v1985
        %v2206 = vunpack.c.h.b16 %v1985
        %v2207 = vunpack.c.l.b16 %v1986
        %v2208 = vunpack.c.h.b16 %v1986
        %v2209 = vunpack.c.l.b16 %v1987
        %v2210 = vunpack.c.h.b16 %v1987
        %v2211 = vunpack.c.l.b16 %v1988
        %v2212 = vunpack.c.h.b16 %v1988
        %v2213 = vunpack.c.l.b16 %v1989
        %v2214 = vunpack.c.h.b16 %v1989
        %v2215 = vunpack.c.l.b16 %v1990
        %v2216 = vunpack.c.h.b16 %v1990
        %v2217 = vunpack.c.l.b16 %v1991
        %v2218 = vunpack.c.h.b16 %v1991
        %v2219 = vunpack.c.l.b16 %v1992
        %v2220 = vunpack.c.h.b16 %v1992
        %v2221 = vunpack.c.l.b16 %v1993
        %v2222 = vunpack.c.h.b16 %v1993
        %v2223 = vunpack.c.l.b16 %v1994
        %v2224 = vunpack.c.h.b16 %v1994
        %v2225 = vunpack.c.l.b16 %v1995
        %v2226 = vunpack.c.h.b16 %v1995
        %v2227 = vunpack.c.l.b16 %v1996
        %v2228 = vunpack.c.h.b16 %v1996
        %v2229 = vunpack.c.l.b16 %v1997
        %v2230 = vunpack.c.h.b16 %v1997
        %v2231 = vunpack.c.l.b16 %v1998
        %v2232 = vunpack.c.h.b16 %v1998
        %v2233 = vunpack.c.l.b16 %v1999
        %v2234 = vunpack.c.h.b16 %v1999
        %v2235 = vunpack.c.l.b16 %v2000
        %v2236 = vunpack.c.h.b16 %v2000
        %v2237 = vunpack.c.l.b16 %v2001
        %v2238 = vunpack.c.h.b16 %v2001
        %v2239 = vunpack.c.l.b16 %v2002
        %v2240 = vunpack.c.h.b16 %v2002
        %v2241 = vunpack.c.l.b16 %v2003
        %v2242 = vunpack.c.h.b16 %v2003
        %v2243 = vunpack.c.l.b16 %v2004
        %v2244 = vunpack.c.h.b16 %v2004
        %v2245 = vunpack.c.l.b16 %v2005
        %v2246 = vunpack.c.h.b16 %v2005
        %v2247 = vunpack.c.l.b16 %v2006
        %v2248 = vunpack.c.h.b16 %v2006
        %v2249 = vunpack.c.l.b16 %v2007
        %v2250 = vunpack.c.h.b16 %v2007
        %v2251 = vpack.c.b16 %v2189, %v2187
        %v2252 = vpack.c.b16 %v2190, %v2188
        %v2253 = vpack.c.b16 %v2193, %v2191
        %v2254 = vpack.c.b16 %v2194, %v2192
        %v2255 = vpack.c.b16 %v2197, %v2195
        %v2256 = vpack.c.b16 %v2198, %v2196
        %v2257 = vpack.c.b16 %v2201, %v2199
        %v2258 = vpack.c.b16 %v2202, %v2200
        %v2259 = vpack.c.b16 %v2205, %v2203
        %v2260 = vpack.c.b16 %v2206, %v2204
        %v2261 = vpack.c.b16 %v2209, %v2207
        %v2262 = vpack.c.b16 %v2210, %v2208
        %v2263 = vpack.c.b16 %v2213, %v2211
        %v2264 = vpack.c.b16 %v2214, %v2212
        %v2265 = vpack.c.b16 %v2217, %v2215
        %v2266 = vpack.c.b16 %v2218, %v2216
        %v2267 = vpack.c.b16 %v2221, %v2219
        %v2268 = vpack.c.b16 %v2222, %v2220
        %v2269 = vpack.c.b16 %v2225, %v2223
        %v2270 = vpack.c.b16 %v2226, %v2224
        %v2271 = vpack.c.b16 %v2229, %v2227
        %v2272 = vpack.c.b16 %v2230, %v2228
        %v2273 = vpack.c.b16 %v2233, %v2231
        %v2274 = vpack.c.b16 %v2234, %v2232
        %v2275 = vpack.c.b16 %v2237, %v2235
        %v2276 = vpack.c.b16 %v2238, %v2236
        %v2277 = vpack.c.b16 %v2241, %v2239
        %v2278 = vpack.c.b16 %v2242, %v2240
        %v2279 = vpack.c.b16 %v2245, %v2243
        %v2280 = vpack.c.b16 %v2246, %v2244
        %v2281 = vpack.c.b16 %v2249, %v2247
        %v2282 = vpack.c.b16 %v2250, %v2248
        %2315 = vmatpush.bf16.msra.mxu0 %v2265
        %2316 = vmatpush.bf16.msra.mxu0 %v2263
        %2317 = vmatpush.bf16.msra.mxu0 %v2261
        %2318 = vmatpush.bf16.msra.mxu0 %v2259
        %2319 = vmatpush.bf16.msra.mxu0 %v2257
        %2320 = vmatpush.bf16.msra.mxu0 %v2255
        %2321 = vmatpush.bf16.msra.mxu0 %v2253
        %2322 = vmatpush.bf16.msra.mxu0 %v2251
        %2323 = vmatmul.bf16.gmra.mxu0 %v2095
        %v2324 = vpop.f32.mrf.mxu0
        %v2325 = vadd.f32 0.0, %v2324
        %v2326 = vpop.f32.mrf.mxu0
        %v2327 = vadd.f32 0.0, %v2326
        %2328 = vmatmul.bf16.gmra.mxu0 %v2100
        %v2329 = vpop.f32.mrf.mxu0
        %v2330 = vadd.f32 0.0, %v2329
        %v2331 = vpop.f32.mrf.mxu0
        %v2332 = vadd.f32 0.0, %v2331
        %2333 = vmatmul.bf16.gmra.mxu0 %v2104
        %v2334 = vpop.f32.mrf.mxu0
        %v2335 = vadd.f32 0.0, %v2334
        %v2336 = vpop.f32.mrf.mxu0
        %v2337 = vadd.f32 0.0, %v2336
        %2338 = vmatmul.bf16.gmra.mxu0 %v2108
        %v2339 = vpop.f32.mrf.mxu0
        %v2340 = vadd.f32 0.0, %v2339
        %v2341 = vpop.f32.mrf.mxu0
        %v2342 = vadd.f32 0.0, %v2341
        %2343 = vmatmul.bf16.gmra.mxu0 %v2112
        %v2344 = vpop.f32.mrf.mxu0
        %v2345 = vadd.f32 0.0, %v2344
        %v2346 = vpop.f32.mrf.mxu0
        %v2347 = vadd.f32 0.0, %v2346
        %2348 = vmatmul.bf16.gmra.mxu0 %v2116
        %v2349 = vpop.f32.mrf.mxu0
        %v2350 = vadd.f32 0.0, %v2349
        %v2351 = vpop.f32.mrf.mxu0
        %v2352 = vadd.f32 0.0, %v2351
        %2353 = vmatmul.bf16.gmra.mxu0 %v2120
        %v2354 = vpop.f32.mrf.mxu0
        %v2355 = vadd.f32 0.0, %v2354
        %v2356 = vpop.f32.mrf.mxu0
        %v2357 = vadd.f32 0.0, %v2356
        %2358 = vmatmul.bf16.gmra.mxu0 %v2124
        %v2359 = vpop.f32.mrf.mxu0
        %v2360 = vadd.f32 0.0, %v2359
        %v2361 = vpop.f32.mrf.mxu0
        %v2362 = vadd.f32 0.0, %v2361
        %2363 = vmatmul.bf16.gmra.mxu0 %v2128
        %v2364 = vpop.f32.mrf.mxu0
        %v2365 = vadd.f32 0.0, %v2364
        %v2366 = vpop.f32.mrf.mxu0
        %v2367 = vadd.f32 0.0, %v2366
        %2368 = vmatmul.bf16.gmra.mxu0 %v2132
        %v2369 = vpop.f32.mrf.mxu0
        %v2370 = vadd.f32 0.0, %v2369
        %v2371 = vpop.f32.mrf.mxu0
        %v2372 = vadd.f32 0.0, %v2371
        %2373 = vdwg.mxu0
        %2374 = vmatpush.bf16.msra.mxu0 %v2281
        %2375 = vmatpush.bf16.msra.mxu0 %v2279
        %2376 = vmatpush.bf16.msra.mxu0 %v2277
        %2377 = vmatpush.bf16.msra.mxu0 %v2275
        %2378 = vmatpush.bf16.msra.mxu0 %v2273
        %2379 = vmatpush.bf16.msra.mxu0 %v2271
        %2380 = vmatpush.bf16.msra.mxu0 %v2269
        %2381 = vmatpush.bf16.msra.mxu0 %v2267
        %2382 = vmatmul.bf16.gmra.mxu0 %v2098
        %v2383 = vpop.f32.mrf.mxu0
        %v2384 = vadd.f32 %v2325, %v2383
        %v2385 = vpop.f32.mrf.mxu0
        %v2386 = vadd.f32 %v2327, %v2385
        %2387 = vmatmul.bf16.gmra.mxu0 %v2102
        %v2388 = vpop.f32.mrf.mxu0
        %v2389 = vadd.f32 %v2330, %v2388
        %v2390 = vpop.f32.mrf.mxu0
        %v2391 = vadd.f32 %v2332, %v2390
        %2392 = vmatmul.bf16.gmra.mxu0 %v2106
        %v2393 = vpop.f32.mrf.mxu0
        %v2394 = vadd.f32 %v2335, %v2393
        %v2395 = vpop.f32.mrf.mxu0
        %v2396 = vadd.f32 %v2337, %v2395
        %2397 = vmatmul.bf16.gmra.mxu0 %v2110
        %v2398 = vpop.f32.mrf.mxu0
        %v2399 = vadd.f32 %v2340, %v2398
        %v2400 = vpop.f32.mrf.mxu0
        %v2401 = vadd.f32 %v2342, %v2400
        %2402 = vmatmul.bf16.gmra.mxu0 %v2114
        %v2403 = vpop.f32.mrf.mxu0
        %v2404 = vadd.f32 %v2345, %v2403
        %v2405 = vpop.f32.mrf.mxu0
        %v2406 = vadd.f32 %v2347, %v2405
        %2407 = vmatmul.bf16.gmra.mxu0 %v2118
        %v2408 = vpop.f32.mrf.mxu0
        %v2409 = vadd.f32 %v2350, %v2408
        %v2410 = vpop.f32.mrf.mxu0
        %v2411 = vadd.f32 %v2352, %v2410
        %2412 = vmatmul.bf16.gmra.mxu0 %v2122
        %v2413 = vpop.f32.mrf.mxu0
        %v2414 = vadd.f32 %v2355, %v2413
        %v2415 = vpop.f32.mrf.mxu0
        %v2416 = vadd.f32 %v2357, %v2415
        %2417 = vmatmul.bf16.gmra.mxu0 %v2126
        %v2418 = vpop.f32.mrf.mxu0
        %v2419 = vadd.f32 %v2360, %v2418
        %v2420 = vpop.f32.mrf.mxu0
        %v2421 = vadd.f32 %v2362, %v2420
        %2422 = vmatmul.bf16.gmra.mxu0 %v2130
        %v2423 = vpop.f32.mrf.mxu0
        %v2424 = vadd.f32 %v2365, %v2423
        %v2425 = vpop.f32.mrf.mxu0
        %v2426 = vadd.f32 %v2367, %v2425
        %2427 = vmatmul.bf16.gmra.mxu0 %v2134
        %v2428 = vpop.f32.mrf.mxu0
        %v2429 = vadd.f32 %v2370, %v2428
        %v2430 = vpop.f32.mrf.mxu0
        %v2431 = vadd.f32 %v2372, %v2430
        %2432 = vdwg.mxu0
        %2433 = vmatpush.bf16.msra.mxu0 %v2266
        %2434 = vmatpush.bf16.msra.mxu0 %v2264
        %2435 = vmatpush.bf16.msra.mxu0 %v2262
        %2436 = vmatpush.bf16.msra.mxu0 %v2260
        %2437 = vmatpush.bf16.msra.mxu0 %v2258
        %2438 = vmatpush.bf16.msra.mxu0 %v2256
        %2439 = vmatpush.bf16.msra.mxu0 %v2254
        %2440 = vmatpush.bf16.msra.mxu0 %v2252
        %2441 = vmatmul.bf16.gmra.mxu0 %v2095
        %v2442 = vpop.f32.mrf.mxu0
        %v2443 = vadd.f32 0.0, %v2442
        %v2444 = vpop.f32.mrf.mxu0
        %v2445 = vadd.f32 0.0, %v2444
        %2446 = vmatmul.bf16.gmra.mxu0 %v2100
        %v2447 = vpop.f32.mrf.mxu0
        %v2448 = vadd.f32 0.0, %v2447
        %v2449 = vpop.f32.mrf.mxu0
        %v2450 = vadd.f32 0.0, %v2449
        %2451 = vmatmul.bf16.gmra.mxu0 %v2104
        %v2452 = vpop.f32.mrf.mxu0
        %v2453 = vadd.f32 0.0, %v2452
        %v2454 = vpop.f32.mrf.mxu0
        %v2455 = vadd.f32 0.0, %v2454
        %2456 = vmatmul.bf16.gmra.mxu0 %v2108
        %v2457 = vpop.f32.mrf.mxu0
        %v2458 = vadd.f32 0.0, %v2457
        %v2459 = vpop.f32.mrf.mxu0
        %v2460 = vadd.f32 0.0, %v2459
        %2461 = vmatmul.bf16.gmra.mxu0 %v2112
        %v2462 = vpop.f32.mrf.mxu0
        %v2463 = vadd.f32 0.0, %v2462
        %v2464 = vpop.f32.mrf.mxu0
        %v2465 = vadd.f32 0.0, %v2464
        %2466 = vmatmul.bf16.gmra.mxu0 %v2116
        %v2467 = vpop.f32.mrf.mxu0
        %v2468 = vadd.f32 0.0, %v2467
        %v2469 = vpop.f32.mrf.mxu0
        %v2470 = vadd.f32 0.0, %v2469
        %2471 = vmatmul.bf16.gmra.mxu0 %v2120
        %v2472 = vpop.f32.mrf.mxu0
        %v2473 = vadd.f32 0.0, %v2472
        %v2474 = vpop.f32.mrf.mxu0
        %v2475 = vadd.f32 0.0, %v2474
        %2476 = vmatmul.bf16.gmra.mxu0 %v2124
        %v2477 = vpop.f32.mrf.mxu0
        %v2478 = vadd.f32 0.0, %v2477
        %v2479 = vpop.f32.mrf.mxu0
        %v2480 = vadd.f32 0.0, %v2479
        %2481 = vmatmul.bf16.gmra.mxu0 %v2128
        %v2482 = vpop.f32.mrf.mxu0
        %v2483 = vadd.f32 0.0, %v2482
        %v2484 = vpop.f32.mrf.mxu0
        %v2485 = vadd.f32 0.0, %v2484
        %2486 = vmatmul.bf16.gmra.mxu0 %v2132
        %v2487 = vpop.f32.mrf.mxu0
        %v2488 = vadd.f32 0.0, %v2487
        %v2489 = vpop.f32.mrf.mxu0
        %v2490 = vadd.f32 0.0, %v2489
        %2491 = vdwg.mxu0
        %2492 = vmatpush.bf16.msra.mxu0 %v2282
        %2493 = vmatpush.bf16.msra.mxu0 %v2280
        %2494 = vmatpush.bf16.msra.mxu0 %v2278
        %2495 = vmatpush.bf16.msra.mxu0 %v2276
        %2496 = vmatpush.bf16.msra.mxu0 %v2274
        %2497 = vmatpush.bf16.msra.mxu0 %v2272
        %2498 = vmatpush.bf16.msra.mxu0 %v2270
        %2499 = vmatpush.bf16.msra.mxu0 %v2268
        %2500 = vmatmul.bf16.gmra.mxu0 %v2098
        %v2501 = vpop.f32.mrf.mxu0
        %v2502 = vadd.f32 %v2443, %v2501
        %v2503 = vpop.f32.mrf.mxu0
        %v2504 = vadd.f32 %v2445, %v2503
        %2505 = vmatmul.bf16.gmra.mxu0 %v2102
        %v2506 = vpop.f32.mrf.mxu0
        %v2507 = vadd.f32 %v2448, %v2506
        %v2508 = vpop.f32.mrf.mxu0
        %v2509 = vadd.f32 %v2450, %v2508
        %2510 = vmatmul.bf16.gmra.mxu0 %v2106
        %v2511 = vpop.f32.mrf.mxu0
        %v2512 = vadd.f32 %v2453, %v2511
        %v2513 = vpop.f32.mrf.mxu0
        %v2514 = vadd.f32 %v2455, %v2513
        %2515 = vmatmul.bf16.gmra.mxu0 %v2110
        %v2516 = vpop.f32.mrf.mxu0
        %v2517 = vadd.f32 %v2458, %v2516
        %v2518 = vpop.f32.mrf.mxu0
        %v2519 = vadd.f32 %v2460, %v2518
        %2520 = vmatmul.bf16.gmra.mxu0 %v2114
        %v2521 = vpop.f32.mrf.mxu0
        %v2522 = vadd.f32 %v2463, %v2521
        %v2523 = vpop.f32.mrf.mxu0
        %v2524 = vadd.f32 %v2465, %v2523
        %2525 = vmatmul.bf16.gmra.mxu0 %v2118
        %v2526 = vpop.f32.mrf.mxu0
        %v2527 = vadd.f32 %v2468, %v2526
        %v2528 = vpop.f32.mrf.mxu0
        %v2529 = vadd.f32 %v2470, %v2528
        %2530 = vmatmul.bf16.gmra.mxu0 %v2122
        %v2531 = vpop.f32.mrf.mxu0
        %v2532 = vadd.f32 %v2473, %v2531
        %v2533 = vpop.f32.mrf.mxu0
        %v2534 = vadd.f32 %v2475, %v2533
        %2535 = vmatmul.bf16.gmra.mxu0 %v2126
        %v2536 = vpop.f32.mrf.mxu0
        %v2537 = vadd.f32 %v2478, %v2536
        %v2538 = vpop.f32.mrf.mxu0
        %v2539 = vadd.f32 %v2480, %v2538
        %2540 = vmatmul.bf16.gmra.mxu0 %v2130
        %v2541 = vpop.f32.mrf.mxu0
        %v2542 = vadd.f32 %v2483, %v2541
        %v2543 = vpop.f32.mrf.mxu0
        %v2544 = vadd.f32 %v2485, %v2543
        %2545 = vmatmul.bf16.gmra.mxu0 %v2134
        %v2546 = vpop.f32.mrf.mxu0
        %v2547 = vadd.f32 %v2488, %v2546
        %v2548 = vpop.f32.mrf.mxu0
        %v2549 = vadd.f32 %v2490, %v2548
        %2550 = vdwg.mxu0
        %v2551 = vadd.f32 %v1914, %v2384
        %v2552 = vadd.f32 %v1915, %v2502
        %v2553 = vadd.f32 %v1916, %v2386
        %v2554 = vadd.f32 %v1917, %v2504
        %v2555 = vadd.f32 %v1918, %v2389
        %v2556 = vadd.f32 %v1919, %v2507
        %v2557 = vadd.f32 %v1920, %v2391
        %v2558 = vadd.f32 %v1921, %v2509
        %v2559 = vadd.f32 %v1922, %v2394
        %v2560 = vadd.f32 %v1923, %v2512
        %v2561 = vadd.f32 %v1924, %v2396
        %v2562 = vadd.f32 %v1925, %v2514
        %v2563 = vadd.f32 %v1926, %v2399
        %v2564 = vadd.f32 %v1927, %v2517
        %v2565 = vadd.f32 %v1928, %v2401
        %v2566 = vadd.f32 %v1929, %v2519
        %v2567 = vadd.f32 %v1930, %v2404
        %v2568 = vadd.f32 %v1931, %v2522
        %v2569 = vadd.f32 %v1932, %v2406
        %v2570 = vadd.f32 %v1933, %v2524
        %v2571 = vadd.f32 %v1934, %v2409
        %v2572 = vadd.f32 %v1935, %v2527
        %v2573 = vadd.f32 %v1936, %v2411
        %v2574 = vadd.f32 %v1937, %v2529
        %v2575 = vadd.f32 %v1938, %v2414
        %v2576 = vadd.f32 %v1939, %v2532
        %v2577 = vadd.f32 %v1940, %v2416
        %v2578 = vadd.f32 %v1941, %v2534
        %v2579 = vadd.f32 %v1942, %v2419
        %v2580 = vadd.f32 %v1943, %v2537
        %v2581 = vadd.f32 %v1944, %v2421
        %v2582 = vadd.f32 %v1945, %v2539
        %v2583 = vadd.f32 %v1946, %v2424
        %v2584 = vadd.f32 %v1947, %v2542
        %v2585 = vadd.f32 %v1948, %v2426
        %v2586 = vadd.f32 %v1949, %v2544
        %v2587 = vadd.f32 %v1950, %v2429
        %v2588 = vadd.f32 %v1951, %v2547
        %v2589 = vadd.f32 %v1952, %v2431
        %v2590 = vadd.f32 %v1953, %v2549
        %v2591 = vld [vmem:[%s238 + $0xa8] sm:$0x33]
        %s2592 = scalar_lea.vmem [#allocation2], 1024
        %v2593 = vld [vmem:[%s2592] sm:$0xff]
        %v2594 = vld [vmem:[%s2592 + $0x8] sm:$0xff]
        %v2595 = vld [vmem:[%s2592 + $0x10] sm:$0xff]
        %v2596 = vld [vmem:[%s2592 + $0x18] sm:$0xff]
        %v2597 = vld [vmem:[%s2592 + $0x20] sm:$0xff]
        %v2598 = vld [vmem:[%s2592 + $0x28] sm:$0xff]
        %v2599 = vld [vmem:[%s2592 + $0x30] sm:$0xff]
        %v2600 = vld [vmem:[%s2592 + $0x38] sm:$0xff]
        %v2601 = vld [vmem:[%s2592 + $0x40] sm:$0xff]
        %v2602 = vld [vmem:[%s2592 + $0x48] sm:$0xff]
        %v2603 = vld [vmem:[%s2592 + $0x50] sm:$0xff]
        %v2604 = vld [vmem:[%s2592 + $0x58] sm:$0xff]
        %v2605 = vld [vmem:[%s2592 + $0x60] sm:$0xff]
        %v2606 = vld [vmem:[%s2592 + $0x68] sm:$0xff]
        %v2607 = vld [vmem:[%s2592 + $0x70] sm:$0xff]
        %v2608 = vld [vmem:[%s2592 + $0x78] sm:$0xff]
        %v2609 = vld [vmem:[%s2592 + $0x80] sm:$0xff]
        %v2610 = vld [vmem:[%s2592 + $0x88] sm:$0xff]
        %v2611 = vld [vmem:[%s2592 + $0x90] sm:$0xff]
        %v2612 = vld [vmem:[%s2592 + $0x98] sm:$0xff]
        %v2613 = vld [vmem:[%s2592 + $0xa0] sm:$0xff]
        %v2614 = vld [vmem:[%s2592 + $0xa8] sm:$0xff]
        %v2615 = vld [vmem:[%s2592 + $0xb0] sm:$0xff]
        %v2616 = vld [vmem:[%s2592 + $0xb8] sm:$0xff]
        %v2617 = vld [vmem:[%s2592 + $0xc0] sm:$0xff]
        %v2618 = vld [vmem:[%s2592 + $0xc8] sm:$0xff]
        %v2619 = vld [vmem:[%s2592 + $0xd0] sm:$0xff]
        %v2620 = vld [vmem:[%s2592 + $0xd8] sm:$0xff]
        %v2621 = vld [vmem:[%s2592 + $0xe0] sm:$0xff]
        %v2622 = vld [vmem:[%s2592 + $0xe8] sm:$0xff]
        %v2623 = vld [vmem:[%s2592 + $0xf0] sm:$0xff]
        %v2624 = vld [vmem:[%s2592 + $0xf8] sm:$0xff]
        %v2626 = vunpack.c.l.b16 %v2591
        %v2627 = vunpack.c.h.b16 %v2591
        %v2628 = vpack.c.b16 %v2626, %v2626
        %v2629 = vpack.c.b16 %v2627, %v2627
        %vm2630 = vsmask.f32 6400
        %v2632 = vshrl.u32 %v2071, 16
        %v2634 = vrot.slane %v2632, 1
        %v2635 = vshll.u32 %v2071, 16
        %v2637 = vrot.slane %v2635, 2
        %v2638 = vor.u32 %v2634, %v2637
        %v2640 = vshrl.u32 %v2073, 16
        %v2642 = vrot.slane %v2640, 1
        %v2643 = vshll.u32 %v2073, 16
        %v2645 = vrot.slane %v2643, 2
        %v2646 = vor.u32 %v2642, %v2645
        %v2647 = vsel %vm2630, %v2638, %v2646
        %v2649 = vshrl.u32 %v2072, 16
        %v2651 = vrot.slane %v2649, 1
        %v2652 = vshll.u32 %v2072, 16
        %v2654 = vrot.slane %v2652, 2
        %v2655 = vor.u32 %v2651, %v2654
        %v2657 = vshrl.u32 %v2074, 16
        %v2659 = vrot.slane %v2657, 1
        %v2660 = vshll.u32 %v2074, 16
        %v2662 = vrot.slane %v2660, 2
        %v2663 = vor.u32 %v2659, %v2662
        %v2664 = vsel %vm2630, %v2655, %v2663
        %v2666 = vshrl.u32 %v2075, 16
        %v2668 = vrot.slane %v2666, 1
        %v2669 = vshll.u32 %v2075, 16
        %v2671 = vrot.slane %v2669, 2
        %v2672 = vor.u32 %v2668, %v2671
        %v2673 = vsel %vm2630, %v2646, %v2672
        %v2675 = vshrl.u32 %v2076, 16
        %v2677 = vrot.slane %v2675, 1
        %v2678 = vshll.u32 %v2076, 16
        %v2680 = vrot.slane %v2678, 2
        %v2681 = vor.u32 %v2677, %v2680
        %v2682 = vsel %vm2630, %v2663, %v2681
        %v2684 = vshrl.u32 %v2077, 16
        %v2686 = vrot.slane %v2684, 1
        %v2687 = vshll.u32 %v2077, 16
        %v2689 = vrot.slane %v2687, 2
        %v2690 = vor.u32 %v2686, %v2689
        %v2691 = vsel %vm2630, %v2672, %v2690
        %v2693 = vshrl.u32 %v2078, 16
        %v2695 = vrot.slane %v2693, 1
        %v2696 = vshll.u32 %v2078, 16
        %v2698 = vrot.slane %v2696, 2
        %v2699 = vor.u32 %v2695, %v2698
        %v2700 = vsel %vm2630, %v2681, %v2699
        %v2702 = vshrl.u32 %v2079, 16
        %v2704 = vrot.slane %v2702, 1
        %v2705 = vshll.u32 %v2079, 16
        %v2707 = vrot.slane %v2705, 2
        %v2708 = vor.u32 %v2704, %v2707
        %v2709 = vsel %vm2630, %v2690, %v2708
        %v2711 = vshrl.u32 %v2080, 16
        %v2713 = vrot.slane %v2711, 1
        %v2714 = vshll.u32 %v2080, 16
        %v2716 = vrot.slane %v2714, 2
        %v2717 = vor.u32 %v2713, %v2716
        %v2718 = vsel %vm2630, %v2699, %v2717
        %v2720 = vshrl.u32 %v2081, 16
        %v2722 = vrot.slane %v2720, 1
        %v2723 = vshll.u32 %v2081, 16
        %v2725 = vrot.slane %v2723, 2
        %v2726 = vor.u32 %v2722, %v2725
        %v2727 = vsel %vm2630, %v2708, %v2726
        %v2729 = vshrl.u32 %v2082, 16
        %v2731 = vrot.slane %v2729, 1
        %v2732 = vshll.u32 %v2082, 16
        %v2734 = vrot.slane %v2732, 2
        %v2735 = vor.u32 %v2731, %v2734
        %v2736 = vsel %vm2630, %v2717, %v2735
        %v2738 = vshrl.u32 %v2083, 16
        %v2740 = vrot.slane %v2738, 1
        %v2741 = vshll.u32 %v2083, 16
        %v2743 = vrot.slane %v2741, 2
        %v2744 = vor.u32 %v2740, %v2743
        %v2745 = vsel %vm2630, %v2726, %v2744
        %v2747 = vshrl.u32 %v2084, 16
        %v2749 = vrot.slane %v2747, 1
        %v2750 = vshll.u32 %v2084, 16
        %v2752 = vrot.slane %v2750, 2
        %v2753 = vor.u32 %v2749, %v2752
        %v2754 = vsel %vm2630, %v2735, %v2753
        %v2756 = vshrl.u32 %v2085, 16
        %v2758 = vrot.slane %v2756, 1
        %v2759 = vshll.u32 %v2085, 16
        %v2761 = vrot.slane %v2759, 2
        %v2762 = vor.u32 %v2758, %v2761
        %v2763 = vsel %vm2630, %v2744, %v2762
        %v2765 = vshrl.u32 %v2086, 16
        %v2767 = vrot.slane %v2765, 1
        %v2768 = vshll.u32 %v2086, 16
        %v2770 = vrot.slane %v2768, 2
        %v2771 = vor.u32 %v2767, %v2770
        %v2772 = vsel %vm2630, %v2753, %v2771
        %v2774 = vshrl.u32 %v2087, 16
        %v2776 = vrot.slane %v2774, 1
        %v2777 = vshll.u32 %v2087, 16
        %v2779 = vrot.slane %v2777, 2
        %v2780 = vor.u32 %v2776, %v2779
        %v2781 = vsel %vm2630, %v2762, %v2780
        %v2783 = vshrl.u32 %v2088, 16
        %v2785 = vrot.slane %v2783, 1
        %v2786 = vshll.u32 %v2088, 16
        %v2788 = vrot.slane %v2786, 2
        %v2789 = vor.u32 %v2785, %v2788
        %v2790 = vsel %vm2630, %v2771, %v2789
        %v2792 = vshrl.u32 %v2089, 16
        %v2794 = vrot.slane %v2792, 1
        %v2795 = vshll.u32 %v2089, 16
        %v2797 = vrot.slane %v2795, 2
        %v2798 = vor.u32 %v2794, %v2797
        %v2799 = vsel %vm2630, %v2780, %v2798
        %v2801 = vshrl.u32 %v2090, 16
        %v2803 = vrot.slane %v2801, 1
        %v2804 = vshll.u32 %v2090, 16
        %v2806 = vrot.slane %v2804, 2
        %v2807 = vor.u32 %v2803, %v2806
        %v2808 = vsel %vm2630, %v2789, %v2807
        %v2810 = vshrl.u32 %v2628, 16
        %v2812 = vrot.slane %v2810, 1
        %v2813 = vshll.u32 %v2628, 16
        %v2815 = vrot.slane %v2813, 2
        %v2816 = vor.u32 %v2812, %v2815
        %v2817 = vsel %vm2630, %v2798, %v2816
        %v2819 = vshrl.u32 %v2629, 16
        %v2821 = vrot.slane %v2819, 1
        %v2822 = vshll.u32 %v2629, 16
        %v2824 = vrot.slane %v2822, 2
        %v2825 = vor.u32 %v2821, %v2824
        %v2826 = vsel %vm2630, %v2807, %v2825
        %v2879 = vunpack.c.l.b16 %v2593
        %v2880 = vunpack.c.h.b16 %v2593
        %v2881 = vunpack.c.l.b16 %v2594
        %v2882 = vunpack.c.h.b16 %v2594
        %v2883 = vunpack.c.l.b16 %v2595
        %v2884 = vunpack.c.h.b16 %v2595
        %v2885 = vunpack.c.l.b16 %v2596
        %v2886 = vunpack.c.h.b16 %v2596
        %v2887 = vunpack.c.l.b16 %v2597
        %v2888 = vunpack.c.h.b16 %v2597
        %v2889 = vunpack.c.l.b16 %v2598
        %v2890 = vunpack.c.h.b16 %v2598
        %v2891 = vunpack.c.l.b16 %v2599
        %v2892 = vunpack.c.h.b16 %v2599
        %v2893 = vunpack.c.l.b16 %v2600
        %v2894 = vunpack.c.h.b16 %v2600
        %v2895 = vunpack.c.l.b16 %v2601
        %v2896 = vunpack.c.h.b16 %v2601
        %v2897 = vunpack.c.l.b16 %v2602
        %v2898 = vunpack.c.h.b16 %v2602
        %v2899 = vunpack.c.l.b16 %v2603
        %v2900 = vunpack.c.h.b16 %v2603
        %v2901 = vunpack.c.l.b16 %v2604
        %v2902 = vunpack.c.h.b16 %v2604
        %v2903 = vunpack.c.l.b16 %v2605
        %v2904 = vunpack.c.h.b16 %v2605
        %v2905 = vunpack.c.l.b16 %v2606
        %v2906 = vunpack.c.h.b16 %v2606
        %v2907 = vunpack.c.l.b16 %v2607
        %v2908 = vunpack.c.h.b16 %v2607
        %v2909 = vunpack.c.l.b16 %v2608
        %v2910 = vunpack.c.h.b16 %v2608
        %v2911 = vunpack.c.l.b16 %v2609
        %v2912 = vunpack.c.h.b16 %v2609
        %v2913 = vunpack.c.l.b16 %v2610
        %v2914 = vunpack.c.h.b16 %v2610
        %v2915 = vunpack.c.l.b16 %v2611
        %v2916 = vunpack.c.h.b16 %v2611
        %v2917 = vunpack.c.l.b16 %v2612
        %v2918 = vunpack.c.h.b16 %v2612
        %v2919 = vunpack.c.l.b16 %v2613
        %v2920 = vunpack.c.h.b16 %v2613
        %v2921 = vunpack.c.l.b16 %v2614
        %v2922 = vunpack.c.h.b16 %v2614
        %v2923 = vunpack.c.l.b16 %v2615
        %v2924 = vunpack.c.h.b16 %v2615
        %v2925 = vunpack.c.l.b16 %v2616
        %v2926 = vunpack.c.h.b16 %v2616
        %v2927 = vunpack.c.l.b16 %v2617
        %v2928 = vunpack.c.h.b16 %v2617
        %v2929 = vunpack.c.l.b16 %v2618
        %v2930 = vunpack.c.h.b16 %v2618
        %v2931 = vunpack.c.l.b16 %v2619
        %v2932 = vunpack.c.h.b16 %v2619
        %v2933 = vunpack.c.l.b16 %v2620
        %v2934 = vunpack.c.h.b16 %v2620
        %v2935 = vunpack.c.l.b16 %v2621
        %v2936 = vunpack.c.h.b16 %v2621
        %v2937 = vunpack.c.l.b16 %v2622
        %v2938 = vunpack.c.h.b16 %v2622
        %v2939 = vunpack.c.l.b16 %v2623
        %v2940 = vunpack.c.h.b16 %v2623
        %v2941 = vunpack.c.l.b16 %v2624
        %v2942 = vunpack.c.h.b16 %v2624
        %v2943 = vpack.c.b16 %v2881, %v2879
        %v2944 = vpack.c.b16 %v2882, %v2880
        %v2945 = vpack.c.b16 %v2885, %v2883
        %v2946 = vpack.c.b16 %v2886, %v2884
        %v2947 = vpack.c.b16 %v2889, %v2887
        %v2948 = vpack.c.b16 %v2890, %v2888
        %v2949 = vpack.c.b16 %v2893, %v2891
        %v2950 = vpack.c.b16 %v2894, %v2892
        %v2951 = vpack.c.b16 %v2897, %v2895
        %v2952 = vpack.c.b16 %v2898, %v2896
        %v2953 = vpack.c.b16 %v2901, %v2899
        %v2954 = vpack.c.b16 %v2902, %v2900
        %v2955 = vpack.c.b16 %v2905, %v2903
        %v2956 = vpack.c.b16 %v2906, %v2904
        %v2957 = vpack.c.b16 %v2909, %v2907
        %v2958 = vpack.c.b16 %v2910, %v2908
        %v2959 = vpack.c.b16 %v2913, %v2911
        %v2960 = vpack.c.b16 %v2914, %v2912
        %v2961 = vpack.c.b16 %v2917, %v2915
        %v2962 = vpack.c.b16 %v2918, %v2916
        %v2963 = vpack.c.b16 %v2921, %v2919
        %v2964 = vpack.c.b16 %v2922, %v2920
        %v2965 = vpack.c.b16 %v2925, %v2923
        %v2966 = vpack.c.b16 %v2926, %v2924
        %v2967 = vpack.c.b16 %v2929, %v2927
        %v2968 = vpack.c.b16 %v2930, %v2928
        %v2969 = vpack.c.b16 %v2933, %v2931
        %v2970 = vpack.c.b16 %v2934, %v2932
        %v2971 = vpack.c.b16 %v2937, %v2935
        %v2972 = vpack.c.b16 %v2938, %v2936
        %v2973 = vpack.c.b16 %v2941, %v2939
        %v2974 = vpack.c.b16 %v2942, %v2940
        %3007 = vmatpush.bf16.msra.mxu0 %v2957
        %3008 = vmatpush.bf16.msra.mxu0 %v2955
        %3009 = vmatpush.bf16.msra.mxu0 %v2953
        %3010 = vmatpush.bf16.msra.mxu0 %v2951
        %3011 = vmatpush.bf16.msra.mxu0 %v2949
        %3012 = vmatpush.bf16.msra.mxu0 %v2947
        %3013 = vmatpush.bf16.msra.mxu0 %v2945
        %3014 = vmatpush.bf16.msra.mxu0 %v2943
        %3015 = vmatmul.bf16.gmra.mxu0 %v2647
        %v3016 = vpop.f32.mrf.mxu0
        %v3017 = vadd.f32 0.0, %v3016
        %v3018 = vpop.f32.mrf.mxu0
        %v3019 = vadd.f32 0.0, %v3018
        %3020 = vmatmul.bf16.gmra.mxu0 %v2673
        %v3021 = vpop.f32.mrf.mxu0
        %v3022 = vadd.f32 0.0, %v3021
        %v3023 = vpop.f32.mrf.mxu0
        %v3024 = vadd.f32 0.0, %v3023
        %3025 = vmatmul.bf16.gmra.mxu0 %v2691
        %v3026 = vpop.f32.mrf.mxu0
        %v3027 = vadd.f32 0.0, %v3026
        %v3028 = vpop.f32.mrf.mxu0
        %v3029 = vadd.f32 0.0, %v3028
        %3030 = vmatmul.bf16.gmra.mxu0 %v2709
        %v3031 = vpop.f32.mrf.mxu0
        %v3032 = vadd.f32 0.0, %v3031
        %v3033 = vpop.f32.mrf.mxu0
        %v3034 = vadd.f32 0.0, %v3033
        %3035 = vmatmul.bf16.gmra.mxu0 %v2727
        %v3036 = vpop.f32.mrf.mxu0
        %v3037 = vadd.f32 0.0, %v3036
        %v3038 = vpop.f32.mrf.mxu0
        %v3039 = vadd.f32 0.0, %v3038
        %3040 = vmatmul.bf16.gmra.mxu0 %v2745
        %v3041 = vpop.f32.mrf.mxu0
        %v3042 = vadd.f32 0.0, %v3041
        %v3043 = vpop.f32.mrf.mxu0
        %v3044 = vadd.f32 0.0, %v3043
        %3045 = vmatmul.bf16.gmra.mxu0 %v2763
        %v3046 = vpop.f32.mrf.mxu0
        %v3047 = vadd.f32 0.0, %v3046
        %v3048 = vpop.f32.mrf.mxu0
        %v3049 = vadd.f32 0.0, %v3048
        %3050 = vmatmul.bf16.gmra.mxu0 %v2781
        %v3051 = vpop.f32.mrf.mxu0
        %v3052 = vadd.f32 0.0, %v3051
        %v3053 = vpop.f32.mrf.mxu0
        %v3054 = vadd.f32 0.0, %v3053
        %3055 = vmatmul.bf16.gmra.mxu0 %v2799
        %v3056 = vpop.f32.mrf.mxu0
        %v3057 = vadd.f32 0.0, %v3056
        %v3058 = vpop.f32.mrf.mxu0
        %v3059 = vadd.f32 0.0, %v3058
        %3060 = vmatmul.bf16.gmra.mxu0 %v2817
        %v3061 = vpop.f32.mrf.mxu0
        %v3062 = vadd.f32 0.0, %v3061
        %v3063 = vpop.f32.mrf.mxu0
        %v3064 = vadd.f32 0.0, %v3063
        %3065 = vdwg.mxu0
        %3066 = vmatpush.bf16.msra.mxu0 %v2973
        %3067 = vmatpush.bf16.msra.mxu0 %v2971
        %3068 = vmatpush.bf16.msra.mxu0 %v2969
        %3069 = vmatpush.bf16.msra.mxu0 %v2967
        %3070 = vmatpush.bf16.msra.mxu0 %v2965
        %3071 = vmatpush.bf16.msra.mxu0 %v2963
        %3072 = vmatpush.bf16.msra.mxu0 %v2961
        %3073 = vmatpush.bf16.msra.mxu0 %v2959
        %3074 = vmatmul.bf16.gmra.mxu0 %v2664
        %v3075 = vpop.f32.mrf.mxu0
        %v3076 = vadd.f32 %v3017, %v3075
        %v3077 = vpop.f32.mrf.mxu0
        %v3078 = vadd.f32 %v3019, %v3077
        %3079 = vmatmul.bf16.gmra.mxu0 %v2682
        %v3080 = vpop.f32.mrf.mxu0
        %v3081 = vadd.f32 %v3022, %v3080
        %v3082 = vpop.f32.mrf.mxu0
        %v3083 = vadd.f32 %v3024, %v3082
        %3084 = vmatmul.bf16.gmra.mxu0 %v2700
        %v3085 = vpop.f32.mrf.mxu0
        %v3086 = vadd.f32 %v3027, %v3085
        %v3087 = vpop.f32.mrf.mxu0
        %v3088 = vadd.f32 %v3029, %v3087
        %3089 = vmatmul.bf16.gmra.mxu0 %v2718
        %v3090 = vpop.f32.mrf.mxu0
        %v3091 = vadd.f32 %v3032, %v3090
        %v3092 = vpop.f32.mrf.mxu0
        %v3093 = vadd.f32 %v3034, %v3092
        %3094 = vmatmul.bf16.gmra.mxu0 %v2736
        %v3095 = vpop.f32.mrf.mxu0
        %v3096 = vadd.f32 %v3037, %v3095
        %v3097 = vpop.f32.mrf.mxu0
        %v3098 = vadd.f32 %v3039, %v3097
        %3099 = vmatmul.bf16.gmra.mxu0 %v2754
        %v3100 = vpop.f32.mrf.mxu0
        %v3101 = vadd.f32 %v3042, %v3100
        %v3102 = vpop.f32.mrf.mxu0
        %v3103 = vadd.f32 %v3044, %v3102
        %3104 = vmatmul.bf16.gmra.mxu0 %v2772
        %v3105 = vpop.f32.mrf.mxu0
        %v3106 = vadd.f32 %v3047, %v3105
        %v3107 = vpop.f32.mrf.mxu0
        %v3108 = vadd.f32 %v3049, %v3107
        %3109 = vmatmul.bf16.gmra.mxu0 %v2790
        %v3110 = vpop.f32.mrf.mxu0
        %v3111 = vadd.f32 %v3052, %v3110
        %v3112 = vpop.f32.mrf.mxu0
        %v3113 = vadd.f32 %v3054, %v3112
        %3114 = vmatmul.bf16.gmra.mxu0 %v2808
        %v3115 = vpop.f32.mrf.mxu0
        %v3116 = vadd.f32 %v3057, %v3115
        %v3117 = vpop.f32.mrf.mxu0
        %v3118 = vadd.f32 %v3059, %v3117
        %3119 = vmatmul.bf16.gmra.mxu0 %v2826
        %v3120 = vpop.f32.mrf.mxu0
        %v3121 = vadd.f32 %v3062, %v3120
        %v3122 = vpop.f32.mrf.mxu0
        %v3123 = vadd.f32 %v3064, %v3122
        %3124 = vdwg.mxu0
        %3125 = vmatpush.bf16.msra.mxu0 %v2958
        %3126 = vmatpush.bf16.msra.mxu0 %v2956
        %3127 = vmatpush.bf16.msra.mxu0 %v2954
        %3128 = vmatpush.bf16.msra.mxu0 %v2952
        %3129 = vmatpush.bf16.msra.mxu0 %v2950
        %3130 = vmatpush.bf16.msra.mxu0 %v2948
        %3131 = vmatpush.bf16.msra.mxu0 %v2946
        %3132 = vmatpush.bf16.msra.mxu0 %v2944
        %3133 = vmatmul.bf16.gmra.mxu0 %v2647
        %v3134 = vpop.f32.mrf.mxu0
        %v3135 = vadd.f32 0.0, %v3134
        %v3136 = vpop.f32.mrf.mxu0
        %v3137 = vadd.f32 0.0, %v3136
        %3138 = vmatmul.bf16.gmra.mxu0 %v2673
        %v3139 = vpop.f32.mrf.mxu0
        %v3140 = vadd.f32 0.0, %v3139
        %v3141 = vpop.f32.mrf.mxu0
        %v3142 = vadd.f32 0.0, %v3141
        %3143 = vmatmul.bf16.gmra.mxu0 %v2691
        %v3144 = vpop.f32.mrf.mxu0
        %v3145 = vadd.f32 0.0, %v3144
        %v3146 = vpop.f32.mrf.mxu0
        %v3147 = vadd.f32 0.0, %v3146
        %3148 = vmatmul.bf16.gmra.mxu0 %v2709
        %v3149 = vpop.f32.mrf.mxu0
        %v3150 = vadd.f32 0.0, %v3149
        %v3151 = vpop.f32.mrf.mxu0
        %v3152 = vadd.f32 0.0, %v3151
        %3153 = vmatmul.bf16.gmra.mxu0 %v2727
        %v3154 = vpop.f32.mrf.mxu0
        %v3155 = vadd.f32 0.0, %v3154
        %v3156 = vpop.f32.mrf.mxu0
        %v3157 = vadd.f32 0.0, %v3156
        %3158 = vmatmul.bf16.gmra.mxu0 %v2745
        %v3159 = vpop.f32.mrf.mxu0
        %v3160 = vadd.f32 0.0, %v3159
        %v3161 = vpop.f32.mrf.mxu0
        %v3162 = vadd.f32 0.0, %v3161
        %3163 = vmatmul.bf16.gmra.mxu0 %v2763
        %v3164 = vpop.f32.mrf.mxu0
        %v3165 = vadd.f32 0.0, %v3164
        %v3166 = vpop.f32.mrf.mxu0
        %v3167 = vadd.f32 0.0, %v3166
        %3168 = vmatmul.bf16.gmra.mxu0 %v2781
        %v3169 = vpop.f32.mrf.mxu0
        %v3170 = vadd.f32 0.0, %v3169
        %v3171 = vpop.f32.mrf.mxu0
        %v3172 = vadd.f32 0.0, %v3171
        %3173 = vmatmul.bf16.gmra.mxu0 %v2799
        %v3174 = vpop.f32.mrf.mxu0
        %v3175 = vadd.f32 0.0, %v3174
        %v3176 = vpop.f32.mrf.mxu0
        %v3177 = vadd.f32 0.0, %v3176
        %3178 = vmatmul.bf16.gmra.mxu0 %v2817
        %v3179 = vpop.f32.mrf.mxu0
        %v3180 = vadd.f32 0.0, %v3179
        %v3181 = vpop.f32.mrf.mxu0
        %v3182 = vadd.f32 0.0, %v3181
        %3183 = vdwg.mxu0
        %3184 = vmatpush.bf16.msra.mxu0 %v2974
        %3185 = vmatpush.bf16.msra.mxu0 %v2972
        %3186 = vmatpush.bf16.msra.mxu0 %v2970
        %3187 = vmatpush.bf16.msra.mxu0 %v2968
        %3188 = vmatpush.bf16.msra.mxu0 %v2966
        %3189 = vmatpush.bf16.msra.mxu0 %v2964
        %3190 = vmatpush.bf16.msra.mxu0 %v2962
        %3191 = vmatpush.bf16.msra.mxu0 %v2960
        %3192 = vmatmul.bf16.gmra.mxu0 %v2664
        %v3193 = vpop.f32.mrf.mxu0
        %v3194 = vadd.f32 %v3135, %v3193
        %v3195 = vpop.f32.mrf.mxu0
        %v3196 = vadd.f32 %v3137, %v3195
        %3197 = vmatmul.bf16.gmra.mxu0 %v2682
        %v3198 = vpop.f32.mrf.mxu0
        %v3199 = vadd.f32 %v3140, %v3198
        %v3200 = vpop.f32.mrf.mxu0
        %v3201 = vadd.f32 %v3142, %v3200
        %3202 = vmatmul.bf16.gmra.mxu0 %v2700
        %v3203 = vpop.f32.mrf.mxu0
        %v3204 = vadd.f32 %v3145, %v3203
        %v3205 = vpop.f32.mrf.mxu0
        %v3206 = vadd.f32 %v3147, %v3205
        %3207 = vmatmul.bf16.gmra.mxu0 %v2718
        %v3208 = vpop.f32.mrf.mxu0
        %v3209 = vadd.f32 %v3150, %v3208
        %v3210 = vpop.f32.mrf.mxu0
        %v3211 = vadd.f32 %v3152, %v3210
        %3212 = vmatmul.bf16.gmra.mxu0 %v2736
        %v3213 = vpop.f32.mrf.mxu0
        %v3214 = vadd.f32 %v3155, %v3213
        %v3215 = vpop.f32.mrf.mxu0
        %v3216 = vadd.f32 %v3157, %v3215
        %3217 = vmatmul.bf16.gmra.mxu0 %v2754
        %v3218 = vpop.f32.mrf.mxu0
        %v3219 = vadd.f32 %v3160, %v3218
        %v3220 = vpop.f32.mrf.mxu0
        %v3221 = vadd.f32 %v3162, %v3220
        %3222 = vmatmul.bf16.gmra.mxu0 %v2772
        %v3223 = vpop.f32.mrf.mxu0
        %v3224 = vadd.f32 %v3165, %v3223
        %v3225 = vpop.f32.mrf.mxu0
        %v3226 = vadd.f32 %v3167, %v3225
        %3227 = vmatmul.bf16.gmra.mxu0 %v2790
        %v3228 = vpop.f32.mrf.mxu0
        %v3229 = vadd.f32 %v3170, %v3228
        %v3230 = vpop.f32.mrf.mxu0
        %v3231 = vadd.f32 %v3172, %v3230
        %3232 = vmatmul.bf16.gmra.mxu0 %v2808
        %v3233 = vpop.f32.mrf.mxu0
        %v3234 = vadd.f32 %v3175, %v3233
        %v3235 = vpop.f32.mrf.mxu0
        %v3236 = vadd.f32 %v3177, %v3235
        %3237 = vmatmul.bf16.gmra.mxu0 %v2826
        %v3238 = vpop.f32.mrf.mxu0
        %v3239 = vadd.f32 %v3180, %v3238
        %v3240 = vpop.f32.mrf.mxu0
        %v3241 = vadd.f32 %v3182, %v3240
        %3242 = vdwg.mxu0
        %v3243 = vadd.f32 %v2551, %v3076
        %v3244 = vadd.f32 %v2552, %v3194
        %v3245 = vadd.f32 %v2553, %v3078
        %v3246 = vadd.f32 %v2554, %v3196
        %v3247 = vadd.f32 %v2555, %v3081
        %v3248 = vadd.f32 %v2556, %v3199
        %v3249 = vadd.f32 %v2557, %v3083
        %v3250 = vadd.f32 %v2558, %v3201
        %v3251 = vadd.f32 %v2559, %v3086
        %v3252 = vadd.f32 %v2560, %v3204
        %v3253 = vadd.f32 %v2561, %v3088
        %v3254 = vadd.f32 %v2562, %v3206
        %v3255 = vadd.f32 %v2563, %v3091
        %v3256 = vadd.f32 %v2564, %v3209
        %v3257 = vadd.f32 %v2565, %v3093
        %v3258 = vadd.f32 %v2566, %v3211
        %v3259 = vadd.f32 %v2567, %v3096
        %v3260 = vadd.f32 %v2568, %v3214
        %v3261 = vadd.f32 %v2569, %v3098
        %v3262 = vadd.f32 %v2570, %v3216
        %v3263 = vadd.f32 %v2571, %v3101
        %v3264 = vadd.f32 %v2572, %v3219
        %v3265 = vadd.f32 %v2573, %v3103
        %v3266 = vadd.f32 %v2574, %v3221
        %v3267 = vadd.f32 %v2575, %v3106
        %v3268 = vadd.f32 %v2576, %v3224
        %v3269 = vadd.f32 %v2577, %v3108
        %v3270 = vadd.f32 %v2578, %v3226
        %v3271 = vadd.f32 %v2579, %v3111
        %v3272 = vadd.f32 %v2580, %v3229
        %v3273 = vadd.f32 %v2581, %v3113
        %v3274 = vadd.f32 %v2582, %v3231
        %v3275 = vadd.f32 %v2583, %v3116
        %v3276 = vadd.f32 %v2584, %v3234
        %v3277 = vadd.f32 %v2585, %v3118
        %v3278 = vadd.f32 %v2586, %v3236
        %v3279 = vadd.f32 %v2587, %v3121
        %v3280 = vadd.f32 %v2588, %v3239
        %v3281 = vadd.f32 %v2589, %v3123
        %v3282 = vadd.f32 %v2590, %v3241
        %v3283 = vld [vmem:[%s238 + $0x8] sm:$0xcc]
        %s3284 = scalar_lea.vmem [#allocation2], 1280
        %v3285 = vld [vmem:[%s3284] sm:$0xff]
        %v3286 = vld [vmem:[%s3284 + $0x8] sm:$0xff]
        %v3287 = vld [vmem:[%s3284 + $0x10] sm:$0xff]
        %v3288 = vld [vmem:[%s3284 + $0x18] sm:$0xff]
        %v3289 = vld [vmem:[%s3284 + $0x20] sm:$0xff]
        %v3290 = vld [vmem:[%s3284 + $0x28] sm:$0xff]
        %v3291 = vld [vmem:[%s3284 + $0x30] sm:$0xff]
        %v3292 = vld [vmem:[%s3284 + $0x38] sm:$0xff]
        %v3293 = vld [vmem:[%s3284 + $0x40] sm:$0xff]
        %v3294 = vld [vmem:[%s3284 + $0x48] sm:$0xff]
        %v3295 = vld [vmem:[%s3284 + $0x50] sm:$0xff]
        %v3296 = vld [vmem:[%s3284 + $0x58] sm:$0xff]
        %v3297 = vld [vmem:[%s3284 + $0x60] sm:$0xff]
        %v3298 = vld [vmem:[%s3284 + $0x68] sm:$0xff]
        %v3299 = vld [vmem:[%s3284 + $0x70] sm:$0xff]
        %v3300 = vld [vmem:[%s3284 + $0x78] sm:$0xff]
        %v3301 = vld [vmem:[%s3284 + $0x80] sm:$0xff]
        %v3302 = vld [vmem:[%s3284 + $0x88] sm:$0xff]
        %v3303 = vld [vmem:[%s3284 + $0x90] sm:$0xff]
        %v3304 = vld [vmem:[%s3284 + $0x98] sm:$0xff]
        %v3305 = vld [vmem:[%s3284 + $0xa0] sm:$0xff]
        %v3306 = vld [vmem:[%s3284 + $0xa8] sm:$0xff]
        %v3307 = vld [vmem:[%s3284 + $0xb0] sm:$0xff]
        %v3308 = vld [vmem:[%s3284 + $0xb8] sm:$0xff]
        %v3309 = vld [vmem:[%s3284 + $0xc0] sm:$0xff]
        %v3310 = vld [vmem:[%s3284 + $0xc8] sm:$0xff]
        %v3311 = vld [vmem:[%s3284 + $0xd0] sm:$0xff]
        %v3312 = vld [vmem:[%s3284 + $0xd8] sm:$0xff]
        %v3313 = vld [vmem:[%s3284 + $0xe0] sm:$0xff]
        %v3314 = vld [vmem:[%s3284 + $0xe8] sm:$0xff]
        %v3315 = vld [vmem:[%s3284 + $0xf0] sm:$0xff]
        %v3316 = vld [vmem:[%s3284 + $0xf8] sm:$0xff]
        %v3318 = vunpack.c.l.b16 %v3283
        %v3319 = vunpack.c.h.b16 %v3283
        %v3320 = vpack.c.b16 %v2031, %v3318
        %v3321 = vpack.c.b16 %v2032, %v3319
        %vm3322 = vcmask 1045504
        %v3323 = vrot.slane %v3320, 2
        %v3324 = vrot.slane %v2073, 2
        %v3325 = vsel %vm3322, %v3323, %v3324
        %v3326 = vrot.slane %v3321, 2
        %v3327 = vrot.slane %v2074, 2
        %v3328 = vsel %vm3322, %v3326, %v3327
        %v3329 = vrot.slane %v2075, 2
        %v3330 = vsel %vm3322, %v3324, %v3329
        %v3331 = vrot.slane %v2076, 2
        %v3332 = vsel %vm3322, %v3327, %v3331
        %v3333 = vrot.slane %v2077, 2
        %v3334 = vsel %vm3322, %v3329, %v3333
        %v3335 = vrot.slane %v2078, 2
        %v3336 = vsel %vm3322, %v3331, %v3335
        %v3337 = vrot.slane %v2079, 2
        %v3338 = vsel %vm3322, %v3333, %v3337
        %v3339 = vrot.slane %v2080, 2
        %v3340 = vsel %vm3322, %v3335, %v3339
        %v3341 = vrot.slane %v2081, 2
        %v3342 = vsel %vm3322, %v3337, %v3341
        %v3343 = vrot.slane %v2082, 2
        %v3344 = vsel %vm3322, %v3339, %v3343
        %v3345 = vrot.slane %v2083, 2
        %v3346 = vsel %vm3322, %v3341, %v3345
        %v3347 = vrot.slane %v2084, 2
        %v3348 = vsel %vm3322, %v3343, %v3347
        %v3349 = vrot.slane %v2085, 2
        %v3350 = vsel %vm3322, %v3345, %v3349
        %v3351 = vrot.slane %v2086, 2
        %v3352 = vsel %vm3322, %v3347, %v3351
        %v3353 = vrot.slane %v2087, 2
        %v3354 = vsel %vm3322, %v3349, %v3353
        %v3355 = vrot.slane %v2088, 2
        %v3356 = vsel %vm3322, %v3351, %v3355
        %v3357 = vrot.slane %v2089, 2
        %v3358 = vsel %vm3322, %v3353, %v3357
        %v3359 = vrot.slane %v2090, 2
        %v3360 = vsel %vm3322, %v3355, %v3359
        %v3361 = vrot.slane %v2628, 2
        %v3362 = vsel %vm3322, %v3357, %v3361
        %v3363 = vrot.slane %v2629, 2
        %v3364 = vsel %vm3322, %v3359, %v3363
        %v3417 = vunpack.c.l.b16 %v3285
        %v3418 = vunpack.c.h.b16 %v3285
        %v3419 = vunpack.c.l.b16 %v3286
        %v3420 = vunpack.c.h.b16 %v3286
        %v3421 = vunpack.c.l.b16 %v3287
        %v3422 = vunpack.c.h.b16 %v3287
        %v3423 = vunpack.c.l.b16 %v3288
        %v3424 = vunpack.c.h.b16 %v3288
        %v3425 = vunpack.c.l.b16 %v3289
        %v3426 = vunpack.c.h.b16 %v3289
        %v3427 = vunpack.c.l.b16 %v3290
        %v3428 = vunpack.c.h.b16 %v3290
        %v3429 = vunpack.c.l.b16 %v3291
        %v3430 = vunpack.c.h.b16 %v3291
        %v3431 = vunpack.c.l.b16 %v3292
        %v3432 = vunpack.c.h.b16 %v3292
        %v3433 = vunpack.c.l.b16 %v3293
        %v3434 = vunpack.c.h.b16 %v3293
        %v3435 = vunpack.c.l.b16 %v3294
        %v3436 = vunpack.c.h.b16 %v3294
        %v3437 = vunpack.c.l.b16 %v3295
        %v3438 = vunpack.c.h.b16 %v3295
        %v3439 = vunpack.c.l.b16 %v3296
        %v3440 = vunpack.c.h.b16 %v3296
        %v3441 = vunpack.c.l.b16 %v3297
        %v3442 = vunpack.c.h.b16 %v3297
        %v3443 = vunpack.c.l.b16 %v3298
        %v3444 = vunpack.c.h.b16 %v3298
        %v3445 = vunpack.c.l.b16 %v3299
        %v3446 = vunpack.c.h.b16 %v3299
        %v3447 = vunpack.c.l.b16 %v3300
        %v3448 = vunpack.c.h.b16 %v3300
        %v3449 = vunpack.c.l.b16 %v3301
        %v3450 = vunpack.c.h.b16 %v3301
        %v3451 = vunpack.c.l.b16 %v3302
        %v3452 = vunpack.c.h.b16 %v3302
        %v3453 = vunpack.c.l.b16 %v3303
        %v3454 = vunpack.c.h.b16 %v3303
        %v3455 = vunpack.c.l.b16 %v3304
        %v3456 = vunpack.c.h.b16 %v3304
        %v3457 = vunpack.c.l.b16 %v3305
        %v3458 = vunpack.c.h.b16 %v3305
        %v3459 = vunpack.c.l.b16 %v3306
        %v3460 = vunpack.c.h.b16 %v3306
        %v3461 = vunpack.c.l.b16 %v3307
        %v3462 = vunpack.c.h.b16 %v3307
        %v3463 = vunpack.c.l.b16 %v3308
        %v3464 = vunpack.c.h.b16 %v3308
        %v3465 = vunpack.c.l.b16 %v3309
        %v3466 = vunpack.c.h.b16 %v3309
        %v3467 = vunpack.c.l.b16 %v3310
        %v3468 = vunpack.c.h.b16 %v3310
        %v3469 = vunpack.c.l.b16 %v3311
        %v3470 = vunpack.c.h.b16 %v3311
        %v3471 = vunpack.c.l.b16 %v3312
        %v3472 = vunpack.c.h.b16 %v3312
        %v3473 = vunpack.c.l.b16 %v3313
        %v3474 = vunpack.c.h.b16 %v3313
        %v3475 = vunpack.c.l.b16 %v3314
        %v3476 = vunpack.c.h.b16 %v3314
        %v3477 = vunpack.c.l.b16 %v3315
        %v3478 = vunpack.c.h.b16 %v3315
        %v3479 = vunpack.c.l.b16 %v3316
        %v3480 = vunpack.c.h.b16 %v3316
        %v3481 = vpack.c.b16 %v3419, %v3417
        %v3482 = vpack.c.b16 %v3420, %v3418
        %v3483 = vpack.c.b16 %v3423, %v3421
        %v3484 = vpack.c.b16 %v3424, %v3422
        %v3485 = vpack.c.b16 %v3427, %v3425
        %v3486 = vpack.c.b16 %v3428, %v3426
        %v3487 = vpack.c.b16 %v3431, %v3429
        %v3488 = vpack.c.b16 %v3432, %v3430
        %v3489 = vpack.c.b16 %v3435, %v3433
        %v3490 = vpack.c.b16 %v3436, %v3434
        %v3491 = vpack.c.b16 %v3439, %v3437
        %v3492 = vpack.c.b16 %v3440, %v3438
        %v3493 = vpack.c.b16 %v3443, %v3441
        %v3494 = vpack.c.b16 %v3444, %v3442
        %v3495 = vpack.c.b16 %v3447, %v3445
        %v3496 = vpack.c.b16 %v3448, %v3446
        %v3497 = vpack.c.b16 %v3451, %v3449
        %v3498 = vpack.c.b16 %v3452, %v3450
        %v3499 = vpack.c.b16 %v3455, %v3453
        %v3500 = vpack.c.b16 %v3456, %v3454
        %v3501 = vpack.c.b16 %v3459, %v3457
        %v3502 = vpack.c.b16 %v3460, %v3458
        %v3503 = vpack.c.b16 %v3463, %v3461
        %v3504 = vpack.c.b16 %v3464, %v3462
        %v3505 = vpack.c.b16 %v3467, %v3465
        %v3506 = vpack.c.b16 %v3468, %v3466
        %v3507 = vpack.c.b16 %v3471, %v3469
        %v3508 = vpack.c.b16 %v3472, %v3470
        %v3509 = vpack.c.b16 %v3475, %v3473
        %v3510 = vpack.c.b16 %v3476, %v3474
        %v3511 = vpack.c.b16 %v3479, %v3477
        %v3512 = vpack.c.b16 %v3480, %v3478
        %3545 = vmatpush.bf16.msra.mxu0 %v3495
        %3546 = vmatpush.bf16.msra.mxu0 %v3493
        %3547 = vmatpush.bf16.msra.mxu0 %v3491
        %3548 = vmatpush.bf16.msra.mxu0 %v3489
        %3549 = vmatpush.bf16.msra.mxu0 %v3487
        %3550 = vmatpush.bf16.msra.mxu0 %v3485
        %3551 = vmatpush.bf16.msra.mxu0 %v3483
        %3552 = vmatpush.bf16.msra.mxu0 %v3481
        %3553 = vmatmul.bf16.gmra.mxu0 %v3325
        %v3554 = vpop.f32.mrf.mxu0
        %v3555 = vadd.f32 0.0, %v3554
        %v3556 = vpop.f32.mrf.mxu0
        %v3557 = vadd.f32 0.0, %v3556
        %3558 = vmatmul.bf16.gmra.mxu0 %v3330
        %v3559 = vpop.f32.mrf.mxu0
        %v3560 = vadd.f32 0.0, %v3559
        %v3561 = vpop.f32.mrf.mxu0
        %v3562 = vadd.f32 0.0, %v3561
        %3563 = vmatmul.bf16.gmra.mxu0 %v3334
        %v3564 = vpop.f32.mrf.mxu0
        %v3565 = vadd.f32 0.0, %v3564
        %v3566 = vpop.f32.mrf.mxu0
        %v3567 = vadd.f32 0.0, %v3566
        %3568 = vmatmul.bf16.gmra.mxu0 %v3338
        %v3569 = vpop.f32.mrf.mxu0
        %v3570 = vadd.f32 0.0, %v3569
        %v3571 = vpop.f32.mrf.mxu0
        %v3572 = vadd.f32 0.0, %v3571
        %3573 = vmatmul.bf16.gmra.mxu0 %v3342
        %v3574 = vpop.f32.mrf.mxu0
        %v3575 = vadd.f32 0.0, %v3574
        %v3576 = vpop.f32.mrf.mxu0
        %v3577 = vadd.f32 0.0, %v3576
        %3578 = vmatmul.bf16.gmra.mxu0 %v3346
        %v3579 = vpop.f32.mrf.mxu0
        %v3580 = vadd.f32 0.0, %v3579
        %v3581 = vpop.f32.mrf.mxu0
        %v3582 = vadd.f32 0.0, %v3581
        %3583 = vmatmul.bf16.gmra.mxu0 %v3350
        %v3584 = vpop.f32.mrf.mxu0
        %v3585 = vadd.f32 0.0, %v3584
        %v3586 = vpop.f32.mrf.mxu0
        %v3587 = vadd.f32 0.0, %v3586
        %3588 = vmatmul.bf16.gmra.mxu0 %v3354
        %v3589 = vpop.f32.mrf.mxu0
        %v3590 = vadd.f32 0.0, %v3589
        %v3591 = vpop.f32.mrf.mxu0
        %v3592 = vadd.f32 0.0, %v3591
        %3593 = vmatmul.bf16.gmra.mxu0 %v3358
        %v3594 = vpop.f32.mrf.mxu0
        %v3595 = vadd.f32 0.0, %v3594
        %v3596 = vpop.f32.mrf.mxu0
        %v3597 = vadd.f32 0.0, %v3596
        %3598 = vmatmul.bf16.gmra.mxu0 %v3362
        %v3599 = vpop.f32.mrf.mxu0
        %v3600 = vadd.f32 0.0, %v3599
        %v3601 = vpop.f32.mrf.mxu0
        %v3602 = vadd.f32 0.0, %v3601
        %3603 = vdwg.mxu0
        %3604 = vmatpush.bf16.msra.mxu0 %v3511
        %3605 = vmatpush.bf16.msra.mxu0 %v3509
        %3606 = vmatpush.bf16.msra.mxu0 %v3507
        %3607 = vmatpush.bf16.msra.mxu0 %v3505
        %3608 = vmatpush.bf16.msra.mxu0 %v3503
        %3609 = vmatpush.bf16.msra.mxu0 %v3501
        %3610 = vmatpush.bf16.msra.mxu0 %v3499
        %3611 = vmatpush.bf16.msra.mxu0 %v3497
        %3612 = vmatmul.bf16.gmra.mxu0 %v3328
        %v3613 = vpop.f32.mrf.mxu0
        %v3614 = vadd.f32 %v3555, %v3613
        %v3615 = vpop.f32.mrf.mxu0
        %v3616 = vadd.f32 %v3557, %v3615
        %3617 = vmatmul.bf16.gmra.mxu0 %v3332
        %v3618 = vpop.f32.mrf.mxu0
        %v3619 = vadd.f32 %v3560, %v3618
        %v3620 = vpop.f32.mrf.mxu0
        %v3621 = vadd.f32 %v3562, %v3620
        %3622 = vmatmul.bf16.gmra.mxu0 %v3336
        %v3623 = vpop.f32.mrf.mxu0
        %v3624 = vadd.f32 %v3565, %v3623
        %v3625 = vpop.f32.mrf.mxu0
        %v3626 = vadd.f32 %v3567, %v3625
        %3627 = vmatmul.bf16.gmra.mxu0 %v3340
        %v3628 = vpop.f32.mrf.mxu0
        %v3629 = vadd.f32 %v3570, %v3628
        %v3630 = vpop.f32.mrf.mxu0
        %v3631 = vadd.f32 %v3572, %v3630
        %3632 = vmatmul.bf16.gmra.mxu0 %v3344
        %v3633 = vpop.f32.mrf.mxu0
        %v3634 = vadd.f32 %v3575, %v3633
        %v3635 = vpop.f32.mrf.mxu0
        %v3636 = vadd.f32 %v3577, %v3635
        %3637 = vmatmul.bf16.gmra.mxu0 %v3348
        %v3638 = vpop.f32.mrf.mxu0
        %v3639 = vadd.f32 %v3580, %v3638
        %v3640 = vpop.f32.mrf.mxu0
        %v3641 = vadd.f32 %v3582, %v3640
        %3642 = vmatmul.bf16.gmra.mxu0 %v3352
        %v3643 = vpop.f32.mrf.mxu0
        %v3644 = vadd.f32 %v3585, %v3643
        %v3645 = vpop.f32.mrf.mxu0
        %v3646 = vadd.f32 %v3587, %v3645
        %3647 = vmatmul.bf16.gmra.mxu0 %v3356
        %v3648 = vpop.f32.mrf.mxu0
        %v3649 = vadd.f32 %v3590, %v3648
        %v3650 = vpop.f32.mrf.mxu0
        %v3651 = vadd.f32 %v3592, %v3650
        %3652 = vmatmul.bf16.gmra.mxu0 %v3360
        %v3653 = vpop.f32.mrf.mxu0
        %v3654 = vadd.f32 %v3595, %v3653
        %v3655 = vpop.f32.mrf.mxu0
        %v3656 = vadd.f32 %v3597, %v3655
        %3657 = vmatmul.bf16.gmra.mxu0 %v3364
        %v3658 = vpop.f32.mrf.mxu0
        %v3659 = vadd.f32 %v3600, %v3658
        %v3660 = vpop.f32.mrf.mxu0
        %v3661 = vadd.f32 %v3602, %v3660
        %3662 = vdwg.mxu0
        %3663 = vmatpush.bf16.msra.mxu0 %v3496
        %3664 = vmatpush.bf16.msra.mxu0 %v3494
        %3665 = vmatpush.bf16.msra.mxu0 %v3492
        %3666 = vmatpush.bf16.msra.mxu0 %v3490
        %3667 = vmatpush.bf16.msra.mxu0 %v3488
        %3668 = vmatpush.bf16.msra.mxu0 %v3486
        %3669 = vmatpush.bf16.msra.mxu0 %v3484
        %3670 = vmatpush.bf16.msra.mxu0 %v3482
        %3671 = vmatmul.bf16.gmra.mxu0 %v3325
        %v3672 = vpop.f32.mrf.mxu0
        %v3673 = vadd.f32 0.0, %v3672
        %v3674 = vpop.f32.mrf.mxu0
        %v3675 = vadd.f32 0.0, %v3674
        %3676 = vmatmul.bf16.gmra.mxu0 %v3330
        %v3677 = vpop.f32.mrf.mxu0
        %v3678 = vadd.f32 0.0, %v3677
        %v3679 = vpop.f32.mrf.mxu0
        %v3680 = vadd.f32 0.0, %v3679
        %3681 = vmatmul.bf16.gmra.mxu0 %v3334
        %v3682 = vpop.f32.mrf.mxu0
        %v3683 = vadd.f32 0.0, %v3682
        %v3684 = vpop.f32.mrf.mxu0
        %v3685 = vadd.f32 0.0, %v3684
        %3686 = vmatmul.bf16.gmra.mxu0 %v3338
        %v3687 = vpop.f32.mrf.mxu0
        %v3688 = vadd.f32 0.0, %v3687
        %v3689 = vpop.f32.mrf.mxu0
        %v3690 = vadd.f32 0.0, %v3689
        %3691 = vmatmul.bf16.gmra.mxu0 %v3342
        %v3692 = vpop.f32.mrf.mxu0
        %v3693 = vadd.f32 0.0, %v3692
        %v3694 = vpop.f32.mrf.mxu0
        %v3695 = vadd.f32 0.0, %v3694
        %3696 = vmatmul.bf16.gmra.mxu0 %v3346
        %v3697 = vpop.f32.mrf.mxu0
        %v3698 = vadd.f32 0.0, %v3697
        %v3699 = vpop.f32.mrf.mxu0
        %v3700 = vadd.f32 0.0, %v3699
        %3701 = vmatmul.bf16.gmra.mxu0 %v3350
        %v3702 = vpop.f32.mrf.mxu0
        %v3703 = vadd.f32 0.0, %v3702
        %v3704 = vpop.f32.mrf.mxu0
        %v3705 = vadd.f32 0.0, %v3704
        %3706 = vmatmul.bf16.gmra.mxu0 %v3354
        %v3707 = vpop.f32.mrf.mxu0
        %v3708 = vadd.f32 0.0, %v3707
        %v3709 = vpop.f32.mrf.mxu0
        %v3710 = vadd.f32 0.0, %v3709
        %3711 = vmatmul.bf16.gmra.mxu0 %v3358
        %v3712 = vpop.f32.mrf.mxu0
        %v3713 = vadd.f32 0.0, %v3712
        %v3714 = vpop.f32.mrf.mxu0
        %v3715 = vadd.f32 0.0, %v3714
        %3716 = vmatmul.bf16.gmra.mxu0 %v3362
        %v3717 = vpop.f32.mrf.mxu0
        %v3718 = vadd.f32 0.0, %v3717
        %v3719 = vpop.f32.mrf.mxu0
        %v3720 = vadd.f32 0.0, %v3719
        %3721 = vdwg.mxu0
        %3722 = vmatpush.bf16.msra.mxu0 %v3512
        %3723 = vmatpush.bf16.msra.mxu0 %v3510
        %3724 = vmatpush.bf16.msra.mxu0 %v3508
        %3725 = vmatpush.bf16.msra.mxu0 %v3506
        %3726 = vmatpush.bf16.msra.mxu0 %v3504
        %3727 = vmatpush.bf16.msra.mxu0 %v3502
        %3728 = vmatpush.bf16.msra.mxu0 %v3500
        %3729 = vmatpush.bf16.msra.mxu0 %v3498
        %3730 = vmatmul.bf16.gmra.mxu0 %v3328
        %v3731 = vpop.f32.mrf.mxu0
        %v3732 = vadd.f32 %v3673, %v3731
        %v3733 = vpop.f32.mrf.mxu0
        %v3734 = vadd.f32 %v3675, %v3733
        %3735 = vmatmul.bf16.gmra.mxu0 %v3332
        %v3736 = vpop.f32.mrf.mxu0
        %v3737 = vadd.f32 %v3678, %v3736
        %v3738 = vpop.f32.mrf.mxu0
        %v3739 = vadd.f32 %v3680, %v3738
        %3740 = vmatmul.bf16.gmra.mxu0 %v3336
        %v3741 = vpop.f32.mrf.mxu0
        %v3742 = vadd.f32 %v3683, %v3741
        %v3743 = vpop.f32.mrf.mxu0
        %v3744 = vadd.f32 %v3685, %v3743
        %3745 = vmatmul.bf16.gmra.mxu0 %v3340
        %v3746 = vpop.f32.mrf.mxu0
        %v3747 = vadd.f32 %v3688, %v3746
        %v3748 = vpop.f32.mrf.mxu0
        %v3749 = vadd.f32 %v3690, %v3748
        %3750 = vmatmul.bf16.gmra.mxu0 %v3344
        %v3751 = vpop.f32.mrf.mxu0
        %v3752 = vadd.f32 %v3693, %v3751
        %v3753 = vpop.f32.mrf.mxu0
        %v3754 = vadd.f32 %v3695, %v3753
        %3755 = vmatmul.bf16.gmra.mxu0 %v3348
        %v3756 = vpop.f32.mrf.mxu0
        %v3757 = vadd.f32 %v3698, %v3756
        %v3758 = vpop.f32.mrf.mxu0
        %v3759 = vadd.f32 %v3700, %v3758
        %3760 = vmatmul.bf16.gmra.mxu0 %v3352
        %v3761 = vpop.f32.mrf.mxu0
        %v3762 = vadd.f32 %v3703, %v3761
        %v3763 = vpop.f32.mrf.mxu0
        %v3764 = vadd.f32 %v3705, %v3763
        %3765 = vmatmul.bf16.gmra.mxu0 %v3356
        %v3766 = vpop.f32.mrf.mxu0
        %v3767 = vadd.f32 %v3708, %v3766
        %v3768 = vpop.f32.mrf.mxu0
        %v3769 = vadd.f32 %v3710, %v3768
        %3770 = vmatmul.bf16.gmra.mxu0 %v3360
        %v3771 = vpop.f32.mrf.mxu0
        %v3772 = vadd.f32 %v3713, %v3771
        %v3773 = vpop.f32.mrf.mxu0
        %v3774 = vadd.f32 %v3715, %v3773
        %3775 = vmatmul.bf16.gmra.mxu0 %v3364
        %v3776 = vpop.f32.mrf.mxu0
        %v3777 = vadd.f32 %v3718, %v3776
        %v3778 = vpop.f32.mrf.mxu0
        %v3779 = vadd.f32 %v3720, %v3778
        %3780 = vdwg.mxu0
        %v3781 = vadd.f32 %v3243, %v3614
        %v3782 = vadd.f32 %v3244, %v3732
        %v3783 = vadd.f32 %v3245, %v3616
        %v3784 = vadd.f32 %v3246, %v3734
        %v3785 = vadd.f32 %v3247, %v3619
        %v3786 = vadd.f32 %v3248, %v3737
        %v3787 = vadd.f32 %v3249, %v3621
        %v3788 = vadd.f32 %v3250, %v3739
        %v3789 = vadd.f32 %v3251, %v3624
        %v3790 = vadd.f32 %v3252, %v3742
        %v3791 = vadd.f32 %v3253, %v3626
        %v3792 = vadd.f32 %v3254, %v3744
        %v3793 = vadd.f32 %v3255, %v3629
        %v3794 = vadd.f32 %v3256, %v3747
        %v3795 = vadd.f32 %v3257, %v3631
        %v3796 = vadd.f32 %v3258, %v3749
        %v3797 = vadd.f32 %v3259, %v3634
        %v3798 = vadd.f32 %v3260, %v3752
        %v3799 = vadd.f32 %v3261, %v3636
        %v3800 = vadd.f32 %v3262, %v3754
        %v3801 = vadd.f32 %v3263, %v3639
        %v3802 = vadd.f32 %v3264, %v3757
        %v3803 = vadd.f32 %v3265, %v3641
        %v3804 = vadd.f32 %v3266, %v3759
        %v3805 = vadd.f32 %v3267, %v3644
        %v3806 = vadd.f32 %v3268, %v3762
        %v3807 = vadd.f32 %v3269, %v3646
        %v3808 = vadd.f32 %v3270, %v3764
        %v3809 = vadd.f32 %v3271, %v3649
        %v3810 = vadd.f32 %v3272, %v3767
        %v3811 = vadd.f32 %v3273, %v3651
        %v3812 = vadd.f32 %v3274, %v3769
        %v3813 = vadd.f32 %v3275, %v3654
        %v3814 = vadd.f32 %v3276, %v3772
        %v3815 = vadd.f32 %v3277, %v3656
        %v3816 = vadd.f32 %v3278, %v3774
        %v3817 = vadd.f32 %v3279, %v3659
        %v3818 = vadd.f32 %v3280, %v3777
        %v3819 = vadd.f32 %v3281, %v3661
        %v3820 = vadd.f32 %v3282, %v3779
        %v3821 = vld [vmem:[%s238 + $0x10] sm:$0xcc]
        %v3822 = vld [vmem:[%s238 + $0x18] sm:$0xff]
        %v3823 = vld [vmem:[%s238 + $0x20] sm:$0xff]
        %v3824 = vld [vmem:[%s238 + $0x28] sm:$0xff]
        %v3825 = vld [vmem:[%s238 + $0x30] sm:$0xff]
        %v3826 = vld [vmem:[%s238 + $0x38] sm:$0xff]
        %v3827 = vld [vmem:[%s238 + $0x40] sm:$0xff]
        %v3828 = vld [vmem:[%s238 + $0x48] sm:$0xff]
        %v3829 = vld [vmem:[%s238 + $0x50] sm:$0xff]
        %v3830 = vld [vmem:[%s238 + $0x58] sm:$0xff]
        %v3831 = vld [vmem:[%s238 + $0x60] sm:$0xff]
        %v3832 = vld [vmem:[%s238 + $0x68] sm:$0xff]
        %v3833 = vld [vmem:[%s238 + $0x70] sm:$0xff]
        %v3834 = vld [vmem:[%s238 + $0x78] sm:$0xff]
        %v3835 = vld [vmem:[%s238 + $0x80] sm:$0xff]
        %v3836 = vld [vmem:[%s238 + $0x88] sm:$0xff]
        %v3837 = vld [vmem:[%s238 + $0x90] sm:$0xff]
        %v3838 = vld [vmem:[%s238 + $0x98] sm:$0xff]
        %v3839 = vld [vmem:[%s238 + $0xa0] sm:$0xff]
        %v3840 = vld [vmem:[%s238 + $0xa8] sm:$0xff]
        %v3841 = vld [vmem:[%s238 + $0xb0] sm:$0x33]
        %s3842 = scalar_lea.vmem [#allocation2], 1536
        %v3843 = vld [vmem:[%s3842] sm:$0xff]
        %v3844 = vld [vmem:[%s3842 + $0x8] sm:$0xff]
        %v3845 = vld [vmem:[%s3842 + $0x10] sm:$0xff]
        %v3846 = vld [vmem:[%s3842 + $0x18] sm:$0xff]
        %v3847 = vld [vmem:[%s3842 + $0x20] sm:$0xff]
        %v3848 = vld [vmem:[%s3842 + $0x28] sm:$0xff]
        %v3849 = vld [vmem:[%s3842 + $0x30] sm:$0xff]
        %v3850 = vld [vmem:[%s3842 + $0x38] sm:$0xff]
        %v3851 = vld [vmem:[%s3842 + $0x40] sm:$0xff]
        %v3852 = vld [vmem:[%s3842 + $0x48] sm:$0xff]
        %v3853 = vld [vmem:[%s3842 + $0x50] sm:$0xff]
        %v3854 = vld [vmem:[%s3842 + $0x58] sm:$0xff]
        %v3855 = vld [vmem:[%s3842 + $0x60] sm:$0xff]
        %v3856 = vld [vmem:[%s3842 + $0x68] sm:$0xff]
        %v3857 = vld [vmem:[%s3842 + $0x70] sm:$0xff]
        %v3858 = vld [vmem:[%s3842 + $0x78] sm:$0xff]
        %v3859 = vld [vmem:[%s3842 + $0x80] sm:$0xff]
        %v3860 = vld [vmem:[%s3842 + $0x88] sm:$0xff]
        %v3861 = vld [vmem:[%s3842 + $0x90] sm:$0xff]
        %v3862 = vld [vmem:[%s3842 + $0x98] sm:$0xff]
        %v3863 = vld [vmem:[%s3842 + $0xa0] sm:$0xff]
        %v3864 = vld [vmem:[%s3842 + $0xa8] sm:$0xff]
        %v3865 = vld [vmem:[%s3842 + $0xb0] sm:$0xff]
        %v3866 = vld [vmem:[%s3842 + $0xb8] sm:$0xff]
        %v3867 = vld [vmem:[%s3842 + $0xc0] sm:$0xff]
        %v3868 = vld [vmem:[%s3842 + $0xc8] sm:$0xff]
        %v3869 = vld [vmem:[%s3842 + $0xd0] sm:$0xff]
        %v3870 = vld [vmem:[%s3842 + $0xd8] sm:$0xff]
        %v3871 = vld [vmem:[%s3842 + $0xe0] sm:$0xff]
        %v3872 = vld [vmem:[%s3842 + $0xe8] sm:$0xff]
        %v3873 = vld [vmem:[%s3842 + $0xf0] sm:$0xff]
        %v3874 = vld [vmem:[%s3842 + $0xf8] sm:$0xff]
        %v3896 = vunpack.c.l.b16 %v3821
        %v3897 = vunpack.c.h.b16 %v3821
        %v3898 = vunpack.c.l.b16 %v3822
        %v3899 = vunpack.c.h.b16 %v3822
        %v3900 = vunpack.c.l.b16 %v3823
        %v3901 = vunpack.c.h.b16 %v3823
        %v3902 = vunpack.c.l.b16 %v3824
        %v3903 = vunpack.c.h.b16 %v3824
        %v3904 = vunpack.c.l.b16 %v3825
        %v3905 = vunpack.c.h.b16 %v3825
        %v3906 = vunpack.c.l.b16 %v3826
        %v3907 = vunpack.c.h.b16 %v3826
        %v3908 = vunpack.c.l.b16 %v3827
        %v3909 = vunpack.c.h.b16 %v3827
        %v3910 = vunpack.c.l.b16 %v3828
        %v3911 = vunpack.c.h.b16 %v3828
        %v3912 = vunpack.c.l.b16 %v3829
        %v3913 = vunpack.c.h.b16 %v3829
        %v3914 = vunpack.c.l.b16 %v3830
        %v3915 = vunpack.c.h.b16 %v3830
        %v3916 = vunpack.c.l.b16 %v3831
        %v3917 = vunpack.c.h.b16 %v3831
        %v3918 = vunpack.c.l.b16 %v3832
        %v3919 = vunpack.c.h.b16 %v3832
        %v3920 = vunpack.c.l.b16 %v3833
        %v3921 = vunpack.c.h.b16 %v3833
        %v3922 = vunpack.c.l.b16 %v3834
        %v3923 = vunpack.c.h.b16 %v3834
        %v3924 = vunpack.c.l.b16 %v3835
        %v3925 = vunpack.c.h.b16 %v3835
        %v3926 = vunpack.c.l.b16 %v3836
        %v3927 = vunpack.c.h.b16 %v3836
        %v3928 = vunpack.c.l.b16 %v3837
        %v3929 = vunpack.c.h.b16 %v3837
        %v3930 = vunpack.c.l.b16 %v3838
        %v3931 = vunpack.c.h.b16 %v3838
        %v3932 = vunpack.c.l.b16 %v3839
        %v3933 = vunpack.c.h.b16 %v3839
        %v3934 = vunpack.c.l.b16 %v3840
        %v3935 = vunpack.c.h.b16 %v3840
        %v3936 = vunpack.c.l.b16 %v3841
        %v3937 = vunpack.c.h.b16 %v3841
        %v3938 = vpack.c.b16 %v3898, %v3896
        %v3939 = vpack.c.b16 %v3899, %v3897
        %v3940 = vpack.c.b16 %v3902, %v3900
        %v3941 = vpack.c.b16 %v3903, %v3901
        %v3942 = vpack.c.b16 %v3906, %v3904
        %v3943 = vpack.c.b16 %v3907, %v3905
        %v3944 = vpack.c.b16 %v3910, %v3908
        %v3945 = vpack.c.b16 %v3911, %v3909
        %v3946 = vpack.c.b16 %v3914, %v3912
        %v3947 = vpack.c.b16 %v3915, %v3913
        %v3948 = vpack.c.b16 %v3918, %v3916
        %v3949 = vpack.c.b16 %v3919, %v3917
        %v3950 = vpack.c.b16 %v3922, %v3920
        %v3951 = vpack.c.b16 %v3923, %v3921
        %v3952 = vpack.c.b16 %v3926, %v3924
        %v3953 = vpack.c.b16 %v3927, %v3925
        %v3954 = vpack.c.b16 %v3930, %v3928
        %v3955 = vpack.c.b16 %v3931, %v3929
        %v3956 = vpack.c.b16 %v3934, %v3932
        %v3957 = vpack.c.b16 %v3935, %v3933
        %v3958 = vpack.c.b16 %v3936, %v3936
        %v3959 = vpack.c.b16 %v3937, %v3937
        %v3960 = vrot.slane %v3938, 2
        %v3961 = vrot.slane %v3940, 2
        %v3962 = vsel %vm3322, %v3960, %v3961
        %v3963 = vrot.slane %v3939, 2
        %v3964 = vrot.slane %v3941, 2
        %v3965 = vsel %vm3322, %v3963, %v3964
        %v3966 = vrot.slane %v3942, 2
        %v3967 = vsel %vm3322, %v3961, %v3966
        %v3968 = vrot.slane %v3943, 2
        %v3969 = vsel %vm3322, %v3964, %v3968
        %v3970 = vrot.slane %v3944, 2
        %v3971 = vsel %vm3322, %v3966, %v3970
        %v3972 = vrot.slane %v3945, 2
        %v3973 = vsel %vm3322, %v3968, %v3972
        %v3974 = vrot.slane %v3946, 2
        %v3975 = vsel %vm3322, %v3970, %v3974
        %v3976 = vrot.slane %v3947, 2
        %v3977 = vsel %vm3322, %v3972, %v3976
        %v3978 = vrot.slane %v3948, 2
        %v3979 = vsel %vm3322, %v3974, %v3978
        %v3980 = vrot.slane %v3949, 2
        %v3981 = vsel %vm3322, %v3976, %v3980
        %v3982 = vrot.slane %v3950, 2
        %v3983 = vsel %vm3322, %v3978, %v3982
        %v3984 = vrot.slane %v3951, 2
        %v3985 = vsel %vm3322, %v3980, %v3984
        %v3986 = vrot.slane %v3952, 2
        %v3987 = vsel %vm3322, %v3982, %v3986
        %v3988 = vrot.slane %v3953, 2
        %v3989 = vsel %vm3322, %v3984, %v3988
        %v3990 = vrot.slane %v3954, 2
        %v3991 = vsel %vm3322, %v3986, %v3990
        %v3992 = vrot.slane %v3955, 2
        %v3993 = vsel %vm3322, %v3988, %v3992
        %v3994 = vrot.slane %v3956, 2
        %v3995 = vsel %vm3322, %v3990, %v3994
        %v3996 = vrot.slane %v3957, 2
        %v3997 = vsel %vm3322, %v3992, %v3996
        %v3998 = vrot.slane %v3958, 2
        %v3999 = vsel %vm3322, %v3994, %v3998
        %v4000 = vrot.slane %v3959, 2
        %v4001 = vsel %vm3322, %v3996, %v4000
        %v4054 = vunpack.c.l.b16 %v3843
        %v4055 = vunpack.c.h.b16 %v3843
        %v4056 = vunpack.c.l.b16 %v3844
        %v4057 = vunpack.c.h.b16 %v3844
        %v4058 = vunpack.c.l.b16 %v3845
        %v4059 = vunpack.c.h.b16 %v3845
        %v4060 = vunpack.c.l.b16 %v3846
        %v4061 = vunpack.c.h.b16 %v3846
        %v4062 = vunpack.c.l.b16 %v3847
        %v4063 = vunpack.c.h.b16 %v3847
        %v4064 = vunpack.c.l.b16 %v3848
        %v4065 = vunpack.c.h.b16 %v3848
        %v4066 = vunpack.c.l.b16 %v3849
        %v4067 = vunpack.c.h.b16 %v3849
        %v4068 = vunpack.c.l.b16 %v3850
        %v4069 = vunpack.c.h.b16 %v3850
        %v4070 = vunpack.c.l.b16 %v3851
        %v4071 = vunpack.c.h.b16 %v3851
        %v4072 = vunpack.c.l.b16 %v3852
        %v4073 = vunpack.c.h.b16 %v3852
        %v4074 = vunpack.c.l.b16 %v3853
        %v4075 = vunpack.c.h.b16 %v3853
        %v4076 = vunpack.c.l.b16 %v3854
        %v4077 = vunpack.c.h.b16 %v3854
        %v4078 = vunpack.c.l.b16 %v3855
        %v4079 = vunpack.c.h.b16 %v3855
        %v4080 = vunpack.c.l.b16 %v3856
        %v4081 = vunpack.c.h.b16 %v3856
        %v4082 = vunpack.c.l.b16 %v3857
        %v4083 = vunpack.c.h.b16 %v3857
        %v4084 = vunpack.c.l.b16 %v3858
        %v4085 = vunpack.c.h.b16 %v3858
        %v4086 = vunpack.c.l.b16 %v3859
        %v4087 = vunpack.c.h.b16 %v3859
        %v4088 = vunpack.c.l.b16 %v3860
        %v4089 = vunpack.c.h.b16 %v3860
        %v4090 = vunpack.c.l.b16 %v3861
        %v4091 = vunpack.c.h.b16 %v3861
        %v4092 = vunpack.c.l.b16 %v3862
        %v4093 = vunpack.c.h.b16 %v3862
        %v4094 = vunpack.c.l.b16 %v3863
        %v4095 = vunpack.c.h.b16 %v3863
        %v4096 = vunpack.c.l.b16 %v3864
        %v4097 = vunpack.c.h.b16 %v3864
        %v4098 = vunpack.c.l.b16 %v3865
        %v4099 = vunpack.c.h.b16 %v3865
        %v4100 = vunpack.c.l.b16 %v3866
        %v4101 = vunpack.c.h.b16 %v3866
        %v4102 = vunpack.c.l.b16 %v3867
        %v4103 = vunpack.c.h.b16 %v3867
        %v4104 = vunpack.c.l.b16 %v3868
        %v4105 = vunpack.c.h.b16 %v3868
        %v4106 = vunpack.c.l.b16 %v3869
        %v4107 = vunpack.c.h.b16 %v3869
        %v4108 = vunpack.c.l.b16 %v3870
        %v4109 = vunpack.c.h.b16 %v3870
        %v4110 = vunpack.c.l.b16 %v3871
        %v4111 = vunpack.c.h.b16 %v3871
        %v4112 = vunpack.c.l.b16 %v3872
        %v4113 = vunpack.c.h.b16 %v3872
        %v4114 = vunpack.c.l.b16 %v3873
        %v4115 = vunpack.c.h.b16 %v3873
        %v4116 = vunpack.c.l.b16 %v3874
        %v4117 = vunpack.c.h.b16 %v3874
        %v4118 = vpack.c.b16 %v4056, %v4054
        %v4119 = vpack.c.b16 %v4057, %v4055
        %v4120 = vpack.c.b16 %v4060, %v4058
        %v4121 = vpack.c.b16 %v4061, %v4059
        %v4122 = vpack.c.b16 %v4064, %v4062
        %v4123 = vpack.c.b16 %v4065, %v4063
        %v4124 = vpack.c.b16 %v4068, %v4066
        %v4125 = vpack.c.b16 %v4069, %v4067
        %v4126 = vpack.c.b16 %v4072, %v4070
        %v4127 = vpack.c.b16 %v4073, %v4071
        %v4128 = vpack.c.b16 %v4076, %v4074
        %v4129 = vpack.c.b16 %v4077, %v4075
        %v4130 = vpack.c.b16 %v4080, %v4078
        %v4131 = vpack.c.b16 %v4081, %v4079
        %v4132 = vpack.c.b16 %v4084, %v4082
        %v4133 = vpack.c.b16 %v4085, %v4083
        %v4134 = vpack.c.b16 %v4088, %v4086
        %v4135 = vpack.c.b16 %v4089, %v4087
        %v4136 = vpack.c.b16 %v4092, %v4090
        %v4137 = vpack.c.b16 %v4093, %v4091
        %v4138 = vpack.c.b16 %v4096, %v4094
        %v4139 = vpack.c.b16 %v4097, %v4095
        %v4140 = vpack.c.b16 %v4100, %v4098
        %v4141 = vpack.c.b16 %v4101, %v4099
        %v4142 = vpack.c.b16 %v4104, %v4102
        %v4143 = vpack.c.b16 %v4105, %v4103
        %v4144 = vpack.c.b16 %v4108, %v4106
        %v4145 = vpack.c.b16 %v4109, %v4107
        %v4146 = vpack.c.b16 %v4112, %v4110
        %v4147 = vpack.c.b16 %v4113, %v4111
        %v4148 = vpack.c.b16 %v4116, %v4114
        %v4149 = vpack.c.b16 %v4117, %v4115
        %4182 = vmatpush.bf16.msra.mxu0 %v4132
        %4183 = vmatpush.bf16.msra.mxu0 %v4130
        %4184 = vmatpush.bf16.msra.mxu0 %v4128
        %4185 = vmatpush.bf16.msra.mxu0 %v4126
        %4186 = vmatpush.bf16.msra.mxu0 %v4124
        %4187 = vmatpush.bf16.msra.mxu0 %v4122
        %4188 = vmatpush.bf16.msra.mxu0 %v4120
        %4189 = vmatpush.bf16.msra.mxu0 %v4118
        %4190 = vmatmul.bf16.gmra.mxu0 %v3962
        %v4191 = vpop.f32.mrf.mxu0
        %v4192 = vadd.f32 0.0, %v4191
        %v4193 = vpop.f32.mrf.mxu0
        %v4194 = vadd.f32 0.0, %v4193
        %4195 = vmatmul.bf16.gmra.mxu0 %v3967
        %v4196 = vpop.f32.mrf.mxu0
        %v4197 = vadd.f32 0.0, %v4196
        %v4198 = vpop.f32.mrf.mxu0
        %v4199 = vadd.f32 0.0, %v4198
        %4200 = vmatmul.bf16.gmra.mxu0 %v3971
        %v4201 = vpop.f32.mrf.mxu0
        %v4202 = vadd.f32 0.0, %v4201
        %v4203 = vpop.f32.mrf.mxu0
        %v4204 = vadd.f32 0.0, %v4203
        %4205 = vmatmul.bf16.gmra.mxu0 %v3975
        %v4206 = vpop.f32.mrf.mxu0
        %v4207 = vadd.f32 0.0, %v4206
        %v4208 = vpop.f32.mrf.mxu0
        %v4209 = vadd.f32 0.0, %v4208
        %4210 = vmatmul.bf16.gmra.mxu0 %v3979
        %v4211 = vpop.f32.mrf.mxu0
        %v4212 = vadd.f32 0.0, %v4211
        %v4213 = vpop.f32.mrf.mxu0
        %v4214 = vadd.f32 0.0, %v4213
        %4215 = vmatmul.bf16.gmra.mxu0 %v3983
        %v4216 = vpop.f32.mrf.mxu0
        %v4217 = vadd.f32 0.0, %v4216
        %v4218 = vpop.f32.mrf.mxu0
        %v4219 = vadd.f32 0.0, %v4218
        %4220 = vmatmul.bf16.gmra.mxu0 %v3987
        %v4221 = vpop.f32.mrf.mxu0
        %v4222 = vadd.f32 0.0, %v4221
        %v4223 = vpop.f32.mrf.mxu0
        %v4224 = vadd.f32 0.0, %v4223
        %4225 = vmatmul.bf16.gmra.mxu0 %v3991
        %v4226 = vpop.f32.mrf.mxu0
        %v4227 = vadd.f32 0.0, %v4226
        %v4228 = vpop.f32.mrf.mxu0
        %v4229 = vadd.f32 0.0, %v4228
        %4230 = vmatmul.bf16.gmra.mxu0 %v3995
        %v4231 = vpop.f32.mrf.mxu0
        %v4232 = vadd.f32 0.0, %v4231
        %v4233 = vpop.f32.mrf.mxu0
        %v4234 = vadd.f32 0.0, %v4233
        %4235 = vmatmul.bf16.gmra.mxu0 %v3999
        %v4236 = vpop.f32.mrf.mxu0
        %v4237 = vadd.f32 0.0, %v4236
        %v4238 = vpop.f32.mrf.mxu0
        %v4239 = vadd.f32 0.0, %v4238
        %4240 = vdwg.mxu0
        %4241 = vmatpush.bf16.msra.mxu0 %v4148
        %4242 = vmatpush.bf16.msra.mxu0 %v4146
        %4243 = vmatpush.bf16.msra.mxu0 %v4144
        %4244 = vmatpush.bf16.msra.mxu0 %v4142
        %4245 = vmatpush.bf16.msra.mxu0 %v4140
        %4246 = vmatpush.bf16.msra.mxu0 %v4138
        %4247 = vmatpush.bf16.msra.mxu0 %v4136
        %4248 = vmatpush.bf16.msra.mxu0 %v4134
        %4249 = vmatmul.bf16.gmra.mxu0 %v3965
        %v4250 = vpop.f32.mrf.mxu0
        %v4251 = vadd.f32 %v4192, %v4250
        %v4252 = vpop.f32.mrf.mxu0
        %v4253 = vadd.f32 %v4194, %v4252
        %4254 = vmatmul.bf16.gmra.mxu0 %v3969
        %v4255 = vpop.f32.mrf.mxu0
        %v4256 = vadd.f32 %v4197, %v4255
        %v4257 = vpop.f32.mrf.mxu0
        %v4258 = vadd.f32 %v4199, %v4257
        %4259 = vmatmul.bf16.gmra.mxu0 %v3973
        %v4260 = vpop.f32.mrf.mxu0
        %v4261 = vadd.f32 %v4202, %v4260
        %v4262 = vpop.f32.mrf.mxu0
        %v4263 = vadd.f32 %v4204, %v4262
        %4264 = vmatmul.bf16.gmra.mxu0 %v3977
        %v4265 = vpop.f32.mrf.mxu0
        %v4266 = vadd.f32 %v4207, %v4265
        %v4267 = vpop.f32.mrf.mxu0
        %v4268 = vadd.f32 %v4209, %v4267
        %4269 = vmatmul.bf16.gmra.mxu0 %v3981
        %v4270 = vpop.f32.mrf.mxu0
        %v4271 = vadd.f32 %v4212, %v4270
        %v4272 = vpop.f32.mrf.mxu0
        %v4273 = vadd.f32 %v4214, %v4272
        %4274 = vmatmul.bf16.gmra.mxu0 %v3985
        %v4275 = vpop.f32.mrf.mxu0
        %v4276 = vadd.f32 %v4217, %v4275
        %v4277 = vpop.f32.mrf.mxu0
        %v4278 = vadd.f32 %v4219, %v4277
        %4279 = vmatmul.bf16.gmra.mxu0 %v3989
        %v4280 = vpop.f32.mrf.mxu0
        %v4281 = vadd.f32 %v4222, %v4280
        %v4282 = vpop.f32.mrf.mxu0
        %v4283 = vadd.f32 %v4224, %v4282
        %4284 = vmatmul.bf16.gmra.mxu0 %v3993
        %v4285 = vpop.f32.mrf.mxu0
        %v4286 = vadd.f32 %v4227, %v4285
        %v4287 = vpop.f32.mrf.mxu0
        %v4288 = vadd.f32 %v4229, %v4287
        %4289 = vmatmul.bf16.gmra.mxu0 %v3997
        %v4290 = vpop.f32.mrf.mxu0
        %v4291 = vadd.f32 %v4232, %v4290
        %v4292 = vpop.f32.mrf.mxu0
        %v4293 = vadd.f32 %v4234, %v4292
        %4294 = vmatmul.bf16.gmra.mxu0 %v4001
        %v4295 = vpop.f32.mrf.mxu0
        %v4296 = vadd.f32 %v4237, %v4295
        %v4297 = vpop.f32.mrf.mxu0
        %v4298 = vadd.f32 %v4239, %v4297
        %4299 = vdwg.mxu0
        %4300 = vmatpush.bf16.msra.mxu0 %v4133
        %4301 = vmatpush.bf16.msra.mxu0 %v4131
        %4302 = vmatpush.bf16.msra.mxu0 %v4129
        %4303 = vmatpush.bf16.msra.mxu0 %v4127
        %4304 = vmatpush.bf16.msra.mxu0 %v4125
        %4305 = vmatpush.bf16.msra.mxu0 %v4123
        %4306 = vmatpush.bf16.msra.mxu0 %v4121
        %4307 = vmatpush.bf16.msra.mxu0 %v4119
        %4308 = vmatmul.bf16.gmra.mxu0 %v3962
        %v4309 = vpop.f32.mrf.mxu0
        %v4310 = vadd.f32 0.0, %v4309
        %v4311 = vpop.f32.mrf.mxu0
        %v4312 = vadd.f32 0.0, %v4311
        %4313 = vmatmul.bf16.gmra.mxu0 %v3967
        %v4314 = vpop.f32.mrf.mxu0
        %v4315 = vadd.f32 0.0, %v4314
        %v4316 = vpop.f32.mrf.mxu0
        %v4317 = vadd.f32 0.0, %v4316
        %4318 = vmatmul.bf16.gmra.mxu0 %v3971
        %v4319 = vpop.f32.mrf.mxu0
        %v4320 = vadd.f32 0.0, %v4319
        %v4321 = vpop.f32.mrf.mxu0
        %v4322 = vadd.f32 0.0, %v4321
        %4323 = vmatmul.bf16.gmra.mxu0 %v3975
        %v4324 = vpop.f32.mrf.mxu0
        %v4325 = vadd.f32 0.0, %v4324
        %v4326 = vpop.f32.mrf.mxu0
        %v4327 = vadd.f32 0.0, %v4326
        %4328 = vmatmul.bf16.gmra.mxu0 %v3979
        %v4329 = vpop.f32.mrf.mxu0
        %v4330 = vadd.f32 0.0, %v4329
        %v4331 = vpop.f32.mrf.mxu0
        %v4332 = vadd.f32 0.0, %v4331
        %4333 = vmatmul.bf16.gmra.mxu0 %v3983
        %v4334 = vpop.f32.mrf.mxu0
        %v4335 = vadd.f32 0.0, %v4334
        %v4336 = vpop.f32.mrf.mxu0
        %v4337 = vadd.f32 0.0, %v4336
        %4338 = vmatmul.bf16.gmra.mxu0 %v3987
        %v4339 = vpop.f32.mrf.mxu0
        %v4340 = vadd.f32 0.0, %v4339
        %v4341 = vpop.f32.mrf.mxu0
        %v4342 = vadd.f32 0.0, %v4341
        %4343 = vmatmul.bf16.gmra.mxu0 %v3991
        %v4344 = vpop.f32.mrf.mxu0
        %v4345 = vadd.f32 0.0, %v4344
        %v4346 = vpop.f32.mrf.mxu0
        %v4347 = vadd.f32 0.0, %v4346
        %4348 = vmatmul.bf16.gmra.mxu0 %v3995
        %v4349 = vpop.f32.mrf.mxu0
        %v4350 = vadd.f32 0.0, %v4349
        %v4351 = vpop.f32.mrf.mxu0
        %v4352 = vadd.f32 0.0, %v4351
        %4353 = vmatmul.bf16.gmra.mxu0 %v3999
        %v4354 = vpop.f32.mrf.mxu0
        %v4355 = vadd.f32 0.0, %v4354
        %v4356 = vpop.f32.mrf.mxu0
        %v4357 = vadd.f32 0.0, %v4356
        %4358 = vdwg.mxu0
        %4359 = vmatpush.bf16.msra.mxu0 %v4149
        %4360 = vmatpush.bf16.msra.mxu0 %v4147
        %4361 = vmatpush.bf16.msra.mxu0 %v4145
        %4362 = vmatpush.bf16.msra.mxu0 %v4143
        %4363 = vmatpush.bf16.msra.mxu0 %v4141
        %4364 = vmatpush.bf16.msra.mxu0 %v4139
        %4365 = vmatpush.bf16.msra.mxu0 %v4137
        %4366 = vmatpush.bf16.msra.mxu0 %v4135
        %4367 = vmatmul.bf16.gmra.mxu0 %v3965
        %v4368 = vpop.f32.mrf.mxu0
        %v4369 = vadd.f32 %v4310, %v4368
        %v4370 = vpop.f32.mrf.mxu0
        %v4371 = vadd.f32 %v4312, %v4370
        %4372 = vmatmul.bf16.gmra.mxu0 %v3969
        %v4373 = vpop.f32.mrf.mxu0
        %v4374 = vadd.f32 %v4315, %v4373
        %v4375 = vpop.f32.mrf.mxu0
        %v4376 = vadd.f32 %v4317, %v4375
        %4377 = vmatmul.bf16.gmra.mxu0 %v3973
        %v4378 = vpop.f32.mrf.mxu0
        %v4379 = vadd.f32 %v4320, %v4378
        %v4380 = vpop.f32.mrf.mxu0
        %v4381 = vadd.f32 %v4322, %v4380
        %4382 = vmatmul.bf16.gmra.mxu0 %v3977
        %v4383 = vpop.f32.mrf.mxu0
        %v4384 = vadd.f32 %v4325, %v4383
        %v4385 = vpop.f32.mrf.mxu0
        %v4386 = vadd.f32 %v4327, %v4385
        %4387 = vmatmul.bf16.gmra.mxu0 %v3981
        %v4388 = vpop.f32.mrf.mxu0
        %v4389 = vadd.f32 %v4330, %v4388
        %v4390 = vpop.f32.mrf.mxu0
        %v4391 = vadd.f32 %v4332, %v4390
        %4392 = vmatmul.bf16.gmra.mxu0 %v3985
        %v4393 = vpop.f32.mrf.mxu0
        %v4394 = vadd.f32 %v4335, %v4393
        %v4395 = vpop.f32.mrf.mxu0
        %v4396 = vadd.f32 %v4337, %v4395
        %4397 = vmatmul.bf16.gmra.mxu0 %v3989
        %v4398 = vpop.f32.mrf.mxu0
        %v4399 = vadd.f32 %v4340, %v4398
        %v4400 = vpop.f32.mrf.mxu0
        %v4401 = vadd.f32 %v4342, %v4400
        %4402 = vmatmul.bf16.gmra.mxu0 %v3993
        %v4403 = vpop.f32.mrf.mxu0
        %v4404 = vadd.f32 %v4345, %v4403
        %v4405 = vpop.f32.mrf.mxu0
        %v4406 = vadd.f32 %v4347, %v4405
        %4407 = vmatmul.bf16.gmra.mxu0 %v3997
        %v4408 = vpop.f32.mrf.mxu0
        %v4409 = vadd.f32 %v4350, %v4408
        %v4410 = vpop.f32.mrf.mxu0
        %v4411 = vadd.f32 %v4352, %v4410
        %4412 = vmatmul.bf16.gmra.mxu0 %v4001
        %v4413 = vpop.f32.mrf.mxu0
        %v4414 = vadd.f32 %v4355, %v4413
        %v4415 = vpop.f32.mrf.mxu0
        %v4416 = vadd.f32 %v4357, %v4415
        %4417 = vdwg.mxu0
        %v4418 = vadd.f32 %v3781, %v4251
        %v4419 = vadd.f32 %v3782, %v4369
        %v4420 = vadd.f32 %v3783, %v4253
        %v4421 = vadd.f32 %v3784, %v4371
        %v4422 = vadd.f32 %v3785, %v4256
        %v4423 = vadd.f32 %v3786, %v4374
        %v4424 = vadd.f32 %v3787, %v4258
        %v4425 = vadd.f32 %v3788, %v4376
        %v4426 = vadd.f32 %v3789, %v4261
        %v4427 = vadd.f32 %v3790, %v4379
        %v4428 = vadd.f32 %v3791, %v4263
        %v4429 = vadd.f32 %v3792, %v4381
        %v4430 = vadd.f32 %v3793, %v4266
        %v4431 = vadd.f32 %v3794, %v4384
        %v4432 = vadd.f32 %v3795, %v4268
        %v4433 = vadd.f32 %v3796, %v4386
        %v4434 = vadd.f32 %v3797, %v4271
        %v4435 = vadd.f32 %v3798, %v4389
        %v4436 = vadd.f32 %v3799, %v4273
        %v4437 = vadd.f32 %v3800, %v4391
        %v4438 = vadd.f32 %v3801, %v4276
        %v4439 = vadd.f32 %v3802, %v4394
        %v4440 = vadd.f32 %v3803, %v4278
        %v4441 = vadd.f32 %v3804, %v4396
        %v4442 = vadd.f32 %v3805, %v4281
        %v4443 = vadd.f32 %v3806, %v4399
        %v4444 = vadd.f32 %v3807, %v4283
        %v4445 = vadd.f32 %v3808, %v4401
        %v4446 = vadd.f32 %v3809, %v4286
        %v4447 = vadd.f32 %v3810, %v4404
        %v4448 = vadd.f32 %v3811, %v4288
        %v4449 = vadd.f32 %v3812, %v4406
        %v4450 = vadd.f32 %v3813, %v4291
        %v4451 = vadd.f32 %v3814, %v4409
        %v4452 = vadd.f32 %v3815, %v4293
        %v4453 = vadd.f32 %v3816, %v4411
        %v4454 = vadd.f32 %v3817, %v4296
        %v4455 = vadd.f32 %v3818, %v4414
        %v4456 = vadd.f32 %v3819, %v4298
        %v4457 = vadd.f32 %v3820, %v4416
        %v4458 = vld [vmem:[%s238 + $0xb0] sm:$0x77]
        %s4459 = scalar_lea.vmem [#allocation2], 1792
        %v4460 = vld [vmem:[%s4459] sm:$0xff]
        %v4461 = vld [vmem:[%s4459 + $0x8] sm:$0xff]
        %v4462 = vld [vmem:[%s4459 + $0x10] sm:$0xff]
        %v4463 = vld [vmem:[%s4459 + $0x18] sm:$0xff]
        %v4464 = vld [vmem:[%s4459 + $0x20] sm:$0xff]
        %v4465 = vld [vmem:[%s4459 + $0x28] sm:$0xff]
        %v4466 = vld [vmem:[%s4459 + $0x30] sm:$0xff]
        %v4467 = vld [vmem:[%s4459 + $0x38] sm:$0xff]
        %v4468 = vld [vmem:[%s4459 + $0x40] sm:$0xff]
        %v4469 = vld [vmem:[%s4459 + $0x48] sm:$0xff]
        %v4470 = vld [vmem:[%s4459 + $0x50] sm:$0xff]
        %v4471 = vld [vmem:[%s4459 + $0x58] sm:$0xff]
        %v4472 = vld [vmem:[%s4459 + $0x60] sm:$0xff]
        %v4473 = vld [vmem:[%s4459 + $0x68] sm:$0xff]
        %v4474 = vld [vmem:[%s4459 + $0x70] sm:$0xff]
        %v4475 = vld [vmem:[%s4459 + $0x78] sm:$0xff]
        %v4476 = vld [vmem:[%s4459 + $0x80] sm:$0xff]
        %v4477 = vld [vmem:[%s4459 + $0x88] sm:$0xff]
        %v4478 = vld [vmem:[%s4459 + $0x90] sm:$0xff]
        %v4479 = vld [vmem:[%s4459 + $0x98] sm:$0xff]
        %v4480 = vld [vmem:[%s4459 + $0xa0] sm:$0xff]
        %v4481 = vld [vmem:[%s4459 + $0xa8] sm:$0xff]
        %v4482 = vld [vmem:[%s4459 + $0xb0] sm:$0xff]
        %v4483 = vld [vmem:[%s4459 + $0xb8] sm:$0xff]
        %v4484 = vld [vmem:[%s4459 + $0xc0] sm:$0xff]
        %v4485 = vld [vmem:[%s4459 + $0xc8] sm:$0xff]
        %v4486 = vld [vmem:[%s4459 + $0xd0] sm:$0xff]
        %v4487 = vld [vmem:[%s4459 + $0xd8] sm:$0xff]
        %v4488 = vld [vmem:[%s4459 + $0xe0] sm:$0xff]
        %v4489 = vld [vmem:[%s4459 + $0xe8] sm:$0xff]
        %v4490 = vld [vmem:[%s4459 + $0xf0] sm:$0xff]
        %v4491 = vld [vmem:[%s4459 + $0xf8] sm:$0xff]
        %v4493 = vunpack.c.l.b16 %v4458
        %v4494 = vunpack.c.h.b16 %v4458
        %v4495 = vpack.c.b16 %v4493, %v4493
        %v4496 = vpack.c.b16 %v4494, %v4494
        %vm4497 = vsmask.f32 5376
        %v4499 = vshrl.u32 %v3938, 16
        %v4501 = vrot.slane %v4499, 2
        %v4502 = vshll.u32 %v3938, 16
        %v4504 = vrot.slane %v4502, 3
        %v4505 = vor.u32 %v4501, %v4504
        %v4507 = vshrl.u32 %v3940, 16
        %v4509 = vrot.slane %v4507, 2
        %v4510 = vshll.u32 %v3940, 16
        %v4512 = vrot.slane %v4510, 3
        %v4513 = vor.u32 %v4509, %v4512
        %v4514 = vsel %vm4497, %v4505, %v4513
        %v4516 = vshrl.u32 %v3939, 16
        %v4518 = vrot.slane %v4516, 2
        %v4519 = vshll.u32 %v3939, 16
        %v4521 = vrot.slane %v4519, 3
        %v4522 = vor.u32 %v4518, %v4521
        %v4524 = vshrl.u32 %v3941, 16
        %v4526 = vrot.slane %v4524, 2
        %v4527 = vshll.u32 %v3941, 16
        %v4529 = vrot.slane %v4527, 3
        %v4530 = vor.u32 %v4526, %v4529
        %v4531 = vsel %vm4497, %v4522, %v4530
        %v4533 = vshrl.u32 %v3942, 16
        %v4535 = vrot.slane %v4533, 2
        %v4536 = vshll.u32 %v3942, 16
        %v4538 = vrot.slane %v4536, 3
        %v4539 = vor.u32 %v4535, %v4538
        %v4540 = vsel %vm4497, %v4513, %v4539
        %v4542 = vshrl.u32 %v3943, 16
        %v4544 = vrot.slane %v4542, 2
        %v4545 = vshll.u32 %v3943, 16
        %v4547 = vrot.slane %v4545, 3
        %v4548 = vor.u32 %v4544, %v4547
        %v4549 = vsel %vm4497, %v4530, %v4548
        %v4551 = vshrl.u32 %v3944, 16
        %v4553 = vrot.slane %v4551, 2
        %v4554 = vshll.u32 %v3944, 16
        %v4556 = vrot.slane %v4554, 3
        %v4557 = vor.u32 %v4553, %v4556
        %v4558 = vsel %vm4497, %v4539, %v4557
        %v4560 = vshrl.u32 %v3945, 16
        %v4562 = vrot.slane %v4560, 2
        %v4563 = vshll.u32 %v3945, 16
        %v4565 = vrot.slane %v4563, 3
        %v4566 = vor.u32 %v4562, %v4565
        %v4567 = vsel %vm4497, %v4548, %v4566
        %v4569 = vshrl.u32 %v3946, 16
        %v4571 = vrot.slane %v4569, 2
        %v4572 = vshll.u32 %v3946, 16
        %v4574 = vrot.slane %v4572, 3
        %v4575 = vor.u32 %v4571, %v4574
        %v4576 = vsel %vm4497, %v4557, %v4575
        %v4578 = vshrl.u32 %v3947, 16
        %v4580 = vrot.slane %v4578, 2
        %v4581 = vshll.u32 %v3947, 16
        %v4583 = vrot.slane %v4581, 3
        %v4584 = vor.u32 %v4580, %v4583
        %v4585 = vsel %vm4497, %v4566, %v4584
        %v4587 = vshrl.u32 %v3948, 16
        %v4589 = vrot.slane %v4587, 2
        %v4590 = vshll.u32 %v3948, 16
        %v4592 = vrot.slane %v4590, 3
        %v4593 = vor.u32 %v4589, %v4592
        %v4594 = vsel %vm4497, %v4575, %v4593
        %v4596 = vshrl.u32 %v3949, 16
        %v4598 = vrot.slane %v4596, 2
        %v4599 = vshll.u32 %v3949, 16
        %v4601 = vrot.slane %v4599, 3
        %v4602 = vor.u32 %v4598, %v4601
        %v4603 = vsel %vm4497, %v4584, %v4602
        %v4605 = vshrl.u32 %v3950, 16
        %v4607 = vrot.slane %v4605, 2
        %v4608 = vshll.u32 %v3950, 16
        %v4610 = vrot.slane %v4608, 3
        %v4611 = vor.u32 %v4607, %v4610
        %v4612 = vsel %vm4497, %v4593, %v4611
        %v4614 = vshrl.u32 %v3951, 16
        %v4616 = vrot.slane %v4614, 2
        %v4617 = vshll.u32 %v3951, 16
        %v4619 = vrot.slane %v4617, 3
        %v4620 = vor.u32 %v4616, %v4619
        %v4621 = vsel %vm4497, %v4602, %v4620
        %v4623 = vshrl.u32 %v3952, 16
        %v4625 = vrot.slane %v4623, 2
        %v4626 = vshll.u32 %v3952, 16
        %v4628 = vrot.slane %v4626, 3
        %v4629 = vor.u32 %v4625, %v4628
        %v4630 = vsel %vm4497, %v4611, %v4629
        %v4632 = vshrl.u32 %v3953, 16
        %v4634 = vrot.slane %v4632, 2
        %v4635 = vshll.u32 %v3953, 16
        %v4637 = vrot.slane %v4635, 3
        %v4638 = vor.u32 %v4634, %v4637
        %v4639 = vsel %vm4497, %v4620, %v4638
        %v4641 = vshrl.u32 %v3954, 16
        %v4643 = vrot.slane %v4641, 2
        %v4644 = vshll.u32 %v3954, 16
        %v4646 = vrot.slane %v4644, 3
        %v4647 = vor.u32 %v4643, %v4646
        %v4648 = vsel %vm4497, %v4629, %v4647
        %v4650 = vshrl.u32 %v3955, 16
        %v4652 = vrot.slane %v4650, 2
        %v4653 = vshll.u32 %v3955, 16
        %v4655 = vrot.slane %v4653, 3
        %v4656 = vor.u32 %v4652, %v4655
        %v4657 = vsel %vm4497, %v4638, %v4656
        %v4659 = vshrl.u32 %v3956, 16
        %v4661 = vrot.slane %v4659, 2
        %v4662 = vshll.u32 %v3956, 16
        %v4664 = vrot.slane %v4662, 3
        %v4665 = vor.u32 %v4661, %v4664
        %v4666 = vsel %vm4497, %v4647, %v4665
        %v4668 = vshrl.u32 %v3957, 16
        %v4670 = vrot.slane %v4668, 2
        %v4671 = vshll.u32 %v3957, 16
        %v4673 = vrot.slane %v4671, 3
        %v4674 = vor.u32 %v4670, %v4673
        %v4675 = vsel %vm4497, %v4656, %v4674
        %v4677 = vshrl.u32 %v4495, 16
        %v4679 = vrot.slane %v4677, 2
        %v4680 = vshll.u32 %v4495, 16
        %v4682 = vrot.slane %v4680, 3
        %v4683 = vor.u32 %v4679, %v4682
        %v4684 = vsel %vm4497, %v4665, %v4683
        %v4686 = vshrl.u32 %v4496, 16
        %v4688 = vrot.slane %v4686, 2
        %v4689 = vshll.u32 %v4496, 16
        %v4691 = vrot.slane %v4689, 3
        %v4692 = vor.u32 %v4688, %v4691
        %v4693 = vsel %vm4497, %v4674, %v4692
        %v4746 = vunpack.c.l.b16 %v4460
        %v4747 = vunpack.c.h.b16 %v4460
        %v4748 = vunpack.c.l.b16 %v4461
        %v4749 = vunpack.c.h.b16 %v4461
        %v4750 = vunpack.c.l.b16 %v4462
        %v4751 = vunpack.c.h.b16 %v4462
        %v4752 = vunpack.c.l.b16 %v4463
        %v4753 = vunpack.c.h.b16 %v4463
        %v4754 = vunpack.c.l.b16 %v4464
        %v4755 = vunpack.c.h.b16 %v4464
        %v4756 = vunpack.c.l.b16 %v4465
        %v4757 = vunpack.c.h.b16 %v4465
        %v4758 = vunpack.c.l.b16 %v4466
        %v4759 = vunpack.c.h.b16 %v4466
        %v4760 = vunpack.c.l.b16 %v4467
        %v4761 = vunpack.c.h.b16 %v4467
        %v4762 = vunpack.c.l.b16 %v4468
        %v4763 = vunpack.c.h.b16 %v4468
        %v4764 = vunpack.c.l.b16 %v4469
        %v4765 = vunpack.c.h.b16 %v4469
        %v4766 = vunpack.c.l.b16 %v4470
        %v4767 = vunpack.c.h.b16 %v4470
        %v4768 = vunpack.c.l.b16 %v4471
        %v4769 = vunpack.c.h.b16 %v4471
        %v4770 = vunpack.c.l.b16 %v4472
        %v4771 = vunpack.c.h.b16 %v4472
        %v4772 = vunpack.c.l.b16 %v4473
        %v4773 = vunpack.c.h.b16 %v4473
        %v4774 = vunpack.c.l.b16 %v4474
        %v4775 = vunpack.c.h.b16 %v4474
        %v4776 = vunpack.c.l.b16 %v4475
        %v4777 = vunpack.c.h.b16 %v4475
        %v4778 = vunpack.c.l.b16 %v4476
        %v4779 = vunpack.c.h.b16 %v4476
        %v4780 = vunpack.c.l.b16 %v4477
        %v4781 = vunpack.c.h.b16 %v4477
        %v4782 = vunpack.c.l.b16 %v4478
        %v4783 = vunpack.c.h.b16 %v4478
        %v4784 = vunpack.c.l.b16 %v4479
        %v4785 = vunpack.c.h.b16 %v4479
        %v4786 = vunpack.c.l.b16 %v4480
        %v4787 = vunpack.c.h.b16 %v4480
        %v4788 = vunpack.c.l.b16 %v4481
        %v4789 = vunpack.c.h.b16 %v4481
        %v4790 = vunpack.c.l.b16 %v4482
        %v4791 = vunpack.c.h.b16 %v4482
        %v4792 = vunpack.c.l.b16 %v4483
        %v4793 = vunpack.c.h.b16 %v4483
        %v4794 = vunpack.c.l.b16 %v4484
        %v4795 = vunpack.c.h.b16 %v4484
        %v4796 = vunpack.c.l.b16 %v4485
        %v4797 = vunpack.c.h.b16 %v4485
        %v4798 = vunpack.c.l.b16 %v4486
        %v4799 = vunpack.c.h.b16 %v4486
        %v4800 = vunpack.c.l.b16 %v4487
        %v4801 = vunpack.c.h.b16 %v4487
        %v4802 = vunpack.c.l.b16 %v4488
        %v4803 = vunpack.c.h.b16 %v4488
        %v4804 = vunpack.c.l.b16 %v4489
        %v4805 = vunpack.c.h.b16 %v4489
        %v4806 = vunpack.c.l.b16 %v4490
        %v4807 = vunpack.c.h.b16 %v4490
        %v4808 = vunpack.c.l.b16 %v4491
        %v4809 = vunpack.c.h.b16 %v4491
        %v4810 = vpack.c.b16 %v4748, %v4746
        %v4811 = vpack.c.b16 %v4749, %v4747
        %v4812 = vpack.c.b16 %v4752, %v4750
        %v4813 = vpack.c.b16 %v4753, %v4751
        %v4814 = vpack.c.b16 %v4756, %v4754
        %v4815 = vpack.c.b16 %v4757, %v4755
        %v4816 = vpack.c.b16 %v4760, %v4758
        %v4817 = vpack.c.b16 %v4761, %v4759
        %v4818 = vpack.c.b16 %v4764, %v4762
        %v4819 = vpack.c.b16 %v4765, %v4763
        %v4820 = vpack.c.b16 %v4768, %v4766
        %v4821 = vpack.c.b16 %v4769, %v4767
        %v4822 = vpack.c.b16 %v4772, %v4770
        %v4823 = vpack.c.b16 %v4773, %v4771
        %v4824 = vpack.c.b16 %v4776, %v4774
        %v4825 = vpack.c.b16 %v4777, %v4775
        %v4826 = vpack.c.b16 %v4780, %v4778
        %v4827 = vpack.c.b16 %v4781, %v4779
        %v4828 = vpack.c.b16 %v4784, %v4782
        %v4829 = vpack.c.b16 %v4785, %v4783
        %v4830 = vpack.c.b16 %v4788, %v4786
        %v4831 = vpack.c.b16 %v4789, %v4787
        %v4832 = vpack.c.b16 %v4792, %v4790
        %v4833 = vpack.c.b16 %v4793, %v4791
        %v4834 = vpack.c.b16 %v4796, %v4794
        %v4835 = vpack.c.b16 %v4797, %v4795
        %v4836 = vpack.c.b16 %v4800, %v4798
        %v4837 = vpack.c.b16 %v4801, %v4799
        %v4838 = vpack.c.b16 %v4804, %v4802
        %v4839 = vpack.c.b16 %v4805, %v4803
        %v4840 = vpack.c.b16 %v4808, %v4806
        %v4841 = vpack.c.b16 %v4809, %v4807
        %4874 = vmatpush.bf16.msra.mxu0 %v4824
        %4875 = vmatpush.bf16.msra.mxu0 %v4822
        %4876 = vmatpush.bf16.msra.mxu0 %v4820
        %4877 = vmatpush.bf16.msra.mxu0 %v4818
        %4878 = vmatpush.bf16.msra.mxu0 %v4816
        %4879 = vmatpush.bf16.msra.mxu0 %v4814
        %4880 = vmatpush.bf16.msra.mxu0 %v4812
        %4881 = vmatpush.bf16.msra.mxu0 %v4810
        %4882 = vmatmul.bf16.gmra.mxu0 %v4514
        %v4883 = vpop.f32.mrf.mxu0
        %v4884 = vadd.f32 0.0, %v4883
        %v4885 = vpop.f32.mrf.mxu0
        %v4886 = vadd.f32 0.0, %v4885
        %4887 = vmatmul.bf16.gmra.mxu0 %v4540
        %v4888 = vpop.f32.mrf.mxu0
        %v4889 = vadd.f32 0.0, %v4888
        %v4890 = vpop.f32.mrf.mxu0
        %v4891 = vadd.f32 0.0, %v4890
        %4892 = vmatmul.bf16.gmra.mxu0 %v4558
        %v4893 = vpop.f32.mrf.mxu0
        %v4894 = vadd.f32 0.0, %v4893
        %v4895 = vpop.f32.mrf.mxu0
        %v4896 = vadd.f32 0.0, %v4895
        %4897 = vmatmul.bf16.gmra.mxu0 %v4576
        %v4898 = vpop.f32.mrf.mxu0
        %v4899 = vadd.f32 0.0, %v4898
        %v4900 = vpop.f32.mrf.mxu0
        %v4901 = vadd.f32 0.0, %v4900
        %4902 = vmatmul.bf16.gmra.mxu0 %v4594
        %v4903 = vpop.f32.mrf.mxu0
        %v4904 = vadd.f32 0.0, %v4903
        %v4905 = vpop.f32.mrf.mxu0
        %v4906 = vadd.f32 0.0, %v4905
        %4907 = vmatmul.bf16.gmra.mxu0 %v4612
        %v4908 = vpop.f32.mrf.mxu0
        %v4909 = vadd.f32 0.0, %v4908
        %v4910 = vpop.f32.mrf.mxu0
        %v4911 = vadd.f32 0.0, %v4910
        %4912 = vmatmul.bf16.gmra.mxu0 %v4630
        %v4913 = vpop.f32.mrf.mxu0
        %v4914 = vadd.f32 0.0, %v4913
        %v4915 = vpop.f32.mrf.mxu0
        %v4916 = vadd.f32 0.0, %v4915
        %4917 = vmatmul.bf16.gmra.mxu0 %v4648
        %v4918 = vpop.f32.mrf.mxu0
        %v4919 = vadd.f32 0.0, %v4918
        %v4920 = vpop.f32.mrf.mxu0
        %v4921 = vadd.f32 0.0, %v4920
        %4922 = vmatmul.bf16.gmra.mxu0 %v4666
        %v4923 = vpop.f32.mrf.mxu0
        %v4924 = vadd.f32 0.0, %v4923
        %v4925 = vpop.f32.mrf.mxu0
        %v4926 = vadd.f32 0.0, %v4925
        %4927 = vmatmul.bf16.gmra.mxu0 %v4684
        %v4928 = vpop.f32.mrf.mxu0
        %v4929 = vadd.f32 0.0, %v4928
        %v4930 = vpop.f32.mrf.mxu0
        %v4931 = vadd.f32 0.0, %v4930
        %4932 = vdwg.mxu0
        %4933 = vmatpush.bf16.msra.mxu0 %v4840
        %4934 = vmatpush.bf16.msra.mxu0 %v4838
        %4935 = vmatpush.bf16.msra.mxu0 %v4836
        %4936 = vmatpush.bf16.msra.mxu0 %v4834
        %4937 = vmatpush.bf16.msra.mxu0 %v4832
        %4938 = vmatpush.bf16.msra.mxu0 %v4830
        %4939 = vmatpush.bf16.msra.mxu0 %v4828
        %4940 = vmatpush.bf16.msra.mxu0 %v4826
        %4941 = vmatmul.bf16.gmra.mxu0 %v4531
        %v4942 = vpop.f32.mrf.mxu0
        %v4943 = vadd.f32 %v4884, %v4942
        %v4944 = vpop.f32.mrf.mxu0
        %v4945 = vadd.f32 %v4886, %v4944
        %4946 = vmatmul.bf16.gmra.mxu0 %v4549
        %v4947 = vpop.f32.mrf.mxu0
        %v4948 = vadd.f32 %v4889, %v4947
        %v4949 = vpop.f32.mrf.mxu0
        %v4950 = vadd.f32 %v4891, %v4949
        %4951 = vmatmul.bf16.gmra.mxu0 %v4567
        %v4952 = vpop.f32.mrf.mxu0
        %v4953 = vadd.f32 %v4894, %v4952
        %v4954 = vpop.f32.mrf.mxu0
        %v4955 = vadd.f32 %v4896, %v4954
        %4956 = vmatmul.bf16.gmra.mxu0 %v4585
        %v4957 = vpop.f32.mrf.mxu0
        %v4958 = vadd.f32 %v4899, %v4957
        %v4959 = vpop.f32.mrf.mxu0
        %v4960 = vadd.f32 %v4901, %v4959
        %4961 = vmatmul.bf16.gmra.mxu0 %v4603
        %v4962 = vpop.f32.mrf.mxu0
        %v4963 = vadd.f32 %v4904, %v4962
        %v4964 = vpop.f32.mrf.mxu0
        %v4965 = vadd.f32 %v4906, %v4964
        %4966 = vmatmul.bf16.gmra.mxu0 %v4621
        %v4967 = vpop.f32.mrf.mxu0
        %v4968 = vadd.f32 %v4909, %v4967
        %v4969 = vpop.f32.mrf.mxu0
        %v4970 = vadd.f32 %v4911, %v4969
        %4971 = vmatmul.bf16.gmra.mxu0 %v4639
        %v4972 = vpop.f32.mrf.mxu0
        %v4973 = vadd.f32 %v4914, %v4972
        %v4974 = vpop.f32.mrf.mxu0
        %v4975 = vadd.f32 %v4916, %v4974
        %4976 = vmatmul.bf16.gmra.mxu0 %v4657
        %v4977 = vpop.f32.mrf.mxu0
        %v4978 = vadd.f32 %v4919, %v4977
        %v4979 = vpop.f32.mrf.mxu0
        %v4980 = vadd.f32 %v4921, %v4979
        %4981 = vmatmul.bf16.gmra.mxu0 %v4675
        %v4982 = vpop.f32.mrf.mxu0
        %v4983 = vadd.f32 %v4924, %v4982
        %v4984 = vpop.f32.mrf.mxu0
        %v4985 = vadd.f32 %v4926, %v4984
        %4986 = vmatmul.bf16.gmra.mxu0 %v4693
        %v4987 = vpop.f32.mrf.mxu0
        %v4988 = vadd.f32 %v4929, %v4987
        %v4989 = vpop.f32.mrf.mxu0
        %v4990 = vadd.f32 %v4931, %v4989
        %4991 = vdwg.mxu0
        %4992 = vmatpush.bf16.msra.mxu0 %v4825
        %4993 = vmatpush.bf16.msra.mxu0 %v4823
        %4994 = vmatpush.bf16.msra.mxu0 %v4821
        %4995 = vmatpush.bf16.msra.mxu0 %v4819
        %4996 = vmatpush.bf16.msra.mxu0 %v4817
        %4997 = vmatpush.bf16.msra.mxu0 %v4815
        %4998 = vmatpush.bf16.msra.mxu0 %v4813
        %4999 = vmatpush.bf16.msra.mxu0 %v4811
        %5000 = vmatmul.bf16.gmra.mxu0 %v4514
        %v5001 = vpop.f32.mrf.mxu0
        %v5002 = vadd.f32 0.0, %v5001
        %v5003 = vpop.f32.mrf.mxu0
        %v5004 = vadd.f32 0.0, %v5003
        %5005 = vmatmul.bf16.gmra.mxu0 %v4540
        %v5006 = vpop.f32.mrf.mxu0
        %v5007 = vadd.f32 0.0, %v5006
        %v5008 = vpop.f32.mrf.mxu0
        %v5009 = vadd.f32 0.0, %v5008
        %5010 = vmatmul.bf16.gmra.mxu0 %v4558
        %v5011 = vpop.f32.mrf.mxu0
        %v5012 = vadd.f32 0.0, %v5011
        %v5013 = vpop.f32.mrf.mxu0
        %v5014 = vadd.f32 0.0, %v5013
        %5015 = vmatmul.bf16.gmra.mxu0 %v4576
        %v5016 = vpop.f32.mrf.mxu0
        %v5017 = vadd.f32 0.0, %v5016
        %v5018 = vpop.f32.mrf.mxu0
        %v5019 = vadd.f32 0.0, %v5018
        %5020 = vmatmul.bf16.gmra.mxu0 %v4594
        %v5021 = vpop.f32.mrf.mxu0
        %v5022 = vadd.f32 0.0, %v5021
        %v5023 = vpop.f32.mrf.mxu0
        %v5024 = vadd.f32 0.0, %v5023
        %5025 = vmatmul.bf16.gmra.mxu0 %v4612
        %v5026 = vpop.f32.mrf.mxu0
        %v5027 = vadd.f32 0.0, %v5026
        %v5028 = vpop.f32.mrf.mxu0
        %v5029 = vadd.f32 0.0, %v5028
        %5030 = vmatmul.bf16.gmra.mxu0 %v4630
        %v5031 = vpop.f32.mrf.mxu0
        %v5032 = vadd.f32 0.0, %v5031
        %v5033 = vpop.f32.mrf.mxu0
        %v5034 = vadd.f32 0.0, %v5033
        %5035 = vmatmul.bf16.gmra.mxu0 %v4648
        %v5036 = vpop.f32.mrf.mxu0
        %v5037 = vadd.f32 0.0, %v5036
        %v5038 = vpop.f32.mrf.mxu0
        %v5039 = vadd.f32 0.0, %v5038
        %5040 = vmatmul.bf16.gmra.mxu0 %v4666
        %v5041 = vpop.f32.mrf.mxu0
        %v5042 = vadd.f32 0.0, %v5041
        %v5043 = vpop.f32.mrf.mxu0
        %v5044 = vadd.f32 0.0, %v5043
        %5045 = vmatmul.bf16.gmra.mxu0 %v4684
        %v5046 = vpop.f32.mrf.mxu0
        %v5047 = vadd.f32 0.0, %v5046
        %v5048 = vpop.f32.mrf.mxu0
        %v5049 = vadd.f32 0.0, %v5048
        %5050 = vdwg.mxu0
        %5051 = vmatpush.bf16.msra.mxu0 %v4841
        %5052 = vmatpush.bf16.msra.mxu0 %v4839
        %5053 = vmatpush.bf16.msra.mxu0 %v4837
        %5054 = vmatpush.bf16.msra.mxu0 %v4835
        %5055 = vmatpush.bf16.msra.mxu0 %v4833
        %5056 = vmatpush.bf16.msra.mxu0 %v4831
        %5057 = vmatpush.bf16.msra.mxu0 %v4829
        %5058 = vmatpush.bf16.msra.mxu0 %v4827
        %5059 = vmatmul.bf16.gmra.mxu0 %v4531
        %v5060 = vpop.f32.mrf.mxu0
        %v5061 = vadd.f32 %v5002, %v5060
        %v5062 = vpop.f32.mrf.mxu0
        %v5063 = vadd.f32 %v5004, %v5062
        %5064 = vmatmul.bf16.gmra.mxu0 %v4549
        %v5065 = vpop.f32.mrf.mxu0
        %v5066 = vadd.f32 %v5007, %v5065
        %v5067 = vpop.f32.mrf.mxu0
        %v5068 = vadd.f32 %v5009, %v5067
        %5069 = vmatmul.bf16.gmra.mxu0 %v4567
        %v5070 = vpop.f32.mrf.mxu0
        %v5071 = vadd.f32 %v5012, %v5070
        %v5072 = vpop.f32.mrf.mxu0
        %v5073 = vadd.f32 %v5014, %v5072
        %5074 = vmatmul.bf16.gmra.mxu0 %v4585
        %v5075 = vpop.f32.mrf.mxu0
        %v5076 = vadd.f32 %v5017, %v5075
        %v5077 = vpop.f32.mrf.mxu0
        %v5078 = vadd.f32 %v5019, %v5077
        %5079 = vmatmul.bf16.gmra.mxu0 %v4603
        %v5080 = vpop.f32.mrf.mxu0
        %v5081 = vadd.f32 %v5022, %v5080
        %v5082 = vpop.f32.mrf.mxu0
        %v5083 = vadd.f32 %v5024, %v5082
        %5084 = vmatmul.bf16.gmra.mxu0 %v4621
        %v5085 = vpop.f32.mrf.mxu0
        %v5086 = vadd.f32 %v5027, %v5085
        %v5087 = vpop.f32.mrf.mxu0
        %v5088 = vadd.f32 %v5029, %v5087
        %5089 = vmatmul.bf16.gmra.mxu0 %v4639
        %v5090 = vpop.f32.mrf.mxu0
        %v5091 = vadd.f32 %v5032, %v5090
        %v5092 = vpop.f32.mrf.mxu0
        %v5093 = vadd.f32 %v5034, %v5092
        %5094 = vmatmul.bf16.gmra.mxu0 %v4657
        %v5095 = vpop.f32.mrf.mxu0
        %v5096 = vadd.f32 %v5037, %v5095
        %v5097 = vpop.f32.mrf.mxu0
        %v5098 = vadd.f32 %v5039, %v5097
        %5099 = vmatmul.bf16.gmra.mxu0 %v4675
        %v5100 = vpop.f32.mrf.mxu0
        %v5101 = vadd.f32 %v5042, %v5100
        %v5102 = vpop.f32.mrf.mxu0
        %v5103 = vadd.f32 %v5044, %v5102
        %5104 = vmatmul.bf16.gmra.mxu0 %v4693
        %v5105 = vpop.f32.mrf.mxu0
        %v5106 = vadd.f32 %v5047, %v5105
        %v5107 = vpop.f32.mrf.mxu0
        %v5108 = vadd.f32 %v5049, %v5107
        %5109 = vdwg.mxu0
        %v5110 = vadd.f32 %v4418, %v4943
        %v5111 = vadd.f32 %v4419, %v5061
        %v5112 = vadd.f32 %v4420, %v4945
        %v5113 = vadd.f32 %v4421, %v5063
        %v5114 = vadd.f32 %v4422, %v4948
        %v5115 = vadd.f32 %v4423, %v5066
        %v5116 = vadd.f32 %v4424, %v4950
        %v5117 = vadd.f32 %v4425, %v5068
        %v5118 = vadd.f32 %v4426, %v4953
        %v5119 = vadd.f32 %v4427, %v5071
        %v5120 = vadd.f32 %v4428, %v4955
        %v5121 = vadd.f32 %v4429, %v5073
        %v5122 = vadd.f32 %v4430, %v4958
        %v5123 = vadd.f32 %v4431, %v5076
        %v5124 = vadd.f32 %v4432, %v4960
        %v5125 = vadd.f32 %v4433, %v5078
        %v5126 = vadd.f32 %v4434, %v4963
        %v5127 = vadd.f32 %v4435, %v5081
        %v5128 = vadd.f32 %v4436, %v4965
        %v5129 = vadd.f32 %v4437, %v5083
        %v5130 = vadd.f32 %v4438, %v4968
        %v5131 = vadd.f32 %v4439, %v5086
        %v5132 = vadd.f32 %v4440, %v4970
        %v5133 = vadd.f32 %v4441, %v5088
        %v5134 = vadd.f32 %v4442, %v4973
        %v5135 = vadd.f32 %v4443, %v5091
        %v5136 = vadd.f32 %v4444, %v4975
        %v5137 = vadd.f32 %v4445, %v5093
        %v5138 = vadd.f32 %v4446, %v4978
        %v5139 = vadd.f32 %v4447, %v5096
        %v5140 = vadd.f32 %v4448, %v4980
        %v5141 = vadd.f32 %v4449, %v5098
        %v5142 = vadd.f32 %v4450, %v4983
        %v5143 = vadd.f32 %v4451, %v5101
        %v5144 = vadd.f32 %v4452, %v4985
        %v5145 = vadd.f32 %v4453, %v5103
        %v5146 = vadd.f32 %v4454, %v4988
        %v5147 = vadd.f32 %v4455, %v5106
        %v5148 = vadd.f32 %v4456, %v4990
        %v5149 = vadd.f32 %v4457, %v5108
        %v5150 = vld [vmem:[%s238 + $0x10] sm:$0x88]
        %s5151 = scalar_lea.vmem [#allocation2], 2048
        %v5152 = vld [vmem:[%s5151] sm:$0xff]
        %v5153 = vld [vmem:[%s5151 + $0x8] sm:$0xff]
        %v5154 = vld [vmem:[%s5151 + $0x10] sm:$0xff]
        %v5155 = vld [vmem:[%s5151 + $0x18] sm:$0xff]
        %v5156 = vld [vmem:[%s5151 + $0x20] sm:$0xff]
        %v5157 = vld [vmem:[%s5151 + $0x28] sm:$0xff]
        %v5158 = vld [vmem:[%s5151 + $0x30] sm:$0xff]
        %v5159 = vld [vmem:[%s5151 + $0x38] sm:$0xff]
        %v5160 = vld [vmem:[%s5151 + $0x40] sm:$0xff]
        %v5161 = vld [vmem:[%s5151 + $0x48] sm:$0xff]
        %v5162 = vld [vmem:[%s5151 + $0x50] sm:$0xff]
        %v5163 = vld [vmem:[%s5151 + $0x58] sm:$0xff]
        %v5164 = vld [vmem:[%s5151 + $0x60] sm:$0xff]
        %v5165 = vld [vmem:[%s5151 + $0x68] sm:$0xff]
        %v5166 = vld [vmem:[%s5151 + $0x70] sm:$0xff]
        %v5167 = vld [vmem:[%s5151 + $0x78] sm:$0xff]
        %v5168 = vld [vmem:[%s5151 + $0x80] sm:$0xff]
        %v5169 = vld [vmem:[%s5151 + $0x88] sm:$0xff]
        %v5170 = vld [vmem:[%s5151 + $0x90] sm:$0xff]
        %v5171 = vld [vmem:[%s5151 + $0x98] sm:$0xff]
        %v5172 = vld [vmem:[%s5151 + $0xa0] sm:$0xff]
        %v5173 = vld [vmem:[%s5151 + $0xa8] sm:$0xff]
        %v5174 = vld [vmem:[%s5151 + $0xb0] sm:$0xff]
        %v5175 = vld [vmem:[%s5151 + $0xb8] sm:$0xff]
        %v5176 = vld [vmem:[%s5151 + $0xc0] sm:$0xff]
        %v5177 = vld [vmem:[%s5151 + $0xc8] sm:$0xff]
        %v5178 = vld [vmem:[%s5151 + $0xd0] sm:$0xff]
        %v5179 = vld [vmem:[%s5151 + $0xd8] sm:$0xff]
        %v5180 = vld [vmem:[%s5151 + $0xe0] sm:$0xff]
        %v5181 = vld [vmem:[%s5151 + $0xe8] sm:$0xff]
        %v5182 = vld [vmem:[%s5151 + $0xf0] sm:$0xff]
        %v5183 = vld [vmem:[%s5151 + $0xf8] sm:$0xff]
        %v5185 = vunpack.c.l.b16 %v5150
        %v5186 = vunpack.c.h.b16 %v5150
        %v5187 = vpack.c.b16 %v3898, %v5185
        %v5188 = vpack.c.b16 %v3899, %v5186
        %vm5189 = vcmask 1044480
        %v5190 = vrot.slane %v5187, 3
        %v5191 = vrot.slane %v3940, 3
        %v5192 = vsel %vm5189, %v5190, %v5191
        %v5193 = vrot.slane %v5188, 3
        %v5194 = vrot.slane %v3941, 3
        %v5195 = vsel %vm5189, %v5193, %v5194
        %v5196 = vrot.slane %v3942, 3
        %v5197 = vsel %vm5189, %v5191, %v5196
        %v5198 = vrot.slane %v3943, 3
        %v5199 = vsel %vm5189, %v5194, %v5198
        %v5200 = vrot.slane %v3944, 3
        %v5201 = vsel %vm5189, %v5196, %v5200
        %v5202 = vrot.slane %v3945, 3
        %v5203 = vsel %vm5189, %v5198, %v5202
        %v5204 = vrot.slane %v3946, 3
        %v5205 = vsel %vm5189, %v5200, %v5204
        %v5206 = vrot.slane %v3947, 3
        %v5207 = vsel %vm5189, %v5202, %v5206
        %v5208 = vrot.slane %v3948, 3
        %v5209 = vsel %vm5189, %v5204, %v5208
        %v5210 = vrot.slane %v3949, 3
        %v5211 = vsel %vm5189, %v5206, %v5210
        %v5212 = vrot.slane %v3950, 3
        %v5213 = vsel %vm5189, %v5208, %v5212
        %v5214 = vrot.slane %v3951, 3
        %v5215 = vsel %vm5189, %v5210, %v5214
        %v5216 = vrot.slane %v3952, 3
        %v5217 = vsel %vm5189, %v5212, %v5216
        %v5218 = vrot.slane %v3953, 3
        %v5219 = vsel %vm5189, %v5214, %v5218
        %v5220 = vrot.slane %v3954, 3
        %v5221 = vsel %vm5189, %v5216, %v5220
        %v5222 = vrot.slane %v3955, 3
        %v5223 = vsel %vm5189, %v5218, %v5222
        %v5224 = vrot.slane %v3956, 3
        %v5225 = vsel %vm5189, %v5220, %v5224
        %v5226 = vrot.slane %v3957, 3
        %v5227 = vsel %vm5189, %v5222, %v5226
        %v5228 = vrot.slane %v4495, 3
        %v5229 = vsel %vm5189, %v5224, %v5228
        %v5230 = vrot.slane %v4496, 3
        %v5231 = vsel %vm5189, %v5226, %v5230
        %v5284 = vunpack.c.l.b16 %v5152
        %v5285 = vunpack.c.h.b16 %v5152
        %v5286 = vunpack.c.l.b16 %v5153
        %v5287 = vunpack.c.h.b16 %v5153
        %v5288 = vunpack.c.l.b16 %v5154
        %v5289 = vunpack.c.h.b16 %v5154
        %v5290 = vunpack.c.l.b16 %v5155
        %v5291 = vunpack.c.h.b16 %v5155
        %v5292 = vunpack.c.l.b16 %v5156
        %v5293 = vunpack.c.h.b16 %v5156
        %v5294 = vunpack.c.l.b16 %v5157
        %v5295 = vunpack.c.h.b16 %v5157
        %v5296 = vunpack.c.l.b16 %v5158
        %v5297 = vunpack.c.h.b16 %v5158
        %v5298 = vunpack.c.l.b16 %v5159
        %v5299 = vunpack.c.h.b16 %v5159
        %v5300 = vunpack.c.l.b16 %v5160
        %v5301 = vunpack.c.h.b16 %v5160
        %v5302 = vunpack.c.l.b16 %v5161
        %v5303 = vunpack.c.h.b16 %v5161
        %v5304 = vunpack.c.l.b16 %v5162
        %v5305 = vunpack.c.h.b16 %v5162
        %v5306 = vunpack.c.l.b16 %v5163
        %v5307 = vunpack.c.h.b16 %v5163
        %v5308 = vunpack.c.l.b16 %v5164
        %v5309 = vunpack.c.h.b16 %v5164
        %v5310 = vunpack.c.l.b16 %v5165
        %v5311 = vunpack.c.h.b16 %v5165
        %v5312 = vunpack.c.l.b16 %v5166
        %v5313 = vunpack.c.h.b16 %v5166
        %v5314 = vunpack.c.l.b16 %v5167
        %v5315 = vunpack.c.h.b16 %v5167
        %v5316 = vunpack.c.l.b16 %v5168
        %v5317 = vunpack.c.h.b16 %v5168
        %v5318 = vunpack.c.l.b16 %v5169
        %v5319 = vunpack.c.h.b16 %v5169
        %v5320 = vunpack.c.l.b16 %v5170
        %v5321 = vunpack.c.h.b16 %v5170
        %v5322 = vunpack.c.l.b16 %v5171
        %v5323 = vunpack.c.h.b16 %v5171
        %v5324 = vunpack.c.l.b16 %v5172
        %v5325 = vunpack.c.h.b16 %v5172
        %v5326 = vunpack.c.l.b16 %v5173
        %v5327 = vunpack.c.h.b16 %v5173
        %v5328 = vunpack.c.l.b16 %v5174
        %v5329 = vunpack.c.h.b16 %v5174
        %v5330 = vunpack.c.l.b16 %v5175
        %v5331 = vunpack.c.h.b16 %v5175
        %v5332 = vunpack.c.l.b16 %v5176
        %v5333 = vunpack.c.h.b16 %v5176
        %v5334 = vunpack.c.l.b16 %v5177
        %v5335 = vunpack.c.h.b16 %v5177
        %v5336 = vunpack.c.l.b16 %v5178
        %v5337 = vunpack.c.h.b16 %v5178
        %v5338 = vunpack.c.l.b16 %v5179
        %v5339 = vunpack.c.h.b16 %v5179
        %v5340 = vunpack.c.l.b16 %v5180
        %v5341 = vunpack.c.h.b16 %v5180
        %v5342 = vunpack.c.l.b16 %v5181
        %v5343 = vunpack.c.h.b16 %v5181
        %v5344 = vunpack.c.l.b16 %v5182
        %v5345 = vunpack.c.h.b16 %v5182
        %v5346 = vunpack.c.l.b16 %v5183
        %v5347 = vunpack.c.h.b16 %v5183
        %v5348 = vpack.c.b16 %v5286, %v5284
        %v5349 = vpack.c.b16 %v5287, %v5285
        %v5350 = vpack.c.b16 %v5290, %v5288
        %v5351 = vpack.c.b16 %v5291, %v5289
        %v5352 = vpack.c.b16 %v5294, %v5292
        %v5353 = vpack.c.b16 %v5295, %v5293
        %v5354 = vpack.c.b16 %v5298, %v5296
        %v5355 = vpack.c.b16 %v5299, %v5297
        %v5356 = vpack.c.b16 %v5302, %v5300
        %v5357 = vpack.c.b16 %v5303, %v5301
        %v5358 = vpack.c.b16 %v5306, %v5304
        %v5359 = vpack.c.b16 %v5307, %v5305
        %v5360 = vpack.c.b16 %v5310, %v5308
        %v5361 = vpack.c.b16 %v5311, %v5309
        %v5362 = vpack.c.b16 %v5314, %v5312
        %v5363 = vpack.c.b16 %v5315, %v5313
        %v5364 = vpack.c.b16 %v5318, %v5316
        %v5365 = vpack.c.b16 %v5319, %v5317
        %v5366 = vpack.c.b16 %v5322, %v5320
        %v5367 = vpack.c.b16 %v5323, %v5321
        %v5368 = vpack.c.b16 %v5326, %v5324
        %v5369 = vpack.c.b16 %v5327, %v5325
        %v5370 = vpack.c.b16 %v5330, %v5328
        %v5371 = vpack.c.b16 %v5331, %v5329
        %v5372 = vpack.c.b16 %v5334, %v5332
        %v5373 = vpack.c.b16 %v5335, %v5333
        %v5374 = vpack.c.b16 %v5338, %v5336
        %v5375 = vpack.c.b16 %v5339, %v5337
        %v5376 = vpack.c.b16 %v5342, %v5340
        %v5377 = vpack.c.b16 %v5343, %v5341
        %v5378 = vpack.c.b16 %v5346, %v5344
        %v5379 = vpack.c.b16 %v5347, %v5345
        %5412 = vmatpush.bf16.msra.mxu0 %v5362
        %5413 = vmatpush.bf16.msra.mxu0 %v5360
        %5414 = vmatpush.bf16.msra.mxu0 %v5358
        %5415 = vmatpush.bf16.msra.mxu0 %v5356
        %5416 = vmatpush.bf16.msra.mxu0 %v5354
        %5417 = vmatpush.bf16.msra.mxu0 %v5352
        %5418 = vmatpush.bf16.msra.mxu0 %v5350
        %5419 = vmatpush.bf16.msra.mxu0 %v5348
        %5420 = vmatmul.bf16.gmra.mxu0 %v5192
        %v5421 = vpop.f32.mrf.mxu0
        %v5422 = vadd.f32 0.0, %v5421
        %v5423 = vpop.f32.mrf.mxu0
        %v5424 = vadd.f32 0.0, %v5423
        %5425 = vmatmul.bf16.gmra.mxu0 %v5197
        %v5426 = vpop.f32.mrf.mxu0
        %v5427 = vadd.f32 0.0, %v5426
        %v5428 = vpop.f32.mrf.mxu0
        %v5429 = vadd.f32 0.0, %v5428
        %5430 = vmatmul.bf16.gmra.mxu0 %v5201
        %v5431 = vpop.f32.mrf.mxu0
        %v5432 = vadd.f32 0.0, %v5431
        %v5433 = vpop.f32.mrf.mxu0
        %v5434 = vadd.f32 0.0, %v5433
        %5435 = vmatmul.bf16.gmra.mxu0 %v5205
        %v5436 = vpop.f32.mrf.mxu0
        %v5437 = vadd.f32 0.0, %v5436
        %v5438 = vpop.f32.mrf.mxu0
        %v5439 = vadd.f32 0.0, %v5438
        %5440 = vmatmul.bf16.gmra.mxu0 %v5209
        %v5441 = vpop.f32.mrf.mxu0
        %v5442 = vadd.f32 0.0, %v5441
        %v5443 = vpop.f32.mrf.mxu0
        %v5444 = vadd.f32 0.0, %v5443
        %5445 = vmatmul.bf16.gmra.mxu0 %v5213
        %v5446 = vpop.f32.mrf.mxu0
        %v5447 = vadd.f32 0.0, %v5446
        %v5448 = vpop.f32.mrf.mxu0
        %v5449 = vadd.f32 0.0, %v5448
        %5450 = vmatmul.bf16.gmra.mxu0 %v5217
        %v5451 = vpop.f32.mrf.mxu0
        %v5452 = vadd.f32 0.0, %v5451
        %v5453 = vpop.f32.mrf.mxu0
        %v5454 = vadd.f32 0.0, %v5453
        %5455 = vmatmul.bf16.gmra.mxu0 %v5221
        %v5456 = vpop.f32.mrf.mxu0
        %v5457 = vadd.f32 0.0, %v5456
        %v5458 = vpop.f32.mrf.mxu0
        %v5459 = vadd.f32 0.0, %v5458
        %5460 = vmatmul.bf16.gmra.mxu0 %v5225
        %v5461 = vpop.f32.mrf.mxu0
        %v5462 = vadd.f32 0.0, %v5461
        %v5463 = vpop.f32.mrf.mxu0
        %v5464 = vadd.f32 0.0, %v5463
        %5465 = vmatmul.bf16.gmra.mxu0 %v5229
        %v5466 = vpop.f32.mrf.mxu0
        %v5467 = vadd.f32 0.0, %v5466
        %v5468 = vpop.f32.mrf.mxu0
        %v5469 = vadd.f32 0.0, %v5468
        %5470 = vdwg.mxu0
        %5471 = vmatpush.bf16.msra.mxu0 %v5378
        %5472 = vmatpush.bf16.msra.mxu0 %v5376
        %5473 = vmatpush.bf16.msra.mxu0 %v5374
        %5474 = vmatpush.bf16.msra.mxu0 %v5372
        %5475 = vmatpush.bf16.msra.mxu0 %v5370
        %5476 = vmatpush.bf16.msra.mxu0 %v5368
        %5477 = vmatpush.bf16.msra.mxu0 %v5366
        %5478 = vmatpush.bf16.msra.mxu0 %v5364
        %5479 = vmatmul.bf16.gmra.mxu0 %v5195
        %v5480 = vpop.f32.mrf.mxu0
        %v5481 = vadd.f32 %v5422, %v5480
        %v5482 = vpop.f32.mrf.mxu0
        %v5483 = vadd.f32 %v5424, %v5482
        %5484 = vmatmul.bf16.gmra.mxu0 %v5199
        %v5485 = vpop.f32.mrf.mxu0
        %v5486 = vadd.f32 %v5427, %v5485
        %v5487 = vpop.f32.mrf.mxu0
        %v5488 = vadd.f32 %v5429, %v5487
        %5489 = vmatmul.bf16.gmra.mxu0 %v5203
        %v5490 = vpop.f32.mrf.mxu0
        %v5491 = vadd.f32 %v5432, %v5490
        %v5492 = vpop.f32.mrf.mxu0
        %v5493 = vadd.f32 %v5434, %v5492
        %5494 = vmatmul.bf16.gmra.mxu0 %v5207
        %v5495 = vpop.f32.mrf.mxu0
        %v5496 = vadd.f32 %v5437, %v5495
        %v5497 = vpop.f32.mrf.mxu0
        %v5498 = vadd.f32 %v5439, %v5497
        %5499 = vmatmul.bf16.gmra.mxu0 %v5211
        %v5500 = vpop.f32.mrf.mxu0
        %v5501 = vadd.f32 %v5442, %v5500
        %v5502 = vpop.f32.mrf.mxu0
        %v5503 = vadd.f32 %v5444, %v5502
        %5504 = vmatmul.bf16.gmra.mxu0 %v5215
        %v5505 = vpop.f32.mrf.mxu0
        %v5506 = vadd.f32 %v5447, %v5505
        %v5507 = vpop.f32.mrf.mxu0
        %v5508 = vadd.f32 %v5449, %v5507
        %5509 = vmatmul.bf16.gmra.mxu0 %v5219
        %v5510 = vpop.f32.mrf.mxu0
        %v5511 = vadd.f32 %v5452, %v5510
        %v5512 = vpop.f32.mrf.mxu0
        %v5513 = vadd.f32 %v5454, %v5512
        %5514 = vmatmul.bf16.gmra.mxu0 %v5223
        %v5515 = vpop.f32.mrf.mxu0
        %v5516 = vadd.f32 %v5457, %v5515
        %v5517 = vpop.f32.mrf.mxu0
        %v5518 = vadd.f32 %v5459, %v5517
        %5519 = vmatmul.bf16.gmra.mxu0 %v5227
        %v5520 = vpop.f32.mrf.mxu0
        %v5521 = vadd.f32 %v5462, %v5520
        %v5522 = vpop.f32.mrf.mxu0
        %v5523 = vadd.f32 %v5464, %v5522
        %5524 = vmatmul.bf16.gmra.mxu0 %v5231
        %v5525 = vpop.f32.mrf.mxu0
        %v5526 = vadd.f32 %v5467, %v5525
        %v5527 = vpop.f32.mrf.mxu0
        %v5528 = vadd.f32 %v5469, %v5527
        %5529 = vdwg.mxu0
        %5530 = vmatpush.bf16.msra.mxu0 %v5363
        %5531 = vmatpush.bf16.msra.mxu0 %v5361
        %5532 = vmatpush.bf16.msra.mxu0 %v5359
        %5533 = vmatpush.bf16.msra.mxu0 %v5357
        %5534 = vmatpush.bf16.msra.mxu0 %v5355
        %5535 = vmatpush.bf16.msra.mxu0 %v5353
        %5536 = vmatpush.bf16.msra.mxu0 %v5351
        %5537 = vmatpush.bf16.msra.mxu0 %v5349
        %5538 = vmatmul.bf16.gmra.mxu0 %v5192
        %v5539 = vpop.f32.mrf.mxu0
        %v5540 = vadd.f32 0.0, %v5539
        %v5541 = vpop.f32.mrf.mxu0
        %v5542 = vadd.f32 0.0, %v5541
        %5543 = vmatmul.bf16.gmra.mxu0 %v5197
        %v5544 = vpop.f32.mrf.mxu0
        %v5545 = vadd.f32 0.0, %v5544
        %v5546 = vpop.f32.mrf.mxu0
        %v5547 = vadd.f32 0.0, %v5546
        %5548 = vmatmul.bf16.gmra.mxu0 %v5201
        %v5549 = vpop.f32.mrf.mxu0
        %v5550 = vadd.f32 0.0, %v5549
        %v5551 = vpop.f32.mrf.mxu0
        %v5552 = vadd.f32 0.0, %v5551
        %5553 = vmatmul.bf16.gmra.mxu0 %v5205
        %v5554 = vpop.f32.mrf.mxu0
        %v5555 = vadd.f32 0.0, %v5554
        %v5556 = vpop.f32.mrf.mxu0
        %v5557 = vadd.f32 0.0, %v5556
        %5558 = vmatmul.bf16.gmra.mxu0 %v5209
        %v5559 = vpop.f32.mrf.mxu0
        %v5560 = vadd.f32 0.0, %v5559
        %v5561 = vpop.f32.mrf.mxu0
        %v5562 = vadd.f32 0.0, %v5561
        %5563 = vmatmul.bf16.gmra.mxu0 %v5213
        %v5564 = vpop.f32.mrf.mxu0
        %v5565 = vadd.f32 0.0, %v5564
        %v5566 = vpop.f32.mrf.mxu0
        %v5567 = vadd.f32 0.0, %v5566
        %5568 = vmatmul.bf16.gmra.mxu0 %v5217
        %v5569 = vpop.f32.mrf.mxu0
        %v5570 = vadd.f32 0.0, %v5569
        %v5571 = vpop.f32.mrf.mxu0
        %v5572 = vadd.f32 0.0, %v5571
        %5573 = vmatmul.bf16.gmra.mxu0 %v5221
        %v5574 = vpop.f32.mrf.mxu0
        %v5575 = vadd.f32 0.0, %v5574
        %v5576 = vpop.f32.mrf.mxu0
        %v5577 = vadd.f32 0.0, %v5576
        %5578 = vmatmul.bf16.gmra.mxu0 %v5225
        %v5579 = vpop.f32.mrf.mxu0
        %v5580 = vadd.f32 0.0, %v5579
        %v5581 = vpop.f32.mrf.mxu0
        %v5582 = vadd.f32 0.0, %v5581
        %5583 = vmatmul.bf16.gmra.mxu0 %v5229
        %v5584 = vpop.f32.mrf.mxu0
        %v5585 = vadd.f32 0.0, %v5584
        %v5586 = vpop.f32.mrf.mxu0
        %v5587 = vadd.f32 0.0, %v5586
        %5588 = vdwg.mxu0
        %5589 = vmatpush.bf16.msra.mxu0 %v5379
        %5590 = vmatpush.bf16.msra.mxu0 %v5377
        %5591 = vmatpush.bf16.msra.mxu0 %v5375
        %5592 = vmatpush.bf16.msra.mxu0 %v5373
        %5593 = vmatpush.bf16.msra.mxu0 %v5371
        %5594 = vmatpush.bf16.msra.mxu0 %v5369
        %5595 = vmatpush.bf16.msra.mxu0 %v5367
        %5596 = vmatpush.bf16.msra.mxu0 %v5365
        %5597 = vmatmul.bf16.gmra.mxu0 %v5195
        %v5598 = vpop.f32.mrf.mxu0
        %v5599 = vadd.f32 %v5540, %v5598
        %v5600 = vpop.f32.mrf.mxu0
        %v5601 = vadd.f32 %v5542, %v5600
        %5602 = vmatmul.bf16.gmra.mxu0 %v5199
        %v5603 = vpop.f32.mrf.mxu0
        %v5604 = vadd.f32 %v5545, %v5603
        %v5605 = vpop.f32.mrf.mxu0
        %v5606 = vadd.f32 %v5547, %v5605
        %5607 = vmatmul.bf16.gmra.mxu0 %v5203
        %v5608 = vpop.f32.mrf.mxu0
        %v5609 = vadd.f32 %v5550, %v5608
        %v5610 = vpop.f32.mrf.mxu0
        %v5611 = vadd.f32 %v5552, %v5610
        %5612 = vmatmul.bf16.gmra.mxu0 %v5207
        %v5613 = vpop.f32.mrf.mxu0
        %v5614 = vadd.f32 %v5555, %v5613
        %v5615 = vpop.f32.mrf.mxu0
        %v5616 = vadd.f32 %v5557, %v5615
        %5617 = vmatmul.bf16.gmra.mxu0 %v5211
        %v5618 = vpop.f32.mrf.mxu0
        %v5619 = vadd.f32 %v5560, %v5618
        %v5620 = vpop.f32.mrf.mxu0
        %v5621 = vadd.f32 %v5562, %v5620
        %5622 = vmatmul.bf16.gmra.mxu0 %v5215
        %v5623 = vpop.f32.mrf.mxu0
        %v5624 = vadd.f32 %v5565, %v5623
        %v5625 = vpop.f32.mrf.mxu0
        %v5626 = vadd.f32 %v5567, %v5625
        %5627 = vmatmul.bf16.gmra.mxu0 %v5219
        %v5628 = vpop.f32.mrf.mxu0
        %v5629 = vadd.f32 %v5570, %v5628
        %v5630 = vpop.f32.mrf.mxu0
        %v5631 = vadd.f32 %v5572, %v5630
        %5632 = vmatmul.bf16.gmra.mxu0 %v5223
        %v5633 = vpop.f32.mrf.mxu0
        %v5634 = vadd.f32 %v5575, %v5633
        %v5635 = vpop.f32.mrf.mxu0
        %v5636 = vadd.f32 %v5577, %v5635
        %5637 = vmatmul.bf16.gmra.mxu0 %v5227
        %v5638 = vpop.f32.mrf.mxu0
        %v5639 = vadd.f32 %v5580, %v5638
        %v5640 = vpop.f32.mrf.mxu0
        %v5641 = vadd.f32 %v5582, %v5640
        %5642 = vmatmul.bf16.gmra.mxu0 %v5231
        %v5643 = vpop.f32.mrf.mxu0
        %v5644 = vadd.f32 %v5585, %v5643
        %v5645 = vpop.f32.mrf.mxu0
        %v5646 = vadd.f32 %v5587, %v5645
        %5647 = vdwg.mxu0
        %v5648 = vadd.f32 %v5110, %v5481
        %v5649 = vadd.f32 %v5111, %v5599
        %v5650 = vadd.f32 %v5112, %v5483
        %v5651 = vadd.f32 %v5113, %v5601
        %v5652 = vadd.f32 %v5114, %v5486
        %v5653 = vadd.f32 %v5115, %v5604
        %v5654 = vadd.f32 %v5116, %v5488
        %v5655 = vadd.f32 %v5117, %v5606
        %v5656 = vadd.f32 %v5118, %v5491
        %v5657 = vadd.f32 %v5119, %v5609
        %v5658 = vadd.f32 %v5120, %v5493
        %v5659 = vadd.f32 %v5121, %v5611
        %v5660 = vadd.f32 %v5122, %v5496
        %v5661 = vadd.f32 %v5123, %v5614
        %v5662 = vadd.f32 %v5124, %v5498
        %v5663 = vadd.f32 %v5125, %v5616
        %v5664 = vadd.f32 %v5126, %v5501
        %v5665 = vadd.f32 %v5127, %v5619
        %v5666 = vadd.f32 %v5128, %v5503
        %v5667 = vadd.f32 %v5129, %v5621
        %v5668 = vadd.f32 %v5130, %v5506
        %v5669 = vadd.f32 %v5131, %v5624
        %v5670 = vadd.f32 %v5132, %v5508
        %v5671 = vadd.f32 %v5133, %v5626
        %v5672 = vadd.f32 %v5134, %v5511
        %v5673 = vadd.f32 %v5135, %v5629
        %v5674 = vadd.f32 %v5136, %v5513
        %v5675 = vadd.f32 %v5137, %v5631
        %v5676 = vadd.f32 %v5138, %v5516
        %v5677 = vadd.f32 %v5139, %v5634
        %v5678 = vadd.f32 %v5140, %v5518
        %v5679 = vadd.f32 %v5141, %v5636
        %v5680 = vadd.f32 %v5142, %v5521
        %v5681 = vadd.f32 %v5143, %v5639
        %v5682 = vadd.f32 %v5144, %v5523
        %v5683 = vadd.f32 %v5145, %v5641
        %v5684 = vadd.f32 %v5146, %v5526
        %v5685 = vadd.f32 %v5147, %v5644
        %v5686 = vadd.f32 %v5148, %v5528
        %v5687 = vadd.f32 %v5149, %v5646
        %v5688 = vld [vmem:[#allocation4] sm:$0x3]
        %v5690 = vperm.slane %v5688, 0
        %v5691 = vperm.slane %v5688, 1
        %v5694 = vmul.f32 %v5648, %v5690
        %v5695 = vmul.f32 %v5649, %v5691
        %v5696 = vmul.f32 %v5650, %v5690
        %v5697 = vmul.f32 %v5651, %v5691
        %v5698 = vmul.f32 %v5652, %v5690
        %v5699 = vmul.f32 %v5653, %v5691
        %v5700 = vmul.f32 %v5654, %v5690
        %v5701 = vmul.f32 %v5655, %v5691
        %v5702 = vmul.f32 %v5656, %v5690
        %v5703 = vmul.f32 %v5657, %v5691
        %v5704 = vmul.f32 %v5658, %v5690
        %v5705 = vmul.f32 %v5659, %v5691
        %v5706 = vmul.f32 %v5660, %v5690
        %v5707 = vmul.f32 %v5661, %v5691
        %v5708 = vmul.f32 %v5662, %v5690
        %v5709 = vmul.f32 %v5663, %v5691
        %v5710 = vmul.f32 %v5664, %v5690
        %v5711 = vmul.f32 %v5665, %v5691
        %v5712 = vmul.f32 %v5666, %v5690
        %v5713 = vmul.f32 %v5667, %v5691
        %v5714 = vmul.f32 %v5668, %v5690
        %v5715 = vmul.f32 %v5669, %v5691
        %v5716 = vmul.f32 %v5670, %v5690
        %v5717 = vmul.f32 %v5671, %v5691
        %v5718 = vmul.f32 %v5672, %v5690
        %v5719 = vmul.f32 %v5673, %v5691
        %v5720 = vmul.f32 %v5674, %v5690
        %v5721 = vmul.f32 %v5675, %v5691
        %v5722 = vmul.f32 %v5676, %v5690
        %v5723 = vmul.f32 %v5677, %v5691
        %v5724 = vmul.f32 %v5678, %v5690
        %v5725 = vmul.f32 %v5679, %v5691
        %v5726 = vmul.f32 %v5680, %v5690
        %v5727 = vmul.f32 %v5681, %v5691
        %v5728 = vmul.f32 %v5682, %v5690
        %v5729 = vmul.f32 %v5683, %v5691
        %v5730 = vmul.f32 %v5684, %v5690
        %v5731 = vmul.f32 %v5685, %v5691
        %v5732 = vmul.f32 %v5686, %v5690
        %v5733 = vmul.f32 %v5687, %v5691
        %v5734 = vld [vmem:[#allocation6] sm:$0x3]
        %v5736 = vperm.slane %v5734, 0
        %v5737 = vperm.slane %v5734, 1
        %v5740 = vadd.f32 %v5694, %v5736
        %v5741 = vadd.f32 %v5695, %v5737
        %v5742 = vadd.f32 %v5696, %v5736
        %v5743 = vadd.f32 %v5697, %v5737
        %v5744 = vadd.f32 %v5698, %v5736
        %v5745 = vadd.f32 %v5699, %v5737
        %v5746 = vadd.f32 %v5700, %v5736
        %v5747 = vadd.f32 %v5701, %v5737
        %v5748 = vadd.f32 %v5702, %v5736
        %v5749 = vadd.f32 %v5703, %v5737
        %v5750 = vadd.f32 %v5704, %v5736
        %v5751 = vadd.f32 %v5705, %v5737
        %v5752 = vadd.f32 %v5706, %v5736
        %v5753 = vadd.f32 %v5707, %v5737
        %v5754 = vadd.f32 %v5708, %v5736
        %v5755 = vadd.f32 %v5709, %v5737
        %v5756 = vadd.f32 %v5710, %v5736
        %v5757 = vadd.f32 %v5711, %v5737
        %v5758 = vadd.f32 %v5712, %v5736
        %v5759 = vadd.f32 %v5713, %v5737
        %v5760 = vadd.f32 %v5714, %v5736
        %v5761 = vadd.f32 %v5715, %v5737
        %v5762 = vadd.f32 %v5716, %v5736
        %v5763 = vadd.f32 %v5717, %v5737
        %v5764 = vadd.f32 %v5718, %v5736
        %v5765 = vadd.f32 %v5719, %v5737
        %v5766 = vadd.f32 %v5720, %v5736
        %v5767 = vadd.f32 %v5721, %v5737
        %v5768 = vadd.f32 %v5722, %v5736
        %v5769 = vadd.f32 %v5723, %v5737
        %v5770 = vadd.f32 %v5724, %v5736
        %v5771 = vadd.f32 %v5725, %v5737
        %v5772 = vadd.f32 %v5726, %v5736
        %v5773 = vadd.f32 %v5727, %v5737
        %v5774 = vadd.f32 %v5728, %v5736
        %v5775 = vadd.f32 %v5729, %v5737
        %v5776 = vadd.f32 %v5730, %v5736
        %v5777 = vadd.f32 %v5731, %v5737
        %v5778 = vadd.f32 %v5732, %v5736
        %v5779 = vadd.f32 %v5733, %v5737
        %v5780 = vmax.f32 %v5740, 0.0
        %v5781 = vmax.f32 %v5741, 0.0
        %v5782 = vmax.f32 %v5742, 0.0
        %v5783 = vmax.f32 %v5743, 0.0
        %v5784 = vmax.f32 %v5744, 0.0
        %v5785 = vmax.f32 %v5745, 0.0
        %v5786 = vmax.f32 %v5746, 0.0
        %v5787 = vmax.f32 %v5747, 0.0
        %v5788 = vmax.f32 %v5748, 0.0
        %v5789 = vmax.f32 %v5749, 0.0
        %v5790 = vmax.f32 %v5750, 0.0
        %v5791 = vmax.f32 %v5751, 0.0
        %v5792 = vmax.f32 %v5752, 0.0
        %v5793 = vmax.f32 %v5753, 0.0
        %v5794 = vmax.f32 %v5754, 0.0
        %v5795 = vmax.f32 %v5755, 0.0
        %v5796 = vmax.f32 %v5756, 0.0
        %v5797 = vmax.f32 %v5757, 0.0
        %v5798 = vmax.f32 %v5758, 0.0
        %v5799 = vmax.f32 %v5759, 0.0
        %v5800 = vmax.f32 %v5760, 0.0
        %v5801 = vmax.f32 %v5761, 0.0
        %v5802 = vmax.f32 %v5762, 0.0
        %v5803 = vmax.f32 %v5763, 0.0
        %v5804 = vmax.f32 %v5764, 0.0
        %v5805 = vmax.f32 %v5765, 0.0
        %v5806 = vmax.f32 %v5766, 0.0
        %v5807 = vmax.f32 %v5767, 0.0
        %v5808 = vmax.f32 %v5768, 0.0
        %v5809 = vmax.f32 %v5769, 0.0
        %v5810 = vmax.f32 %v5770, 0.0
        %v5811 = vmax.f32 %v5771, 0.0
        %v5812 = vmax.f32 %v5772, 0.0
        %v5813 = vmax.f32 %v5773, 0.0
        %v5814 = vmax.f32 %v5774, 0.0
        %v5815 = vmax.f32 %v5775, 0.0
        %v5816 = vmax.f32 %v5776, 0.0
        %v5817 = vmax.f32 %v5777, 0.0
        %v5818 = vmax.f32 %v5778, 0.0
        %v5819 = vmax.f32 %v5779, 0.0
        %v5820 = vmax.f32 %v5780, %v5781
        %v5821 = vmax.f32 %v5782, %v5783
        %v5822 = vmax.f32 %v5784, %v5785
        %v5823 = vmax.f32 %v5786, %v5787
        %v5824 = vmax.f32 %v5788, %v5789
        %v5825 = vmax.f32 %v5790, %v5791
        %v5826 = vmax.f32 %v5792, %v5793
        %v5827 = vmax.f32 %v5794, %v5795
        %v5828 = vmax.f32 %v5796, %v5797
        %v5829 = vmax.f32 %v5798, %v5799
        %v5830 = vmax.f32 %v5800, %v5801
        %v5831 = vmax.f32 %v5802, %v5803
        %v5832 = vmax.f32 %v5804, %v5805
        %v5833 = vmax.f32 %v5806, %v5807
        %v5834 = vmax.f32 %v5808, %v5809
        %v5835 = vmax.f32 %v5810, %v5811
        %v5836 = vmax.f32 %v5812, %v5813
        %v5837 = vmax.f32 %v5814, %v5815
        %v5838 = vmax.f32 %v5816, %v5817
        %v5839 = vmax.f32 %v5818, %v5819
        %vm5842 = vcmask 1045504
        %v5843 = vrot.slane %v5821, 2
        %v5844 = vrot.slane %v5822, 2
        %v5845 = vsel %vm5842, %v5843, %v5844
        %v5847 = vmax.f32 %v5820, %v5845
        %v5848 = vpack.c.bf16 %v5847, %v5847
        %5849 = vst [vmem:[%s243] sm:$0xf] %v5848
        %v5852 = vrot.slane %v5823, 2
        %v5853 = vrot.slane %v5824, 2
        %v5854 = vsel %vm5842, %v5852, %v5853
        %v5857 = vmax.f32 %v5822, %v5854
        %v5858 = vmax.f32 %v5823, %v5853
        %v5859 = vpack.c.bf16 %v5857, %v5857
        %v5860 = vpack.c.bf16 %v5858, %v5858
        %vm5863 = vcmask 1041408
        %vm5864 = vcmask 1045508
        %vm5865 = vmor %vm5863, %vm5864
        %v5866 = vrot.slane %v5859, 6
        %v5867 = vrot.slane %v5866, 4
        %v5868 = vrot.slane %v5860, 6
        %v5869 = vsel %vm5865, %v5867, %v5868
        %5871 = vst [vmem:[%s243 + $0x4] sm:$0xf] %v5869
        %v5874 = vrot.slane %v5826, 2
        %v5875 = vrot.slane %v5827, 2
        %v5876 = vsel %vm5842, %v5874, %v5875
        %v5878 = vmax.f32 %v5825, %v5876
        %v5879 = vpack.c.bf16 %v5878, %v5878
        %5880 = vst [vmem:[%s243 + $0x8] sm:$0xf] %v5879
        %v5883 = vrot.slane %v5828, 2
        %v5884 = vrot.slane %v5829, 2
        %v5885 = vsel %vm5842, %v5883, %v5884
        %v5888 = vmax.f32 %v5827, %v5885
        %v5889 = vmax.f32 %v5828, %v5884
        %v5890 = vpack.c.bf16 %v5888, %v5888
        %v5891 = vpack.c.bf16 %v5889, %v5889
        %v5894 = vrot.slane %v5890, 6
        %v5895 = vrot.slane %v5894, 4
        %v5896 = vrot.slane %v5891, 6
        %v5897 = vsel %vm5865, %v5895, %v5896
        %5899 = vst [vmem:[%s243 + $0xc] sm:$0xf] %v5897
        %v5902 = vrot.slane %v5831, 2
        %v5903 = vrot.slane %v5832, 2
        %v5904 = vsel %vm5842, %v5902, %v5903
        %v5906 = vmax.f32 %v5830, %v5904
        %v5907 = vpack.c.bf16 %v5906, %v5906
        %5908 = vst [vmem:[%s243 + $0x10] sm:$0xf] %v5907
        %v5911 = vrot.slane %v5833, 2
        %v5912 = vrot.slane %v5834, 2
        %v5913 = vsel %vm5842, %v5911, %v5912
        %v5916 = vmax.f32 %v5832, %v5913
        %v5917 = vmax.f32 %v5833, %v5912
        %v5918 = vpack.c.bf16 %v5916, %v5916
        %v5919 = vpack.c.bf16 %v5917, %v5917
        %v5922 = vrot.slane %v5918, 6
        %v5923 = vrot.slane %v5922, 4
        %v5924 = vrot.slane %v5919, 6
        %v5925 = vsel %vm5865, %v5923, %v5924
        %5927 = vst [vmem:[%s243 + $0x14] sm:$0xf] %v5925
        %v5930 = vrot.slane %v5836, 2
        %v5931 = vrot.slane %v5837, 2
        %v5932 = vsel %vm5842, %v5930, %v5931
        %v5934 = vmax.f32 %v5835, %v5932
        %v5935 = vpack.c.bf16 %v5934, %v5934
        %5936 = vst [vmem:[%s243 + $0x18] sm:$0xf] %v5935
        %v5939 = vrot.slane %v5838, 2
        %v5940 = vrot.slane %v5839, 2
        %v5941 = vsel %vm5842, %v5939, %v5940
        %v5944 = vmax.f32 %v5837, %v5941
        %v5945 = vmax.f32 %v5838, %v5940
        %v5946 = vpack.c.bf16 %v5944, %v5944
        %v5947 = vpack.c.bf16 %v5945, %v5945
        %v5950 = vrot.slane %v5946, 6
        %v5951 = vrot.slane %v5950, 4
        %v5952 = vrot.slane %v5947, 6
        %v5953 = vsel %vm5865, %v5951, %v5952
        %5955 = vst [vmem:[%s243 + $0x1c] sm:$0xf] %v5953
        %p5956 = scmp.lt.s32.totalorder %s17, 1
        %s5957 = scalar_select %p5956, %s17, 1
        %s5958 = smul.addr %s5957, 8
        %s5959 = smul.addr %s5958, 4
        %s5960 = scalar_lea.vmem %s4, %s5959
        // Predicated region
        $region49: #{convolutional_encoder_forward.3} parent=35 // pred_check
          %p5961 = pneg %p124
        $region50: #{convolutional_encoder_forward.3} parent=35 // pred_check_branch
          %5963 = sbr.rel (%p5961) target = $region52
        $region51: #{convolutional_encoder_forward.3} parent=35 // pred_region
          _
        $region52: #{convolutional_encoder_forward.3} parent=35 // pred_fallthru
          _
      $region36: #{convolutional_encoder_forward.3} parent=5 // pred_fallthru
        _
      %p5964 = scmp.le.s32.totalorder 2, %s12
      // Predicated region
      $region53: #{convolutional_encoder_forward.3} parent=5 // pred_check
        %p5965 = pneg %p5964
      $region54: #{convolutional_encoder_forward.3} parent=5 // pred_check_branch
        %5967 = sbr.rel (%p5965) target = $region56
      $region55: #{convolutional_encoder_forward.3} parent=5 // pred_region
        %s5968 = ssub.s32 %s12, 2
        // Predicated region
        $region57: #{convolutional_encoder_forward.3} parent=55 // pred_check
          %p5969 = pneg %p130
        $region58: #{convolutional_encoder_forward.3} parent=55 // pred_check_branch
          %5971 = sbr.rel (%p5969) target = $region60
        $region59: #{convolutional_encoder_forward.3} parent=55 // pred_region
          %p5972 = scmp.lt.s32.totalorder %s18, 1
          %s5973 = scalar_select %p5972, %s18, 1
          %s5974 = smul.addr %s5973, 8
          %s5975 = smul.addr %s5974, 4
          %s5976 = scalar_lea.vmem %s4, %s5975
        $region60: #{convolutional_encoder_forward.3} parent=55 // pred_fallthru
          _
      $region56: #{convolutional_encoder_forward.3} parent=5 // pred_fallthru
        _
    $region6: #{convolutional_encoder_forward.3} parent=1 // loop_footer
      %s16 = sadd.s32 1, %s12
    $region7: #{convolutional_encoder_forward.3} parent=1 // loop_footer_branch
      %11 = sbr.rel target = $region3
    $region8: #{convolutional_encoder_forward.3} parent=1 // loop_exit
      _
    %5977 = vsyncpa [#allocation3], 1
    %s5978 = scalar_lea.sflag [#allocation3], 1
    %5979 = vsyncpa %s5978, 1
    %5980 = vsyncpa [#allocation5], 1

</llo_original>
